<compile_context>
chip_gen: v7x
topology: tpu7x:2x2x1
jax: 0.10.0
libtpu: 0.0.40
codegen_flags: <defaults>
</compile_context>

<pallas_src>
import numpy as np

import jax
import jax.numpy as jnp
from jax.experimental import pallas as pl
from jax.experimental.pallas import tpu as pltpu


# ---------------------------------------------------------------------------
# Fused kernel: conv1(GEMM) -> conv2/3/4 (9 selection-matmul taps each)
#               -> linear (4 selection taps), everything VMEM-resident.
# ---------------------------------------------------------------------------
def _cnn_fused_kernel(p1_ref, w1_ref, b1_ref,
                      s2_ref, w2_ref, b2_ref,
                      s3_ref, w3_ref, b3_ref,
                      s4_ref, w4_ref, b4_ref,
                      e_ref, wl_ref, bl_ref,
                      out_ref):
    f32, bf16 = jnp.float32, jnp.bfloat16

    # conv1 + ReLU: plain GEMM on precomputed input patches.  [B*256, 16]
    a = jnp.dot(p1_ref[...], w1_ref[...], preferred_element_type=f32)
    a = jnp.maximum(a + b1_ref[...], 0.0).astype(bf16)

    def conv_relu(a, s_ref, w_ref, b_ref):
        # s_ref: [9, R_out, R_in] 0/1 gather, w_ref: [9, C_in, C_out]
        r_out = s_ref.shape[1]
        c_out = w_ref.shape[2]
        acc = jnp.zeros((r_out, c_out), f32)
        for t in range(9):                       # unrolled: 9 taps
            rows = jnp.dot(s_ref[t], a, preferred_element_type=f32)
            acc = acc + jnp.dot(rows.astype(bf16), w_ref[t],
                                preferred_element_type=f32)
        return jnp.maximum(acc + b_ref[...], 0.0).astype(bf16)

    a = conv_relu(a, s2_ref, w2_ref, b2_ref)     # [B*64, 32]
    a = conv_relu(a, s3_ref, w3_ref, b3_ref)     # [B*16, 64]
    a = conv_relu(a, s4_ref, w4_ref, b4_ref)     # [B*4, 128]

    # Linear on the NCHW-flattened features (permutation folded into WL / E).
    y = jnp.zeros(out_ref.shape, f32)
    for s in range(e_ref.shape[0]):              # 4 spatial positions
        rows = jnp.dot(e_ref[s], a, preferred_element_type=f32)   # [B, 128]
        y = y + jnp.dot(rows.astype(bf16), wl_ref[s],
                        preferred_element_type=f32)               # [B, 10]
    out_ref[...] = y + bl_ref[...]


# ---------------------------------------------------------------------------
# Trace-time helpers (constants / cheap XLA glue on the raw input only)
# ---------------------------------------------------------------------------
def _im2col_input(x):
    """x: [B, C, H, W] -> patches [B*Ho*Wo, C*9] (C-major, then kh, kw)."""
    B, C, H, W = x.shape
    Ho = (H + 2 - 3) // 2 + 1
    Wo = (W + 2 - 3) // 2 + 1
    xp = jnp.pad(x, ((0, 0), (0, 0), (1, 1), (1, 1)))
    taps = [xp[:, :, di:di + 2 * Ho:2, dj:dj + 2 * Wo:2]
            for di in range(3) for dj in range(3)]
    p = jnp.stack(taps, axis=2)                      # [B, C, 9, Ho, Wo]
    p = p.transpose(0, 3, 4, 1, 2).reshape(B * Ho * Wo, C * 9)
    return p, Ho, Wo


def _conv_selection_matrices(B, Hi, Wi):
    """0/1 gather matrices for a k=3, s=2, p=1 conv: [9, B*Ho*Wo, B*Hi*Wi]."""
    Ho, Wo = Hi // 2, Wi // 2
    S = np.zeros((9, B * Ho * Wo, B * Hi * Wi), np.float32)
    for di in range(3):
        for dj in range(3):
            t = di * 3 + dj
            for b in range(B):
                for io in range(Ho):
                    ii = 2 * io + di - 1
                    if not 0 <= ii < Hi:
                        continue
                    for jo in range(Wo):
                        ji = 2 * jo + dj - 1
                        if not 0 <= ji < Wi:
                            continue
                        S[t, (b * Ho + io) * Wo + jo,
                          (b * Hi + ii) * Wi + ji] = 1.0
    return S


def _flatten_selection(B, n_spatial):
    """E[s, b, b*n_spatial + s] = 1 : picks spatial position s of each image."""
    E = np.zeros((n_spatial, B, B * n_spatial), np.float32)
    for s in range(n_spatial):
        for b in range(B):
            E[s, b, b * n_spatial + s] = 1.0
    return E


# ---------------------------------------------------------------------------
# Forward pass (matches torch CNN.forward semantics)
# ---------------------------------------------------------------------------
@jax.jit
def cnn_forward(params, x):
    B = x.shape[0]
    bf16, f32 = jnp.bfloat16, jnp.float32

    w1, b1 = params["conv1"]
    wl, bl = params["linear"]

    # conv1 patches from the raw input (only layer whose gather runs in XLA).
    p1, Ho, Wo = _im2col_input(x)
    w1m = w1.reshape(w1.shape[0], -1).T                        # [9, 16]

    def conv_taps(w):                                          # [O,Cin,3,3]->[9,Cin,O]
        O, Cin, _, _ = w.shape
        return jnp.transpose(w, (2, 3, 1, 0)).reshape(9, Cin, O)

    inputs = [p1.astype(bf16), w1m.astype(bf16), b1.reshape(1, -1).astype(f32)]

    spatial = (Ho, Wo)
    for name in ("conv2", "conv3", "conv4"):
        w, b = params[name]
        Hi, Wi = spatial
        S = _conv_selection_matrices(B, Hi, Wi)                # trace-time constant
        inputs += [jnp.asarray(S, bf16), conv_taps(w).astype(bf16),
                   b.reshape(1, -1).astype(f32)]
        spatial = (Hi // 2, Wi // 2)

    n_sp = spatial[0] * spatial[1]                             # 4
    E = _flatten_selection(B, n_sp)
    # Fold the PyTorch NCHW .view ordering into the linear weight:
    #   WL[s, c, o] = wl[o, c*n_sp + s]
    WL = jnp.transpose(wl.reshape(wl.shape[0], -1, n_sp), (2, 1, 0))
    inputs += [jnp.asarray(E, bf16), WL.astype(bf16),
               bl.reshape(1, -1).astype(f32)]

    vmem = pl.BlockSpec(memory_space=pltpu.MemorySpace.VMEM)
    return pl.pallas_call(
        _cnn_fused_kernel,
        out_shape=jax.ShapeDtypeStruct((B, wl.shape[0]), f32),
        in_specs=[vmem] * len(inputs),
        out_specs=vmem,
    )(*inputs)


# ---------------------------------------------------------------------------
# Parameter init (deterministic, PyTorch default-ish uniform fan-in scaling)
# ---------------------------------------------------------------------------
def init_params(key):
    def conv_p(key, o, c, k=3):
        k1, k2 = jax.random.split(key)
        bound = 1.0 / (c * k * k) ** 0.5
        w = jax.random.uniform(k1, (o, c, k, k), jnp.float32, -bound, bound)
        b = jax.random.uniform(k2, (o,), jnp.float32, -bound, bound)
        return w, b

    def lin_p(key, in_f, out_f):
        k1, k2 = jax.random.split(key)
        bound = 1.0 / in_f ** 0.5
        w = jax.random.uniform(k1, (out_f, in_f), jnp.float32, -bound, bound)
        b = jax.random.uniform(k2, (out_f,), jnp.float32, -bound, bound)
        return w, b

    keys = jax.random.split(key, 5)
    return {
        "conv1": conv_p(keys[0], 16, 1),
        "conv2": conv_p(keys[1], 32, 16),
        "conv3": conv_p(keys[2], 64, 32),
        "conv4": conv_p(keys[3], 128, 64),
        "linear": lin_p(keys[4], 128 * 2 * 2, 10),
    }


if __name__ == "__main__":
    key = jax.random.PRNGKey(0)
    pkey, xkey = jax.random.split(key)
    params = init_params(pkey)
    # Input must be 32x32 so that 4 stride-2 convs give 2x2 -> 128*2*2 = 512.
    x = jax.random.normal(xkey, (2, 1, 32, 32), dtype=jnp.float32)
    out = cnn_forward(params, x)
    out = jax.block_until_ready(out)
    assert out.shape == (2, 10), out.shape
    print("KERNEL_OK")
</pallas_src>

<mosaic_0001>
module attributes {stable_mosaic.version = 11 : i64} {
  func.func @_cnn_fused_kernel(%arg0: memref<512x9xbf16, #tpu.memory_space<vmem>>, %arg1: memref<9x16xbf16, #tpu.memory_space<vmem>>, %arg2: memref<1x16xf32, #tpu.memory_space<vmem>>, %arg3: memref<9x128x512xbf16, #tpu.memory_space<vmem>>, %arg4: memref<9x16x32xbf16, #tpu.memory_space<vmem>>, %arg5: memref<1x32xf32, #tpu.memory_space<vmem>>, %arg6: memref<9x32x128xbf16, #tpu.memory_space<vmem>>, %arg7: memref<9x32x64xbf16, #tpu.memory_space<vmem>>, %arg8: memref<1x64xf32, #tpu.memory_space<vmem>>, %arg9: memref<9x8x32xbf16, #tpu.memory_space<vmem>>, %arg10: memref<9x64x128xbf16, #tpu.memory_space<vmem>>, %arg11: memref<1x128xf32, #tpu.memory_space<vmem>>, %arg12: memref<4x2x8xbf16, #tpu.memory_space<vmem>>, %arg13: memref<4x128x10xbf16, #tpu.memory_space<vmem>>, %arg14: memref<1x10xf32, #tpu.memory_space<vmem>>, %arg15: memref<2x10xf32, #tpu.memory_space<vmem>>) attributes {dimension_semantics = [], scalar_prefetch = 0 : i64, scratch_operands = 0 : i64, tpu.core_type = #tpu.core_type<tc>} {
    %c0 = arith.constant 0 : index
    %c0_0 = arith.constant 0 : index
    %0 = vector.load %arg0[%c0, %c0_0] : memref<512x9xbf16, #tpu.memory_space<vmem>>, vector<512x9xbf16>
    %c0_1 = arith.constant 0 : index
    %c0_2 = arith.constant 0 : index
    %1 = vector.load %arg1[%c0_1, %c0_2] : memref<9x16xbf16, #tpu.memory_space<vmem>>, vector<9x16xbf16>
    %cst = arith.constant dense<0.000000e+00> : vector<512x16xf32>
    %2 = tpu.matmul %0, %1, %cst {dimension_numbers = #tpu.dot_dimension_numbers<[1], [0], [0], [1], [0, 0, 1, 1], [], []>} : vector<512x9xbf16>, vector<9x16xbf16>, vector<512x16xf32> -> vector<512x16xf32>
    %c0_3 = arith.constant 0 : index
    %c0_4 = arith.constant 0 : index
    %3 = vector.load %arg2[%c0_3, %c0_4] : memref<1x16xf32, #tpu.memory_space<vmem>>, vector<1x16xf32>
    %4 = vector.broadcast %3 : vector<1x16xf32> to vector<512x16xf32>
    %5 = arith.addf %2, %4 : vector<512x16xf32>
    %cst_5 = arith.constant 0.000000e+00 : f32
    %6 = vector.broadcast %cst_5 : f32 to vector<512x16xf32>
    %7 = arith.maximumf %5, %6 : vector<512x16xf32>
    %8 = arith.truncf %7 : vector<512x16xf32> to vector<512x16xbf16>
    %cst_6 = arith.constant 0.000000e+00 : f32
    %9 = vector.broadcast %cst_6 : f32 to vector<128x32xf32>
    %c0_7 = arith.constant 0 : index
    %c0_8 = arith.constant 0 : index
    %c0_9 = arith.constant 0 : index
    %10 = vector.load %arg3[%c0_7, %c0_8, %c0_9] : memref<9x128x512xbf16, #tpu.memory_space<vmem>>, vector<1x128x512xbf16>
    %11 = vector.shape_cast %10 : vector<1x128x512xbf16> to vector<128x512xbf16>
    %cst_10 = arith.constant dense<0.000000e+00> : vector<128x16xf32>
    %12 = tpu.matmul %11, %8, %cst_10 {dimension_numbers = #tpu.dot_dimension_numbers<[1], [0], [0], [1], [0, 0, 1, 1], [], []>} : vector<128x512xbf16>, vector<512x16xbf16>, vector<128x16xf32> -> vector<128x16xf32>
    %13 = arith.truncf %12 : vector<128x16xf32> to vector<128x16xbf16>
    %c0_11 = arith.constant 0 : index
    %c0_12 = arith.constant 0 : index
    %c0_13 = arith.constant 0 : index
    %14 = vector.load %arg4[%c0_11, %c0_12, %c0_13] : memref<9x16x32xbf16, #tpu.memory_space<vmem>>, vector<1x16x32xbf16>
    %15 = vector.shape_cast %14 : vector<1x16x32xbf16> to vector<16x32xbf16>
    %cst_14 = arith.constant dense<0.000000e+00> : vector<128x32xf32>
    %16 = tpu.matmul %13, %15, %cst_14 {dimension_numbers = #tpu.dot_dimension_numbers<[1], [0], [0], [1], [0, 0, 1, 1], [], []>} : vector<128x16xbf16>, vector<16x32xbf16>, vector<128x32xf32> -> vector<128x32xf32>
    %17 = arith.addf %9, %16 : vector<128x32xf32>
    %c1 = arith.constant 1 : index
    %c0_15 = arith.constant 0 : index
    %c0_16 = arith.constant 0 : index
    %18 = vector.load %arg3[%c1, %c0_15, %c0_16] : memref<9x128x512xbf16, #tpu.memory_space<vmem>>, vector<1x128x512xbf16>
    %19 = vector.shape_cast %18 : vector<1x128x512xbf16> to vector<128x512xbf16>
    %cst_17 = arith.constant dense<0.000000e+00> : vector<128x16xf32>
    %20 = tpu.matmul %19, %8, %cst_17 {dimension_numbers = #tpu.dot_dimension_numbers<[1], [0], [0], [1], [0, 0, 1, 1], [], []>} : vector<128x512xbf16>, vector<512x16xbf16>, vector<128x16xf32> -> vector<128x16xf32>
    %21 = arith.truncf %20 : vector<128x16xf32> to vector<128x16xbf16>
    %c1_18 = arith.constant 1 : index
    %c0_19 = arith.constant 0 : index
    %c0_20 = arith.constant 0 : index
    %22 = vector.load %arg4[%c1_18, %c0_19, %c0_20] : memref<9x16x32xbf16, #tpu.memory_space<vmem>>, vector<1x16x32xbf16>
    %23 = vector.shape_cast %22 : vector<1x16x32xbf16> to vector<16x32xbf16>
    %cst_21 = arith.constant dense<0.000000e+00> : vector<128x32xf32>
    %24 = tpu.matmul %21, %23, %cst_21 {dimension_numbers = #tpu.dot_dimension_numbers<[1], [0], [0], [1], [0, 0, 1, 1], [], []>} : vector<128x16xbf16>, vector<16x32xbf16>, vector<128x32xf32> -> vector<128x32xf32>
    %25 = arith.addf %17, %24 : vector<128x32xf32>
    %c2 = arith.constant 2 : index
    %c0_22 = arith.constant 0 : index
    %c0_23 = arith.constant 0 : index
    %26 = vector.load %arg3[%c2, %c0_22, %c0_23] : memref<9x128x512xbf16, #tpu.memory_space<vmem>>, vector<1x128x512xbf16>
    %27 = vector.shape_cast %26 : vector<1x128x512xbf16> to vector<128x512xbf16>
    %cst_24 = arith.constant dense<0.000000e+00> : vector<128x16xf32>
    %28 = tpu.matmul %27, %8, %cst_24 {dimension_numbers = #tpu.dot_dimension_numbers<[1], [0], [0], [1], [0, 0, 1, 1], [], []>} : vector<128x512xbf16>, vector<512x16xbf16>, vector<128x16xf32> -> vector<128x16xf32>
    %29 = arith.truncf %28 : vector<128x16xf32> to vector<128x16xbf16>
    %c2_25 = arith.constant 2 : index
    %c0_26 = arith.constant 0 : index
    %c0_27 = arith.constant 0 : index
    %30 = vector.load %arg4[%c2_25, %c0_26, %c0_27] : memref<9x16x32xbf16, #tpu.memory_space<vmem>>, vector<1x16x32xbf16>
    %31 = vector.shape_cast %30 : vector<1x16x32xbf16> to vector<16x32xbf16>
    %cst_28 = arith.constant dense<0.000000e+00> : vector<128x32xf32>
    %32 = tpu.matmul %29, %31, %cst_28 {dimension_numbers = #tpu.dot_dimension_numbers<[1], [0], [0], [1], [0, 0, 1, 1], [], []>} : vector<128x16xbf16>, vector<16x32xbf16>, vector<128x32xf32> -> vector<128x32xf32>
    %33 = arith.addf %25, %32 : vector<128x32xf32>
    %c3 = arith.constant 3 : index
    %c0_29 = arith.constant 0 : index
    %c0_30 = arith.constant 0 : index
    %34 = vector.load %arg3[%c3, %c0_29, %c0_30] : memref<9x128x512xbf16, #tpu.memory_space<vmem>>, vector<1x128x512xbf16>
    %35 = vector.shape_cast %34 : vector<1x128x512xbf16> to vector<128x512xbf16>
    %cst_31 = arith.constant dense<0.000000e+00> : vector<128x16xf32>
    %36 = tpu.matmul %35, %8, %cst_31 {dimension_numbers = #tpu.dot_dimension_numbers<[1], [0], [0], [1], [0, 0, 1, 1], [], []>} : vector<128x512xbf16>, vector<512x16xbf16>, vector<128x16xf32> -> vector<128x16xf32>
    %37 = arith.truncf %36 : vector<128x16xf32> to vector<128x16xbf16>
    %c3_32 = arith.constant 3 : index
    %c0_33 = arith.constant 0 : index
    %c0_34 = arith.constant 0 : index
    %38 = vector.load %arg4[%c3_32, %c0_33, %c0_34] : memref<9x16x32xbf16, #tpu.memory_space<vmem>>, vector<1x16x32xbf16>
    %39 = vector.shape_cast %38 : vector<1x16x32xbf16> to vector<16x32xbf16>
    %cst_35 = arith.constant dense<0.000000e+00> : vector<128x32xf32>
    %40 = tpu.matmul %37, %39, %cst_35 {dimension_numbers = #tpu.dot_dimension_numbers<[1], [0], [0], [1], [0, 0, 1, 1], [], []>} : vector<128x16xbf16>, vector<16x32xbf16>, vector<128x32xf32> -> vector<128x32xf32>
    %41 = arith.addf %33, %40 : vector<128x32xf32>
    %c4 = arith.constant 4 : index
    %c0_36 = arith.constant 0 : index
    %c0_37 = arith.constant 0 : index
    %42 = vector.load %arg3[%c4, %c0_36, %c0_37] : memref<9x128x512xbf16, #tpu.memory_space<vmem>>, vector<1x128x512xbf16>
    %43 = vector.shape_cast %42 : vector<1x128x512xbf16> to vector<128x512xbf16>
    %cst_38 = arith.constant dense<0.000000e+00> : vector<128x16xf32>
    %44 = tpu.matmul %43, %8, %cst_38 {dimension_numbers = #tpu.dot_dimension_numbers<[1], [0], [0], [1], [0, 0, 1, 1], [], []>} : vector<128x512xbf16>, vector<512x16xbf16>, vector<128x16xf32> -> vector<128x16xf32>
    %45 = arith.truncf %44 : vector<128x16xf32> to vector<128x16xbf16>
    %c4_39 = arith.constant 4 : index
    %c0_40 = arith.constant 0 : index
    %c0_41 = arith.constant 0 : index
    %46 = vector.load %arg4[%c4_39, %c0_40, %c0_41] : memref<9x16x32xbf16, #tpu.memory_space<vmem>>, vector<1x16x32xbf16>
    %47 = vector.shape_cast %46 : vector<1x16x32xbf16> to vector<16x32xbf16>
    %cst_42 = arith.constant dense<0.000000e+00> : vector<128x32xf32>
    %48 = tpu.matmul %45, %47, %cst_42 {dimension_numbers = #tpu.dot_dimension_numbers<[1], [0], [0], [1], [0, 0, 1, 1], [], []>} : vector<128x16xbf16>, vector<16x32xbf16>, vector<128x32xf32> -> vector<128x32xf32>
    %49 = arith.addf %41, %48 : vector<128x32xf32>
    %c5 = arith.constant 5 : index
    %c0_43 = arith.constant 0 : index
    %c0_44 = arith.constant 0 : index
    %50 = vector.load %arg3[%c5, %c0_43, %c0_44] : memref<9x128x512xbf16, #tpu.memory_space<vmem>>, vector<1x128x512xbf16>
    %51 = vector.shape_cast %50 : vector<1x128x512xbf16> to vector<128x512xbf16>
    %cst_45 = arith.constant dense<0.000000e+00> : vector<128x16xf32>
    %52 = tpu.matmul %51, %8, %cst_45 {dimension_numbers = #tpu.dot_dimension_numbers<[1], [0], [0], [1], [0, 0, 1, 1], [], []>} : vector<128x512xbf16>, vector<512x16xbf16>, vector<128x16xf32> -> vector<128x16xf32>
    %53 = arith.truncf %52 : vector<128x16xf32> to vector<128x16xbf16>
    %c5_46 = arith.constant 5 : index
    %c0_47 = arith.constant 0 : index
    %c0_48 = arith.constant 0 : index
    %54 = vector.load %arg4[%c5_46, %c0_47, %c0_48] : memref<9x16x32xbf16, #tpu.memory_space<vmem>>, vector<1x16x32xbf16>
    %55 = vector.shape_cast %54 : vector<1x16x32xbf16> to vector<16x32xbf16>
    %cst_49 = arith.constant dense<0.000000e+00> : vector<128x32xf32>
    %56 = tpu.matmul %53, %55, %cst_49 {dimension_numbers = #tpu.dot_dimension_numbers<[1], [0], [0], [1], [0, 0, 1, 1], [], []>} : vector<128x16xbf16>, vector<16x32xbf16>, vector<128x32xf32> -> vector<128x32xf32>
    %57 = arith.addf %49, %56 : vector<128x32xf32>
    %c6 = arith.constant 6 : index
    %c0_50 = arith.constant 0 : index
    %c0_51 = arith.constant 0 : index
    %58 = vector.load %arg3[%c6, %c0_50, %c0_51] : memref<9x128x512xbf16, #tpu.memory_space<vmem>>, vector<1x128x512xbf16>
    %59 = vector.shape_cast %58 : vector<1x128x512xbf16> to vector<128x512xbf16>
    %cst_52 = arith.constant dense<0.000000e+00> : vector<128x16xf32>
    %60 = tpu.matmul %59, %8, %cst_52 {dimension_numbers = #tpu.dot_dimension_numbers<[1], [0], [0], [1], [0, 0, 1, 1], [], []>} : vector<128x512xbf16>, vector<512x16xbf16>, vector<128x16xf32> -> vector<128x16xf32>
    %61 = arith.truncf %60 : vector<128x16xf32> to vector<128x16xbf16>
    %c6_53 = arith.constant 6 : index
    %c0_54 = arith.constant 0 : index
    %c0_55 = arith.constant 0 : index
    %62 = vector.load %arg4[%c6_53, %c0_54, %c0_55] : memref<9x16x32xbf16, #tpu.memory_space<vmem>>, vector<1x16x32xbf16>
    %63 = vector.shape_cast %62 : vector<1x16x32xbf16> to vector<16x32xbf16>
    %cst_56 = arith.constant dense<0.000000e+00> : vector<128x32xf32>
    %64 = tpu.matmul %61, %63, %cst_56 {dimension_numbers = #tpu.dot_dimension_numbers<[1], [0], [0], [1], [0, 0, 1, 1], [], []>} : vector<128x16xbf16>, vector<16x32xbf16>, vector<128x32xf32> -> vector<128x32xf32>
    %65 = arith.addf %57, %64 : vector<128x32xf32>
    %c7 = arith.constant 7 : index
    %c0_57 = arith.constant 0 : index
    %c0_58 = arith.constant 0 : index
    %66 = vector.load %arg3[%c7, %c0_57, %c0_58] : memref<9x128x512xbf16, #tpu.memory_space<vmem>>, vector<1x128x512xbf16>
    %67 = vector.shape_cast %66 : vector<1x128x512xbf16> to vector<128x512xbf16>
    %cst_59 = arith.constant dense<0.000000e+00> : vector<128x16xf32>
    %68 = tpu.matmul %67, %8, %cst_59 {dimension_numbers = #tpu.dot_dimension_numbers<[1], [0], [0], [1], [0, 0, 1, 1], [], []>} : vector<128x512xbf16>, vector<512x16xbf16>, vector<128x16xf32> -> vector<128x16xf32>
    %69 = arith.truncf %68 : vector<128x16xf32> to vector<128x16xbf16>
    %c7_60 = arith.constant 7 : index
    %c0_61 = arith.constant 0 : index
    %c0_62 = arith.constant 0 : index
    %70 = vector.load %arg4[%c7_60, %c0_61, %c0_62] : memref<9x16x32xbf16, #tpu.memory_space<vmem>>, vector<1x16x32xbf16>
    %71 = vector.shape_cast %70 : vector<1x16x32xbf16> to vector<16x32xbf16>
    %cst_63 = arith.constant dense<0.000000e+00> : vector<128x32xf32>
    %72 = tpu.matmul %69, %71, %cst_63 {dimension_numbers = #tpu.dot_dimension_numbers<[1], [0], [0], [1], [0, 0, 1, 1], [], []>} : vector<128x16xbf16>, vector<16x32xbf16>, vector<128x32xf32> -> vector<128x32xf32>
    %73 = arith.addf %65, %72 : vector<128x32xf32>
    %c8 = arith.constant 8 : index
    %c0_64 = arith.constant 0 : index
    %c0_65 = arith.constant 0 : index
    %74 = vector.load %arg3[%c8, %c0_64, %c0_65] : memref<9x128x512xbf16, #tpu.memory_space<vmem>>, vector<1x128x512xbf16>
    %75 = vector.shape_cast %74 : vector<1x128x512xbf16> to vector<128x512xbf16>
    %cst_66 = arith.constant dense<0.000000e+00> : vector<128x16xf32>
    %76 = tpu.matmul %75, %8, %cst_66 {dimension_numbers = #tpu.dot_dimension_numbers<[1], [0], [0], [1], [0, 0, 1, 1], [], []>} : vector<128x512xbf16>, vector<512x16xbf16>, vector<128x16xf32> -> vector<128x16xf32>
    %77 = arith.truncf %76 : vector<128x16xf32> to vector<128x16xbf16>
    %c8_67 = arith.constant 8 : index
    %c0_68 = arith.constant 0 : index
    %c0_69 = arith.constant 0 : index
    %78 = vector.load %arg4[%c8_67, %c0_68, %c0_69] : memref<9x16x32xbf16, #tpu.memory_space<vmem>>, vector<1x16x32xbf16>
    %79 = vector.shape_cast %78 : vector<1x16x32xbf16> to vector<16x32xbf16>
    %cst_70 = arith.constant dense<0.000000e+00> : vector<128x32xf32>
    %80 = tpu.matmul %77, %79, %cst_70 {dimension_numbers = #tpu.dot_dimension_numbers<[1], [0], [0], [1], [0, 0, 1, 1], [], []>} : vector<128x16xbf16>, vector<16x32xbf16>, vector<128x32xf32> -> vector<128x32xf32>
    %81 = arith.addf %73, %80 : vector<128x32xf32>
    %c0_71 = arith.constant 0 : index
    %c0_72 = arith.constant 0 : index
    %82 = vector.load %arg5[%c0_71, %c0_72] : memref<1x32xf32, #tpu.memory_space<vmem>>, vector<1x32xf32>
    %83 = vector.broadcast %82 : vector<1x32xf32> to vector<128x32xf32>
    %84 = arith.addf %81, %83 : vector<128x32xf32>
    %cst_73 = arith.constant 0.000000e+00 : f32
    %85 = vector.broadcast %cst_73 : f32 to vector<128x32xf32>
    %86 = arith.maximumf %84, %85 : vector<128x32xf32>
    %87 = arith.truncf %86 : vector<128x32xf32> to vector<128x32xbf16>
    %cst_74 = arith.constant 0.000000e+00 : f32
    %88 = vector.broadcast %cst_74 : f32 to vector<32x64xf32>
    %c0_75 = arith.constant 0 : index
    %c0_76 = arith.constant 0 : index
    %c0_77 = arith.constant 0 : index
    %89 = vector.load %arg6[%c0_75, %c0_76, %c0_77] : memref<9x32x128xbf16, #tpu.memory_space<vmem>>, vector<1x32x128xbf16>
    %90 = vector.shape_cast %89 : vector<1x32x128xbf16> to vector<32x128xbf16>
    %cst_78 = arith.constant dense<0.000000e+00> : vector<32x32xf32>
    %91 = tpu.matmul %90, %87, %cst_78 {dimension_numbers = #tpu.dot_dimension_numbers<[1], [0], [0], [1], [0, 0, 1, 1], [], []>} : vector<32x128xbf16>, vector<128x32xbf16>, vector<32x32xf32> -> vector<32x32xf32>
    %92 = arith.truncf %91 : vector<32x32xf32> to vector<32x32xbf16>
    %c0_79 = arith.constant 0 : index
    %c0_80 = arith.constant 0 : index
    %c0_81 = arith.constant 0 : index
    %93 = vector.load %arg7[%c0_79, %c0_80, %c0_81] : memref<9x32x64xbf16, #tpu.memory_space<vmem>>, vector<1x32x64xbf16>
    %94 = vector.shape_cast %93 : vector<1x32x64xbf16> to vector<32x64xbf16>
    %cst_82 = arith.constant dense<0.000000e+00> : vector<32x64xf32>
    %95 = tpu.matmul %92, %94, %cst_82 {dimension_numbers = #tpu.dot_dimension_numbers<[1], [0], [0], [1], [0, 0, 1, 1], [], []>} : vector<32x32xbf16>, vector<32x64xbf16>, vector<32x64xf32> -> vector<32x64xf32>
    %96 = arith.addf %88, %95 : vector<32x64xf32>
    %c1_83 = arith.constant 1 : index
    %c0_84 = arith.constant 0 : index
    %c0_85 = arith.constant 0 : index
    %97 = vector.load %arg6[%c1_83, %c0_84, %c0_85] : memref<9x32x128xbf16, #tpu.memory_space<vmem>>, vector<1x32x128xbf16>
    %98 = vector.shape_cast %97 : vector<1x32x128xbf16> to vector<32x128xbf16>
    %cst_86 = arith.constant dense<0.000000e+00> : vector<32x32xf32>
    %99 = tpu.matmul %98, %87, %cst_86 {dimension_numbers = #tpu.dot_dimension_numbers<[1], [0], [0], [1], [0, 0, 1, 1], [], []>} : vector<32x128xbf16>, vector<128x32xbf16>, vector<32x32xf32> -> vector<32x32xf32>
    %100 = arith.truncf %99 : vector<32x32xf32> to vector<32x32xbf16>
    %c1_87 = arith.constant 1 : index
    %c0_88 = arith.constant 0 : index
    %c0_89 = arith.constant 0 : index
    %101 = vector.load %arg7[%c1_87, %c0_88, %c0_89] : memref<9x32x64xbf16, #tpu.memory_space<vmem>>, vector<1x32x64xbf16>
    %102 = vector.shape_cast %101 : vector<1x32x64xbf16> to vector<32x64xbf16>
    %cst_90 = arith.constant dense<0.000000e+00> : vector<32x64xf32>
    %103 = tpu.matmul %100, %102, %cst_90 {dimension_numbers = #tpu.dot_dimension_numbers<[1], [0], [0], [1], [0, 0, 1, 1], [], []>} : vector<32x32xbf16>, vector<32x64xbf16>, vector<32x64xf32> -> vector<32x64xf32>
    %104 = arith.addf %96, %103 : vector<32x64xf32>
    %c2_91 = arith.constant 2 : index
    %c0_92 = arith.constant 0 : index
    %c0_93 = arith.constant 0 : index
    %105 = vector.load %arg6[%c2_91, %c0_92, %c0_93] : memref<9x32x128xbf16, #tpu.memory_space<vmem>>, vector<1x32x128xbf16>
    %106 = vector.shape_cast %105 : vector<1x32x128xbf16> to vector<32x128xbf16>
    %cst_94 = arith.constant dense<0.000000e+00> : vector<32x32xf32>
    %107 = tpu.matmul %106, %87, %cst_94 {dimension_numbers = #tpu.dot_dimension_numbers<[1], [0], [0], [1], [0, 0, 1, 1], [], []>} : vector<32x128xbf16>, vector<128x32xbf16>, vector<32x32xf32> -> vector<32x32xf32>
    %108 = arith.truncf %107 : vector<32x32xf32> to vector<32x32xbf16>
    %c2_95 = arith.constant 2 : index
    %c0_96 = arith.constant 0 : index
    %c0_97 = arith.constant 0 : index
    %109 = vector.load %arg7[%c2_95, %c0_96, %c0_97] : memref<9x32x64xbf16, #tpu.memory_space<vmem>>, vector<1x32x64xbf16>
    %110 = vector.shape_cast %109 : vector<1x32x64xbf16> to vector<32x64xbf16>
    %cst_98 = arith.constant dense<0.000000e+00> : vector<32x64xf32>
    %111 = tpu.matmul %108, %110, %cst_98 {dimension_numbers = #tpu.dot_dimension_numbers<[1], [0], [0], [1], [0, 0, 1, 1], [], []>} : vector<32x32xbf16>, vector<32x64xbf16>, vector<32x64xf32> -> vector<32x64xf32>
    %112 = arith.addf %104, %111 : vector<32x64xf32>
    %c3_99 = arith.constant 3 : index
    %c0_100 = arith.constant 0 : index
    %c0_101 = arith.constant 0 : index
    %113 = vector.load %arg6[%c3_99, %c0_100, %c0_101] : memref<9x32x128xbf16, #tpu.memory_space<vmem>>, vector<1x32x128xbf16>
    %114 = vector.shape_cast %113 : vector<1x32x128xbf16> to vector<32x128xbf16>
    %cst_102 = arith.constant dense<0.000000e+00> : vector<32x32xf32>
    %115 = tpu.matmul %114, %87, %cst_102 {dimension_numbers = #tpu.dot_dimension_numbers<[1], [0], [0], [1], [0, 0, 1, 1], [], []>} : vector<32x128xbf16>, vector<128x32xbf16>, vector<32x32xf32> -> vector<32x32xf32>
    %116 = arith.truncf %115 : vector<32x32xf32> to vector<32x32xbf16>
    %c3_103 = arith.constant 3 : index
    %c0_104 = arith.constant 0 : index
    %c0_105 = arith.constant 0 : index
    %117 = vector.load %arg7[%c3_103, %c0_104, %c0_105] : memref<9x32x64xbf16, #tpu.memory_space<vmem>>, vector<1x32x64xbf16>
    %118 = vector.shape_cast %117 : vector<1x32x64xbf16> to vector<32x64xbf16>
    %cst_106 = arith.constant dense<0.000000e+00> : vector<32x64xf32>
    %119 = tpu.matmul %116, %118, %cst_106 {dimension_numbers = #tpu.dot_dimension_numbers<[1], [0], [0], [1], [0, 0, 1, 1], [], []>} : vector<32x32xbf16>, vector<32x64xbf16>, vector<32x64xf32> -> vector<32x64xf32>
    %120 = arith.addf %112, %119 : vector<32x64xf32>
    %c4_107 = arith.constant 4 : index
    %c0_108 = arith.constant 0 : index
    %c0_109 = arith.constant 0 : index
    %121 = vector.load %arg6[%c4_107, %c0_108, %c0_109] : memref<9x32x128xbf16, #tpu.memory_space<vmem>>, vector<1x32x128xbf16>
    %122 = vector.shape_cast %121 : vector<1x32x128xbf16> to vector<32x128xbf16>
    %cst_110 = arith.constant dense<0.000000e+00> : vector<32x32xf32>
    %123 = tpu.matmul %122, %87, %cst_110 {dimension_numbers = #tpu.dot_dimension_numbers<[1], [0], [0], [1], [0, 0, 1, 1], [], []>} : vector<32x128xbf16>, vector<128x32xbf16>, vector<32x32xf32> -> vector<32x32xf32>
    %124 = arith.truncf %123 : vector<32x32xf32> to vector<32x32xbf16>
    %c4_111 = arith.constant 4 : index
    %c0_112 = arith.constant 0 : index
    %c0_113 = arith.constant 0 : index
    %125 = vector.load %arg7[%c4_111, %c0_112, %c0_113] : memref<9x32x64xbf16, #tpu.memory_space<vmem>>, vector<1x32x64xbf16>
    %126 = vector.shape_cast %125 : vector<1x32x64xbf16> to vector<32x64xbf16>
    %cst_114 = arith.constant dense<0.000000e+00> : vector<32x64xf32>
    %127 = tpu.matmul %124, %126, %cst_114 {dimension_numbers = #tpu.dot_dimension_numbers<[1], [0], [0], [1], [0, 0, 1, 1], [], []>} : vector<32x32xbf16>, vector<32x64xbf16>, vector<32x64xf32> -> vector<32x64xf32>
    %128 = arith.addf %120, %127 : vector<32x64xf32>
    %c5_115 = arith.constant 5 : index
    %c0_116 = arith.constant 0 : index
    %c0_117 = arith.constant 0 : index
    %129 = vector.load %arg6[%c5_115, %c0_116, %c0_117] : memref<9x32x128xbf16, #tpu.memory_space<vmem>>, vector<1x32x128xbf16>
    %130 = vector.shape_cast %129 : vector<1x32x128xbf16> to vector<32x128xbf16>
    %cst_118 = arith.constant dense<0.000000e+00> : vector<32x32xf32>
    %131 = tpu.matmul %130, %87, %cst_118 {dimension_numbers = #tpu.dot_dimension_numbers<[1], [0], [0], [1], [0, 0, 1, 1], [], []>} : vector<32x128xbf16>, vector<128x32xbf16>, vector<32x32xf32> -> vector<32x32xf32>
    %132 = arith.truncf %131 : vector<32x32xf32> to vector<32x32xbf16>
    %c5_119 = arith.constant 5 : index
    %c0_120 = arith.constant 0 : index
    %c0_121 = arith.constant 0 : index
    %133 = vector.load %arg7[%c5_119, %c0_120, %c0_121] : memref<9x32x64xbf16, #tpu.memory_space<vmem>>, vector<1x32x64xbf16>
    %134 = vector.shape_cast %133 : vector<1x32x64xbf16> to vector<32x64xbf16>
    %cst_122 = arith.constant dense<0.000000e+00> : vector<32x64xf32>
    %135 = tpu.matmul %132, %134, %cst_122 {dimension_numbers = #tpu.dot_dimension_numbers<[1], [0], [0], [1], [0, 0, 1, 1], [], []>} : vector<32x32xbf16>, vector<32x64xbf16>, vector<32x64xf32> -> vector<32x64xf32>
    %136 = arith.addf %128, %135 : vector<32x64xf32>
    %c6_123 = arith.constant 6 : index
    %c0_124 = arith.constant 0 : index
    %c0_125 = arith.constant 0 : index
    %137 = vector.load %arg6[%c6_123, %c0_124, %c0_125] : memref<9x32x128xbf16, #tpu.memory_space<vmem>>, vector<1x32x128xbf16>
    %138 = vector.shape_cast %137 : vector<1x32x128xbf16> to vector<32x128xbf16>
    %cst_126 = arith.constant dense<0.000000e+00> : vector<32x32xf32>
    %139 = tpu.matmul %138, %87, %cst_126 {dimension_numbers = #tpu.dot_dimension_numbers<[1], [0], [0], [1], [0, 0, 1, 1], [], []>} : vector<32x128xbf16>, vector<128x32xbf16>, vector<32x32xf32> -> vector<32x32xf32>
    %140 = arith.truncf %139 : vector<32x32xf32> to vector<32x32xbf16>
    %c6_127 = arith.constant 6 : index
    %c0_128 = arith.constant 0 : index
    %c0_129 = arith.constant 0 : index
    %141 = vector.load %arg7[%c6_127, %c0_128, %c0_129] : memref<9x32x64xbf16, #tpu.memory_space<vmem>>, vector<1x32x64xbf16>
    %142 = vector.shape_cast %141 : vector<1x32x64xbf16> to vector<32x64xbf16>
    %cst_130 = arith.constant dense<0.000000e+00> : vector<32x64xf32>
    %143 = tpu.matmul %140, %142, %cst_130 {dimension_numbers = #tpu.dot_dimension_numbers<[1], [0], [0], [1], [0, 0, 1, 1], [], []>} : vector<32x32xbf16>, vector<32x64xbf16>, vector<32x64xf32> -> vector<32x64xf32>
    %144 = arith.addf %136, %143 : vector<32x64xf32>
    %c7_131 = arith.constant 7 : index
    %c0_132 = arith.constant 0 : index
    %c0_133 = arith.constant 0 : index
    %145 = vector.load %arg6[%c7_131, %c0_132, %c0_133] : memref<9x32x128xbf16, #tpu.memory_space<vmem>>, vector<1x32x128xbf16>
    %146 = vector.shape_cast %145 : vector<1x32x128xbf16> to vector<32x128xbf16>
    %cst_134 = arith.constant dense<0.000000e+00> : vector<32x32xf32>
    %147 = tpu.matmul %146, %87, %cst_134 {dimension_numbers = #tpu.dot_dimension_numbers<[1], [0], [0], [1], [0, 0, 1, 1], [], []>} : vector<32x128xbf16>, vector<128x32xbf16>, vector<32x32xf32> -> vector<32x32xf32>
    %148 = arith.truncf %147 : vector<32x32xf32> to vector<32x32xbf16>
    %c7_135 = arith.constant 7 : index
    %c0_136 = arith.constant 0 : index
    %c0_137 = arith.constant 0 : index
    %149 = vector.load %arg7[%c7_135, %c0_136, %c0_137] : memref<9x32x64xbf16, #tpu.memory_space<vmem>>, vector<1x32x64xbf16>
    %150 = vector.shape_cast %149 : vector<1x32x64xbf16> to vector<32x64xbf16>
    %cst_138 = arith.constant dense<0.000000e+00> : vector<32x64xf32>
    %151 = tpu.matmul %148, %150, %cst_138 {dimension_numbers = #tpu.dot_dimension_numbers<[1], [0], [0], [1], [0, 0, 1, 1], [], []>} : vector<32x32xbf16>, vector<32x64xbf16>, vector<32x64xf32> -> vector<32x64xf32>
    %152 = arith.addf %144, %151 : vector<32x64xf32>
    %c8_139 = arith.constant 8 : index
    %c0_140 = arith.constant 0 : index
    %c0_141 = arith.constant 0 : index
    %153 = vector.load %arg6[%c8_139, %c0_140, %c0_141] : memref<9x32x128xbf16, #tpu.memory_space<vmem>>, vector<1x32x128xbf16>
    %154 = vector.shape_cast %153 : vector<1x32x128xbf16> to vector<32x128xbf16>
    %cst_142 = arith.constant dense<0.000000e+00> : vector<32x32xf32>
    %155 = tpu.matmul %154, %87, %cst_142 {dimension_numbers = #tpu.dot_dimension_numbers<[1], [0], [0], [1], [0, 0, 1, 1], [], []>} : vector<32x128xbf16>, vector<128x32xbf16>, vector<32x32xf32> -> vector<32x32xf32>
    %156 = arith.truncf %155 : vector<32x32xf32> to vector<32x32xbf16>
    %c8_143 = arith.constant 8 : index
    %c0_144 = arith.constant 0 : index
    %c0_145 = arith.constant 0 : index
    %157 = vector.load %arg7[%c8_143, %c0_144, %c0_145] : memref<9x32x64xbf16, #tpu.memory_space<vmem>>, vector<1x32x64xbf16>
    %158 = vector.shape_cast %157 : vector<1x32x64xbf16> to vector<32x64xbf16>
    %cst_146 = arith.constant dense<0.000000e+00> : vector<32x64xf32>
    %159 = tpu.matmul %156, %158, %cst_146 {dimension_numbers = #tpu.dot_dimension_numbers<[1], [0], [0], [1], [0, 0, 1, 1], [], []>} : vector<32x32xbf16>, vector<32x64xbf16>, vector<32x64xf32> -> vector<32x64xf32>
    %160 = arith.addf %152, %159 : vector<32x64xf32>
    %c0_147 = arith.constant 0 : index
    %c0_148 = arith.constant 0 : index
    %161 = vector.load %arg8[%c0_147, %c0_148] : memref<1x64xf32, #tpu.memory_space<vmem>>, vector<1x64xf32>
    %162 = vector.broadcast %161 : vector<1x64xf32> to vector<32x64xf32>
    %163 = arith.addf %160, %162 : vector<32x64xf32>
    %cst_149 = arith.constant 0.000000e+00 : f32
    %164 = vector.broadcast %cst_149 : f32 to vector<32x64xf32>
    %165 = arith.maximumf %163, %164 : vector<32x64xf32>
    %166 = arith.truncf %165 : vector<32x64xf32> to vector<32x64xbf16>
    %cst_150 = arith.constant 0.000000e+00 : f32
    %167 = vector.broadcast %cst_150 : f32 to vector<8x128xf32>
    %c0_151 = arith.constant 0 : index
    %c0_152 = arith.constant 0 : index
    %c0_153 = arith.constant 0 : index
    %168 = vector.load %arg9[%c0_151, %c0_152, %c0_153] : memref<9x8x32xbf16, #tpu.memory_space<vmem>>, vector<1x8x32xbf16>
    %169 = vector.shape_cast %168 : vector<1x8x32xbf16> to vector<8x32xbf16>
    %cst_154 = arith.constant dense<0.000000e+00> : vector<8x64xf32>
    %170 = tpu.matmul %169, %166, %cst_154 {dimension_numbers = #tpu.dot_dimension_numbers<[1], [0], [0], [1], [0, 0, 1, 1], [], []>} : vector<8x32xbf16>, vector<32x64xbf16>, vector<8x64xf32> -> vector<8x64xf32>
    %171 = arith.truncf %170 : vector<8x64xf32> to vector<8x64xbf16>
    %c0_155 = arith.constant 0 : index
    %c0_156 = arith.constant 0 : index
    %c0_157 = arith.constant 0 : index
    %172 = vector.load %arg10[%c0_155, %c0_156, %c0_157] : memref<9x64x128xbf16, #tpu.memory_space<vmem>>, vector<1x64x128xbf16>
    %173 = vector.shape_cast %172 : vector<1x64x128xbf16> to vector<64x128xbf16>
    %cst_158 = arith.constant dense<0.000000e+00> : vector<8x128xf32>
    %174 = tpu.matmul %171, %173, %cst_158 {dimension_numbers = #tpu.dot_dimension_numbers<[1], [0], [0], [1], [0, 0, 1, 1], [], []>} : vector<8x64xbf16>, vector<64x128xbf16>, vector<8x128xf32> -> vector<8x128xf32>
    %175 = arith.addf %167, %174 : vector<8x128xf32>
    %c1_159 = arith.constant 1 : index
    %c0_160 = arith.constant 0 : index
    %c0_161 = arith.constant 0 : index
    %176 = vector.load %arg9[%c1_159, %c0_160, %c0_161] : memref<9x8x32xbf16, #tpu.memory_space<vmem>>, vector<1x8x32xbf16>
    %177 = vector.shape_cast %176 : vector<1x8x32xbf16> to vector<8x32xbf16>
    %cst_162 = arith.constant dense<0.000000e+00> : vector<8x64xf32>
    %178 = tpu.matmul %177, %166, %cst_162 {dimension_numbers = #tpu.dot_dimension_numbers<[1], [0], [0], [1], [0, 0, 1, 1], [], []>} : vector<8x32xbf16>, vector<32x64xbf16>, vector<8x64xf32> -> vector<8x64xf32>
    %179 = arith.truncf %178 : vector<8x64xf32> to vector<8x64xbf16>
    %c1_163 = arith.constant 1 : index
    %c0_164 = arith.constant 0 : index
    %c0_165 = arith.constant 0 : index
    %180 = vector.load %arg10[%c1_163, %c0_164, %c0_165] : memref<9x64x128xbf16, #tpu.memory_space<vmem>>, vector<1x64x128xbf16>
    %181 = vector.shape_cast %180 : vector<1x64x128xbf16> to vector<64x128xbf16>
    %cst_166 = arith.constant dense<0.000000e+00> : vector<8x128xf32>
    %182 = tpu.matmul %179, %181, %cst_166 {dimension_numbers = #tpu.dot_dimension_numbers<[1], [0], [0], [1], [0, 0, 1, 1], [], []>} : vector<8x64xbf16>, vector<64x128xbf16>, vector<8x128xf32> -> vector<8x128xf32>
    %183 = arith.addf %175, %182 : vector<8x128xf32>
    %c2_167 = arith.constant 2 : index
    %c0_168 = arith.constant 0 : index
    %c0_169 = arith.constant 0 : index
    %184 = vector.load %arg9[%c2_167, %c0_168, %c0_169] : memref<9x8x32xbf16, #tpu.memory_space<vmem>>, vector<1x8x32xbf16>
    %185 = vector.shape_cast %184 : vector<1x8x32xbf16> to vector<8x32xbf16>
    %cst_170 = arith.constant dense<0.000000e+00> : vector<8x64xf32>
    %186 = tpu.matmul %185, %166, %cst_170 {dimension_numbers = #tpu.dot_dimension_numbers<[1], [0], [0], [1], [0, 0, 1, 1], [], []>} : vector<8x32xbf16>, vector<32x64xbf16>, vector<8x64xf32> -> vector<8x64xf32>
    %187 = arith.truncf %186 : vector<8x64xf32> to vector<8x64xbf16>
    %c2_171 = arith.constant 2 : index
    %c0_172 = arith.constant 0 : index
    %c0_173 = arith.constant 0 : index
    %188 = vector.load %arg10[%c2_171, %c0_172, %c0_173] : memref<9x64x128xbf16, #tpu.memory_space<vmem>>, vector<1x64x128xbf16>
    %189 = vector.shape_cast %188 : vector<1x64x128xbf16> to vector<64x128xbf16>
    %cst_174 = arith.constant dense<0.000000e+00> : vector<8x128xf32>
    %190 = tpu.matmul %187, %189, %cst_174 {dimension_numbers = #tpu.dot_dimension_numbers<[1], [0], [0], [1], [0, 0, 1, 1], [], []>} : vector<8x64xbf16>, vector<64x128xbf16>, vector<8x128xf32> -> vector<8x128xf32>
    %191 = arith.addf %183, %190 : vector<8x128xf32>
    %c3_175 = arith.constant 3 : index
    %c0_176 = arith.constant 0 : index
    %c0_177 = arith.constant 0 : index
    %192 = vector.load %arg9[%c3_175, %c0_176, %c0_177] : memref<9x8x32xbf16, #tpu.memory_space<vmem>>, vector<1x8x32xbf16>
    %193 = vector.shape_cast %192 : vector<1x8x32xbf16> to vector<8x32xbf16>
    %cst_178 = arith.constant dense<0.000000e+00> : vector<8x64xf32>
    %194 = tpu.matmul %193, %166, %cst_178 {dimension_numbers = #tpu.dot_dimension_numbers<[1], [0], [0], [1], [0, 0, 1, 1], [], []>} : vector<8x32xbf16>, vector<32x64xbf16>, vector<8x64xf32> -> vector<8x64xf32>
    %195 = arith.truncf %194 : vector<8x64xf32> to vector<8x64xbf16>
    %c3_179 = arith.constant 3 : index
    %c0_180 = arith.constant 0 : index
    %c0_181 = arith.constant 0 : index
    %196 = vector.load %arg10[%c3_179, %c0_180, %c0_181] : memref<9x64x128xbf16, #tpu.memory_space<vmem>>, vector<1x64x128xbf16>
    %197 = vector.shape_cast %196 : vector<1x64x128xbf16> to vector<64x128xbf16>
    %cst_182 = arith.constant dense<0.000000e+00> : vector<8x128xf32>
    %198 = tpu.matmul %195, %197, %cst_182 {dimension_numbers = #tpu.dot_dimension_numbers<[1], [0], [0], [1], [0, 0, 1, 1], [], []>} : vector<8x64xbf16>, vector<64x128xbf16>, vector<8x128xf32> -> vector<8x128xf32>
    %199 = arith.addf %191, %198 : vector<8x128xf32>
    %c4_183 = arith.constant 4 : index
    %c0_184 = arith.constant 0 : index
    %c0_185 = arith.constant 0 : index
    %200 = vector.load %arg9[%c4_183, %c0_184, %c0_185] : memref<9x8x32xbf16, #tpu.memory_space<vmem>>, vector<1x8x32xbf16>
    %201 = vector.shape_cast %200 : vector<1x8x32xbf16> to vector<8x32xbf16>
    %cst_186 = arith.constant dense<0.000000e+00> : vector<8x64xf32>
    %202 = tpu.matmul %201, %166, %cst_186 {dimension_numbers = #tpu.dot_dimension_numbers<[1], [0], [0], [1], [0, 0, 1, 1], [], []>} : vector<8x32xbf16>, vector<32x64xbf16>, vector<8x64xf32> -> vector<8x64xf32>
    %203 = arith.truncf %202 : vector<8x64xf32> to vector<8x64xbf16>
    %c4_187 = arith.constant 4 : index
    %c0_188 = arith.constant 0 : index
    %c0_189 = arith.constant 0 : index
    %204 = vector.load %arg10[%c4_187, %c0_188, %c0_189] : memref<9x64x128xbf16, #tpu.memory_space<vmem>>, vector<1x64x128xbf16>
    %205 = vector.shape_cast %204 : vector<1x64x128xbf16> to vector<64x128xbf16>
    %cst_190 = arith.constant dense<0.000000e+00> : vector<8x128xf32>
    %206 = tpu.matmul %203, %205, %cst_190 {dimension_numbers = #tpu.dot_dimension_numbers<[1], [0], [0], [1], [0, 0, 1, 1], [], []>} : vector<8x64xbf16>, vector<64x128xbf16>, vector<8x128xf32> -> vector<8x128xf32>
    %207 = arith.addf %199, %206 : vector<8x128xf32>
    %c5_191 = arith.constant 5 : index
    %c0_192 = arith.constant 0 : index
    %c0_193 = arith.constant 0 : index
    %208 = vector.load %arg9[%c5_191, %c0_192, %c0_193] : memref<9x8x32xbf16, #tpu.memory_space<vmem>>, vector<1x8x32xbf16>
    %209 = vector.shape_cast %208 : vector<1x8x32xbf16> to vector<8x32xbf16>
    %cst_194 = arith.constant dense<0.000000e+00> : vector<8x64xf32>
    %210 = tpu.matmul %209, %166, %cst_194 {dimension_numbers = #tpu.dot_dimension_numbers<[1], [0], [0], [1], [0, 0, 1, 1], [], []>} : vector<8x32xbf16>, vector<32x64xbf16>, vector<8x64xf32> -> vector<8x64xf32>
    %211 = arith.truncf %210 : vector<8x64xf32> to vector<8x64xbf16>
    %c5_195 = arith.constant 5 : index
    %c0_196 = arith.constant 0 : index
    %c0_197 = arith.constant 0 : index
    %212 = vector.load %arg10[%c5_195, %c0_196, %c0_197] : memref<9x64x128xbf16, #tpu.memory_space<vmem>>, vector<1x64x128xbf16>
    %213 = vector.shape_cast %212 : vector<1x64x128xbf16> to vector<64x128xbf16>
    %cst_198 = arith.constant dense<0.000000e+00> : vector<8x128xf32>
    %214 = tpu.matmul %211, %213, %cst_198 {dimension_numbers = #tpu.dot_dimension_numbers<[1], [0], [0], [1], [0, 0, 1, 1], [], []>} : vector<8x64xbf16>, vector<64x128xbf16>, vector<8x128xf32> -> vector<8x128xf32>
    %215 = arith.addf %207, %214 : vector<8x128xf32>
    %c6_199 = arith.constant 6 : index
    %c0_200 = arith.constant 0 : index
    %c0_201 = arith.constant 0 : index
    %216 = vector.load %arg9[%c6_199, %c0_200, %c0_201] : memref<9x8x32xbf16, #tpu.memory_space<vmem>>, vector<1x8x32xbf16>
    %217 = vector.shape_cast %216 : vector<1x8x32xbf16> to vector<8x32xbf16>
    %cst_202 = arith.constant dense<0.000000e+00> : vector<8x64xf32>
    %218 = tpu.matmul %217, %166, %cst_202 {dimension_numbers = #tpu.dot_dimension_numbers<[1], [0], [0], [1], [0, 0, 1, 1], [], []>} : vector<8x32xbf16>, vector<32x64xbf16>, vector<8x64xf32> -> vector<8x64xf32>
    %219 = arith.truncf %218 : vector<8x64xf32> to vector<8x64xbf16>
    %c6_203 = arith.constant 6 : index
    %c0_204 = arith.constant 0 : index
    %c0_205 = arith.constant 0 : index
    %220 = vector.load %arg10[%c6_203, %c0_204, %c0_205] : memref<9x64x128xbf16, #tpu.memory_space<vmem>>, vector<1x64x128xbf16>
    %221 = vector.shape_cast %220 : vector<1x64x128xbf16> to vector<64x128xbf16>
    %cst_206 = arith.constant dense<0.000000e+00> : vector<8x128xf32>
    %222 = tpu.matmul %219, %221, %cst_206 {dimension_numbers = #tpu.dot_dimension_numbers<[1], [0], [0], [1], [0, 0, 1, 1], [], []>} : vector<8x64xbf16>, vector<64x128xbf16>, vector<8x128xf32> -> vector<8x128xf32>
    %223 = arith.addf %215, %222 : vector<8x128xf32>
    %c7_207 = arith.constant 7 : index
    %c0_208 = arith.constant 0 : index
    %c0_209 = arith.constant 0 : index
    %224 = vector.load %arg9[%c7_207, %c0_208, %c0_209] : memref<9x8x32xbf16, #tpu.memory_space<vmem>>, vector<1x8x32xbf16>
    %225 = vector.shape_cast %224 : vector<1x8x32xbf16> to vector<8x32xbf16>
    %cst_210 = arith.constant dense<0.000000e+00> : vector<8x64xf32>
    %226 = tpu.matmul %225, %166, %cst_210 {dimension_numbers = #tpu.dot_dimension_numbers<[1], [0], [0], [1], [0, 0, 1, 1], [], []>} : vector<8x32xbf16>, vector<32x64xbf16>, vector<8x64xf32> -> vector<8x64xf32>
    %227 = arith.truncf %226 : vector<8x64xf32> to vector<8x64xbf16>
    %c7_211 = arith.constant 7 : index
    %c0_212 = arith.constant 0 : index
    %c0_213 = arith.constant 0 : index
    %228 = vector.load %arg10[%c7_211, %c0_212, %c0_213] : memref<9x64x128xbf16, #tpu.memory_space<vmem>>, vector<1x64x128xbf16>
    %229 = vector.shape_cast %228 : vector<1x64x128xbf16> to vector<64x128xbf16>
    %cst_214 = arith.constant dense<0.000000e+00> : vector<8x128xf32>
    %230 = tpu.matmul %227, %229, %cst_214 {dimension_numbers = #tpu.dot_dimension_numbers<[1], [0], [0], [1], [0, 0, 1, 1], [], []>} : vector<8x64xbf16>, vector<64x128xbf16>, vector<8x128xf32> -> vector<8x128xf32>
    %231 = arith.addf %223, %230 : vector<8x128xf32>
    %c8_215 = arith.constant 8 : index
    %c0_216 = arith.constant 0 : index
    %c0_217 = arith.constant 0 : index
    %232 = vector.load %arg9[%c8_215, %c0_216, %c0_217] : memref<9x8x32xbf16, #tpu.memory_space<vmem>>, vector<1x8x32xbf16>
    %233 = vector.shape_cast %232 : vector<1x8x32xbf16> to vector<8x32xbf16>
    %cst_218 = arith.constant dense<0.000000e+00> : vector<8x64xf32>
    %234 = tpu.matmul %233, %166, %cst_218 {dimension_numbers = #tpu.dot_dimension_numbers<[1], [0], [0], [1], [0, 0, 1, 1], [], []>} : vector<8x32xbf16>, vector<32x64xbf16>, vector<8x64xf32> -> vector<8x64xf32>
    %235 = arith.truncf %234 : vector<8x64xf32> to vector<8x64xbf16>
    %c8_219 = arith.constant 8 : index
    %c0_220 = arith.constant 0 : index
    %c0_221 = arith.constant 0 : index
    %236 = vector.load %arg10[%c8_219, %c0_220, %c0_221] : memref<9x64x128xbf16, #tpu.memory_space<vmem>>, vector<1x64x128xbf16>
    %237 = vector.shape_cast %236 : vector<1x64x128xbf16> to vector<64x128xbf16>
    %cst_222 = arith.constant dense<0.000000e+00> : vector<8x128xf32>
    %238 = tpu.matmul %235, %237, %cst_222 {dimension_numbers = #tpu.dot_dimension_numbers<[1], [0], [0], [1], [0, 0, 1, 1], [], []>} : vector<8x64xbf16>, vector<64x128xbf16>, vector<8x128xf32> -> vector<8x128xf32>
    %239 = arith.addf %231, %238 : vector<8x128xf32>
    %c0_223 = arith.constant 0 : index
    %c0_224 = arith.constant 0 : index
    %240 = vector.load %arg11[%c0_223, %c0_224] : memref<1x128xf32, #tpu.memory_space<vmem>>, vector<1x128xf32>
    %241 = vector.broadcast %240 : vector<1x128xf32> to vector<8x128xf32>
    %242 = arith.addf %239, %241 : vector<8x128xf32>
    %cst_225 = arith.constant 0.000000e+00 : f32
    %243 = vector.broadcast %cst_225 : f32 to vector<8x128xf32>
    %244 = arith.maximumf %242, %243 : vector<8x128xf32>
    %245 = arith.truncf %244 : vector<8x128xf32> to vector<8x128xbf16>
    %cst_226 = arith.constant 0.000000e+00 : f32
    %246 = vector.broadcast %cst_226 : f32 to vector<2x10xf32>
    %c0_227 = arith.constant 0 : index
    %c0_228 = arith.constant 0 : index
    %c0_229 = arith.constant 0 : index
    %247 = vector.load %arg12[%c0_227, %c0_228, %c0_229] : memref<4x2x8xbf16, #tpu.memory_space<vmem>>, vector<1x2x8xbf16>
    %248 = vector.shape_cast %247 : vector<1x2x8xbf16> to vector<2x8xbf16>
    %cst_230 = arith.constant dense<0.000000e+00> : vector<2x128xf32>
    %249 = tpu.matmul %248, %245, %cst_230 {dimension_numbers = #tpu.dot_dimension_numbers<[1], [0], [0], [1], [0, 0, 1, 1], [], []>} : vector<2x8xbf16>, vector<8x128xbf16>, vector<2x128xf32> -> vector<2x128xf32>
    %250 = arith.truncf %249 : vector<2x128xf32> to vector<2x128xbf16>
    %c0_231 = arith.constant 0 : index
    %c0_232 = arith.constant 0 : index
    %c0_233 = arith.constant 0 : index
    %251 = vector.load %arg13[%c0_231, %c0_232, %c0_233] : memref<4x128x10xbf16, #tpu.memory_space<vmem>>, vector<1x128x10xbf16>
    %252 = vector.shape_cast %251 : vector<1x128x10xbf16> to vector<128x10xbf16>
    %cst_234 = arith.constant dense<0.000000e+00> : vector<2x10xf32>
    %253 = tpu.matmul %250, %252, %cst_234 {dimension_numbers = #tpu.dot_dimension_numbers<[1], [0], [0], [1], [0, 0, 1, 1], [], []>} : vector<2x128xbf16>, vector<128x10xbf16>, vector<2x10xf32> -> vector<2x10xf32>
    %254 = arith.addf %246, %253 : vector<2x10xf32>
    %c1_235 = arith.constant 1 : index
    %c0_236 = arith.constant 0 : index
    %c0_237 = arith.constant 0 : index
    %255 = vector.load %arg12[%c1_235, %c0_236, %c0_237] : memref<4x2x8xbf16, #tpu.memory_space<vmem>>, vector<1x2x8xbf16>
    %256 = vector.shape_cast %255 : vector<1x2x8xbf16> to vector<2x8xbf16>
    %cst_238 = arith.constant dense<0.000000e+00> : vector<2x128xf32>
    %257 = tpu.matmul %256, %245, %cst_238 {dimension_numbers = #tpu.dot_dimension_numbers<[1], [0], [0], [1], [0, 0, 1, 1], [], []>} : vector<2x8xbf16>, vector<8x128xbf16>, vector<2x128xf32> -> vector<2x128xf32>
    %258 = arith.truncf %257 : vector<2x128xf32> to vector<2x128xbf16>
    %c1_239 = arith.constant 1 : index
    %c0_240 = arith.constant 0 : index
    %c0_241 = arith.constant 0 : index
    %259 = vector.load %arg13[%c1_239, %c0_240, %c0_241] : memref<4x128x10xbf16, #tpu.memory_space<vmem>>, vector<1x128x10xbf16>
    %260 = vector.shape_cast %259 : vector<1x128x10xbf16> to vector<128x10xbf16>
    %cst_242 = arith.constant dense<0.000000e+00> : vector<2x10xf32>
    %261 = tpu.matmul %258, %260, %cst_242 {dimension_numbers = #tpu.dot_dimension_numbers<[1], [0], [0], [1], [0, 0, 1, 1], [], []>} : vector<2x128xbf16>, vector<128x10xbf16>, vector<2x10xf32> -> vector<2x10xf32>
    %262 = arith.addf %254, %261 : vector<2x10xf32>
    %c2_243 = arith.constant 2 : index
    %c0_244 = arith.constant 0 : index
    %c0_245 = arith.constant 0 : index
    %263 = vector.load %arg12[%c2_243, %c0_244, %c0_245] : memref<4x2x8xbf16, #tpu.memory_space<vmem>>, vector<1x2x8xbf16>
    %264 = vector.shape_cast %263 : vector<1x2x8xbf16> to vector<2x8xbf16>
    %cst_246 = arith.constant dense<0.000000e+00> : vector<2x128xf32>
    %265 = tpu.matmul %264, %245, %cst_246 {dimension_numbers = #tpu.dot_dimension_numbers<[1], [0], [0], [1], [0, 0, 1, 1], [], []>} : vector<2x8xbf16>, vector<8x128xbf16>, vector<2x128xf32> -> vector<2x128xf32>
    %266 = arith.truncf %265 : vector<2x128xf32> to vector<2x128xbf16>
    %c2_247 = arith.constant 2 : index
    %c0_248 = arith.constant 0 : index
    %c0_249 = arith.constant 0 : index
    %267 = vector.load %arg13[%c2_247, %c0_248, %c0_249] : memref<4x128x10xbf16, #tpu.memory_space<vmem>>, vector<1x128x10xbf16>
    %268 = vector.shape_cast %267 : vector<1x128x10xbf16> to vector<128x10xbf16>
    %cst_250 = arith.constant dense<0.000000e+00> : vector<2x10xf32>
    %269 = tpu.matmul %266, %268, %cst_250 {dimension_numbers = #tpu.dot_dimension_numbers<[1], [0], [0], [1], [0, 0, 1, 1], [], []>} : vector<2x128xbf16>, vector<128x10xbf16>, vector<2x10xf32> -> vector<2x10xf32>
    %270 = arith.addf %262, %269 : vector<2x10xf32>
    %c3_251 = arith.constant 3 : index
    %c0_252 = arith.constant 0 : index
    %c0_253 = arith.constant 0 : index
    %271 = vector.load %arg12[%c3_251, %c0_252, %c0_253] : memref<4x2x8xbf16, #tpu.memory_space<vmem>>, vector<1x2x8xbf16>
    %272 = vector.shape_cast %271 : vector<1x2x8xbf16> to vector<2x8xbf16>
    %cst_254 = arith.constant dense<0.000000e+00> : vector<2x128xf32>
    %273 = tpu.matmul %272, %245, %cst_254 {dimension_numbers = #tpu.dot_dimension_numbers<[1], [0], [0], [1], [0, 0, 1, 1], [], []>} : vector<2x8xbf16>, vector<8x128xbf16>, vector<2x128xf32> -> vector<2x128xf32>
    %274 = arith.truncf %273 : vector<2x128xf32> to vector<2x128xbf16>
    %c3_255 = arith.constant 3 : index
    %c0_256 = arith.constant 0 : index
    %c0_257 = arith.constant 0 : index
    %275 = vector.load %arg13[%c3_255, %c0_256, %c0_257] : memref<4x128x10xbf16, #tpu.memory_space<vmem>>, vector<1x128x10xbf16>
    %276 = vector.shape_cast %275 : vector<1x128x10xbf16> to vector<128x10xbf16>
    %cst_258 = arith.constant dense<0.000000e+00> : vector<2x10xf32>
    %277 = tpu.matmul %274, %276, %cst_258 {dimension_numbers = #tpu.dot_dimension_numbers<[1], [0], [0], [1], [0, 0, 1, 1], [], []>} : vector<2x128xbf16>, vector<128x10xbf16>, vector<2x10xf32> -> vector<2x10xf32>
    %278 = arith.addf %270, %277 : vector<2x10xf32>
    %c0_259 = arith.constant 0 : index
    %c0_260 = arith.constant 0 : index
    %279 = vector.load %arg14[%c0_259, %c0_260] : memref<1x10xf32, #tpu.memory_space<vmem>>, vector<1x10xf32>
    %280 = vector.broadcast %279 : vector<1x10xf32> to vector<2x10xf32>
    %281 = arith.addf %278, %280 : vector<2x10xf32>
    %c0_261 = arith.constant 0 : index
    %c0_262 = arith.constant 0 : index
    %282 = vector.load %arg15[%c0_261, %c0_262] : memref<2x10xf32, #tpu.memory_space<vmem>>, vector<2x10xf32>
    tpu.vector_store %arg15[%c0_261, %c0_262], %281 {strides = array<i32>} : memref<2x10xf32, #tpu.memory_space<vmem>>, vector<2x10xf32>,
    return
  }
}

</mosaic_0001>

<llo_original>
// kernel: cnn_forward.1
$region0: #{cnn_forward.1}
  #allocation0 [shape = 'u32[]', space=smem, size = 0x4, offset = 0x4, fixed_abs, tag = 'smem constant byte address 0x4 - core index']
  #allocation1 [shape = 'u32[144,128]{1,0:T(1,128)}', space=vmem, size = 0x12000, scoped, tag = 'internal scratch']
  %s0 = inlined_call_operand.vmem [shape: bf16[512,9], index: 0, kind: input, shape index: {}]
  %s1 = inlined_call_operand.vmem [shape: bf16[9,16], index: 1, kind: input, shape index: {}]
  %s2 = inlined_call_operand.vmem [shape: f32[1,16], index: 2, kind: input, shape index: {}]
  %s3 = inlined_call_operand.vmem [shape: bf16[9,128,512], index: 3, kind: input, shape index: {}]
  %s4 = inlined_call_operand.vmem [shape: bf16[9,16,32], index: 4, kind: input, shape index: {}]
  %s5 = inlined_call_operand.vmem [shape: f32[1,32], index: 5, kind: input, shape index: {}]
  %s6 = inlined_call_operand.vmem [shape: bf16[9,32,128], index: 6, kind: input, shape index: {}]
  %s7 = inlined_call_operand.vmem [shape: bf16[9,32,64], index: 7, kind: input, shape index: {}]
  %s8 = inlined_call_operand.vmem [shape: f32[1,64], index: 8, kind: input, shape index: {}]
  %s9 = inlined_call_operand.vmem [shape: bf16[9,8,32], index: 9, kind: input, shape index: {}]
  %s10 = inlined_call_operand.vmem [shape: bf16[9,64,128], index: 10, kind: input, shape index: {}]
  %s11 = inlined_call_operand.vmem [shape: f32[1,128], index: 11, kind: input, shape index: {}]
  %s12 = inlined_call_operand.vmem [shape: bf16[4,2,8], index: 12, kind: input, shape index: {}]
  %s13 = inlined_call_operand.vmem [shape: bf16[4,128,10], index: 13, kind: input, shape index: {}]
  %s14 = inlined_call_operand.vmem [shape: f32[1,10], index: 14, kind: input, shape index: {}]
  %s15 = inlined_call_operand.hbm [shape: f32[2,10], index: 15, kind: output, shape index: {}]
  %s16 = sld [smem:[#allocation0]]
  $region70: #{cnn_forward.1} parent=0
    _
  %s18 = ssub.s32 1, %s16
  %s19 = scalar_select 0, %s18, %s16
  $region1: #{cnn_forward.1} parent=0
    #allocation2 [shape = 'u8[1024]{0}', space=vmem, size = 0x400, scoped, tag = 'output window, operand 0, single buffered']
    #allocation3 [shape = 's32[1]{0}', space=sflag, size = 0x4, scoped, tag = 'scoped memory for cnn_forward.1']
    %20 = vsyncpa [#allocation3], 0
    // Predicated region
    $region2: #{cnn_forward.1} parent=1 // pred_check
      _
    $region3: #{cnn_forward.1} parent=1 // pred_check_branch
      %22 = sbr.rel (0) target = $region5
    $region4: #{cnn_forward.1} parent=1 // pred_region
      _
    $region5: #{cnn_forward.1} parent=1 // pred_fallthru
      _
    // Predicated region
    $region6: #{cnn_forward.1} parent=1 // pred_check
      _
    $region7: #{cnn_forward.1} parent=1 // pred_check_branch
      %24 = sbr.rel (0) target = $region9
    $region8: #{cnn_forward.1} parent=1 // pred_region
      _
    $region9: #{cnn_forward.1} parent=1 // pred_fallthru
      _
    // Predicated region
    $region10: #{cnn_forward.1} parent=1 // pred_check
      _
    $region11: #{cnn_forward.1} parent=1 // pred_check_branch
      %26 = sbr.rel (0) target = $region13
    $region12: #{cnn_forward.1} parent=1 // pred_region
      _
    $region13: #{cnn_forward.1} parent=1 // pred_fallthru
      _
    // Predicated region
    $region14: #{cnn_forward.1} parent=1 // pred_check
      _
    $region15: #{cnn_forward.1} parent=1 // pred_check_branch
      %28 = sbr.rel (0) target = $region17
    $region16: #{cnn_forward.1} parent=1 // pred_region
      _
    $region17: #{cnn_forward.1} parent=1 // pred_fallthru
      _
    // Predicated region
    $region18: #{cnn_forward.1} parent=1 // pred_check
      _
    $region19: #{cnn_forward.1} parent=1 // pred_check_branch
      %30 = sbr.rel (0) target = $region21
    $region20: #{cnn_forward.1} parent=1 // pred_region
      _
    $region21: #{cnn_forward.1} parent=1 // pred_fallthru
      _
    // Predicated region
    $region22: #{cnn_forward.1} parent=1 // pred_check
      _
    $region23: #{cnn_forward.1} parent=1 // pred_check_branch
      %32 = sbr.rel (0) target = $region25
    $region24: #{cnn_forward.1} parent=1 // pred_region
      _
    $region25: #{cnn_forward.1} parent=1 // pred_fallthru
      _
    // Predicated region
    $region26: #{cnn_forward.1} parent=1 // pred_check
      _
    $region27: #{cnn_forward.1} parent=1 // pred_check_branch
      %34 = sbr.rel (0) target = $region29
    $region28: #{cnn_forward.1} parent=1 // pred_region
      _
    $region29: #{cnn_forward.1} parent=1 // pred_fallthru
      _
    // Predicated region
    $region30: #{cnn_forward.1} parent=1 // pred_check
      _
    $region31: #{cnn_forward.1} parent=1 // pred_check_branch
      %36 = sbr.rel (0) target = $region33
    $region32: #{cnn_forward.1} parent=1 // pred_region
      _
    $region33: #{cnn_forward.1} parent=1 // pred_fallthru
      _
    // Predicated region
    $region34: #{cnn_forward.1} parent=1 // pred_check
      _
    $region35: #{cnn_forward.1} parent=1 // pred_check_branch
      %38 = sbr.rel (0) target = $region37
    $region36: #{cnn_forward.1} parent=1 // pred_region
      _
    $region37: #{cnn_forward.1} parent=1 // pred_fallthru
      _
    // Predicated region
    $region38: #{cnn_forward.1} parent=1 // pred_check
      _
    $region39: #{cnn_forward.1} parent=1 // pred_check_branch
      %40 = sbr.rel (0) target = $region41
    $region40: #{cnn_forward.1} parent=1 // pred_region
      _
    $region41: #{cnn_forward.1} parent=1 // pred_fallthru
      _
    // Predicated region
    $region42: #{cnn_forward.1} parent=1 // pred_check
      _
    $region43: #{cnn_forward.1} parent=1 // pred_check_branch
      %42 = sbr.rel (0) target = $region45
    $region44: #{cnn_forward.1} parent=1 // pred_region
      _
    $region45: #{cnn_forward.1} parent=1 // pred_fallthru
      _
    // Predicated region
    $region46: #{cnn_forward.1} parent=1 // pred_check
      _
    $region47: #{cnn_forward.1} parent=1 // pred_check_branch
      %44 = sbr.rel (0) target = $region49
    $region48: #{cnn_forward.1} parent=1 // pred_region
      _
    $region49: #{cnn_forward.1} parent=1 // pred_fallthru
      _
    // Predicated region
    $region50: #{cnn_forward.1} parent=1 // pred_check
      _
    $region51: #{cnn_forward.1} parent=1 // pred_check_branch
      %46 = sbr.rel (0) target = $region53
    $region52: #{cnn_forward.1} parent=1 // pred_region
      _
    $region53: #{cnn_forward.1} parent=1 // pred_fallthru
      _
    // Predicated region
    $region54: #{cnn_forward.1} parent=1 // pred_check
      _
    $region55: #{cnn_forward.1} parent=1 // pred_check_branch
      %48 = sbr.rel (0) target = $region57
    $region56: #{cnn_forward.1} parent=1 // pred_region
      _
    $region57: #{cnn_forward.1} parent=1 // pred_fallthru
      _
    // Predicated region
    $region58: #{cnn_forward.1} parent=1 // pred_check
      _
    $region59: #{cnn_forward.1} parent=1 // pred_check_branch
      %50 = sbr.rel (0) target = $region61
    $region60: #{cnn_forward.1} parent=1 // pred_region
      _
    $region61: #{cnn_forward.1} parent=1 // pred_fallthru
      _
    %v52 = vld [vmem:[%s0] sm:$0xf]
    %v53 = vld [vmem:[%s0 + $0x4] sm:$0xf]
    %v54 = vld [vmem:[%s0 + $0x8] sm:$0xf]
    %v55 = vld [vmem:[%s0 + $0xc] sm:$0xf]
    %v56 = vld [vmem:[%s0 + $0x10] sm:$0xf]
    %v57 = vld [vmem:[%s0 + $0x14] sm:$0xf]
    %v58 = vld [vmem:[%s0 + $0x18] sm:$0xf]
    %v59 = vld [vmem:[%s0 + $0x1c] sm:$0xf]
    %v60 = vld [vmem:[%s0 + $0x20] sm:$0xf]
    %v61 = vld [vmem:[%s0 + $0x24] sm:$0xf]
    %v62 = vld [vmem:[%s0 + $0x28] sm:$0xf]
    %v63 = vld [vmem:[%s0 + $0x2c] sm:$0xf]
    %v64 = vld [vmem:[%s0 + $0x30] sm:$0xf]
    %v65 = vld [vmem:[%s0 + $0x34] sm:$0xf]
    %v66 = vld [vmem:[%s0 + $0x38] sm:$0xf]
    %v67 = vld [vmem:[%s0 + $0x3c] sm:$0xf]
    %v68 = vld [vmem:[%s0 + $0x40] sm:$0xf]
    %v69 = vld [vmem:[%s0 + $0x44] sm:$0xf]
    %v70 = vld [vmem:[%s0 + $0x48] sm:$0xf]
    %v71 = vld [vmem:[%s0 + $0x4c] sm:$0xf]
    %v72 = vld [vmem:[%s0 + $0x50] sm:$0xf]
    %v73 = vld [vmem:[%s0 + $0x54] sm:$0xf]
    %v74 = vld [vmem:[%s0 + $0x58] sm:$0xf]
    %v75 = vld [vmem:[%s0 + $0x5c] sm:$0xf]
    %v76 = vld [vmem:[%s0 + $0x60] sm:$0xf]
    %v77 = vld [vmem:[%s0 + $0x64] sm:$0xf]
    %v78 = vld [vmem:[%s0 + $0x68] sm:$0xf]
    %v79 = vld [vmem:[%s0 + $0x6c] sm:$0xf]
    %v80 = vld [vmem:[%s0 + $0x70] sm:$0xf]
    %v81 = vld [vmem:[%s0 + $0x74] sm:$0xf]
    %v82 = vld [vmem:[%s0 + $0x78] sm:$0xf]
    %v83 = vld [vmem:[%s0 + $0x7c] sm:$0xf]
    %v84 = vld [vmem:[%s0 + $0x80] sm:$0xf]
    %v85 = vld [vmem:[%s0 + $0x84] sm:$0xf]
    %v86 = vld [vmem:[%s0 + $0x88] sm:$0xf]
    %v87 = vld [vmem:[%s0 + $0x8c] sm:$0xf]
    %v88 = vld [vmem:[%s0 + $0x90] sm:$0xf]
    %v89 = vld [vmem:[%s0 + $0x94] sm:$0xf]
    %v90 = vld [vmem:[%s0 + $0x98] sm:$0xf]
    %v91 = vld [vmem:[%s0 + $0x9c] sm:$0xf]
    %v92 = vld [vmem:[%s0 + $0xa0] sm:$0xf]
    %v93 = vld [vmem:[%s0 + $0xa4] sm:$0xf]
    %v94 = vld [vmem:[%s0 + $0xa8] sm:$0xf]
    %v95 = vld [vmem:[%s0 + $0xac] sm:$0xf]
    %v96 = vld [vmem:[%s0 + $0xb0] sm:$0xf]
    %v97 = vld [vmem:[%s0 + $0xb4] sm:$0xf]
    %v98 = vld [vmem:[%s0 + $0xb8] sm:$0xf]
    %v99 = vld [vmem:[%s0 + $0xbc] sm:$0xf]
    %v100 = vld [vmem:[%s0 + $0xc0] sm:$0xf]
    %v101 = vld [vmem:[%s0 + $0xc4] sm:$0xf]
    %v102 = vld [vmem:[%s0 + $0xc8] sm:$0xf]
    %v103 = vld [vmem:[%s0 + $0xcc] sm:$0xf]
    %v104 = vld [vmem:[%s0 + $0xd0] sm:$0xf]
    %v105 = vld [vmem:[%s0 + $0xd4] sm:$0xf]
    %v106 = vld [vmem:[%s0 + $0xd8] sm:$0xf]
    %v107 = vld [vmem:[%s0 + $0xdc] sm:$0xf]
    %v108 = vld [vmem:[%s0 + $0xe0] sm:$0xf]
    %v109 = vld [vmem:[%s0 + $0xe4] sm:$0xf]
    %v110 = vld [vmem:[%s0 + $0xe8] sm:$0xf]
    %v111 = vld [vmem:[%s0 + $0xec] sm:$0xf]
    %v112 = vld [vmem:[%s0 + $0xf0] sm:$0xf]
    %v113 = vld [vmem:[%s0 + $0xf4] sm:$0xf]
    %v114 = vld [vmem:[%s0 + $0xf8] sm:$0xf]
    %v115 = vld [vmem:[%s0 + $0xfc] sm:$0xf]
    %v116 = vld [vmem:[%s1] sm:$0xf]
    %v117 = vld [vmem:[%s1 + $0x4] sm:$0x1]
    %v118 = vld [vmem:[%s2] sm:$0x1]
    %v120 = vlaneseq
    %v121 = vshrl.u32 %v120, 7
    %v122 = vsub.s32 0, %v121
    %v123 = vrot.slane %v118, %v122
    %v189 = vunpack.c.l.b16 %v52
    %v190 = vunpack.c.l.b16 %v53
    %v191 = vunpack.c.l.b16 %v54
    %v192 = vunpack.c.l.b16 %v55
    %v193 = vunpack.c.l.b16 %v56
    %v194 = vunpack.c.l.b16 %v57
    %v195 = vunpack.c.l.b16 %v58
    %v196 = vunpack.c.l.b16 %v59
    %v197 = vunpack.c.l.b16 %v60
    %v198 = vunpack.c.l.b16 %v61
    %v199 = vunpack.c.l.b16 %v62
    %v200 = vunpack.c.l.b16 %v63
    %v201 = vunpack.c.l.b16 %v64
    %v202 = vunpack.c.l.b16 %v65
    %v203 = vunpack.c.l.b16 %v66
    %v204 = vunpack.c.l.b16 %v67
    %v205 = vunpack.c.l.b16 %v68
    %v206 = vunpack.c.l.b16 %v69
    %v207 = vunpack.c.l.b16 %v70
    %v208 = vunpack.c.l.b16 %v71
    %v209 = vunpack.c.l.b16 %v72
    %v210 = vunpack.c.l.b16 %v73
    %v211 = vunpack.c.l.b16 %v74
    %v212 = vunpack.c.l.b16 %v75
    %v213 = vunpack.c.l.b16 %v76
    %v214 = vunpack.c.l.b16 %v77
    %v215 = vunpack.c.l.b16 %v78
    %v216 = vunpack.c.l.b16 %v79
    %v217 = vunpack.c.l.b16 %v80
    %v218 = vunpack.c.l.b16 %v81
    %v219 = vunpack.c.l.b16 %v82
    %v220 = vunpack.c.l.b16 %v83
    %v221 = vunpack.c.l.b16 %v84
    %v222 = vunpack.c.l.b16 %v85
    %v223 = vunpack.c.l.b16 %v86
    %v224 = vunpack.c.l.b16 %v87
    %v225 = vunpack.c.l.b16 %v88
    %v226 = vunpack.c.l.b16 %v89
    %v227 = vunpack.c.l.b16 %v90
    %v228 = vunpack.c.l.b16 %v91
    %v229 = vunpack.c.l.b16 %v92
    %v230 = vunpack.c.l.b16 %v93
    %v231 = vunpack.c.l.b16 %v94
    %v232 = vunpack.c.l.b16 %v95
    %v233 = vunpack.c.l.b16 %v96
    %v234 = vunpack.c.l.b16 %v97
    %v235 = vunpack.c.l.b16 %v98
    %v236 = vunpack.c.l.b16 %v99
    %v237 = vunpack.c.l.b16 %v100
    %v238 = vunpack.c.l.b16 %v101
    %v239 = vunpack.c.l.b16 %v102
    %v240 = vunpack.c.l.b16 %v103
    %v241 = vunpack.c.l.b16 %v104
    %v242 = vunpack.c.l.b16 %v105
    %v243 = vunpack.c.l.b16 %v106
    %v244 = vunpack.c.l.b16 %v107
    %v245 = vunpack.c.l.b16 %v108
    %v246 = vunpack.c.l.b16 %v109
    %v247 = vunpack.c.l.b16 %v110
    %v248 = vunpack.c.l.b16 %v111
    %v249 = vunpack.c.l.b16 %v112
    %v250 = vunpack.c.l.b16 %v113
    %v251 = vunpack.c.l.b16 %v114
    %v252 = vunpack.c.l.b16 %v115
    %v253 = vpack.c.b16 %v190, %v189
    %v254 = vpack.c.b16 %v192, %v191
    %v255 = vpack.c.b16 %v194, %v193
    %v256 = vpack.c.b16 %v196, %v195
    %v257 = vpack.c.b16 %v198, %v197
    %v258 = vpack.c.b16 %v200, %v199
    %v259 = vpack.c.b16 %v202, %v201
    %v260 = vpack.c.b16 %v204, %v203
    %v261 = vpack.c.b16 %v206, %v205
    %v262 = vpack.c.b16 %v208, %v207
    %v263 = vpack.c.b16 %v210, %v209
    %v264 = vpack.c.b16 %v212, %v211
    %v265 = vpack.c.b16 %v214, %v213
    %v266 = vpack.c.b16 %v216, %v215
    %v267 = vpack.c.b16 %v218, %v217
    %v268 = vpack.c.b16 %v220, %v219
    %v269 = vpack.c.b16 %v222, %v221
    %v270 = vpack.c.b16 %v224, %v223
    %v271 = vpack.c.b16 %v226, %v225
    %v272 = vpack.c.b16 %v228, %v227
    %v273 = vpack.c.b16 %v230, %v229
    %v274 = vpack.c.b16 %v232, %v231
    %v275 = vpack.c.b16 %v234, %v233
    %v276 = vpack.c.b16 %v236, %v235
    %v277 = vpack.c.b16 %v238, %v237
    %v278 = vpack.c.b16 %v240, %v239
    %v279 = vpack.c.b16 %v242, %v241
    %v280 = vpack.c.b16 %v244, %v243
    %v281 = vpack.c.b16 %v246, %v245
    %v282 = vpack.c.b16 %v248, %v247
    %v283 = vpack.c.b16 %v250, %v249
    %v284 = vpack.c.b16 %v252, %v251
    %v287 = vunpack.c.l.b16 %v116
    %v288 = vunpack.c.l.b16 %v117
    %v289 = vpack.c.b16 %v288, %v287
    %vm290 = vcmask 72704
    %v292 = vsel %vm290, %v253, 0
    %v295 = vsel %vm290, %v254, 0
    %v298 = vsel %vm290, %v255, 0
    %v301 = vsel %vm290, %v256, 0
    %v304 = vsel %vm290, %v257, 0
    %v307 = vsel %vm290, %v258, 0
    %v310 = vsel %vm290, %v259, 0
    %v313 = vsel %vm290, %v260, 0
    %v316 = vsel %vm290, %v261, 0
    %v319 = vsel %vm290, %v262, 0
    %v322 = vsel %vm290, %v263, 0
    %v325 = vsel %vm290, %v264, 0
    %v328 = vsel %vm290, %v265, 0
    %v331 = vsel %vm290, %v266, 0
    %v334 = vsel %vm290, %v267, 0
    %v337 = vsel %vm290, %v268, 0
    %v340 = vsel %vm290, %v269, 0
    %v343 = vsel %vm290, %v270, 0
    %v346 = vsel %vm290, %v271, 0
    %v349 = vsel %vm290, %v272, 0
    %v352 = vsel %vm290, %v273, 0
    %v355 = vsel %vm290, %v274, 0
    %v358 = vsel %vm290, %v275, 0
    %v361 = vsel %vm290, %v276, 0
    %v364 = vsel %vm290, %v277, 0
    %v367 = vsel %vm290, %v278, 0
    %v370 = vsel %vm290, %v279, 0
    %v373 = vsel %vm290, %v280, 0
    %v376 = vsel %vm290, %v281, 0
    %v379 = vsel %vm290, %v282, 0
    %v382 = vsel %vm290, %v283, 0
    %v385 = vsel %vm290, %v284, 0
    %vm387 = vcmask 1043456
    %vm388 = vcmask 1044480
    %v389 = vsel %vm387, 4294967295, 65535
    %v390 = vsel %vm388, %v389, 0
    %v392 = vand.u32 %v289, %v390
    %394 = vmatprep.subr.bf16.mxu0 0
    %395 = vmatpush1.bf16.msra.mxu0 %v392
    %396 = vmatprep.subr.bf16.mxu0 0
    %397 = vmatpush1.bf16.msra.mxu0 0
    %398 = vmatprep.subr.bf16.mxu0 0
    %399 = vmatpush1.bf16.msra.mxu0 0
    %400 = vmatprep.subr.bf16.mxu0 0
    %401 = vmatpush1.bf16.msra.mxu0 0
    %402 = vmatprep.subr.bf16.mxu0 0
    %403 = vmatpush1.bf16.msra.mxu0 0
    %404 = vmatprep.subr.bf16.mxu0 0
    %405 = vmatpush1.bf16.msra.mxu0 0
    %406 = vmatprep.subr.bf16.mxu0 0
    %407 = vmatpush1.bf16.msra.mxu0 0
    %408 = vmatprep.subr.bf16.mxu0 0
    %409 = vmatpush1.bf16.msra.mxu0 0
    %410 = vmatprep.subr.bf16.mxu0 0
    %411 = vmatpush1.bf16.msra.mxu0 0
    %412 = vmatprep.subr.bf16.mxu0 0
    %413 = vmatpush1.bf16.msra.mxu0 0
    %414 = vmatprep.subr.bf16.mxu0 0
    %415 = vmatpush1.bf16.msra.mxu0 0
    %416 = vmatprep.subr.bf16.mxu0 0
    %417 = vmatpush1.bf16.msra.mxu0 0
    %418 = vmatprep.subr.bf16.mxu0 0
    %419 = vmatpush1.bf16.msra.mxu0 0
    %420 = vmatprep.subr.bf16.mxu0 0
    %421 = vmatpush1.bf16.msra.mxu0 0
    %422 = vmatprep.subr.bf16.mxu0 0
    %423 = vmatpush1.bf16.msra.mxu0 0
    %424 = vmatprep.subr.bf16.mxu0 0
    %425 = vmatpush1.bf16.msra.mxu0 0
    %426 = vmatprep.mubr.bf16.mxu0 0
    %427 = vmatmul.mubr.bf16.gmra.mrb[0].mxu0 %v292
    %v428 = vpop.f32.mrb[0].mxu0
    %v429 = vadd.f32 %v123, %v428
    %v430 = vpop.f32.mrb[0].mxu0
    %v431 = vpop.f32.mrb[0].mxu0
    %v432 = vadd.f32 %v123, %v431
    %v433 = vpop.f32.mrb[0].mxu0
    %434 = vmatprep.mubr.bf16.mxu0 0
    %435 = vmatmul.mubr.bf16.gmra.mrb[0].mxu0 %v295
    %v436 = vpop.f32.mrb[0].mxu0
    %v437 = vadd.f32 %v123, %v436
    %v438 = vpop.f32.mrb[0].mxu0
    %v439 = vpop.f32.mrb[0].mxu0
    %v440 = vadd.f32 %v123, %v439
    %v441 = vpop.f32.mrb[0].mxu0
    %442 = vmatprep.mubr.bf16.mxu0 0
    %443 = vmatmul.mubr.bf16.gmra.mrb[0].mxu0 %v298
    %v444 = vpop.f32.mrb[0].mxu0
    %v445 = vadd.f32 %v123, %v444
    %v446 = vpop.f32.mrb[0].mxu0
    %v447 = vpop.f32.mrb[0].mxu0
    %v448 = vadd.f32 %v123, %v447
    %v449 = vpop.f32.mrb[0].mxu0
    %450 = vmatprep.mubr.bf16.mxu0 0
    %451 = vmatmul.mubr.bf16.gmra.mrb[0].mxu0 %v301
    %v452 = vpop.f32.mrb[0].mxu0
    %v453 = vadd.f32 %v123, %v452
    %v454 = vpop.f32.mrb[0].mxu0
    %v455 = vpop.f32.mrb[0].mxu0
    %v456 = vadd.f32 %v123, %v455
    %v457 = vpop.f32.mrb[0].mxu0
    %458 = vmatprep.mubr.bf16.mxu0 0
    %459 = vmatmul.mubr.bf16.gmra.mrb[0].mxu0 %v304
    %v460 = vpop.f32.mrb[0].mxu0
    %v461 = vadd.f32 %v123, %v460
    %v462 = vpop.f32.mrb[0].mxu0
    %v463 = vpop.f32.mrb[0].mxu0
    %v464 = vadd.f32 %v123, %v463
    %v465 = vpop.f32.mrb[0].mxu0
    %466 = vmatprep.mubr.bf16.mxu0 0
    %467 = vmatmul.mubr.bf16.gmra.mrb[0].mxu0 %v307
    %v468 = vpop.f32.mrb[0].mxu0
    %v469 = vadd.f32 %v123, %v468
    %v470 = vpop.f32.mrb[0].mxu0
    %v471 = vpop.f32.mrb[0].mxu0
    %v472 = vadd.f32 %v123, %v471
    %v473 = vpop.f32.mrb[0].mxu0
    %474 = vmatprep.mubr.bf16.mxu0 0
    %475 = vmatmul.mubr.bf16.gmra.mrb[0].mxu0 %v310
    %v476 = vpop.f32.mrb[0].mxu0
    %v477 = vadd.f32 %v123, %v476
    %v478 = vpop.f32.mrb[0].mxu0
    %v479 = vpop.f32.mrb[0].mxu0
    %v480 = vadd.f32 %v123, %v479
    %v481 = vpop.f32.mrb[0].mxu0
    %482 = vmatprep.mubr.bf16.mxu0 0
    %483 = vmatmul.mubr.bf16.gmra.mrb[0].mxu0 %v313
    %v484 = vpop.f32.mrb[0].mxu0
    %v485 = vadd.f32 %v123, %v484
    %v486 = vpop.f32.mrb[0].mxu0
    %v487 = vpop.f32.mrb[0].mxu0
    %v488 = vadd.f32 %v123, %v487
    %v489 = vpop.f32.mrb[0].mxu0
    %490 = vmatprep.mubr.bf16.mxu0 0
    %491 = vmatmul.mubr.bf16.gmra.mrb[0].mxu0 %v316
    %v492 = vpop.f32.mrb[0].mxu0
    %v493 = vadd.f32 %v123, %v492
    %v494 = vpop.f32.mrb[0].mxu0
    %v495 = vpop.f32.mrb[0].mxu0
    %v496 = vadd.f32 %v123, %v495
    %v497 = vpop.f32.mrb[0].mxu0
    %498 = vmatprep.mubr.bf16.mxu0 0
    %499 = vmatmul.mubr.bf16.gmra.mrb[0].mxu0 %v319
    %v500 = vpop.f32.mrb[0].mxu0
    %v501 = vadd.f32 %v123, %v500
    %v502 = vpop.f32.mrb[0].mxu0
    %v503 = vpop.f32.mrb[0].mxu0
    %v504 = vadd.f32 %v123, %v503
    %v505 = vpop.f32.mrb[0].mxu0
    %506 = vmatprep.mubr.bf16.mxu0 0
    %507 = vmatmul.mubr.bf16.gmra.mrb[0].mxu0 %v322
    %v508 = vpop.f32.mrb[0].mxu0
    %v509 = vadd.f32 %v123, %v508
    %v510 = vpop.f32.mrb[0].mxu0
    %v511 = vpop.f32.mrb[0].mxu0
    %v512 = vadd.f32 %v123, %v511
    %v513 = vpop.f32.mrb[0].mxu0
    %514 = vmatprep.mubr.bf16.mxu0 0
    %515 = vmatmul.mubr.bf16.gmra.mrb[0].mxu0 %v325
    %v516 = vpop.f32.mrb[0].mxu0
    %v517 = vadd.f32 %v123, %v516
    %v518 = vpop.f32.mrb[0].mxu0
    %v519 = vpop.f32.mrb[0].mxu0
    %v520 = vadd.f32 %v123, %v519
    %v521 = vpop.f32.mrb[0].mxu0
    %522 = vmatprep.mubr.bf16.mxu0 0
    %523 = vmatmul.mubr.bf16.gmra.mrb[0].mxu0 %v328
    %v524 = vpop.f32.mrb[0].mxu0
    %v525 = vadd.f32 %v123, %v524
    %v526 = vpop.f32.mrb[0].mxu0
    %v527 = vpop.f32.mrb[0].mxu0
    %v528 = vadd.f32 %v123, %v527
    %v529 = vpop.f32.mrb[0].mxu0
    %530 = vmatprep.mubr.bf16.mxu0 0
    %531 = vmatmul.mubr.bf16.gmra.mrb[0].mxu0 %v331
    %v532 = vpop.f32.mrb[0].mxu0
    %v533 = vadd.f32 %v123, %v532
    %v534 = vpop.f32.mrb[0].mxu0
    %v535 = vpop.f32.mrb[0].mxu0
    %v536 = vadd.f32 %v123, %v535
    %v537 = vpop.f32.mrb[0].mxu0
    %538 = vmatprep.mubr.bf16.mxu0 0
    %539 = vmatmul.mubr.bf16.gmra.mrb[0].mxu0 %v334
    %v540 = vpop.f32.mrb[0].mxu0
    %v541 = vadd.f32 %v123, %v540
    %v542 = vpop.f32.mrb[0].mxu0
    %v543 = vpop.f32.mrb[0].mxu0
    %v544 = vadd.f32 %v123, %v543
    %v545 = vpop.f32.mrb[0].mxu0
    %546 = vmatprep.mubr.bf16.mxu0 0
    %547 = vmatmul.mubr.bf16.gmra.mrb[0].mxu0 %v337
    %v548 = vpop.f32.mrb[0].mxu0
    %v549 = vadd.f32 %v123, %v548
    %v550 = vpop.f32.mrb[0].mxu0
    %v551 = vpop.f32.mrb[0].mxu0
    %v552 = vadd.f32 %v123, %v551
    %v553 = vpop.f32.mrb[0].mxu0
    %554 = vmatprep.mubr.bf16.mxu0 0
    %555 = vmatmul.mubr.bf16.gmra.mrb[0].mxu0 %v340
    %v556 = vpop.f32.mrb[0].mxu0
    %v557 = vadd.f32 %v123, %v556
    %v558 = vpop.f32.mrb[0].mxu0
    %v559 = vpop.f32.mrb[0].mxu0
    %v560 = vadd.f32 %v123, %v559
    %v561 = vpop.f32.mrb[0].mxu0
    %562 = vmatprep.mubr.bf16.mxu0 0
    %563 = vmatmul.mubr.bf16.gmra.mrb[0].mxu0 %v343
    %v564 = vpop.f32.mrb[0].mxu0
    %v565 = vadd.f32 %v123, %v564
    %v566 = vpop.f32.mrb[0].mxu0
    %v567 = vpop.f32.mrb[0].mxu0
    %v568 = vadd.f32 %v123, %v567
    %v569 = vpop.f32.mrb[0].mxu0
    %570 = vmatprep.mubr.bf16.mxu0 0
    %571 = vmatmul.mubr.bf16.gmra.mrb[0].mxu0 %v346
    %v572 = vpop.f32.mrb[0].mxu0
    %v573 = vadd.f32 %v123, %v572
    %v574 = vpop.f32.mrb[0].mxu0
    %v575 = vpop.f32.mrb[0].mxu0
    %v576 = vadd.f32 %v123, %v575
    %v577 = vpop.f32.mrb[0].mxu0
    %578 = vmatprep.mubr.bf16.mxu0 0
    %579 = vmatmul.mubr.bf16.gmra.mrb[0].mxu0 %v349
    %v580 = vpop.f32.mrb[0].mxu0
    %v581 = vadd.f32 %v123, %v580
    %v582 = vpop.f32.mrb[0].mxu0
    %v583 = vpop.f32.mrb[0].mxu0
    %v584 = vadd.f32 %v123, %v583
    %v585 = vpop.f32.mrb[0].mxu0
    %586 = vmatprep.mubr.bf16.mxu0 0
    %587 = vmatmul.mubr.bf16.gmra.mrb[0].mxu0 %v352
    %v588 = vpop.f32.mrb[0].mxu0
    %v589 = vadd.f32 %v123, %v588
    %v590 = vpop.f32.mrb[0].mxu0
    %v591 = vpop.f32.mrb[0].mxu0
    %v592 = vadd.f32 %v123, %v591
    %v593 = vpop.f32.mrb[0].mxu0
    %594 = vmatprep.mubr.bf16.mxu0 0
    %595 = vmatmul.mubr.bf16.gmra.mrb[0].mxu0 %v355
    %v596 = vpop.f32.mrb[0].mxu0
    %v597 = vadd.f32 %v123, %v596
    %v598 = vpop.f32.mrb[0].mxu0
    %v599 = vpop.f32.mrb[0].mxu0
    %v600 = vadd.f32 %v123, %v599
    %v601 = vpop.f32.mrb[0].mxu0
    %602 = vmatprep.mubr.bf16.mxu0 0
    %603 = vmatmul.mubr.bf16.gmra.mrb[0].mxu0 %v358
    %v604 = vpop.f32.mrb[0].mxu0
    %v605 = vadd.f32 %v123, %v604
    %v606 = vpop.f32.mrb[0].mxu0
    %v607 = vpop.f32.mrb[0].mxu0
    %v608 = vadd.f32 %v123, %v607
    %v609 = vpop.f32.mrb[0].mxu0
    %610 = vmatprep.mubr.bf16.mxu0 0
    %611 = vmatmul.mubr.bf16.gmra.mrb[0].mxu0 %v361
    %v612 = vpop.f32.mrb[0].mxu0
    %v613 = vadd.f32 %v123, %v612
    %v614 = vpop.f32.mrb[0].mxu0
    %v615 = vpop.f32.mrb[0].mxu0
    %v616 = vadd.f32 %v123, %v615
    %v617 = vpop.f32.mrb[0].mxu0
    %618 = vmatprep.mubr.bf16.mxu0 0
    %619 = vmatmul.mubr.bf16.gmra.mrb[0].mxu0 %v364
    %v620 = vpop.f32.mrb[0].mxu0
    %v621 = vadd.f32 %v123, %v620
    %v622 = vpop.f32.mrb[0].mxu0
    %v623 = vpop.f32.mrb[0].mxu0
    %v624 = vadd.f32 %v123, %v623
    %v625 = vpop.f32.mrb[0].mxu0
    %626 = vmatprep.mubr.bf16.mxu0 0
    %627 = vmatmul.mubr.bf16.gmra.mrb[0].mxu0 %v367
    %v628 = vpop.f32.mrb[0].mxu0
    %v629 = vadd.f32 %v123, %v628
    %v630 = vpop.f32.mrb[0].mxu0
    %v631 = vpop.f32.mrb[0].mxu0
    %v632 = vadd.f32 %v123, %v631
    %v633 = vpop.f32.mrb[0].mxu0
    %634 = vmatprep.mubr.bf16.mxu0 0
    %635 = vmatmul.mubr.bf16.gmra.mrb[0].mxu0 %v370
    %v636 = vpop.f32.mrb[0].mxu0
    %v637 = vadd.f32 %v123, %v636
    %v638 = vpop.f32.mrb[0].mxu0
    %v639 = vpop.f32.mrb[0].mxu0
    %v640 = vadd.f32 %v123, %v639
    %v641 = vpop.f32.mrb[0].mxu0
    %642 = vmatprep.mubr.bf16.mxu0 0
    %643 = vmatmul.mubr.bf16.gmra.mrb[0].mxu0 %v373
    %v644 = vpop.f32.mrb[0].mxu0
    %v645 = vadd.f32 %v123, %v644
    %v646 = vpop.f32.mrb[0].mxu0
    %v647 = vpop.f32.mrb[0].mxu0
    %v648 = vadd.f32 %v123, %v647
    %v649 = vpop.f32.mrb[0].mxu0
    %650 = vmatprep.mubr.bf16.mxu0 0
    %651 = vmatmul.mubr.bf16.gmra.mrb[0].mxu0 %v376
    %v652 = vpop.f32.mrb[0].mxu0
    %v653 = vadd.f32 %v123, %v652
    %v654 = vpop.f32.mrb[0].mxu0
    %v655 = vpop.f32.mrb[0].mxu0
    %v656 = vadd.f32 %v123, %v655
    %v657 = vpop.f32.mrb[0].mxu0
    %658 = vmatprep.mubr.bf16.mxu0 0
    %659 = vmatmul.mubr.bf16.gmra.mrb[0].mxu0 %v379
    %v660 = vpop.f32.mrb[0].mxu0
    %v661 = vadd.f32 %v123, %v660
    %v662 = vpop.f32.mrb[0].mxu0
    %v663 = vpop.f32.mrb[0].mxu0
    %v664 = vadd.f32 %v123, %v663
    %v665 = vpop.f32.mrb[0].mxu0
    %666 = vmatprep.mubr.bf16.mxu0 0
    %667 = vmatmul.mubr.bf16.gmra.mrb[0].mxu0 %v382
    %v668 = vpop.f32.mrb[0].mxu0
    %v669 = vadd.f32 %v123, %v668
    %v670 = vpop.f32.mrb[0].mxu0
    %v671 = vpop.f32.mrb[0].mxu0
    %v672 = vadd.f32 %v123, %v671
    %v673 = vpop.f32.mrb[0].mxu0
    %674 = vmatprep.mubr.bf16.mxu0 0
    %675 = vmatmul.mubr.bf16.gmra.mrb[0].mxu0 %v385
    %v676 = vpop.f32.mrb[0].mxu0
    %v677 = vadd.f32 %v123, %v676
    %v678 = vpop.f32.mrb[0].mxu0
    %v679 = vpop.f32.mrb[0].mxu0
    %v680 = vadd.f32 %v123, %v679
    %v681 = vpop.f32.mrb[0].mxu0
    %682 = vdwg.mxu0
    %v683 = vmax.f32 %v429, 0.0
    %v684 = vmax.f32 %v432, 0.0
    %v685 = vmax.f32 %v437, 0.0
    %v686 = vmax.f32 %v440, 0.0
    %v687 = vmax.f32 %v445, 0.0
    %v688 = vmax.f32 %v448, 0.0
    %v689 = vmax.f32 %v453, 0.0
    %v690 = vmax.f32 %v456, 0.0
    %v691 = vmax.f32 %v461, 0.0
    %v692 = vmax.f32 %v464, 0.0
    %v693 = vmax.f32 %v469, 0.0
    %v694 = vmax.f32 %v472, 0.0
    %v695 = vmax.f32 %v477, 0.0
    %v696 = vmax.f32 %v480, 0.0
    %v697 = vmax.f32 %v485, 0.0
    %v698 = vmax.f32 %v488, 0.0
    %v699 = vmax.f32 %v493, 0.0
    %v700 = vmax.f32 %v496, 0.0
    %v701 = vmax.f32 %v501, 0.0
    %v702 = vmax.f32 %v504, 0.0
    %v703 = vmax.f32 %v509, 0.0
    %v704 = vmax.f32 %v512, 0.0
    %v705 = vmax.f32 %v517, 0.0
    %v706 = vmax.f32 %v520, 0.0
    %v707 = vmax.f32 %v525, 0.0
    %v708 = vmax.f32 %v528, 0.0
    %v709 = vmax.f32 %v533, 0.0
    %v710 = vmax.f32 %v536, 0.0
    %v711 = vmax.f32 %v541, 0.0
    %v712 = vmax.f32 %v544, 0.0
    %v713 = vmax.f32 %v549, 0.0
    %v714 = vmax.f32 %v552, 0.0
    %v715 = vmax.f32 %v557, 0.0
    %v716 = vmax.f32 %v560, 0.0
    %v717 = vmax.f32 %v565, 0.0
    %v718 = vmax.f32 %v568, 0.0
    %v719 = vmax.f32 %v573, 0.0
    %v720 = vmax.f32 %v576, 0.0
    %v721 = vmax.f32 %v581, 0.0
    %v722 = vmax.f32 %v584, 0.0
    %v723 = vmax.f32 %v589, 0.0
    %v724 = vmax.f32 %v592, 0.0
    %v725 = vmax.f32 %v597, 0.0
    %v726 = vmax.f32 %v600, 0.0
    %v727 = vmax.f32 %v605, 0.0
    %v728 = vmax.f32 %v608, 0.0
    %v729 = vmax.f32 %v613, 0.0
    %v730 = vmax.f32 %v616, 0.0
    %v731 = vmax.f32 %v621, 0.0
    %v732 = vmax.f32 %v624, 0.0
    %v733 = vmax.f32 %v629, 0.0
    %v734 = vmax.f32 %v632, 0.0
    %v735 = vmax.f32 %v637, 0.0
    %v736 = vmax.f32 %v640, 0.0
    %v737 = vmax.f32 %v645, 0.0
    %v738 = vmax.f32 %v648, 0.0
    %v739 = vmax.f32 %v653, 0.0
    %v740 = vmax.f32 %v656, 0.0
    %v741 = vmax.f32 %v661, 0.0
    %v742 = vmax.f32 %v664, 0.0
    %v743 = vmax.f32 %v669, 0.0
    %v744 = vmax.f32 %v672, 0.0
    %v745 = vmax.f32 %v677, 0.0
    %v746 = vmax.f32 %v680, 0.0
    %v747 = vpack.c.bf16 %v684, %v683
    %v748 = vpack.c.bf16 %v686, %v685
    %v749 = vpack.c.bf16 %v688, %v687
    %v750 = vpack.c.bf16 %v690, %v689
    %v751 = vpack.c.bf16 %v692, %v691
    %v752 = vpack.c.bf16 %v694, %v693
    %v753 = vpack.c.bf16 %v696, %v695
    %v754 = vpack.c.bf16 %v698, %v697
    %v755 = vpack.c.bf16 %v700, %v699
    %v756 = vpack.c.bf16 %v702, %v701
    %v757 = vpack.c.bf16 %v704, %v703
    %v758 = vpack.c.bf16 %v706, %v705
    %v759 = vpack.c.bf16 %v708, %v707
    %v760 = vpack.c.bf16 %v710, %v709
    %v761 = vpack.c.bf16 %v712, %v711
    %v762 = vpack.c.bf16 %v714, %v713
    %v763 = vpack.c.bf16 %v716, %v715
    %v764 = vpack.c.bf16 %v718, %v717
    %v765 = vpack.c.bf16 %v720, %v719
    %v766 = vpack.c.bf16 %v722, %v721
    %v767 = vpack.c.bf16 %v724, %v723
    %v768 = vpack.c.bf16 %v726, %v725
    %v769 = vpack.c.bf16 %v728, %v727
    %v770 = vpack.c.bf16 %v730, %v729
    %v771 = vpack.c.bf16 %v732, %v731
    %v772 = vpack.c.bf16 %v734, %v733
    %v773 = vpack.c.bf16 %v736, %v735
    %v774 = vpack.c.bf16 %v738, %v737
    %v775 = vpack.c.bf16 %v740, %v739
    %v776 = vpack.c.bf16 %v742, %v741
    %v777 = vpack.c.bf16 %v744, %v743
    %v778 = vpack.c.bf16 %v746, %v745
    %v779 = vld [vmem:[%s3] sm:$0xff]
    %v780 = vld [vmem:[%s3 + $0x8] sm:$0xff]
    %v781 = vld [vmem:[%s3 + $0x10] sm:$0xff]
    %v782 = vld [vmem:[%s3 + $0x18] sm:$0xff]
    %v783 = vld [vmem:[%s3 + $0x20] sm:$0xff]
    %v784 = vld [vmem:[%s3 + $0x28] sm:$0xff]
    %v785 = vld [vmem:[%s3 + $0x30] sm:$0xff]
    %v786 = vld [vmem:[%s3 + $0x38] sm:$0xff]
    %v787 = vld [vmem:[%s3 + $0x40] sm:$0xff]
    %v788 = vld [vmem:[%s3 + $0x48] sm:$0xff]
    %v789 = vld [vmem:[%s3 + $0x50] sm:$0xff]
    %v790 = vld [vmem:[%s3 + $0x58] sm:$0xff]
    %v791 = vld [vmem:[%s3 + $0x60] sm:$0xff]
    %v792 = vld [vmem:[%s3 + $0x68] sm:$0xff]
    %v793 = vld [vmem:[%s3 + $0x70] sm:$0xff]
    %v794 = vld [vmem:[%s3 + $0x78] sm:$0xff]
    %v795 = vld [vmem:[%s3 + $0x80] sm:$0xff]
    %v796 = vld [vmem:[%s3 + $0x88] sm:$0xff]
    %v797 = vld [vmem:[%s3 + $0x90] sm:$0xff]
    %v798 = vld [vmem:[%s3 + $0x98] sm:$0xff]
    %v799 = vld [vmem:[%s3 + $0xa0] sm:$0xff]
    %v800 = vld [vmem:[%s3 + $0xa8] sm:$0xff]
    %v801 = vld [vmem:[%s3 + $0xb0] sm:$0xff]
    %v802 = vld [vmem:[%s3 + $0xb8] sm:$0xff]
    %v803 = vld [vmem:[%s3 + $0xc0] sm:$0xff]
    %v804 = vld [vmem:[%s3 + $0xc8] sm:$0xff]
    %v805 = vld [vmem:[%s3 + $0xd0] sm:$0xff]
    %v806 = vld [vmem:[%s3 + $0xd8] sm:$0xff]
    %v807 = vld [vmem:[%s3 + $0xe0] sm:$0xff]
    %v808 = vld [vmem:[%s3 + $0xe8] sm:$0xff]
    %v809 = vld [vmem:[%s3 + $0xf0] sm:$0xff]
    %v810 = vld [vmem:[%s3 + $0xf8] sm:$0xff]
    %v843 = vunpack.c.l.b16 %v779
    %v844 = vunpack.c.h.b16 %v779
    %v845 = vunpack.c.l.b16 %v780
    %v846 = vunpack.c.h.b16 %v780
    %v847 = vunpack.c.l.b16 %v781
    %v848 = vunpack.c.h.b16 %v781
    %v849 = vunpack.c.l.b16 %v782
    %v850 = vunpack.c.h.b16 %v782
    %v851 = vunpack.c.l.b16 %v783
    %v852 = vunpack.c.h.b16 %v783
    %v853 = vunpack.c.l.b16 %v784
    %v854 = vunpack.c.h.b16 %v784
    %v855 = vunpack.c.l.b16 %v785
    %v856 = vunpack.c.h.b16 %v785
    %v857 = vunpack.c.l.b16 %v786
    %v858 = vunpack.c.h.b16 %v786
    %v859 = vunpack.c.l.b16 %v787
    %v860 = vunpack.c.h.b16 %v787
    %v861 = vunpack.c.l.b16 %v788
    %v862 = vunpack.c.h.b16 %v788
    %v863 = vunpack.c.l.b16 %v789
    %v864 = vunpack.c.h.b16 %v789
    %v865 = vunpack.c.l.b16 %v790
    %v866 = vunpack.c.h.b16 %v790
    %v867 = vunpack.c.l.b16 %v791
    %v868 = vunpack.c.h.b16 %v791
    %v869 = vunpack.c.l.b16 %v792
    %v870 = vunpack.c.h.b16 %v792
    %v871 = vunpack.c.l.b16 %v793
    %v872 = vunpack.c.h.b16 %v793
    %v873 = vunpack.c.l.b16 %v794
    %v874 = vunpack.c.h.b16 %v794
    %v875 = vunpack.c.l.b16 %v795
    %v876 = vunpack.c.h.b16 %v795
    %v877 = vunpack.c.l.b16 %v796
    %v878 = vunpack.c.h.b16 %v796
    %v879 = vunpack.c.l.b16 %v797
    %v880 = vunpack.c.h.b16 %v797
    %v881 = vunpack.c.l.b16 %v798
    %v882 = vunpack.c.h.b16 %v798
    %v883 = vunpack.c.l.b16 %v799
    %v884 = vunpack.c.h.b16 %v799
    %v885 = vunpack.c.l.b16 %v800
    %v886 = vunpack.c.h.b16 %v800
    %v887 = vunpack.c.l.b16 %v801
    %v888 = vunpack.c.h.b16 %v801
    %v889 = vunpack.c.l.b16 %v802
    %v890 = vunpack.c.h.b16 %v802
    %v891 = vunpack.c.l.b16 %v803
    %v892 = vunpack.c.h.b16 %v803
    %v893 = vunpack.c.l.b16 %v804
    %v894 = vunpack.c.h.b16 %v804
    %v895 = vunpack.c.l.b16 %v805
    %v896 = vunpack.c.h.b16 %v805
    %v897 = vunpack.c.l.b16 %v806
    %v898 = vunpack.c.h.b16 %v806
    %v899 = vunpack.c.l.b16 %v807
    %v900 = vunpack.c.h.b16 %v807
    %v901 = vunpack.c.l.b16 %v808
    %v902 = vunpack.c.h.b16 %v808
    %v903 = vunpack.c.l.b16 %v809
    %v904 = vunpack.c.h.b16 %v809
    %v905 = vunpack.c.l.b16 %v810
    %v906 = vunpack.c.h.b16 %v810
    %v907 = vpack.c.b16 %v847, %v843
    %v908 = vpack.c.b16 %v848, %v844
    %v909 = vpack.c.b16 %v849, %v845
    %v910 = vpack.c.b16 %v850, %v846
    %v911 = vpack.c.b16 %v855, %v851
    %v912 = vpack.c.b16 %v856, %v852
    %v913 = vpack.c.b16 %v857, %v853
    %v914 = vpack.c.b16 %v858, %v854
    %v915 = vpack.c.b16 %v863, %v859
    %v916 = vpack.c.b16 %v864, %v860
    %v917 = vpack.c.b16 %v865, %v861
    %v918 = vpack.c.b16 %v866, %v862
    %v919 = vpack.c.b16 %v871, %v867
    %v920 = vpack.c.b16 %v872, %v868
    %v921 = vpack.c.b16 %v873, %v869
    %v922 = vpack.c.b16 %v874, %v870
    %v923 = vpack.c.b16 %v879, %v875
    %v924 = vpack.c.b16 %v880, %v876
    %v925 = vpack.c.b16 %v881, %v877
    %v926 = vpack.c.b16 %v882, %v878
    %v927 = vpack.c.b16 %v887, %v883
    %v928 = vpack.c.b16 %v888, %v884
    %v929 = vpack.c.b16 %v889, %v885
    %v930 = vpack.c.b16 %v890, %v886
    %v931 = vpack.c.b16 %v895, %v891
    %v932 = vpack.c.b16 %v896, %v892
    %v933 = vpack.c.b16 %v897, %v893
    %v934 = vpack.c.b16 %v898, %v894
    %v935 = vpack.c.b16 %v903, %v899
    %v936 = vpack.c.b16 %v904, %v900
    %v937 = vpack.c.b16 %v905, %v901
    %v938 = vpack.c.b16 %v906, %v902
    %971 = vmatprep.subr.bf16.mxu0 0
    %972 = vmatpush1.bf16.msra.mxu0 %v747
    %973 = vmatprep.subr.bf16.mxu0 0
    %974 = vmatpush1.bf16.msra.mxu0 %v748
    %975 = vmatprep.subr.bf16.mxu0 0
    %976 = vmatpush1.bf16.msra.mxu0 %v749
    %977 = vmatprep.subr.bf16.mxu0 0
    %978 = vmatpush1.bf16.msra.mxu0 %v750
    %979 = vmatprep.subr.bf16.mxu0 0
    %980 = vmatpush1.bf16.msra.mxu0 %v751
    %981 = vmatprep.subr.bf16.mxu0 0
    %982 = vmatpush1.bf16.msra.mxu0 %v752
    %983 = vmatprep.subr.bf16.mxu0 0
    %984 = vmatpush1.bf16.msra.mxu0 %v753
    %985 = vmatprep.subr.bf16.mxu0 0
    %986 = vmatpush1.bf16.msra.mxu0 %v754
    %987 = vmatprep.subr.bf16.mxu0 0
    %988 = vmatpush1.bf16.msra.mxu0 %v755
    %989 = vmatprep.subr.bf16.mxu0 0
    %990 = vmatpush1.bf16.msra.mxu0 %v756
    %991 = vmatprep.subr.bf16.mxu0 0
    %992 = vmatpush1.bf16.msra.mxu0 %v757
    %993 = vmatprep.subr.bf16.mxu0 0
    %994 = vmatpush1.bf16.msra.mxu0 %v758
    %995 = vmatprep.subr.bf16.mxu0 0
    %996 = vmatpush1.bf16.msra.mxu0 %v759
    %997 = vmatprep.subr.bf16.mxu0 0
    %998 = vmatpush1.bf16.msra.mxu0 %v760
    %999 = vmatprep.subr.bf16.mxu0 0
    %1000 = vmatpush1.bf16.msra.mxu0 %v761
    %1001 = vmatprep.subr.bf16.mxu0 0
    %1002 = vmatpush1.bf16.msra.mxu0 %v762
    %1003 = vmatprep.mubr.bf16.mxu0 %v908
    %1004 = vmatmul.mubr.bf16.gmra.mrb[0].mxu0 %v907
    %v1005 = vpop.f32.mrb[0].mxu0
    %v1006 = vadd.f32 0.0, %v1005
    %v1007 = vpop.f32.mrb[0].mxu0
    %v1008 = vpop.f32.mrb[0].mxu0
    %v1009 = vadd.f32 0.0, %v1008
    %v1010 = vpop.f32.mrb[0].mxu0
    %1011 = vmatprep.mubr.bf16.mxu0 %v912
    %1012 = vmatmul.mubr.bf16.gmra.mrb[0].mxu0 %v911
    %v1013 = vpop.f32.mrb[0].mxu0
    %v1014 = vadd.f32 0.0, %v1013
    %v1015 = vpop.f32.mrb[0].mxu0
    %v1016 = vpop.f32.mrb[0].mxu0
    %v1017 = vadd.f32 0.0, %v1016
    %v1018 = vpop.f32.mrb[0].mxu0
    %1019 = vmatprep.mubr.bf16.mxu0 %v916
    %1020 = vmatmul.mubr.bf16.gmra.mrb[0].mxu0 %v915
    %v1021 = vpop.f32.mrb[0].mxu0
    %v1022 = vadd.f32 0.0, %v1021
    %v1023 = vpop.f32.mrb[0].mxu0
    %v1024 = vpop.f32.mrb[0].mxu0
    %v1025 = vadd.f32 0.0, %v1024
    %v1026 = vpop.f32.mrb[0].mxu0
    %1027 = vmatprep.mubr.bf16.mxu0 %v920
    %1028 = vmatmul.mubr.bf16.gmra.mrb[0].mxu0 %v919
    %v1029 = vpop.f32.mrb[0].mxu0
    %v1030 = vadd.f32 0.0, %v1029
    %v1031 = vpop.f32.mrb[0].mxu0
    %v1032 = vpop.f32.mrb[0].mxu0
    %v1033 = vadd.f32 0.0, %v1032
    %v1034 = vpop.f32.mrb[0].mxu0
    %1035 = vmatprep.mubr.bf16.mxu0 %v924
    %1036 = vmatmul.mubr.bf16.gmra.mrb[0].mxu0 %v923
    %v1037 = vpop.f32.mrb[0].mxu0
    %v1038 = vadd.f32 0.0, %v1037
    %v1039 = vpop.f32.mrb[0].mxu0
    %v1040 = vpop.f32.mrb[0].mxu0
    %v1041 = vadd.f32 0.0, %v1040
    %v1042 = vpop.f32.mrb[0].mxu0
    %1043 = vmatprep.mubr.bf16.mxu0 %v928
    %1044 = vmatmul.mubr.bf16.gmra.mrb[0].mxu0 %v927
    %v1045 = vpop.f32.mrb[0].mxu0
    %v1046 = vadd.f32 0.0, %v1045
    %v1047 = vpop.f32.mrb[0].mxu0
    %v1048 = vpop.f32.mrb[0].mxu0
    %v1049 = vadd.f32 0.0, %v1048
    %v1050 = vpop.f32.mrb[0].mxu0
    %1051 = vmatprep.mubr.bf16.mxu0 %v932
    %1052 = vmatmul.mubr.bf16.gmra.mrb[0].mxu0 %v931
    %v1053 = vpop.f32.mrb[0].mxu0
    %v1054 = vadd.f32 0.0, %v1053
    %v1055 = vpop.f32.mrb[0].mxu0
    %v1056 = vpop.f32.mrb[0].mxu0
    %v1057 = vadd.f32 0.0, %v1056
    %v1058 = vpop.f32.mrb[0].mxu0
    %1059 = vmatprep.mubr.bf16.mxu0 %v936
    %1060 = vmatmul.mubr.bf16.gmra.mrb[0].mxu0 %v935
    %v1061 = vpop.f32.mrb[0].mxu0
    %v1062 = vadd.f32 0.0, %v1061
    %v1063 = vpop.f32.mrb[0].mxu0
    %v1064 = vpop.f32.mrb[0].mxu0
    %v1065 = vadd.f32 0.0, %v1064
    %v1066 = vpop.f32.mrb[0].mxu0
    %1067 = vdwg.mxu0
    %1068 = vmatprep.subr.bf16.mxu0 0
    %1069 = vmatpush1.bf16.msra.mxu0 %v763
    %1070 = vmatprep.subr.bf16.mxu0 0
    %1071 = vmatpush1.bf16.msra.mxu0 %v764
    %1072 = vmatprep.subr.bf16.mxu0 0
    %1073 = vmatpush1.bf16.msra.mxu0 %v765
    %1074 = vmatprep.subr.bf16.mxu0 0
    %1075 = vmatpush1.bf16.msra.mxu0 %v766
    %1076 = vmatprep.subr.bf16.mxu0 0
    %1077 = vmatpush1.bf16.msra.mxu0 %v767
    %1078 = vmatprep.subr.bf16.mxu0 0
    %1079 = vmatpush1.bf16.msra.mxu0 %v768
    %1080 = vmatprep.subr.bf16.mxu0 0
    %1081 = vmatpush1.bf16.msra.mxu0 %v769
    %1082 = vmatprep.subr.bf16.mxu0 0
    %1083 = vmatpush1.bf16.msra.mxu0 %v770
    %1084 = vmatprep.subr.bf16.mxu0 0
    %1085 = vmatpush1.bf16.msra.mxu0 %v771
    %1086 = vmatprep.subr.bf16.mxu0 0
    %1087 = vmatpush1.bf16.msra.mxu0 %v772
    %1088 = vmatprep.subr.bf16.mxu0 0
    %1089 = vmatpush1.bf16.msra.mxu0 %v773
    %1090 = vmatprep.subr.bf16.mxu0 0
    %1091 = vmatpush1.bf16.msra.mxu0 %v774
    %1092 = vmatprep.subr.bf16.mxu0 0
    %1093 = vmatpush1.bf16.msra.mxu0 %v775
    %1094 = vmatprep.subr.bf16.mxu0 0
    %1095 = vmatpush1.bf16.msra.mxu0 %v776
    %1096 = vmatprep.subr.bf16.mxu0 0
    %1097 = vmatpush1.bf16.msra.mxu0 %v777
    %1098 = vmatprep.subr.bf16.mxu0 0
    %1099 = vmatpush1.bf16.msra.mxu0 %v778
    %1100 = vmatprep.mubr.bf16.mxu0 %v910
    %1101 = vmatmul.mubr.bf16.gmra.mrb[0].mxu0 %v909
    %v1102 = vpop.f32.mrb[0].mxu0
    %v1103 = vadd.f32 %v1006, %v1102
    %v1104 = vpop.f32.mrb[0].mxu0
    %v1105 = vpop.f32.mrb[0].mxu0
    %v1106 = vadd.f32 %v1009, %v1105
    %v1107 = vpop.f32.mrb[0].mxu0
    %1108 = vmatprep.mubr.bf16.mxu0 %v914
    %1109 = vmatmul.mubr.bf16.gmra.mrb[0].mxu0 %v913
    %v1110 = vpop.f32.mrb[0].mxu0
    %v1111 = vadd.f32 %v1014, %v1110
    %v1112 = vpop.f32.mrb[0].mxu0
    %v1113 = vpop.f32.mrb[0].mxu0
    %v1114 = vadd.f32 %v1017, %v1113
    %v1115 = vpop.f32.mrb[0].mxu0
    %1116 = vmatprep.mubr.bf16.mxu0 %v918
    %1117 = vmatmul.mubr.bf16.gmra.mrb[0].mxu0 %v917
    %v1118 = vpop.f32.mrb[0].mxu0
    %v1119 = vadd.f32 %v1022, %v1118
    %v1120 = vpop.f32.mrb[0].mxu0
    %v1121 = vpop.f32.mrb[0].mxu0
    %v1122 = vadd.f32 %v1025, %v1121
    %v1123 = vpop.f32.mrb[0].mxu0
    %1124 = vmatprep.mubr.bf16.mxu0 %v922
    %1125 = vmatmul.mubr.bf16.gmra.mrb[0].mxu0 %v921
    %v1126 = vpop.f32.mrb[0].mxu0
    %v1127 = vadd.f32 %v1030, %v1126
    %v1128 = vpop.f32.mrb[0].mxu0
    %v1129 = vpop.f32.mrb[0].mxu0
    %v1130 = vadd.f32 %v1033, %v1129
    %v1131 = vpop.f32.mrb[0].mxu0
    %1132 = vmatprep.mubr.bf16.mxu0 %v926
    %1133 = vmatmul.mubr.bf16.gmra.mrb[0].mxu0 %v925
    %v1134 = vpop.f32.mrb[0].mxu0
    %v1135 = vadd.f32 %v1038, %v1134
    %v1136 = vpop.f32.mrb[0].mxu0
    %v1137 = vpop.f32.mrb[0].mxu0
    %v1138 = vadd.f32 %v1041, %v1137
    %v1139 = vpop.f32.mrb[0].mxu0
    %1140 = vmatprep.mubr.bf16.mxu0 %v930
    %1141 = vmatmul.mubr.bf16.gmra.mrb[0].mxu0 %v929
    %v1142 = vpop.f32.mrb[0].mxu0
    %v1143 = vadd.f32 %v1046, %v1142
    %v1144 = vpop.f32.mrb[0].mxu0
    %v1145 = vpop.f32.mrb[0].mxu0
    %v1146 = vadd.f32 %v1049, %v1145
    %v1147 = vpop.f32.mrb[0].mxu0
    %1148 = vmatprep.mubr.bf16.mxu0 %v934
    %1149 = vmatmul.mubr.bf16.gmra.mrb[0].mxu0 %v933
    %v1150 = vpop.f32.mrb[0].mxu0
    %v1151 = vadd.f32 %v1054, %v1150
    %v1152 = vpop.f32.mrb[0].mxu0
    %v1153 = vpop.f32.mrb[0].mxu0
    %v1154 = vadd.f32 %v1057, %v1153
    %v1155 = vpop.f32.mrb[0].mxu0
    %1156 = vmatprep.mubr.bf16.mxu0 %v938
    %1157 = vmatmul.mubr.bf16.gmra.mrb[0].mxu0 %v937
    %v1158 = vpop.f32.mrb[0].mxu0
    %v1159 = vadd.f32 %v1062, %v1158
    %v1160 = vpop.f32.mrb[0].mxu0
    %v1161 = vpop.f32.mrb[0].mxu0
    %v1162 = vadd.f32 %v1065, %v1161
    %v1163 = vpop.f32.mrb[0].mxu0
    %1164 = vdwg.mxu0
    %v1165 = vpack.c.bf16 %v1106, %v1103
    %v1166 = vpack.c.bf16 %v1114, %v1111
    %v1167 = vpack.c.bf16 %v1122, %v1119
    %v1168 = vpack.c.bf16 %v1130, %v1127
    %v1169 = vpack.c.bf16 %v1138, %v1135
    %v1170 = vpack.c.bf16 %v1146, %v1143
    %v1171 = vpack.c.bf16 %v1154, %v1151
    %v1172 = vpack.c.bf16 %v1162, %v1159
    %v1173 = vld [vmem:[%s4] sm:$0xf]
    %v1174 = vld [vmem:[%s4 + $0x4] sm:$0xf]
    %s1175 = scalar_lea.vmem %s3, 256
    %v1176 = vld [vmem:[%s1175] sm:$0xff]
    %v1177 = vld [vmem:[%s1175 + $0x8] sm:$0xff]
    %v1178 = vld [vmem:[%s1175 + $0x10] sm:$0xff]
    %v1179 = vld [vmem:[%s1175 + $0x18] sm:$0xff]
    %v1180 = vld [vmem:[%s1175 + $0x20] sm:$0xff]
    %v1181 = vld [vmem:[%s1175 + $0x28] sm:$0xff]
    %v1182 = vld [vmem:[%s1175 + $0x30] sm:$0xff]
    %v1183 = vld [vmem:[%s1175 + $0x38] sm:$0xff]
    %v1184 = vld [vmem:[%s1175 + $0x40] sm:$0xff]
    %v1185 = vld [vmem:[%s1175 + $0x48] sm:$0xff]
    %v1186 = vld [vmem:[%s1175 + $0x50] sm:$0xff]
    %v1187 = vld [vmem:[%s1175 + $0x58] sm:$0xff]
    %v1188 = vld [vmem:[%s1175 + $0x60] sm:$0xff]
    %v1189 = vld [vmem:[%s1175 + $0x68] sm:$0xff]
    %v1190 = vld [vmem:[%s1175 + $0x70] sm:$0xff]
    %v1191 = vld [vmem:[%s1175 + $0x78] sm:$0xff]
    %v1192 = vld [vmem:[%s1175 + $0x80] sm:$0xff]
    %v1193 = vld [vmem:[%s1175 + $0x88] sm:$0xff]
    %v1194 = vld [vmem:[%s1175 + $0x90] sm:$0xff]
    %v1195 = vld [vmem:[%s1175 + $0x98] sm:$0xff]
    %v1196 = vld [vmem:[%s1175 + $0xa0] sm:$0xff]
    %v1197 = vld [vmem:[%s1175 + $0xa8] sm:$0xff]
    %v1198 = vld [vmem:[%s1175 + $0xb0] sm:$0xff]
    %v1199 = vld [vmem:[%s1175 + $0xb8] sm:$0xff]
    %v1200 = vld [vmem:[%s1175 + $0xc0] sm:$0xff]
    %v1201 = vld [vmem:[%s1175 + $0xc8] sm:$0xff]
    %v1202 = vld [vmem:[%s1175 + $0xd0] sm:$0xff]
    %v1203 = vld [vmem:[%s1175 + $0xd8] sm:$0xff]
    %v1204 = vld [vmem:[%s1175 + $0xe0] sm:$0xff]
    %v1205 = vld [vmem:[%s1175 + $0xe8] sm:$0xff]
    %v1206 = vld [vmem:[%s1175 + $0xf0] sm:$0xff]
    %v1207 = vld [vmem:[%s1175 + $0xf8] sm:$0xff]
    %v1240 = vunpack.c.l.b16 %v1176
    %v1241 = vunpack.c.h.b16 %v1176
    %v1242 = vunpack.c.l.b16 %v1177
    %v1243 = vunpack.c.h.b16 %v1177
    %v1244 = vunpack.c.l.b16 %v1178
    %v1245 = vunpack.c.h.b16 %v1178
    %v1246 = vunpack.c.l.b16 %v1179
    %v1247 = vunpack.c.h.b16 %v1179
    %v1248 = vunpack.c.l.b16 %v1180
    %v1249 = vunpack.c.h.b16 %v1180
    %v1250 = vunpack.c.l.b16 %v1181
    %v1251 = vunpack.c.h.b16 %v1181
    %v1252 = vunpack.c.l.b16 %v1182
    %v1253 = vunpack.c.h.b16 %v1182
    %v1254 = vunpack.c.l.b16 %v1183
    %v1255 = vunpack.c.h.b16 %v1183
    %v1256 = vunpack.c.l.b16 %v1184
    %v1257 = vunpack.c.h.b16 %v1184
    %v1258 = vunpack.c.l.b16 %v1185
    %v1259 = vunpack.c.h.b16 %v1185
    %v1260 = vunpack.c.l.b16 %v1186
    %v1261 = vunpack.c.h.b16 %v1186
    %v1262 = vunpack.c.l.b16 %v1187
    %v1263 = vunpack.c.h.b16 %v1187
    %v1264 = vunpack.c.l.b16 %v1188
    %v1265 = vunpack.c.h.b16 %v1188
    %v1266 = vunpack.c.l.b16 %v1189
    %v1267 = vunpack.c.h.b16 %v1189
    %v1268 = vunpack.c.l.b16 %v1190
    %v1269 = vunpack.c.h.b16 %v1190
    %v1270 = vunpack.c.l.b16 %v1191
    %v1271 = vunpack.c.h.b16 %v1191
    %v1272 = vunpack.c.l.b16 %v1192
    %v1273 = vunpack.c.h.b16 %v1192
    %v1274 = vunpack.c.l.b16 %v1193
    %v1275 = vunpack.c.h.b16 %v1193
    %v1276 = vunpack.c.l.b16 %v1194
    %v1277 = vunpack.c.h.b16 %v1194
    %v1278 = vunpack.c.l.b16 %v1195
    %v1279 = vunpack.c.h.b16 %v1195
    %v1280 = vunpack.c.l.b16 %v1196
    %v1281 = vunpack.c.h.b16 %v1196
    %v1282 = vunpack.c.l.b16 %v1197
    %v1283 = vunpack.c.h.b16 %v1197
    %v1284 = vunpack.c.l.b16 %v1198
    %v1285 = vunpack.c.h.b16 %v1198
    %v1286 = vunpack.c.l.b16 %v1199
    %v1287 = vunpack.c.h.b16 %v1199
    %v1288 = vunpack.c.l.b16 %v1200
    %v1289 = vunpack.c.h.b16 %v1200
    %v1290 = vunpack.c.l.b16 %v1201
    %v1291 = vunpack.c.h.b16 %v1201
    %v1292 = vunpack.c.l.b16 %v1202
    %v1293 = vunpack.c.h.b16 %v1202
    %v1294 = vunpack.c.l.b16 %v1203
    %v1295 = vunpack.c.h.b16 %v1203
    %v1296 = vunpack.c.l.b16 %v1204
    %v1297 = vunpack.c.h.b16 %v1204
    %v1298 = vunpack.c.l.b16 %v1205
    %v1299 = vunpack.c.h.b16 %v1205
    %v1300 = vunpack.c.l.b16 %v1206
    %v1301 = vunpack.c.h.b16 %v1206
    %v1302 = vunpack.c.l.b16 %v1207
    %v1303 = vunpack.c.h.b16 %v1207
    %v1304 = vpack.c.b16 %v1244, %v1240
    %v1305 = vpack.c.b16 %v1245, %v1241
    %v1306 = vpack.c.b16 %v1246, %v1242
    %v1307 = vpack.c.b16 %v1247, %v1243
    %v1308 = vpack.c.b16 %v1252, %v1248
    %v1309 = vpack.c.b16 %v1253, %v1249
    %v1310 = vpack.c.b16 %v1254, %v1250
    %v1311 = vpack.c.b16 %v1255, %v1251
    %v1312 = vpack.c.b16 %v1260, %v1256
    %v1313 = vpack.c.b16 %v1261, %v1257
    %v1314 = vpack.c.b16 %v1262, %v1258
    %v1315 = vpack.c.b16 %v1263, %v1259
    %v1316 = vpack.c.b16 %v1268, %v1264
    %v1317 = vpack.c.b16 %v1269, %v1265
    %v1318 = vpack.c.b16 %v1270, %v1266
    %v1319 = vpack.c.b16 %v1271, %v1267
    %v1320 = vpack.c.b16 %v1276, %v1272
    %v1321 = vpack.c.b16 %v1277, %v1273
    %v1322 = vpack.c.b16 %v1278, %v1274
    %v1323 = vpack.c.b16 %v1279, %v1275
    %v1324 = vpack.c.b16 %v1284, %v1280
    %v1325 = vpack.c.b16 %v1285, %v1281
    %v1326 = vpack.c.b16 %v1286, %v1282
    %v1327 = vpack.c.b16 %v1287, %v1283
    %v1328 = vpack.c.b16 %v1292, %v1288
    %v1329 = vpack.c.b16 %v1293, %v1289
    %v1330 = vpack.c.b16 %v1294, %v1290
    %v1331 = vpack.c.b16 %v1295, %v1291
    %v1332 = vpack.c.b16 %v1300, %v1296
    %v1333 = vpack.c.b16 %v1301, %v1297
    %v1334 = vpack.c.b16 %v1302, %v1298
    %v1335 = vpack.c.b16 %v1303, %v1299
    %1368 = vmatprep.subr.bf16.mxu0 0
    %1369 = vmatpush1.bf16.msra.mxu0 %v747
    %1370 = vmatprep.subr.bf16.mxu0 0
    %1371 = vmatpush1.bf16.msra.mxu0 %v748
    %1372 = vmatprep.subr.bf16.mxu0 0
    %1373 = vmatpush1.bf16.msra.mxu0 %v749
    %1374 = vmatprep.subr.bf16.mxu0 0
    %1375 = vmatpush1.bf16.msra.mxu0 %v750
    %1376 = vmatprep.subr.bf16.mxu0 0
    %1377 = vmatpush1.bf16.msra.mxu0 %v751
    %1378 = vmatprep.subr.bf16.mxu0 0
    %1379 = vmatpush1.bf16.msra.mxu0 %v752
    %1380 = vmatprep.subr.bf16.mxu0 0
    %1381 = vmatpush1.bf16.msra.mxu0 %v753
    %1382 = vmatprep.subr.bf16.mxu0 0
    %1383 = vmatpush1.bf16.msra.mxu0 %v754
    %1384 = vmatprep.subr.bf16.mxu0 0
    %1385 = vmatpush1.bf16.msra.mxu0 %v755
    %1386 = vmatprep.subr.bf16.mxu0 0
    %1387 = vmatpush1.bf16.msra.mxu0 %v756
    %1388 = vmatprep.subr.bf16.mxu0 0
    %1389 = vmatpush1.bf16.msra.mxu0 %v757
    %1390 = vmatprep.subr.bf16.mxu0 0
    %1391 = vmatpush1.bf16.msra.mxu0 %v758
    %1392 = vmatprep.subr.bf16.mxu0 0
    %1393 = vmatpush1.bf16.msra.mxu0 %v759
    %1394 = vmatprep.subr.bf16.mxu0 0
    %1395 = vmatpush1.bf16.msra.mxu0 %v760
    %1396 = vmatprep.subr.bf16.mxu0 0
    %1397 = vmatpush1.bf16.msra.mxu0 %v761
    %1398 = vmatprep.subr.bf16.mxu0 0
    %1399 = vmatpush1.bf16.msra.mxu0 %v762
    %1400 = vmatprep.mubr.bf16.mxu0 %v1305
    %1401 = vmatmul.mubr.bf16.gmra.mrb[0].mxu0 %v1304
    %v1402 = vpop.f32.mrb[0].mxu0
    %v1403 = vadd.f32 0.0, %v1402
    %v1404 = vpop.f32.mrb[0].mxu0
    %v1405 = vpop.f32.mrb[0].mxu0
    %v1406 = vadd.f32 0.0, %v1405
    %v1407 = vpop.f32.mrb[0].mxu0
    %1408 = vmatprep.mubr.bf16.mxu0 %v1309
    %1409 = vmatmul.mubr.bf16.gmra.mrb[0].mxu0 %v1308
    %v1410 = vpop.f32.mrb[0].mxu0
    %v1411 = vadd.f32 0.0, %v1410
    %v1412 = vpop.f32.mrb[0].mxu0
    %v1413 = vpop.f32.mrb[0].mxu0
    %v1414 = vadd.f32 0.0, %v1413
    %v1415 = vpop.f32.mrb[0].mxu0
    %1416 = vmatprep.mubr.bf16.mxu0 %v1313
    %1417 = vmatmul.mubr.bf16.gmra.mrb[0].mxu0 %v1312
    %v1418 = vpop.f32.mrb[0].mxu0
    %v1419 = vadd.f32 0.0, %v1418
    %v1420 = vpop.f32.mrb[0].mxu0
    %v1421 = vpop.f32.mrb[0].mxu0
    %v1422 = vadd.f32 0.0, %v1421
    %v1423 = vpop.f32.mrb[0].mxu0
    %1424 = vmatprep.mubr.bf16.mxu0 %v1317
    %1425 = vmatmul.mubr.bf16.gmra.mrb[0].mxu0 %v1316
    %v1426 = vpop.f32.mrb[0].mxu0
    %v1427 = vadd.f32 0.0, %v1426
    %v1428 = vpop.f32.mrb[0].mxu0
    %v1429 = vpop.f32.mrb[0].mxu0
    %v1430 = vadd.f32 0.0, %v1429
    %v1431 = vpop.f32.mrb[0].mxu0
    %1432 = vmatprep.mubr.bf16.mxu0 %v1321
    %1433 = vmatmul.mubr.bf16.gmra.mrb[0].mxu0 %v1320
    %v1434 = vpop.f32.mrb[0].mxu0
    %v1435 = vadd.f32 0.0, %v1434
    %v1436 = vpop.f32.mrb[0].mxu0
    %v1437 = vpop.f32.mrb[0].mxu0
    %v1438 = vadd.f32 0.0, %v1437
    %v1439 = vpop.f32.mrb[0].mxu0
    %1440 = vmatprep.mubr.bf16.mxu0 %v1325
    %1441 = vmatmul.mubr.bf16.gmra.mrb[0].mxu0 %v1324
    %v1442 = vpop.f32.mrb[0].mxu0
    %v1443 = vadd.f32 0.0, %v1442
    %v1444 = vpop.f32.mrb[0].mxu0
    %v1445 = vpop.f32.mrb[0].mxu0
    %v1446 = vadd.f32 0.0, %v1445
    %v1447 = vpop.f32.mrb[0].mxu0
    %1448 = vmatprep.mubr.bf16.mxu0 %v1329
    %1449 = vmatmul.mubr.bf16.gmra.mrb[0].mxu0 %v1328
    %v1450 = vpop.f32.mrb[0].mxu0
    %v1451 = vadd.f32 0.0, %v1450
    %v1452 = vpop.f32.mrb[0].mxu0
    %v1453 = vpop.f32.mrb[0].mxu0
    %v1454 = vadd.f32 0.0, %v1453
    %v1455 = vpop.f32.mrb[0].mxu0
    %1456 = vmatprep.mubr.bf16.mxu0 %v1333
    %1457 = vmatmul.mubr.bf16.gmra.mrb[0].mxu0 %v1332
    %v1458 = vpop.f32.mrb[0].mxu0
    %v1459 = vadd.f32 0.0, %v1458
    %v1460 = vpop.f32.mrb[0].mxu0
    %v1461 = vpop.f32.mrb[0].mxu0
    %v1462 = vadd.f32 0.0, %v1461
    %v1463 = vpop.f32.mrb[0].mxu0
    %1464 = vdwg.mxu0
    %1465 = vmatprep.subr.bf16.mxu0 0
    %1466 = vmatpush1.bf16.msra.mxu0 %v763
    %1467 = vmatprep.subr.bf16.mxu0 0
    %1468 = vmatpush1.bf16.msra.mxu0 %v764
    %1469 = vmatprep.subr.bf16.mxu0 0
    %1470 = vmatpush1.bf16.msra.mxu0 %v765
    %1471 = vmatprep.subr.bf16.mxu0 0
    %1472 = vmatpush1.bf16.msra.mxu0 %v766
    %1473 = vmatprep.subr.bf16.mxu0 0
    %1474 = vmatpush1.bf16.msra.mxu0 %v767
    %1475 = vmatprep.subr.bf16.mxu0 0
    %1476 = vmatpush1.bf16.msra.mxu0 %v768
    %1477 = vmatprep.subr.bf16.mxu0 0
    %1478 = vmatpush1.bf16.msra.mxu0 %v769
    %1479 = vmatprep.subr.bf16.mxu0 0
    %1480 = vmatpush1.bf16.msra.mxu0 %v770
    %1481 = vmatprep.subr.bf16.mxu0 0
    %1482 = vmatpush1.bf16.msra.mxu0 %v771
    %1483 = vmatprep.subr.bf16.mxu0 0
    %1484 = vmatpush1.bf16.msra.mxu0 %v772
    %1485 = vmatprep.subr.bf16.mxu0 0
    %1486 = vmatpush1.bf16.msra.mxu0 %v773
    %1487 = vmatprep.subr.bf16.mxu0 0
    %1488 = vmatpush1.bf16.msra.mxu0 %v774
    %1489 = vmatprep.subr.bf16.mxu0 0
    %1490 = vmatpush1.bf16.msra.mxu0 %v775
    %1491 = vmatprep.subr.bf16.mxu0 0
    %1492 = vmatpush1.bf16.msra.mxu0 %v776
    %1493 = vmatprep.subr.bf16.mxu0 0
    %1494 = vmatpush1.bf16.msra.mxu0 %v777
    %1495 = vmatprep.subr.bf16.mxu0 0
    %1496 = vmatpush1.bf16.msra.mxu0 %v778
    %1497 = vmatprep.mubr.bf16.mxu0 %v1307
    %1498 = vmatmul.mubr.bf16.gmra.mrb[0].mxu0 %v1306
    %v1499 = vpop.f32.mrb[0].mxu0
    %v1500 = vadd.f32 %v1403, %v1499
    %v1501 = vpop.f32.mrb[0].mxu0
    %v1502 = vpop.f32.mrb[0].mxu0
    %v1503 = vadd.f32 %v1406, %v1502
    %v1504 = vpop.f32.mrb[0].mxu0
    %1505 = vmatprep.mubr.bf16.mxu0 %v1311
    %1506 = vmatmul.mubr.bf16.gmra.mrb[0].mxu0 %v1310
    %v1507 = vpop.f32.mrb[0].mxu0
    %v1508 = vadd.f32 %v1411, %v1507
    %v1509 = vpop.f32.mrb[0].mxu0
    %v1510 = vpop.f32.mrb[0].mxu0
    %v1511 = vadd.f32 %v1414, %v1510
    %v1512 = vpop.f32.mrb[0].mxu0
    %1513 = vmatprep.mubr.bf16.mxu0 %v1315
    %1514 = vmatmul.mubr.bf16.gmra.mrb[0].mxu0 %v1314
    %v1515 = vpop.f32.mrb[0].mxu0
    %v1516 = vadd.f32 %v1419, %v1515
    %v1517 = vpop.f32.mrb[0].mxu0
    %v1518 = vpop.f32.mrb[0].mxu0
    %v1519 = vadd.f32 %v1422, %v1518
    %v1520 = vpop.f32.mrb[0].mxu0
    %1521 = vmatprep.mubr.bf16.mxu0 %v1319
    %1522 = vmatmul.mubr.bf16.gmra.mrb[0].mxu0 %v1318
    %v1523 = vpop.f32.mrb[0].mxu0
    %v1524 = vadd.f32 %v1427, %v1523
    %v1525 = vpop.f32.mrb[0].mxu0
    %v1526 = vpop.f32.mrb[0].mxu0
    %v1527 = vadd.f32 %v1430, %v1526
    %v1528 = vpop.f32.mrb[0].mxu0
    %1529 = vmatprep.mubr.bf16.mxu0 %v1323
    %1530 = vmatmul.mubr.bf16.gmra.mrb[0].mxu0 %v1322
    %v1531 = vpop.f32.mrb[0].mxu0
    %v1532 = vadd.f32 %v1435, %v1531
    %v1533 = vpop.f32.mrb[0].mxu0
    %v1534 = vpop.f32.mrb[0].mxu0
    %v1535 = vadd.f32 %v1438, %v1534
    %v1536 = vpop.f32.mrb[0].mxu0
    %1537 = vmatprep.mubr.bf16.mxu0 %v1327
    %1538 = vmatmul.mubr.bf16.gmra.mrb[0].mxu0 %v1326
    %v1539 = vpop.f32.mrb[0].mxu0
    %v1540 = vadd.f32 %v1443, %v1539
    %v1541 = vpop.f32.mrb[0].mxu0
    %v1542 = vpop.f32.mrb[0].mxu0
    %v1543 = vadd.f32 %v1446, %v1542
    %v1544 = vpop.f32.mrb[0].mxu0
    %1545 = vmatprep.mubr.bf16.mxu0 %v1331
    %1546 = vmatmul.mubr.bf16.gmra.mrb[0].mxu0 %v1330
    %v1547 = vpop.f32.mrb[0].mxu0
    %v1548 = vadd.f32 %v1451, %v1547
    %v1549 = vpop.f32.mrb[0].mxu0
    %v1550 = vpop.f32.mrb[0].mxu0
    %v1551 = vadd.f32 %v1454, %v1550
    %v1552 = vpop.f32.mrb[0].mxu0
    %1553 = vmatprep.mubr.bf16.mxu0 %v1335
    %1554 = vmatmul.mubr.bf16.gmra.mrb[0].mxu0 %v1334
    %v1555 = vpop.f32.mrb[0].mxu0
    %v1556 = vadd.f32 %v1459, %v1555
    %v1557 = vpop.f32.mrb[0].mxu0
    %v1558 = vpop.f32.mrb[0].mxu0
    %v1559 = vadd.f32 %v1462, %v1558
    %v1560 = vpop.f32.mrb[0].mxu0
    %1561 = vdwg.mxu0
    %v1562 = vpack.c.bf16 %v1503, %v1500
    %v1563 = vpack.c.bf16 %v1511, %v1508
    %v1564 = vpack.c.bf16 %v1519, %v1516
    %v1565 = vpack.c.bf16 %v1527, %v1524
    %v1566 = vpack.c.bf16 %v1535, %v1532
    %v1567 = vpack.c.bf16 %v1543, %v1540
    %v1568 = vpack.c.bf16 %v1551, %v1548
    %v1569 = vpack.c.bf16 %v1559, %v1556
    %s1570 = scalar_lea.vmem %s4, 8
    %v1571 = vld [vmem:[%s1570] sm:$0xf]
    %v1572 = vld [vmem:[%s1570 + $0x4] sm:$0xf]
    %v1575 = vunpack.c.l.b16 %v1571
    %v1576 = vunpack.c.l.b16 %v1572
    %v1577 = vpack.c.b16 %v1576, %v1575
    %vm1579 = vcmask 130048
    %v1581 = vsel %vm1579, %v1562, 0
    %v1584 = vsel %vm1579, %v1563, 0
    %v1587 = vsel %vm1579, %v1564, 0
    %v1590 = vsel %vm1579, %v1565, 0
    %v1593 = vsel %vm1579, %v1566, 0
    %v1596 = vsel %vm1579, %v1567, 0
    %v1599 = vsel %vm1579, %v1568, 0
    %v1602 = vsel %vm1579, %v1569, 0
    %1604 = vmatprep.subr.bf16.mxu0 0
    %1605 = vmatpush1.bf16.msra.mxu0 %v1577
    %1606 = vmatprep.subr.bf16.mxu0 0
    %1607 = vmatpush1.bf16.msra.mxu0 0
    %1608 = vmatprep.subr.bf16.mxu0 0
    %1609 = vmatpush1.bf16.msra.mxu0 0
    %1610 = vmatprep.subr.bf16.mxu0 0
    %1611 = vmatpush1.bf16.msra.mxu0 0
    %1612 = vmatprep.subr.bf16.mxu0 0
    %1613 = vmatpush1.bf16.msra.mxu0 0
    %1614 = vmatprep.subr.bf16.mxu0 0
    %1615 = vmatpush1.bf16.msra.mxu0 0
    %1616 = vmatprep.subr.bf16.mxu0 0
    %1617 = vmatpush1.bf16.msra.mxu0 0
    %1618 = vmatprep.subr.bf16.mxu0 0
    %1619 = vmatpush1.bf16.msra.mxu0 0
    %1620 = vmatprep.subr.bf16.mxu0 0
    %1621 = vmatpush1.bf16.msra.mxu0 0
    %1622 = vmatprep.subr.bf16.mxu0 0
    %1623 = vmatpush1.bf16.msra.mxu0 0
    %1624 = vmatprep.subr.bf16.mxu0 0
    %1625 = vmatpush1.bf16.msra.mxu0 0
    %1626 = vmatprep.subr.bf16.mxu0 0
    %1627 = vmatpush1.bf16.msra.mxu0 0
    %1628 = vmatprep.subr.bf16.mxu0 0
    %1629 = vmatpush1.bf16.msra.mxu0 0
    %1630 = vmatprep.subr.bf16.mxu0 0
    %1631 = vmatpush1.bf16.msra.mxu0 0
    %1632 = vmatprep.subr.bf16.mxu0 0
    %1633 = vmatpush1.bf16.msra.mxu0 0
    %1634 = vmatprep.subr.bf16.mxu0 0
    %1635 = vmatpush1.bf16.msra.mxu0 0
    %1636 = vmatprep.mubr.bf16.mxu0 0
    %1637 = vmatmul.mubr.bf16.gmra.mrb[0].mxu0 %v1581
    %v1638 = vpop.f32.mrb[0].mxu0
    %v1639 = vadd.f32 0.0, %v1638
    %v1640 = vpop.f32.mrb[0].mxu0
    %v1641 = vpop.f32.mrb[0].mxu0
    %v1642 = vadd.f32 0.0, %v1641
    %v1643 = vpop.f32.mrb[0].mxu0
    %1644 = vmatprep.mubr.bf16.mxu0 0
    %1645 = vmatmul.mubr.bf16.gmra.mrb[0].mxu0 %v1584
    %v1646 = vpop.f32.mrb[0].mxu0
    %v1647 = vadd.f32 0.0, %v1646
    %v1648 = vpop.f32.mrb[0].mxu0
    %v1649 = vpop.f32.mrb[0].mxu0
    %v1650 = vadd.f32 0.0, %v1649
    %v1651 = vpop.f32.mrb[0].mxu0
    %1652 = vmatprep.mubr.bf16.mxu0 0
    %1653 = vmatmul.mubr.bf16.gmra.mrb[0].mxu0 %v1587
    %v1654 = vpop.f32.mrb[0].mxu0
    %v1655 = vadd.f32 0.0, %v1654
    %v1656 = vpop.f32.mrb[0].mxu0
    %v1657 = vpop.f32.mrb[0].mxu0
    %v1658 = vadd.f32 0.0, %v1657
    %v1659 = vpop.f32.mrb[0].mxu0
    %1660 = vmatprep.mubr.bf16.mxu0 0
    %1661 = vmatmul.mubr.bf16.gmra.mrb[0].mxu0 %v1590
    %v1662 = vpop.f32.mrb[0].mxu0
    %v1663 = vadd.f32 0.0, %v1662
    %v1664 = vpop.f32.mrb[0].mxu0
    %v1665 = vpop.f32.mrb[0].mxu0
    %v1666 = vadd.f32 0.0, %v1665
    %v1667 = vpop.f32.mrb[0].mxu0
    %1668 = vmatprep.mubr.bf16.mxu0 0
    %1669 = vmatmul.mubr.bf16.gmra.mrb[0].mxu0 %v1593
    %v1670 = vpop.f32.mrb[0].mxu0
    %v1671 = vadd.f32 0.0, %v1670
    %v1672 = vpop.f32.mrb[0].mxu0
    %v1673 = vpop.f32.mrb[0].mxu0
    %v1674 = vadd.f32 0.0, %v1673
    %v1675 = vpop.f32.mrb[0].mxu0
    %1676 = vmatprep.mubr.bf16.mxu0 0
    %1677 = vmatmul.mubr.bf16.gmra.mrb[0].mxu0 %v1596
    %v1678 = vpop.f32.mrb[0].mxu0
    %v1679 = vadd.f32 0.0, %v1678
    %v1680 = vpop.f32.mrb[0].mxu0
    %v1681 = vpop.f32.mrb[0].mxu0
    %v1682 = vadd.f32 0.0, %v1681
    %v1683 = vpop.f32.mrb[0].mxu0
    %1684 = vmatprep.mubr.bf16.mxu0 0
    %1685 = vmatmul.mubr.bf16.gmra.mrb[0].mxu0 %v1599
    %v1686 = vpop.f32.mrb[0].mxu0
    %v1687 = vadd.f32 0.0, %v1686
    %v1688 = vpop.f32.mrb[0].mxu0
    %v1689 = vpop.f32.mrb[0].mxu0
    %v1690 = vadd.f32 0.0, %v1689
    %v1691 = vpop.f32.mrb[0].mxu0
    %1692 = vmatprep.mubr.bf16.mxu0 0
    %1693 = vmatmul.mubr.bf16.gmra.mrb[0].mxu0 %v1602
    %v1694 = vpop.f32.mrb[0].mxu0
    %v1695 = vadd.f32 0.0, %v1694
    %v1696 = vpop.f32.mrb[0].mxu0
    %v1697 = vpop.f32.mrb[0].mxu0
    %v1698 = vadd.f32 0.0, %v1697
    %v1699 = vpop.f32.mrb[0].mxu0
    %1700 = vdwg.mxu0
    %v1703 = vunpack.c.l.b16 %v1173
    %v1704 = vunpack.c.l.b16 %v1174
    %v1705 = vpack.c.b16 %v1704, %v1703
    %v1708 = vsel %vm1579, %v1165, 0
    %v1711 = vsel %vm1579, %v1166, 0
    %v1714 = vsel %vm1579, %v1167, 0
    %v1717 = vsel %vm1579, %v1168, 0
    %v1720 = vsel %vm1579, %v1169, 0
    %v1723 = vsel %vm1579, %v1170, 0
    %v1726 = vsel %vm1579, %v1171, 0
    %v1729 = vsel %vm1579, %v1172, 0
    %1731 = vmatprep.subr.bf16.mxu0 0
    %1732 = vmatpush1.bf16.msra.mxu0 %v1705
    %1733 = vmatprep.subr.bf16.mxu0 0
    %1734 = vmatpush1.bf16.msra.mxu0 0
    %1735 = vmatprep.subr.bf16.mxu0 0
    %1736 = vmatpush1.bf16.msra.mxu0 0
    %1737 = vmatprep.subr.bf16.mxu0 0
    %1738 = vmatpush1.bf16.msra.mxu0 0
    %1739 = vmatprep.subr.bf16.mxu0 0
    %1740 = vmatpush1.bf16.msra.mxu0 0
    %1741 = vmatprep.subr.bf16.mxu0 0
    %1742 = vmatpush1.bf16.msra.mxu0 0
    %1743 = vmatprep.subr.bf16.mxu0 0
    %1744 = vmatpush1.bf16.msra.mxu0 0
    %1745 = vmatprep.subr.bf16.mxu0 0
    %1746 = vmatpush1.bf16.msra.mxu0 0
    %1747 = vmatprep.subr.bf16.mxu0 0
    %1748 = vmatpush1.bf16.msra.mxu0 0
    %1749 = vmatprep.subr.bf16.mxu0 0
    %1750 = vmatpush1.bf16.msra.mxu0 0
    %1751 = vmatprep.subr.bf16.mxu0 0
    %1752 = vmatpush1.bf16.msra.mxu0 0
    %1753 = vmatprep.subr.bf16.mxu0 0
    %1754 = vmatpush1.bf16.msra.mxu0 0
    %1755 = vmatprep.subr.bf16.mxu0 0
    %1756 = vmatpush1.bf16.msra.mxu0 0
    %1757 = vmatprep.subr.bf16.mxu0 0
    %1758 = vmatpush1.bf16.msra.mxu0 0
    %1759 = vmatprep.subr.bf16.mxu0 0
    %1760 = vmatpush1.bf16.msra.mxu0 0
    %1761 = vmatprep.subr.bf16.mxu0 0
    %1762 = vmatpush1.bf16.msra.mxu0 0
    %1763 = vmatprep.mubr.bf16.mxu0 0
    %1764 = vmatmul.mubr.bf16.gmra.mrb[0].mxu0 %v1708
    %v1765 = vpop.f32.mrb[0].mxu0
    %v1766 = vadd.f32 %v1639, %v1765
    %v1767 = vpop.f32.mrb[0].mxu0
    %v1768 = vpop.f32.mrb[0].mxu0
    %v1769 = vadd.f32 %v1642, %v1768
    %v1770 = vpop.f32.mrb[0].mxu0
    %1771 = vmatprep.mubr.bf16.mxu0 0
    %1772 = vmatmul.mubr.bf16.gmra.mrb[0].mxu0 %v1711
    %v1773 = vpop.f32.mrb[0].mxu0
    %v1774 = vadd.f32 %v1647, %v1773
    %v1775 = vpop.f32.mrb[0].mxu0
    %v1776 = vpop.f32.mrb[0].mxu0
    %v1777 = vadd.f32 %v1650, %v1776
    %v1778 = vpop.f32.mrb[0].mxu0
    %1779 = vmatprep.mubr.bf16.mxu0 0
    %1780 = vmatmul.mubr.bf16.gmra.mrb[0].mxu0 %v1714
    %v1781 = vpop.f32.mrb[0].mxu0
    %v1782 = vadd.f32 %v1655, %v1781
    %v1783 = vpop.f32.mrb[0].mxu0
    %v1784 = vpop.f32.mrb[0].mxu0
    %v1785 = vadd.f32 %v1658, %v1784
    %v1786 = vpop.f32.mrb[0].mxu0
    %1787 = vmatprep.mubr.bf16.mxu0 0
    %1788 = vmatmul.mubr.bf16.gmra.mrb[0].mxu0 %v1717
    %v1789 = vpop.f32.mrb[0].mxu0
    %v1790 = vadd.f32 %v1663, %v1789
    %v1791 = vpop.f32.mrb[0].mxu0
    %v1792 = vpop.f32.mrb[0].mxu0
    %v1793 = vadd.f32 %v1666, %v1792
    %v1794 = vpop.f32.mrb[0].mxu0
    %1795 = vmatprep.mubr.bf16.mxu0 0
    %1796 = vmatmul.mubr.bf16.gmra.mrb[0].mxu0 %v1720
    %v1797 = vpop.f32.mrb[0].mxu0
    %v1798 = vadd.f32 %v1671, %v1797
    %v1799 = vpop.f32.mrb[0].mxu0
    %v1800 = vpop.f32.mrb[0].mxu0
    %v1801 = vadd.f32 %v1674, %v1800
    %v1802 = vpop.f32.mrb[0].mxu0
    %1803 = vmatprep.mubr.bf16.mxu0 0
    %1804 = vmatmul.mubr.bf16.gmra.mrb[0].mxu0 %v1723
    %v1805 = vpop.f32.mrb[0].mxu0
    %v1806 = vadd.f32 %v1679, %v1805
    %v1807 = vpop.f32.mrb[0].mxu0
    %v1808 = vpop.f32.mrb[0].mxu0
    %v1809 = vadd.f32 %v1682, %v1808
    %v1810 = vpop.f32.mrb[0].mxu0
    %1811 = vmatprep.mubr.bf16.mxu0 0
    %1812 = vmatmul.mubr.bf16.gmra.mrb[0].mxu0 %v1726
    %v1813 = vpop.f32.mrb[0].mxu0
    %v1814 = vadd.f32 %v1687, %v1813
    %v1815 = vpop.f32.mrb[0].mxu0
    %v1816 = vpop.f32.mrb[0].mxu0
    %v1817 = vadd.f32 %v1690, %v1816
    %v1818 = vpop.f32.mrb[0].mxu0
    %1819 = vmatprep.mubr.bf16.mxu0 0
    %1820 = vmatmul.mubr.bf16.gmra.mrb[0].mxu0 %v1729
    %v1821 = vpop.f32.mrb[0].mxu0
    %v1822 = vadd.f32 %v1695, %v1821
    %v1823 = vpop.f32.mrb[0].mxu0
    %v1824 = vpop.f32.mrb[0].mxu0
    %v1825 = vadd.f32 %v1698, %v1824
    %v1826 = vpop.f32.mrb[0].mxu0
    %1827 = vdwg.mxu0
    %s1828 = scalar_lea.vmem %s3, 512
    %v1829 = vld [vmem:[%s1828] sm:$0xff]
    %v1830 = vld [vmem:[%s1828 + $0x8] sm:$0xff]
    %v1831 = vld [vmem:[%s1828 + $0x10] sm:$0xff]
    %v1832 = vld [vmem:[%s1828 + $0x18] sm:$0xff]
    %v1833 = vld [vmem:[%s1828 + $0x20] sm:$0xff]
    %v1834 = vld [vmem:[%s1828 + $0x28] sm:$0xff]
    %v1835 = vld [vmem:[%s1828 + $0x30] sm:$0xff]
    %v1836 = vld [vmem:[%s1828 + $0x38] sm:$0xff]
    %v1837 = vld [vmem:[%s1828 + $0x40] sm:$0xff]
    %v1838 = vld [vmem:[%s1828 + $0x48] sm:$0xff]
    %v1839 = vld [vmem:[%s1828 + $0x50] sm:$0xff]
    %v1840 = vld [vmem:[%s1828 + $0x58] sm:$0xff]
    %v1841 = vld [vmem:[%s1828 + $0x60] sm:$0xff]
    %v1842 = vld [vmem:[%s1828 + $0x68] sm:$0xff]
    %v1843 = vld [vmem:[%s1828 + $0x70] sm:$0xff]
    %v1844 = vld [vmem:[%s1828 + $0x78] sm:$0xff]
    %v1845 = vld [vmem:[%s1828 + $0x80] sm:$0xff]
    %v1846 = vld [vmem:[%s1828 + $0x88] sm:$0xff]
    %v1847 = vld [vmem:[%s1828 + $0x90] sm:$0xff]
    %v1848 = vld [vmem:[%s1828 + $0x98] sm:$0xff]
    %v1849 = vld [vmem:[%s1828 + $0xa0] sm:$0xff]
    %v1850 = vld [vmem:[%s1828 + $0xa8] sm:$0xff]
    %v1851 = vld [vmem:[%s1828 + $0xb0] sm:$0xff]
    %v1852 = vld [vmem:[%s1828 + $0xb8] sm:$0xff]
    %v1853 = vld [vmem:[%s1828 + $0xc0] sm:$0xff]
    %v1854 = vld [vmem:[%s1828 + $0xc8] sm:$0xff]
    %v1855 = vld [vmem:[%s1828 + $0xd0] sm:$0xff]
    %v1856 = vld [vmem:[%s1828 + $0xd8] sm:$0xff]
    %v1857 = vld [vmem:[%s1828 + $0xe0] sm:$0xff]
    %v1858 = vld [vmem:[%s1828 + $0xe8] sm:$0xff]
    %v1859 = vld [vmem:[%s1828 + $0xf0] sm:$0xff]
    %v1860 = vld [vmem:[%s1828 + $0xf8] sm:$0xff]
    %v1893 = vunpack.c.l.b16 %v1829
    %v1894 = vunpack.c.h.b16 %v1829
    %v1895 = vunpack.c.l.b16 %v1830
    %v1896 = vunpack.c.h.b16 %v1830
    %v1897 = vunpack.c.l.b16 %v1831
    %v1898 = vunpack.c.h.b16 %v1831
    %v1899 = vunpack.c.l.b16 %v1832
    %v1900 = vunpack.c.h.b16 %v1832
    %v1901 = vunpack.c.l.b16 %v1833
    %v1902 = vunpack.c.h.b16 %v1833
    %v1903 = vunpack.c.l.b16 %v1834
    %v1904 = vunpack.c.h.b16 %v1834
    %v1905 = vunpack.c.l.b16 %v1835
    %v1906 = vunpack.c.h.b16 %v1835
    %v1907 = vunpack.c.l.b16 %v1836
    %v1908 = vunpack.c.h.b16 %v1836
    %v1909 = vunpack.c.l.b16 %v1837
    %v1910 = vunpack.c.h.b16 %v1837
    %v1911 = vunpack.c.l.b16 %v1838
    %v1912 = vunpack.c.h.b16 %v1838
    %v1913 = vunpack.c.l.b16 %v1839
    %v1914 = vunpack.c.h.b16 %v1839
    %v1915 = vunpack.c.l.b16 %v1840
    %v1916 = vunpack.c.h.b16 %v1840
    %v1917 = vunpack.c.l.b16 %v1841
    %v1918 = vunpack.c.h.b16 %v1841
    %v1919 = vunpack.c.l.b16 %v1842
    %v1920 = vunpack.c.h.b16 %v1842
    %v1921 = vunpack.c.l.b16 %v1843
    %v1922 = vunpack.c.h.b16 %v1843
    %v1923 = vunpack.c.l.b16 %v1844
    %v1924 = vunpack.c.h.b16 %v1844
    %v1925 = vunpack.c.l.b16 %v1845
    %v1926 = vunpack.c.h.b16 %v1845
    %v1927 = vunpack.c.l.b16 %v1846
    %v1928 = vunpack.c.h.b16 %v1846
    %v1929 = vunpack.c.l.b16 %v1847
    %v1930 = vunpack.c.h.b16 %v1847
    %v1931 = vunpack.c.l.b16 %v1848
    %v1932 = vunpack.c.h.b16 %v1848
    %v1933 = vunpack.c.l.b16 %v1849
    %v1934 = vunpack.c.h.b16 %v1849
    %v1935 = vunpack.c.l.b16 %v1850
    %v1936 = vunpack.c.h.b16 %v1850
    %v1937 = vunpack.c.l.b16 %v1851
    %v1938 = vunpack.c.h.b16 %v1851
    %v1939 = vunpack.c.l.b16 %v1852
    %v1940 = vunpack.c.h.b16 %v1852
    %v1941 = vunpack.c.l.b16 %v1853
    %v1942 = vunpack.c.h.b16 %v1853
    %v1943 = vunpack.c.l.b16 %v1854
    %v1944 = vunpack.c.h.b16 %v1854
    %v1945 = vunpack.c.l.b16 %v1855
    %v1946 = vunpack.c.h.b16 %v1855
    %v1947 = vunpack.c.l.b16 %v1856
    %v1948 = vunpack.c.h.b16 %v1856
    %v1949 = vunpack.c.l.b16 %v1857
    %v1950 = vunpack.c.h.b16 %v1857
    %v1951 = vunpack.c.l.b16 %v1858
    %v1952 = vunpack.c.h.b16 %v1858
    %v1953 = vunpack.c.l.b16 %v1859
    %v1954 = vunpack.c.h.b16 %v1859
    %v1955 = vunpack.c.l.b16 %v1860
    %v1956 = vunpack.c.h.b16 %v1860
    %v1957 = vpack.c.b16 %v1897, %v1893
    %v1958 = vpack.c.b16 %v1898, %v1894
    %v1959 = vpack.c.b16 %v1899, %v1895
    %v1960 = vpack.c.b16 %v1900, %v1896
    %v1961 = vpack.c.b16 %v1905, %v1901
    %v1962 = vpack.c.b16 %v1906, %v1902
    %v1963 = vpack.c.b16 %v1907, %v1903
    %v1964 = vpack.c.b16 %v1908, %v1904
    %v1965 = vpack.c.b16 %v1913, %v1909
    %v1966 = vpack.c.b16 %v1914, %v1910
    %v1967 = vpack.c.b16 %v1915, %v1911
    %v1968 = vpack.c.b16 %v1916, %v1912
    %v1969 = vpack.c.b16 %v1921, %v1917
    %v1970 = vpack.c.b16 %v1922, %v1918
    %v1971 = vpack.c.b16 %v1923, %v1919
    %v1972 = vpack.c.b16 %v1924, %v1920
    %v1973 = vpack.c.b16 %v1929, %v1925
    %v1974 = vpack.c.b16 %v1930, %v1926
    %v1975 = vpack.c.b16 %v1931, %v1927
    %v1976 = vpack.c.b16 %v1932, %v1928
    %v1977 = vpack.c.b16 %v1937, %v1933
    %v1978 = vpack.c.b16 %v1938, %v1934
    %v1979 = vpack.c.b16 %v1939, %v1935
    %v1980 = vpack.c.b16 %v1940, %v1936
    %v1981 = vpack.c.b16 %v1945, %v1941
    %v1982 = vpack.c.b16 %v1946, %v1942
    %v1983 = vpack.c.b16 %v1947, %v1943
    %v1984 = vpack.c.b16 %v1948, %v1944
    %v1985 = vpack.c.b16 %v1953, %v1949
    %v1986 = vpack.c.b16 %v1954, %v1950
    %v1987 = vpack.c.b16 %v1955, %v1951
    %v1988 = vpack.c.b16 %v1956, %v1952
    %2021 = vmatprep.subr.bf16.mxu0 0
    %2022 = vmatpush1.bf16.msra.mxu0 %v747
    %2023 = vmatprep.subr.bf16.mxu0 0
    %2024 = vmatpush1.bf16.msra.mxu0 %v748
    %2025 = vmatprep.subr.bf16.mxu0 0
    %2026 = vmatpush1.bf16.msra.mxu0 %v749
    %2027 = vmatprep.subr.bf16.mxu0 0
    %2028 = vmatpush1.bf16.msra.mxu0 %v750
    %2029 = vmatprep.subr.bf16.mxu0 0
    %2030 = vmatpush1.bf16.msra.mxu0 %v751
    %2031 = vmatprep.subr.bf16.mxu0 0
    %2032 = vmatpush1.bf16.msra.mxu0 %v752
    %2033 = vmatprep.subr.bf16.mxu0 0
    %2034 = vmatpush1.bf16.msra.mxu0 %v753
    %2035 = vmatprep.subr.bf16.mxu0 0
    %2036 = vmatpush1.bf16.msra.mxu0 %v754
    %2037 = vmatprep.subr.bf16.mxu0 0
    %2038 = vmatpush1.bf16.msra.mxu0 %v755
    %2039 = vmatprep.subr.bf16.mxu0 0
    %2040 = vmatpush1.bf16.msra.mxu0 %v756
    %2041 = vmatprep.subr.bf16.mxu0 0
    %2042 = vmatpush1.bf16.msra.mxu0 %v757
    %2043 = vmatprep.subr.bf16.mxu0 0
    %2044 = vmatpush1.bf16.msra.mxu0 %v758
    %2045 = vmatprep.subr.bf16.mxu0 0
    %2046 = vmatpush1.bf16.msra.mxu0 %v759
    %2047 = vmatprep.subr.bf16.mxu0 0
    %2048 = vmatpush1.bf16.msra.mxu0 %v760
    %2049 = vmatprep.subr.bf16.mxu0 0
    %2050 = vmatpush1.bf16.msra.mxu0 %v761
    %2051 = vmatprep.subr.bf16.mxu0 0
    %2052 = vmatpush1.bf16.msra.mxu0 %v762
    %2053 = vmatprep.mubr.bf16.mxu0 %v1958
    %2054 = vmatmul.mubr.bf16.gmra.mrb[0].mxu0 %v1957
    %v2055 = vpop.f32.mrb[0].mxu0
    %v2056 = vadd.f32 0.0, %v2055
    %v2057 = vpop.f32.mrb[0].mxu0
    %v2058 = vpop.f32.mrb[0].mxu0
    %v2059 = vadd.f32 0.0, %v2058
    %v2060 = vpop.f32.mrb[0].mxu0
    %2061 = vmatprep.mubr.bf16.mxu0 %v1962
    %2062 = vmatmul.mubr.bf16.gmra.mrb[0].mxu0 %v1961
    %v2063 = vpop.f32.mrb[0].mxu0
    %v2064 = vadd.f32 0.0, %v2063
    %v2065 = vpop.f32.mrb[0].mxu0
    %v2066 = vpop.f32.mrb[0].mxu0
    %v2067 = vadd.f32 0.0, %v2066
    %v2068 = vpop.f32.mrb[0].mxu0
    %2069 = vmatprep.mubr.bf16.mxu0 %v1966
    %2070 = vmatmul.mubr.bf16.gmra.mrb[0].mxu0 %v1965
    %v2071 = vpop.f32.mrb[0].mxu0
    %v2072 = vadd.f32 0.0, %v2071
    %v2073 = vpop.f32.mrb[0].mxu0
    %v2074 = vpop.f32.mrb[0].mxu0
    %v2075 = vadd.f32 0.0, %v2074
    %v2076 = vpop.f32.mrb[0].mxu0
    %2077 = vmatprep.mubr.bf16.mxu0 %v1970
    %2078 = vmatmul.mubr.bf16.gmra.mrb[0].mxu0 %v1969
    %v2079 = vpop.f32.mrb[0].mxu0
    %v2080 = vadd.f32 0.0, %v2079
    %v2081 = vpop.f32.mrb[0].mxu0
    %v2082 = vpop.f32.mrb[0].mxu0
    %v2083 = vadd.f32 0.0, %v2082
    %v2084 = vpop.f32.mrb[0].mxu0
    %2085 = vmatprep.mubr.bf16.mxu0 %v1974
    %2086 = vmatmul.mubr.bf16.gmra.mrb[0].mxu0 %v1973
    %v2087 = vpop.f32.mrb[0].mxu0
    %v2088 = vadd.f32 0.0, %v2087
    %v2089 = vpop.f32.mrb[0].mxu0
    %v2090 = vpop.f32.mrb[0].mxu0
    %v2091 = vadd.f32 0.0, %v2090
    %v2092 = vpop.f32.mrb[0].mxu0
    %2093 = vmatprep.mubr.bf16.mxu0 %v1978
    %2094 = vmatmul.mubr.bf16.gmra.mrb[0].mxu0 %v1977
    %v2095 = vpop.f32.mrb[0].mxu0
    %v2096 = vadd.f32 0.0, %v2095
    %v2097 = vpop.f32.mrb[0].mxu0
    %v2098 = vpop.f32.mrb[0].mxu0
    %v2099 = vadd.f32 0.0, %v2098
    %v2100 = vpop.f32.mrb[0].mxu0
    %2101 = vmatprep.mubr.bf16.mxu0 %v1982
    %2102 = vmatmul.mubr.bf16.gmra.mrb[0].mxu0 %v1981
    %v2103 = vpop.f32.mrb[0].mxu0
    %v2104 = vadd.f32 0.0, %v2103
    %v2105 = vpop.f32.mrb[0].mxu0
    %v2106 = vpop.f32.mrb[0].mxu0
    %v2107 = vadd.f32 0.0, %v2106
    %v2108 = vpop.f32.mrb[0].mxu0
    %2109 = vmatprep.mubr.bf16.mxu0 %v1986
    %2110 = vmatmul.mubr.bf16.gmra.mrb[0].mxu0 %v1985
    %v2111 = vpop.f32.mrb[0].mxu0
    %v2112 = vadd.f32 0.0, %v2111
    %v2113 = vpop.f32.mrb[0].mxu0
    %v2114 = vpop.f32.mrb[0].mxu0
    %v2115 = vadd.f32 0.0, %v2114
    %v2116 = vpop.f32.mrb[0].mxu0
    %2117 = vdwg.mxu0
    %2118 = vmatprep.subr.bf16.mxu0 0
    %2119 = vmatpush1.bf16.msra.mxu0 %v763
    %2120 = vmatprep.subr.bf16.mxu0 0
    %2121 = vmatpush1.bf16.msra.mxu0 %v764
    %2122 = vmatprep.subr.bf16.mxu0 0
    %2123 = vmatpush1.bf16.msra.mxu0 %v765
    %2124 = vmatprep.subr.bf16.mxu0 0
    %2125 = vmatpush1.bf16.msra.mxu0 %v766
    %2126 = vmatprep.subr.bf16.mxu0 0
    %2127 = vmatpush1.bf16.msra.mxu0 %v767
    %2128 = vmatprep.subr.bf16.mxu0 0
    %2129 = vmatpush1.bf16.msra.mxu0 %v768
    %2130 = vmatprep.subr.bf16.mxu0 0
    %2131 = vmatpush1.bf16.msra.mxu0 %v769
    %2132 = vmatprep.subr.bf16.mxu0 0
    %2133 = vmatpush1.bf16.msra.mxu0 %v770
    %2134 = vmatprep.subr.bf16.mxu0 0
    %2135 = vmatpush1.bf16.msra.mxu0 %v771
    %2136 = vmatprep.subr.bf16.mxu0 0
    %2137 = vmatpush1.bf16.msra.mxu0 %v772
    %2138 = vmatprep.subr.bf16.mxu0 0
    %2139 = vmatpush1.bf16.msra.mxu0 %v773
    %2140 = vmatprep.subr.bf16.mxu0 0
    %2141 = vmatpush1.bf16.msra.mxu0 %v774
    %2142 = vmatprep.subr.bf16.mxu0 0
    %2143 = vmatpush1.bf16.msra.mxu0 %v775
    %2144 = vmatprep.subr.bf16.mxu0 0
    %2145 = vmatpush1.bf16.msra.mxu0 %v776
    %2146 = vmatprep.subr.bf16.mxu0 0
    %2147 = vmatpush1.bf16.msra.mxu0 %v777
    %2148 = vmatprep.subr.bf16.mxu0 0
    %2149 = vmatpush1.bf16.msra.mxu0 %v778
    %2150 = vmatprep.mubr.bf16.mxu0 %v1960
    %2151 = vmatmul.mubr.bf16.gmra.mrb[0].mxu0 %v1959
    %v2152 = vpop.f32.mrb[0].mxu0
    %v2153 = vadd.f32 %v2056, %v2152
    %v2154 = vpop.f32.mrb[0].mxu0
    %v2155 = vpop.f32.mrb[0].mxu0
    %v2156 = vadd.f32 %v2059, %v2155
    %v2157 = vpop.f32.mrb[0].mxu0
    %2158 = vmatprep.mubr.bf16.mxu0 %v1964
    %2159 = vmatmul.mubr.bf16.gmra.mrb[0].mxu0 %v1963
    %v2160 = vpop.f32.mrb[0].mxu0
    %v2161 = vadd.f32 %v2064, %v2160
    %v2162 = vpop.f32.mrb[0].mxu0
    %v2163 = vpop.f32.mrb[0].mxu0
    %v2164 = vadd.f32 %v2067, %v2163
    %v2165 = vpop.f32.mrb[0].mxu0
    %2166 = vmatprep.mubr.bf16.mxu0 %v1968
    %2167 = vmatmul.mubr.bf16.gmra.mrb[0].mxu0 %v1967
    %v2168 = vpop.f32.mrb[0].mxu0
    %v2169 = vadd.f32 %v2072, %v2168
    %v2170 = vpop.f32.mrb[0].mxu0
    %v2171 = vpop.f32.mrb[0].mxu0
    %v2172 = vadd.f32 %v2075, %v2171
    %v2173 = vpop.f32.mrb[0].mxu0
    %2174 = vmatprep.mubr.bf16.mxu0 %v1972
    %2175 = vmatmul.mubr.bf16.gmra.mrb[0].mxu0 %v1971
    %v2176 = vpop.f32.mrb[0].mxu0
    %v2177 = vadd.f32 %v2080, %v2176
    %v2178 = vpop.f32.mrb[0].mxu0
    %v2179 = vpop.f32.mrb[0].mxu0
    %v2180 = vadd.f32 %v2083, %v2179
    %v2181 = vpop.f32.mrb[0].mxu0
    %2182 = vmatprep.mubr.bf16.mxu0 %v1976
    %2183 = vmatmul.mubr.bf16.gmra.mrb[0].mxu0 %v1975
    %v2184 = vpop.f32.mrb[0].mxu0
    %v2185 = vadd.f32 %v2088, %v2184
    %v2186 = vpop.f32.mrb[0].mxu0
    %v2187 = vpop.f32.mrb[0].mxu0
    %v2188 = vadd.f32 %v2091, %v2187
    %v2189 = vpop.f32.mrb[0].mxu0
    %2190 = vmatprep.mubr.bf16.mxu0 %v1980
    %2191 = vmatmul.mubr.bf16.gmra.mrb[0].mxu0 %v1979
    %v2192 = vpop.f32.mrb[0].mxu0
    %v2193 = vadd.f32 %v2096, %v2192
    %v2194 = vpop.f32.mrb[0].mxu0
    %v2195 = vpop.f32.mrb[0].mxu0
    %v2196 = vadd.f32 %v2099, %v2195
    %v2197 = vpop.f32.mrb[0].mxu0
    %2198 = vmatprep.mubr.bf16.mxu0 %v1984
    %2199 = vmatmul.mubr.bf16.gmra.mrb[0].mxu0 %v1983
    %v2200 = vpop.f32.mrb[0].mxu0
    %v2201 = vadd.f32 %v2104, %v2200
    %v2202 = vpop.f32.mrb[0].mxu0
    %v2203 = vpop.f32.mrb[0].mxu0
    %v2204 = vadd.f32 %v2107, %v2203
    %v2205 = vpop.f32.mrb[0].mxu0
    %2206 = vmatprep.mubr.bf16.mxu0 %v1988
    %2207 = vmatmul.mubr.bf16.gmra.mrb[0].mxu0 %v1987
    %v2208 = vpop.f32.mrb[0].mxu0
    %v2209 = vadd.f32 %v2112, %v2208
    %v2210 = vpop.f32.mrb[0].mxu0
    %v2211 = vpop.f32.mrb[0].mxu0
    %v2212 = vadd.f32 %v2115, %v2211
    %v2213 = vpop.f32.mrb[0].mxu0
    %2214 = vdwg.mxu0
    %v2215 = vpack.c.bf16 %v2156, %v2153
    %v2216 = vpack.c.bf16 %v2164, %v2161
    %v2217 = vpack.c.bf16 %v2172, %v2169
    %v2218 = vpack.c.bf16 %v2180, %v2177
    %v2219 = vpack.c.bf16 %v2188, %v2185
    %v2220 = vpack.c.bf16 %v2196, %v2193
    %v2221 = vpack.c.bf16 %v2204, %v2201
    %v2222 = vpack.c.bf16 %v2212, %v2209
    %s2223 = scalar_lea.vmem %s4, 16
    %v2224 = vld [vmem:[%s2223] sm:$0xf]
    %v2225 = vld [vmem:[%s2223 + $0x4] sm:$0xf]
    %v2228 = vunpack.c.l.b16 %v2224
    %v2229 = vunpack.c.l.b16 %v2225
    %v2230 = vpack.c.b16 %v2229, %v2228
    %v2233 = vsel %vm1579, %v2215, 0
    %v2236 = vsel %vm1579, %v2216, 0
    %v2239 = vsel %vm1579, %v2217, 0
    %v2242 = vsel %vm1579, %v2218, 0
    %v2245 = vsel %vm1579, %v2219, 0
    %v2248 = vsel %vm1579, %v2220, 0
    %v2251 = vsel %vm1579, %v2221, 0
    %v2254 = vsel %vm1579, %v2222, 0
    %2256 = vmatprep.subr.bf16.mxu0 0
    %2257 = vmatpush1.bf16.msra.mxu0 %v2230
    %2258 = vmatprep.subr.bf16.mxu0 0
    %2259 = vmatpush1.bf16.msra.mxu0 0
    %2260 = vmatprep.subr.bf16.mxu0 0
    %2261 = vmatpush1.bf16.msra.mxu0 0
    %2262 = vmatprep.subr.bf16.mxu0 0
    %2263 = vmatpush1.bf16.msra.mxu0 0
    %2264 = vmatprep.subr.bf16.mxu0 0
    %2265 = vmatpush1.bf16.msra.mxu0 0
    %2266 = vmatprep.subr.bf16.mxu0 0
    %2267 = vmatpush1.bf16.msra.mxu0 0
    %2268 = vmatprep.subr.bf16.mxu0 0
    %2269 = vmatpush1.bf16.msra.mxu0 0
    %2270 = vmatprep.subr.bf16.mxu0 0
    %2271 = vmatpush1.bf16.msra.mxu0 0
    %2272 = vmatprep.subr.bf16.mxu0 0
    %2273 = vmatpush1.bf16.msra.mxu0 0
    %2274 = vmatprep.subr.bf16.mxu0 0
    %2275 = vmatpush1.bf16.msra.mxu0 0
    %2276 = vmatprep.subr.bf16.mxu0 0
    %2277 = vmatpush1.bf16.msra.mxu0 0
    %2278 = vmatprep.subr.bf16.mxu0 0
    %2279 = vmatpush1.bf16.msra.mxu0 0
    %2280 = vmatprep.subr.bf16.mxu0 0
    %2281 = vmatpush1.bf16.msra.mxu0 0
    %2282 = vmatprep.subr.bf16.mxu0 0
    %2283 = vmatpush1.bf16.msra.mxu0 0
    %2284 = vmatprep.subr.bf16.mxu0 0
    %2285 = vmatpush1.bf16.msra.mxu0 0
    %2286 = vmatprep.subr.bf16.mxu0 0
    %2287 = vmatpush1.bf16.msra.mxu0 0
    %2288 = vmatprep.mubr.bf16.mxu0 0
    %2289 = vmatmul.mubr.bf16.gmra.mrb[0].mxu0 %v2233
    %v2290 = vpop.f32.mrb[0].mxu0
    %v2291 = vadd.f32 0.0, %v2290
    %v2292 = vpop.f32.mrb[0].mxu0
    %v2293 = vpop.f32.mrb[0].mxu0
    %v2294 = vadd.f32 0.0, %v2293
    %v2295 = vpop.f32.mrb[0].mxu0
    %2296 = vmatprep.mubr.bf16.mxu0 0
    %2297 = vmatmul.mubr.bf16.gmra.mrb[0].mxu0 %v2236
    %v2298 = vpop.f32.mrb[0].mxu0
    %v2299 = vadd.f32 0.0, %v2298
    %v2300 = vpop.f32.mrb[0].mxu0
    %v2301 = vpop.f32.mrb[0].mxu0
    %v2302 = vadd.f32 0.0, %v2301
    %v2303 = vpop.f32.mrb[0].mxu0
    %2304 = vmatprep.mubr.bf16.mxu0 0
    %2305 = vmatmul.mubr.bf16.gmra.mrb[0].mxu0 %v2239
    %v2306 = vpop.f32.mrb[0].mxu0
    %v2307 = vadd.f32 0.0, %v2306
    %v2308 = vpop.f32.mrb[0].mxu0
    %v2309 = vpop.f32.mrb[0].mxu0
    %v2310 = vadd.f32 0.0, %v2309
    %v2311 = vpop.f32.mrb[0].mxu0
    %2312 = vmatprep.mubr.bf16.mxu0 0
    %2313 = vmatmul.mubr.bf16.gmra.mrb[0].mxu0 %v2242
    %v2314 = vpop.f32.mrb[0].mxu0
    %v2315 = vadd.f32 0.0, %v2314
    %v2316 = vpop.f32.mrb[0].mxu0
    %v2317 = vpop.f32.mrb[0].mxu0
    %v2318 = vadd.f32 0.0, %v2317
    %v2319 = vpop.f32.mrb[0].mxu0
    %2320 = vmatprep.mubr.bf16.mxu0 0
    %2321 = vmatmul.mubr.bf16.gmra.mrb[0].mxu0 %v2245
    %v2322 = vpop.f32.mrb[0].mxu0
    %v2323 = vadd.f32 0.0, %v2322
    %v2324 = vpop.f32.mrb[0].mxu0
    %v2325 = vpop.f32.mrb[0].mxu0
    %v2326 = vadd.f32 0.0, %v2325
    %v2327 = vpop.f32.mrb[0].mxu0
    %2328 = vmatprep.mubr.bf16.mxu0 0
    %2329 = vmatmul.mubr.bf16.gmra.mrb[0].mxu0 %v2248
    %v2330 = vpop.f32.mrb[0].mxu0
    %v2331 = vadd.f32 0.0, %v2330
    %v2332 = vpop.f32.mrb[0].mxu0
    %v2333 = vpop.f32.mrb[0].mxu0
    %v2334 = vadd.f32 0.0, %v2333
    %v2335 = vpop.f32.mrb[0].mxu0
    %2336 = vmatprep.mubr.bf16.mxu0 0
    %2337 = vmatmul.mubr.bf16.gmra.mrb[0].mxu0 %v2251
    %v2338 = vpop.f32.mrb[0].mxu0
    %v2339 = vadd.f32 0.0, %v2338
    %v2340 = vpop.f32.mrb[0].mxu0
    %v2341 = vpop.f32.mrb[0].mxu0
    %v2342 = vadd.f32 0.0, %v2341
    %v2343 = vpop.f32.mrb[0].mxu0
    %2344 = vmatprep.mubr.bf16.mxu0 0
    %2345 = vmatmul.mubr.bf16.gmra.mrb[0].mxu0 %v2254
    %v2346 = vpop.f32.mrb[0].mxu0
    %v2347 = vadd.f32 0.0, %v2346
    %v2348 = vpop.f32.mrb[0].mxu0
    %v2349 = vpop.f32.mrb[0].mxu0
    %v2350 = vadd.f32 0.0, %v2349
    %v2351 = vpop.f32.mrb[0].mxu0
    %2352 = vdwg.mxu0
    %v2353 = vadd.f32 %v1766, %v2291
    %v2354 = vadd.f32 %v1769, %v2294
    %v2355 = vadd.f32 %v1774, %v2299
    %v2356 = vadd.f32 %v1777, %v2302
    %v2357 = vadd.f32 %v1782, %v2307
    %v2358 = vadd.f32 %v1785, %v2310
    %v2359 = vadd.f32 %v1790, %v2315
    %v2360 = vadd.f32 %v1793, %v2318
    %v2361 = vadd.f32 %v1798, %v2323
    %v2362 = vadd.f32 %v1801, %v2326
    %v2363 = vadd.f32 %v1806, %v2331
    %v2364 = vadd.f32 %v1809, %v2334
    %v2365 = vadd.f32 %v1814, %v2339
    %v2366 = vadd.f32 %v1817, %v2342
    %v2367 = vadd.f32 %v1822, %v2347
    %v2368 = vadd.f32 %v1825, %v2350
    %s2369 = scalar_lea.vmem %s3, 768
    %v2370 = vld [vmem:[%s2369] sm:$0xff]
    %v2371 = vld [vmem:[%s2369 + $0x8] sm:$0xff]
    %v2372 = vld [vmem:[%s2369 + $0x10] sm:$0xff]
    %v2373 = vld [vmem:[%s2369 + $0x18] sm:$0xff]
    %v2374 = vld [vmem:[%s2369 + $0x20] sm:$0xff]
    %v2375 = vld [vmem:[%s2369 + $0x28] sm:$0xff]
    %v2376 = vld [vmem:[%s2369 + $0x30] sm:$0xff]
    %v2377 = vld [vmem:[%s2369 + $0x38] sm:$0xff]
    %v2378 = vld [vmem:[%s2369 + $0x40] sm:$0xff]
    %v2379 = vld [vmem:[%s2369 + $0x48] sm:$0xff]
    %v2380 = vld [vmem:[%s2369 + $0x50] sm:$0xff]
    %v2381 = vld [vmem:[%s2369 + $0x58] sm:$0xff]
    %v2382 = vld [vmem:[%s2369 + $0x60] sm:$0xff]
    %v2383 = vld [vmem:[%s2369 + $0x68] sm:$0xff]
    %v2384 = vld [vmem:[%s2369 + $0x70] sm:$0xff]
    %v2385 = vld [vmem:[%s2369 + $0x78] sm:$0xff]
    %v2386 = vld [vmem:[%s2369 + $0x80] sm:$0xff]
    %v2387 = vld [vmem:[%s2369 + $0x88] sm:$0xff]
    %v2388 = vld [vmem:[%s2369 + $0x90] sm:$0xff]
    %v2389 = vld [vmem:[%s2369 + $0x98] sm:$0xff]
    %v2390 = vld [vmem:[%s2369 + $0xa0] sm:$0xff]
    %v2391 = vld [vmem:[%s2369 + $0xa8] sm:$0xff]
    %v2392 = vld [vmem:[%s2369 + $0xb0] sm:$0xff]
    %v2393 = vld [vmem:[%s2369 + $0xb8] sm:$0xff]
    %v2394 = vld [vmem:[%s2369 + $0xc0] sm:$0xff]
    %v2395 = vld [vmem:[%s2369 + $0xc8] sm:$0xff]
    %v2396 = vld [vmem:[%s2369 + $0xd0] sm:$0xff]
    %v2397 = vld [vmem:[%s2369 + $0xd8] sm:$0xff]
    %v2398 = vld [vmem:[%s2369 + $0xe0] sm:$0xff]
    %v2399 = vld [vmem:[%s2369 + $0xe8] sm:$0xff]
    %v2400 = vld [vmem:[%s2369 + $0xf0] sm:$0xff]
    %v2401 = vld [vmem:[%s2369 + $0xf8] sm:$0xff]
    %v2434 = vunpack.c.l.b16 %v2370
    %v2435 = vunpack.c.h.b16 %v2370
    %v2436 = vunpack.c.l.b16 %v2371
    %v2437 = vunpack.c.h.b16 %v2371
    %v2438 = vunpack.c.l.b16 %v2372
    %v2439 = vunpack.c.h.b16 %v2372
    %v2440 = vunpack.c.l.b16 %v2373
    %v2441 = vunpack.c.h.b16 %v2373
    %v2442 = vunpack.c.l.b16 %v2374
    %v2443 = vunpack.c.h.b16 %v2374
    %v2444 = vunpack.c.l.b16 %v2375
    %v2445 = vunpack.c.h.b16 %v2375
    %v2446 = vunpack.c.l.b16 %v2376
    %v2447 = vunpack.c.h.b16 %v2376
    %v2448 = vunpack.c.l.b16 %v2377
    %v2449 = vunpack.c.h.b16 %v2377
    %v2450 = vunpack.c.l.b16 %v2378
    %v2451 = vunpack.c.h.b16 %v2378
    %v2452 = vunpack.c.l.b16 %v2379
    %v2453 = vunpack.c.h.b16 %v2379
    %v2454 = vunpack.c.l.b16 %v2380
    %v2455 = vunpack.c.h.b16 %v2380
    %v2456 = vunpack.c.l.b16 %v2381
    %v2457 = vunpack.c.h.b16 %v2381
    %v2458 = vunpack.c.l.b16 %v2382
    %v2459 = vunpack.c.h.b16 %v2382
    %v2460 = vunpack.c.l.b16 %v2383
    %v2461 = vunpack.c.h.b16 %v2383
    %v2462 = vunpack.c.l.b16 %v2384
    %v2463 = vunpack.c.h.b16 %v2384
    %v2464 = vunpack.c.l.b16 %v2385
    %v2465 = vunpack.c.h.b16 %v2385
    %v2466 = vunpack.c.l.b16 %v2386
    %v2467 = vunpack.c.h.b16 %v2386
    %v2468 = vunpack.c.l.b16 %v2387
    %v2469 = vunpack.c.h.b16 %v2387
    %v2470 = vunpack.c.l.b16 %v2388
    %v2471 = vunpack.c.h.b16 %v2388
    %v2472 = vunpack.c.l.b16 %v2389
    %v2473 = vunpack.c.h.b16 %v2389
    %v2474 = vunpack.c.l.b16 %v2390
    %v2475 = vunpack.c.h.b16 %v2390
    %v2476 = vunpack.c.l.b16 %v2391
    %v2477 = vunpack.c.h.b16 %v2391
    %v2478 = vunpack.c.l.b16 %v2392
    %v2479 = vunpack.c.h.b16 %v2392
    %v2480 = vunpack.c.l.b16 %v2393
    %v2481 = vunpack.c.h.b16 %v2393
    %v2482 = vunpack.c.l.b16 %v2394
    %v2483 = vunpack.c.h.b16 %v2394
    %v2484 = vunpack.c.l.b16 %v2395
    %v2485 = vunpack.c.h.b16 %v2395
    %v2486 = vunpack.c.l.b16 %v2396
    %v2487 = vunpack.c.h.b16 %v2396
    %v2488 = vunpack.c.l.b16 %v2397
    %v2489 = vunpack.c.h.b16 %v2397
    %v2490 = vunpack.c.l.b16 %v2398
    %v2491 = vunpack.c.h.b16 %v2398
    %v2492 = vunpack.c.l.b16 %v2399
    %v2493 = vunpack.c.h.b16 %v2399
    %v2494 = vunpack.c.l.b16 %v2400
    %v2495 = vunpack.c.h.b16 %v2400
    %v2496 = vunpack.c.l.b16 %v2401
    %v2497 = vunpack.c.h.b16 %v2401
    %v2498 = vpack.c.b16 %v2438, %v2434
    %v2499 = vpack.c.b16 %v2439, %v2435
    %v2500 = vpack.c.b16 %v2440, %v2436
    %v2501 = vpack.c.b16 %v2441, %v2437
    %v2502 = vpack.c.b16 %v2446, %v2442
    %v2503 = vpack.c.b16 %v2447, %v2443
    %v2504 = vpack.c.b16 %v2448, %v2444
    %v2505 = vpack.c.b16 %v2449, %v2445
    %v2506 = vpack.c.b16 %v2454, %v2450
    %v2507 = vpack.c.b16 %v2455, %v2451
    %v2508 = vpack.c.b16 %v2456, %v2452
    %v2509 = vpack.c.b16 %v2457, %v2453
    %v2510 = vpack.c.b16 %v2462, %v2458
    %v2511 = vpack.c.b16 %v2463, %v2459
    %v2512 = vpack.c.b16 %v2464, %v2460
    %v2513 = vpack.c.b16 %v2465, %v2461
    %v2514 = vpack.c.b16 %v2470, %v2466
    %v2515 = vpack.c.b16 %v2471, %v2467
    %v2516 = vpack.c.b16 %v2472, %v2468
    %v2517 = vpack.c.b16 %v2473, %v2469
    %v2518 = vpack.c.b16 %v2478, %v2474
    %v2519 = vpack.c.b16 %v2479, %v2475
    %v2520 = vpack.c.b16 %v2480, %v2476
    %v2521 = vpack.c.b16 %v2481, %v2477
    %v2522 = vpack.c.b16 %v2486, %v2482
    %v2523 = vpack.c.b16 %v2487, %v2483
    %v2524 = vpack.c.b16 %v2488, %v2484
    %v2525 = vpack.c.b16 %v2489, %v2485
    %v2526 = vpack.c.b16 %v2494, %v2490
    %v2527 = vpack.c.b16 %v2495, %v2491
    %v2528 = vpack.c.b16 %v2496, %v2492
    %v2529 = vpack.c.b16 %v2497, %v2493
    %2562 = vmatprep.subr.bf16.mxu0 0
    %2563 = vmatpush1.bf16.msra.mxu0 %v747
    %2564 = vmatprep.subr.bf16.mxu0 0
    %2565 = vmatpush1.bf16.msra.mxu0 %v748
    %2566 = vmatprep.subr.bf16.mxu0 0
    %2567 = vmatpush1.bf16.msra.mxu0 %v749
    %2568 = vmatprep.subr.bf16.mxu0 0
    %2569 = vmatpush1.bf16.msra.mxu0 %v750
    %2570 = vmatprep.subr.bf16.mxu0 0
    %2571 = vmatpush1.bf16.msra.mxu0 %v751
    %2572 = vmatprep.subr.bf16.mxu0 0
    %2573 = vmatpush1.bf16.msra.mxu0 %v752
    %2574 = vmatprep.subr.bf16.mxu0 0
    %2575 = vmatpush1.bf16.msra.mxu0 %v753
    %2576 = vmatprep.subr.bf16.mxu0 0
    %2577 = vmatpush1.bf16.msra.mxu0 %v754
    %2578 = vmatprep.subr.bf16.mxu0 0
    %2579 = vmatpush1.bf16.msra.mxu0 %v755
    %2580 = vmatprep.subr.bf16.mxu0 0
    %2581 = vmatpush1.bf16.msra.mxu0 %v756
    %2582 = vmatprep.subr.bf16.mxu0 0
    %2583 = vmatpush1.bf16.msra.mxu0 %v757
    %2584 = vmatprep.subr.bf16.mxu0 0
    %2585 = vmatpush1.bf16.msra.mxu0 %v758
    %2586 = vmatprep.subr.bf16.mxu0 0
    %2587 = vmatpush1.bf16.msra.mxu0 %v759
    %2588 = vmatprep.subr.bf16.mxu0 0
    %2589 = vmatpush1.bf16.msra.mxu0 %v760
    %2590 = vmatprep.subr.bf16.mxu0 0
    %2591 = vmatpush1.bf16.msra.mxu0 %v761
    %2592 = vmatprep.subr.bf16.mxu0 0
    %2593 = vmatpush1.bf16.msra.mxu0 %v762
    %2594 = vmatprep.mubr.bf16.mxu0 %v2499
    %2595 = vmatmul.mubr.bf16.gmra.mrb[0].mxu0 %v2498
    %v2596 = vpop.f32.mrb[0].mxu0
    %v2597 = vadd.f32 0.0, %v2596
    %v2598 = vpop.f32.mrb[0].mxu0
    %v2599 = vpop.f32.mrb[0].mxu0
    %v2600 = vadd.f32 0.0, %v2599
    %v2601 = vpop.f32.mrb[0].mxu0
    %2602 = vmatprep.mubr.bf16.mxu0 %v2503
    %2603 = vmatmul.mubr.bf16.gmra.mrb[0].mxu0 %v2502
    %v2604 = vpop.f32.mrb[0].mxu0
    %v2605 = vadd.f32 0.0, %v2604
    %v2606 = vpop.f32.mrb[0].mxu0
    %v2607 = vpop.f32.mrb[0].mxu0
    %v2608 = vadd.f32 0.0, %v2607
    %v2609 = vpop.f32.mrb[0].mxu0
    %2610 = vmatprep.mubr.bf16.mxu0 %v2507
    %2611 = vmatmul.mubr.bf16.gmra.mrb[0].mxu0 %v2506
    %v2612 = vpop.f32.mrb[0].mxu0
    %v2613 = vadd.f32 0.0, %v2612
    %v2614 = vpop.f32.mrb[0].mxu0
    %v2615 = vpop.f32.mrb[0].mxu0
    %v2616 = vadd.f32 0.0, %v2615
    %v2617 = vpop.f32.mrb[0].mxu0
    %2618 = vmatprep.mubr.bf16.mxu0 %v2511
    %2619 = vmatmul.mubr.bf16.gmra.mrb[0].mxu0 %v2510
    %v2620 = vpop.f32.mrb[0].mxu0
    %v2621 = vadd.f32 0.0, %v2620
    %v2622 = vpop.f32.mrb[0].mxu0
    %v2623 = vpop.f32.mrb[0].mxu0
    %v2624 = vadd.f32 0.0, %v2623
    %v2625 = vpop.f32.mrb[0].mxu0
    %2626 = vmatprep.mubr.bf16.mxu0 %v2515
    %2627 = vmatmul.mubr.bf16.gmra.mrb[0].mxu0 %v2514
    %v2628 = vpop.f32.mrb[0].mxu0
    %v2629 = vadd.f32 0.0, %v2628
    %v2630 = vpop.f32.mrb[0].mxu0
    %v2631 = vpop.f32.mrb[0].mxu0
    %v2632 = vadd.f32 0.0, %v2631
    %v2633 = vpop.f32.mrb[0].mxu0
    %2634 = vmatprep.mubr.bf16.mxu0 %v2519
    %2635 = vmatmul.mubr.bf16.gmra.mrb[0].mxu0 %v2518
    %v2636 = vpop.f32.mrb[0].mxu0
    %v2637 = vadd.f32 0.0, %v2636
    %v2638 = vpop.f32.mrb[0].mxu0
    %v2639 = vpop.f32.mrb[0].mxu0
    %v2640 = vadd.f32 0.0, %v2639
    %v2641 = vpop.f32.mrb[0].mxu0
    %2642 = vmatprep.mubr.bf16.mxu0 %v2523
    %2643 = vmatmul.mubr.bf16.gmra.mrb[0].mxu0 %v2522
    %v2644 = vpop.f32.mrb[0].mxu0
    %v2645 = vadd.f32 0.0, %v2644
    %v2646 = vpop.f32.mrb[0].mxu0
    %v2647 = vpop.f32.mrb[0].mxu0
    %v2648 = vadd.f32 0.0, %v2647
    %v2649 = vpop.f32.mrb[0].mxu0
    %2650 = vmatprep.mubr.bf16.mxu0 %v2527
    %2651 = vmatmul.mubr.bf16.gmra.mrb[0].mxu0 %v2526
    %v2652 = vpop.f32.mrb[0].mxu0
    %v2653 = vadd.f32 0.0, %v2652
    %v2654 = vpop.f32.mrb[0].mxu0
    %v2655 = vpop.f32.mrb[0].mxu0
    %v2656 = vadd.f32 0.0, %v2655
    %v2657 = vpop.f32.mrb[0].mxu0
    %2658 = vdwg.mxu0
    %2659 = vmatprep.subr.bf16.mxu0 0
    %2660 = vmatpush1.bf16.msra.mxu0 %v763
    %2661 = vmatprep.subr.bf16.mxu0 0
    %2662 = vmatpush1.bf16.msra.mxu0 %v764
    %2663 = vmatprep.subr.bf16.mxu0 0
    %2664 = vmatpush1.bf16.msra.mxu0 %v765
    %2665 = vmatprep.subr.bf16.mxu0 0
    %2666 = vmatpush1.bf16.msra.mxu0 %v766
    %2667 = vmatprep.subr.bf16.mxu0 0
    %2668 = vmatpush1.bf16.msra.mxu0 %v767
    %2669 = vmatprep.subr.bf16.mxu0 0
    %2670 = vmatpush1.bf16.msra.mxu0 %v768
    %2671 = vmatprep.subr.bf16.mxu0 0
    %2672 = vmatpush1.bf16.msra.mxu0 %v769
    %2673 = vmatprep.subr.bf16.mxu0 0
    %2674 = vmatpush1.bf16.msra.mxu0 %v770
    %2675 = vmatprep.subr.bf16.mxu0 0
    %2676 = vmatpush1.bf16.msra.mxu0 %v771
    %2677 = vmatprep.subr.bf16.mxu0 0
    %2678 = vmatpush1.bf16.msra.mxu0 %v772
    %2679 = vmatprep.subr.bf16.mxu0 0
    %2680 = vmatpush1.bf16.msra.mxu0 %v773
    %2681 = vmatprep.subr.bf16.mxu0 0
    %2682 = vmatpush1.bf16.msra.mxu0 %v774
    %2683 = vmatprep.subr.bf16.mxu0 0
    %2684 = vmatpush1.bf16.msra.mxu0 %v775
    %2685 = vmatprep.subr.bf16.mxu0 0
    %2686 = vmatpush1.bf16.msra.mxu0 %v776
    %2687 = vmatprep.subr.bf16.mxu0 0
    %2688 = vmatpush1.bf16.msra.mxu0 %v777
    %2689 = vmatprep.subr.bf16.mxu0 0
    %2690 = vmatpush1.bf16.msra.mxu0 %v778
    %2691 = vmatprep.mubr.bf16.mxu0 %v2501
    %2692 = vmatmul.mubr.bf16.gmra.mrb[0].mxu0 %v2500
    %v2693 = vpop.f32.mrb[0].mxu0
    %v2694 = vadd.f32 %v2597, %v2693
    %v2695 = vpop.f32.mrb[0].mxu0
    %v2696 = vpop.f32.mrb[0].mxu0
    %v2697 = vadd.f32 %v2600, %v2696
    %v2698 = vpop.f32.mrb[0].mxu0
    %2699 = vmatprep.mubr.bf16.mxu0 %v2505
    %2700 = vmatmul.mubr.bf16.gmra.mrb[0].mxu0 %v2504
    %v2701 = vpop.f32.mrb[0].mxu0
    %v2702 = vadd.f32 %v2605, %v2701
    %v2703 = vpop.f32.mrb[0].mxu0
    %v2704 = vpop.f32.mrb[0].mxu0
    %v2705 = vadd.f32 %v2608, %v2704
    %v2706 = vpop.f32.mrb[0].mxu0
    %2707 = vmatprep.mubr.bf16.mxu0 %v2509
    %2708 = vmatmul.mubr.bf16.gmra.mrb[0].mxu0 %v2508
    %v2709 = vpop.f32.mrb[0].mxu0
    %v2710 = vadd.f32 %v2613, %v2709
    %v2711 = vpop.f32.mrb[0].mxu0
    %v2712 = vpop.f32.mrb[0].mxu0
    %v2713 = vadd.f32 %v2616, %v2712
    %v2714 = vpop.f32.mrb[0].mxu0
    %2715 = vmatprep.mubr.bf16.mxu0 %v2513
    %2716 = vmatmul.mubr.bf16.gmra.mrb[0].mxu0 %v2512
    %v2717 = vpop.f32.mrb[0].mxu0
    %v2718 = vadd.f32 %v2621, %v2717
    %v2719 = vpop.f32.mrb[0].mxu0
    %v2720 = vpop.f32.mrb[0].mxu0
    %v2721 = vadd.f32 %v2624, %v2720
    %v2722 = vpop.f32.mrb[0].mxu0
    %2723 = vmatprep.mubr.bf16.mxu0 %v2517
    %2724 = vmatmul.mubr.bf16.gmra.mrb[0].mxu0 %v2516
    %v2725 = vpop.f32.mrb[0].mxu0
    %v2726 = vadd.f32 %v2629, %v2725
    %v2727 = vpop.f32.mrb[0].mxu0
    %v2728 = vpop.f32.mrb[0].mxu0
    %v2729 = vadd.f32 %v2632, %v2728
    %v2730 = vpop.f32.mrb[0].mxu0
    %2731 = vmatprep.mubr.bf16.mxu0 %v2521
    %2732 = vmatmul.mubr.bf16.gmra.mrb[0].mxu0 %v2520
    %v2733 = vpop.f32.mrb[0].mxu0
    %v2734 = vadd.f32 %v2637, %v2733
    %v2735 = vpop.f32.mrb[0].mxu0
    %v2736 = vpop.f32.mrb[0].mxu0
    %v2737 = vadd.f32 %v2640, %v2736
    %v2738 = vpop.f32.mrb[0].mxu0
    %2739 = vmatprep.mubr.bf16.mxu0 %v2525
    %2740 = vmatmul.mubr.bf16.gmra.mrb[0].mxu0 %v2524
    %v2741 = vpop.f32.mrb[0].mxu0
    %v2742 = vadd.f32 %v2645, %v2741
    %v2743 = vpop.f32.mrb[0].mxu0
    %v2744 = vpop.f32.mrb[0].mxu0
    %v2745 = vadd.f32 %v2648, %v2744
    %v2746 = vpop.f32.mrb[0].mxu0
    %2747 = vmatprep.mubr.bf16.mxu0 %v2529
    %2748 = vmatmul.mubr.bf16.gmra.mrb[0].mxu0 %v2528
    %v2749 = vpop.f32.mrb[0].mxu0
    %v2750 = vadd.f32 %v2653, %v2749
    %v2751 = vpop.f32.mrb[0].mxu0
    %v2752 = vpop.f32.mrb[0].mxu0
    %v2753 = vadd.f32 %v2656, %v2752
    %v2754 = vpop.f32.mrb[0].mxu0
    %2755 = vdwg.mxu0
    %v2756 = vpack.c.bf16 %v2697, %v2694
    %v2757 = vpack.c.bf16 %v2705, %v2702
    %v2758 = vpack.c.bf16 %v2713, %v2710
    %v2759 = vpack.c.bf16 %v2721, %v2718
    %v2760 = vpack.c.bf16 %v2729, %v2726
    %v2761 = vpack.c.bf16 %v2737, %v2734
    %v2762 = vpack.c.bf16 %v2745, %v2742
    %v2763 = vpack.c.bf16 %v2753, %v2750
    %s2764 = scalar_lea.vmem %s4, 24
    %v2765 = vld [vmem:[%s2764] sm:$0xf]
    %v2766 = vld [vmem:[%s2764 + $0x4] sm:$0xf]
    %v2769 = vunpack.c.l.b16 %v2765
    %v2770 = vunpack.c.l.b16 %v2766
    %v2771 = vpack.c.b16 %v2770, %v2769
    %v2774 = vsel %vm1579, %v2756, 0
    %v2777 = vsel %vm1579, %v2757, 0
    %v2780 = vsel %vm1579, %v2758, 0
    %v2783 = vsel %vm1579, %v2759, 0
    %v2786 = vsel %vm1579, %v2760, 0
    %v2789 = vsel %vm1579, %v2761, 0
    %v2792 = vsel %vm1579, %v2762, 0
    %v2795 = vsel %vm1579, %v2763, 0
    %2797 = vmatprep.subr.bf16.mxu0 0
    %2798 = vmatpush1.bf16.msra.mxu0 %v2771
    %2799 = vmatprep.subr.bf16.mxu0 0
    %2800 = vmatpush1.bf16.msra.mxu0 0
    %2801 = vmatprep.subr.bf16.mxu0 0
    %2802 = vmatpush1.bf16.msra.mxu0 0
    %2803 = vmatprep.subr.bf16.mxu0 0
    %2804 = vmatpush1.bf16.msra.mxu0 0
    %2805 = vmatprep.subr.bf16.mxu0 0
    %2806 = vmatpush1.bf16.msra.mxu0 0
    %2807 = vmatprep.subr.bf16.mxu0 0
    %2808 = vmatpush1.bf16.msra.mxu0 0
    %2809 = vmatprep.subr.bf16.mxu0 0
    %2810 = vmatpush1.bf16.msra.mxu0 0
    %2811 = vmatprep.subr.bf16.mxu0 0
    %2812 = vmatpush1.bf16.msra.mxu0 0
    %2813 = vmatprep.subr.bf16.mxu0 0
    %2814 = vmatpush1.bf16.msra.mxu0 0
    %2815 = vmatprep.subr.bf16.mxu0 0
    %2816 = vmatpush1.bf16.msra.mxu0 0
    %2817 = vmatprep.subr.bf16.mxu0 0
    %2818 = vmatpush1.bf16.msra.mxu0 0
    %2819 = vmatprep.subr.bf16.mxu0 0
    %2820 = vmatpush1.bf16.msra.mxu0 0
    %2821 = vmatprep.subr.bf16.mxu0 0
    %2822 = vmatpush1.bf16.msra.mxu0 0
    %2823 = vmatprep.subr.bf16.mxu0 0
    %2824 = vmatpush1.bf16.msra.mxu0 0
    %2825 = vmatprep.subr.bf16.mxu0 0
    %2826 = vmatpush1.bf16.msra.mxu0 0
    %2827 = vmatprep.subr.bf16.mxu0 0
    %2828 = vmatpush1.bf16.msra.mxu0 0
    %2829 = vmatprep.mubr.bf16.mxu0 0
    %2830 = vmatmul.mubr.bf16.gmra.mrb[0].mxu0 %v2774
    %v2831 = vpop.f32.mrb[0].mxu0
    %v2832 = vadd.f32 0.0, %v2831
    %v2833 = vpop.f32.mrb[0].mxu0
    %v2834 = vpop.f32.mrb[0].mxu0
    %v2835 = vadd.f32 0.0, %v2834
    %v2836 = vpop.f32.mrb[0].mxu0
    %2837 = vmatprep.mubr.bf16.mxu0 0
    %2838 = vmatmul.mubr.bf16.gmra.mrb[0].mxu0 %v2777
    %v2839 = vpop.f32.mrb[0].mxu0
    %v2840 = vadd.f32 0.0, %v2839
    %v2841 = vpop.f32.mrb[0].mxu0
    %v2842 = vpop.f32.mrb[0].mxu0
    %v2843 = vadd.f32 0.0, %v2842
    %v2844 = vpop.f32.mrb[0].mxu0
    %2845 = vmatprep.mubr.bf16.mxu0 0
    %2846 = vmatmul.mubr.bf16.gmra.mrb[0].mxu0 %v2780
    %v2847 = vpop.f32.mrb[0].mxu0
    %v2848 = vadd.f32 0.0, %v2847
    %v2849 = vpop.f32.mrb[0].mxu0
    %v2850 = vpop.f32.mrb[0].mxu0
    %v2851 = vadd.f32 0.0, %v2850
    %v2852 = vpop.f32.mrb[0].mxu0
    %2853 = vmatprep.mubr.bf16.mxu0 0
    %2854 = vmatmul.mubr.bf16.gmra.mrb[0].mxu0 %v2783
    %v2855 = vpop.f32.mrb[0].mxu0
    %v2856 = vadd.f32 0.0, %v2855
    %v2857 = vpop.f32.mrb[0].mxu0
    %v2858 = vpop.f32.mrb[0].mxu0
    %v2859 = vadd.f32 0.0, %v2858
    %v2860 = vpop.f32.mrb[0].mxu0
    %2861 = vmatprep.mubr.bf16.mxu0 0
    %2862 = vmatmul.mubr.bf16.gmra.mrb[0].mxu0 %v2786
    %v2863 = vpop.f32.mrb[0].mxu0
    %v2864 = vadd.f32 0.0, %v2863
    %v2865 = vpop.f32.mrb[0].mxu0
    %v2866 = vpop.f32.mrb[0].mxu0
    %v2867 = vadd.f32 0.0, %v2866
    %v2868 = vpop.f32.mrb[0].mxu0
    %2869 = vmatprep.mubr.bf16.mxu0 0
    %2870 = vmatmul.mubr.bf16.gmra.mrb[0].mxu0 %v2789
    %v2871 = vpop.f32.mrb[0].mxu0
    %v2872 = vadd.f32 0.0, %v2871
    %v2873 = vpop.f32.mrb[0].mxu0
    %v2874 = vpop.f32.mrb[0].mxu0
    %v2875 = vadd.f32 0.0, %v2874
    %v2876 = vpop.f32.mrb[0].mxu0
    %2877 = vmatprep.mubr.bf16.mxu0 0
    %2878 = vmatmul.mubr.bf16.gmra.mrb[0].mxu0 %v2792
    %v2879 = vpop.f32.mrb[0].mxu0
    %v2880 = vadd.f32 0.0, %v2879
    %v2881 = vpop.f32.mrb[0].mxu0
    %v2882 = vpop.f32.mrb[0].mxu0
    %v2883 = vadd.f32 0.0, %v2882
    %v2884 = vpop.f32.mrb[0].mxu0
    %2885 = vmatprep.mubr.bf16.mxu0 0
    %2886 = vmatmul.mubr.bf16.gmra.mrb[0].mxu0 %v2795
    %v2887 = vpop.f32.mrb[0].mxu0
    %v2888 = vadd.f32 0.0, %v2887
    %v2889 = vpop.f32.mrb[0].mxu0
    %v2890 = vpop.f32.mrb[0].mxu0
    %v2891 = vadd.f32 0.0, %v2890
    %v2892 = vpop.f32.mrb[0].mxu0
    %2893 = vdwg.mxu0
    %v2894 = vadd.f32 %v2353, %v2832
    %v2895 = vadd.f32 %v2354, %v2835
    %v2896 = vadd.f32 %v2355, %v2840
    %v2897 = vadd.f32 %v2356, %v2843
    %v2898 = vadd.f32 %v2357, %v2848
    %v2899 = vadd.f32 %v2358, %v2851
    %v2900 = vadd.f32 %v2359, %v2856
    %v2901 = vadd.f32 %v2360, %v2859
    %v2902 = vadd.f32 %v2361, %v2864
    %v2903 = vadd.f32 %v2362, %v2867
    %v2904 = vadd.f32 %v2363, %v2872
    %v2905 = vadd.f32 %v2364, %v2875
    %v2906 = vadd.f32 %v2365, %v2880
    %v2907 = vadd.f32 %v2366, %v2883
    %v2908 = vadd.f32 %v2367, %v2888
    %v2909 = vadd.f32 %v2368, %v2891
    %s2910 = scalar_lea.vmem %s3, 1024
    %v2911 = vld [vmem:[%s2910] sm:$0xff]
    %v2912 = vld [vmem:[%s2910 + $0x8] sm:$0xff]
    %v2913 = vld [vmem:[%s2910 + $0x10] sm:$0xff]
    %v2914 = vld [vmem:[%s2910 + $0x18] sm:$0xff]
    %v2915 = vld [vmem:[%s2910 + $0x20] sm:$0xff]
    %v2916 = vld [vmem:[%s2910 + $0x28] sm:$0xff]
    %v2917 = vld [vmem:[%s2910 + $0x30] sm:$0xff]
    %v2918 = vld [vmem:[%s2910 + $0x38] sm:$0xff]
    %v2919 = vld [vmem:[%s2910 + $0x40] sm:$0xff]
    %v2920 = vld [vmem:[%s2910 + $0x48] sm:$0xff]
    %v2921 = vld [vmem:[%s2910 + $0x50] sm:$0xff]
    %v2922 = vld [vmem:[%s2910 + $0x58] sm:$0xff]
    %v2923 = vld [vmem:[%s2910 + $0x60] sm:$0xff]
    %v2924 = vld [vmem:[%s2910 + $0x68] sm:$0xff]
    %v2925 = vld [vmem:[%s2910 + $0x70] sm:$0xff]
    %v2926 = vld [vmem:[%s2910 + $0x78] sm:$0xff]
    %v2927 = vld [vmem:[%s2910 + $0x80] sm:$0xff]
    %v2928 = vld [vmem:[%s2910 + $0x88] sm:$0xff]
    %v2929 = vld [vmem:[%s2910 + $0x90] sm:$0xff]
    %v2930 = vld [vmem:[%s2910 + $0x98] sm:$0xff]
    %v2931 = vld [vmem:[%s2910 + $0xa0] sm:$0xff]
    %v2932 = vld [vmem:[%s2910 + $0xa8] sm:$0xff]
    %v2933 = vld [vmem:[%s2910 + $0xb0] sm:$0xff]
    %v2934 = vld [vmem:[%s2910 + $0xb8] sm:$0xff]
    %v2935 = vld [vmem:[%s2910 + $0xc0] sm:$0xff]
    %v2936 = vld [vmem:[%s2910 + $0xc8] sm:$0xff]
    %v2937 = vld [vmem:[%s2910 + $0xd0] sm:$0xff]
    %v2938 = vld [vmem:[%s2910 + $0xd8] sm:$0xff]
    %v2939 = vld [vmem:[%s2910 + $0xe0] sm:$0xff]
    %v2940 = vld [vmem:[%s2910 + $0xe8] sm:$0xff]
    %v2941 = vld [vmem:[%s2910 + $0xf0] sm:$0xff]
    %v2942 = vld [vmem:[%s2910 + $0xf8] sm:$0xff]
    %v2975 = vunpack.c.l.b16 %v2911
    %v2976 = vunpack.c.h.b16 %v2911
    %v2977 = vunpack.c.l.b16 %v2912
    %v2978 = vunpack.c.h.b16 %v2912
    %v2979 = vunpack.c.l.b16 %v2913
    %v2980 = vunpack.c.h.b16 %v2913
    %v2981 = vunpack.c.l.b16 %v2914
    %v2982 = vunpack.c.h.b16 %v2914
    %v2983 = vunpack.c.l.b16 %v2915
    %v2984 = vunpack.c.h.b16 %v2915
    %v2985 = vunpack.c.l.b16 %v2916
    %v2986 = vunpack.c.h.b16 %v2916
    %v2987 = vunpack.c.l.b16 %v2917
    %v2988 = vunpack.c.h.b16 %v2917
    %v2989 = vunpack.c.l.b16 %v2918
    %v2990 = vunpack.c.h.b16 %v2918
    %v2991 = vunpack.c.l.b16 %v2919
    %v2992 = vunpack.c.h.b16 %v2919
    %v2993 = vunpack.c.l.b16 %v2920
    %v2994 = vunpack.c.h.b16 %v2920
    %v2995 = vunpack.c.l.b16 %v2921
    %v2996 = vunpack.c.h.b16 %v2921
    %v2997 = vunpack.c.l.b16 %v2922
    %v2998 = vunpack.c.h.b16 %v2922
    %v2999 = vunpack.c.l.b16 %v2923
    %v3000 = vunpack.c.h.b16 %v2923
    %v3001 = vunpack.c.l.b16 %v2924
    %v3002 = vunpack.c.h.b16 %v2924
    %v3003 = vunpack.c.l.b16 %v2925
    %v3004 = vunpack.c.h.b16 %v2925
    %v3005 = vunpack.c.l.b16 %v2926
    %v3006 = vunpack.c.h.b16 %v2926
    %v3007 = vunpack.c.l.b16 %v2927
    %v3008 = vunpack.c.h.b16 %v2927
    %v3009 = vunpack.c.l.b16 %v2928
    %v3010 = vunpack.c.h.b16 %v2928
    %v3011 = vunpack.c.l.b16 %v2929
    %v3012 = vunpack.c.h.b16 %v2929
    %v3013 = vunpack.c.l.b16 %v2930
    %v3014 = vunpack.c.h.b16 %v2930
    %v3015 = vunpack.c.l.b16 %v2931
    %v3016 = vunpack.c.h.b16 %v2931
    %v3017 = vunpack.c.l.b16 %v2932
    %v3018 = vunpack.c.h.b16 %v2932
    %v3019 = vunpack.c.l.b16 %v2933
    %v3020 = vunpack.c.h.b16 %v2933
    %v3021 = vunpack.c.l.b16 %v2934
    %v3022 = vunpack.c.h.b16 %v2934
    %v3023 = vunpack.c.l.b16 %v2935
    %v3024 = vunpack.c.h.b16 %v2935
    %v3025 = vunpack.c.l.b16 %v2936
    %v3026 = vunpack.c.h.b16 %v2936
    %v3027 = vunpack.c.l.b16 %v2937
    %v3028 = vunpack.c.h.b16 %v2937
    %v3029 = vunpack.c.l.b16 %v2938
    %v3030 = vunpack.c.h.b16 %v2938
    %v3031 = vunpack.c.l.b16 %v2939
    %v3032 = vunpack.c.h.b16 %v2939
    %v3033 = vunpack.c.l.b16 %v2940
    %v3034 = vunpack.c.h.b16 %v2940
    %v3035 = vunpack.c.l.b16 %v2941
    %v3036 = vunpack.c.h.b16 %v2941
    %v3037 = vunpack.c.l.b16 %v2942
    %v3038 = vunpack.c.h.b16 %v2942
    %v3039 = vpack.c.b16 %v2979, %v2975
    %v3040 = vpack.c.b16 %v2980, %v2976
    %v3041 = vpack.c.b16 %v2981, %v2977
    %v3042 = vpack.c.b16 %v2982, %v2978
    %v3043 = vpack.c.b16 %v2987, %v2983
    %v3044 = vpack.c.b16 %v2988, %v2984
    %v3045 = vpack.c.b16 %v2989, %v2985
    %v3046 = vpack.c.b16 %v2990, %v2986
    %v3047 = vpack.c.b16 %v2995, %v2991
    %v3048 = vpack.c.b16 %v2996, %v2992
    %v3049 = vpack.c.b16 %v2997, %v2993
    %v3050 = vpack.c.b16 %v2998, %v2994
    %v3051 = vpack.c.b16 %v3003, %v2999
    %v3052 = vpack.c.b16 %v3004, %v3000
    %v3053 = vpack.c.b16 %v3005, %v3001
    %v3054 = vpack.c.b16 %v3006, %v3002
    %v3055 = vpack.c.b16 %v3011, %v3007
    %v3056 = vpack.c.b16 %v3012, %v3008
    %v3057 = vpack.c.b16 %v3013, %v3009
    %v3058 = vpack.c.b16 %v3014, %v3010
    %v3059 = vpack.c.b16 %v3019, %v3015
    %v3060 = vpack.c.b16 %v3020, %v3016
    %v3061 = vpack.c.b16 %v3021, %v3017
    %v3062 = vpack.c.b16 %v3022, %v3018
    %v3063 = vpack.c.b16 %v3027, %v3023
    %v3064 = vpack.c.b16 %v3028, %v3024
    %v3065 = vpack.c.b16 %v3029, %v3025
    %v3066 = vpack.c.b16 %v3030, %v3026
    %v3067 = vpack.c.b16 %v3035, %v3031
    %v3068 = vpack.c.b16 %v3036, %v3032
    %v3069 = vpack.c.b16 %v3037, %v3033
    %v3070 = vpack.c.b16 %v3038, %v3034
    %3103 = vmatprep.subr.bf16.mxu0 0
    %3104 = vmatpush1.bf16.msra.mxu0 %v747
    %3105 = vmatprep.subr.bf16.mxu0 0
    %3106 = vmatpush1.bf16.msra.mxu0 %v748
    %3107 = vmatprep.subr.bf16.mxu0 0
    %3108 = vmatpush1.bf16.msra.mxu0 %v749
    %3109 = vmatprep.subr.bf16.mxu0 0
    %3110 = vmatpush1.bf16.msra.mxu0 %v750
    %3111 = vmatprep.subr.bf16.mxu0 0
    %3112 = vmatpush1.bf16.msra.mxu0 %v751
    %3113 = vmatprep.subr.bf16.mxu0 0
    %3114 = vmatpush1.bf16.msra.mxu0 %v752
    %3115 = vmatprep.subr.bf16.mxu0 0
    %3116 = vmatpush1.bf16.msra.mxu0 %v753
    %3117 = vmatprep.subr.bf16.mxu0 0
    %3118 = vmatpush1.bf16.msra.mxu0 %v754
    %3119 = vmatprep.subr.bf16.mxu0 0
    %3120 = vmatpush1.bf16.msra.mxu0 %v755
    %3121 = vmatprep.subr.bf16.mxu0 0
    %3122 = vmatpush1.bf16.msra.mxu0 %v756
    %3123 = vmatprep.subr.bf16.mxu0 0
    %3124 = vmatpush1.bf16.msra.mxu0 %v757
    %3125 = vmatprep.subr.bf16.mxu0 0
    %3126 = vmatpush1.bf16.msra.mxu0 %v758
    %3127 = vmatprep.subr.bf16.mxu0 0
    %3128 = vmatpush1.bf16.msra.mxu0 %v759
    %3129 = vmatprep.subr.bf16.mxu0 0
    %3130 = vmatpush1.bf16.msra.mxu0 %v760
    %3131 = vmatprep.subr.bf16.mxu0 0
    %3132 = vmatpush1.bf16.msra.mxu0 %v761
    %3133 = vmatprep.subr.bf16.mxu0 0
    %3134 = vmatpush1.bf16.msra.mxu0 %v762
    %3135 = vmatprep.mubr.bf16.mxu0 %v3040
    %3136 = vmatmul.mubr.bf16.gmra.mrb[0].mxu0 %v3039
    %v3137 = vpop.f32.mrb[0].mxu0
    %v3138 = vadd.f32 0.0, %v3137
    %v3139 = vpop.f32.mrb[0].mxu0
    %v3140 = vpop.f32.mrb[0].mxu0
    %v3141 = vadd.f32 0.0, %v3140
    %v3142 = vpop.f32.mrb[0].mxu0
    %3143 = vmatprep.mubr.bf16.mxu0 %v3044
    %3144 = vmatmul.mubr.bf16.gmra.mrb[0].mxu0 %v3043
    %v3145 = vpop.f32.mrb[0].mxu0
    %v3146 = vadd.f32 0.0, %v3145
    %v3147 = vpop.f32.mrb[0].mxu0
    %v3148 = vpop.f32.mrb[0].mxu0
    %v3149 = vadd.f32 0.0, %v3148
    %v3150 = vpop.f32.mrb[0].mxu0
    %3151 = vmatprep.mubr.bf16.mxu0 %v3048
    %3152 = vmatmul.mubr.bf16.gmra.mrb[0].mxu0 %v3047
    %v3153 = vpop.f32.mrb[0].mxu0
    %v3154 = vadd.f32 0.0, %v3153
    %v3155 = vpop.f32.mrb[0].mxu0
    %v3156 = vpop.f32.mrb[0].mxu0
    %v3157 = vadd.f32 0.0, %v3156
    %v3158 = vpop.f32.mrb[0].mxu0
    %3159 = vmatprep.mubr.bf16.mxu0 %v3052
    %3160 = vmatmul.mubr.bf16.gmra.mrb[0].mxu0 %v3051
    %v3161 = vpop.f32.mrb[0].mxu0
    %v3162 = vadd.f32 0.0, %v3161
    %v3163 = vpop.f32.mrb[0].mxu0
    %v3164 = vpop.f32.mrb[0].mxu0
    %v3165 = vadd.f32 0.0, %v3164
    %v3166 = vpop.f32.mrb[0].mxu0
    %3167 = vmatprep.mubr.bf16.mxu0 %v3056
    %3168 = vmatmul.mubr.bf16.gmra.mrb[0].mxu0 %v3055
    %v3169 = vpop.f32.mrb[0].mxu0
    %v3170 = vadd.f32 0.0, %v3169
    %v3171 = vpop.f32.mrb[0].mxu0
    %v3172 = vpop.f32.mrb[0].mxu0
    %v3173 = vadd.f32 0.0, %v3172
    %v3174 = vpop.f32.mrb[0].mxu0
    %3175 = vmatprep.mubr.bf16.mxu0 %v3060
    %3176 = vmatmul.mubr.bf16.gmra.mrb[0].mxu0 %v3059
    %v3177 = vpop.f32.mrb[0].mxu0
    %v3178 = vadd.f32 0.0, %v3177
    %v3179 = vpop.f32.mrb[0].mxu0
    %v3180 = vpop.f32.mrb[0].mxu0
    %v3181 = vadd.f32 0.0, %v3180
    %v3182 = vpop.f32.mrb[0].mxu0
    %3183 = vmatprep.mubr.bf16.mxu0 %v3064
    %3184 = vmatmul.mubr.bf16.gmra.mrb[0].mxu0 %v3063
    %v3185 = vpop.f32.mrb[0].mxu0
    %v3186 = vadd.f32 0.0, %v3185
    %v3187 = vpop.f32.mrb[0].mxu0
    %v3188 = vpop.f32.mrb[0].mxu0
    %v3189 = vadd.f32 0.0, %v3188
    %v3190 = vpop.f32.mrb[0].mxu0
    %3191 = vmatprep.mubr.bf16.mxu0 %v3068
    %3192 = vmatmul.mubr.bf16.gmra.mrb[0].mxu0 %v3067
    %v3193 = vpop.f32.mrb[0].mxu0
    %v3194 = vadd.f32 0.0, %v3193
    %v3195 = vpop.f32.mrb[0].mxu0
    %v3196 = vpop.f32.mrb[0].mxu0
    %v3197 = vadd.f32 0.0, %v3196
    %v3198 = vpop.f32.mrb[0].mxu0
    %3199 = vdwg.mxu0
    %3200 = vmatprep.subr.bf16.mxu0 0
    %3201 = vmatpush1.bf16.msra.mxu0 %v763
    %3202 = vmatprep.subr.bf16.mxu0 0
    %3203 = vmatpush1.bf16.msra.mxu0 %v764
    %3204 = vmatprep.subr.bf16.mxu0 0
    %3205 = vmatpush1.bf16.msra.mxu0 %v765
    %3206 = vmatprep.subr.bf16.mxu0 0
    %3207 = vmatpush1.bf16.msra.mxu0 %v766
    %3208 = vmatprep.subr.bf16.mxu0 0
    %3209 = vmatpush1.bf16.msra.mxu0 %v767
    %3210 = vmatprep.subr.bf16.mxu0 0
    %3211 = vmatpush1.bf16.msra.mxu0 %v768
    %3212 = vmatprep.subr.bf16.mxu0 0
    %3213 = vmatpush1.bf16.msra.mxu0 %v769
    %3214 = vmatprep.subr.bf16.mxu0 0
    %3215 = vmatpush1.bf16.msra.mxu0 %v770
    %3216 = vmatprep.subr.bf16.mxu0 0
    %3217 = vmatpush1.bf16.msra.mxu0 %v771
    %3218 = vmatprep.subr.bf16.mxu0 0
    %3219 = vmatpush1.bf16.msra.mxu0 %v772
    %3220 = vmatprep.subr.bf16.mxu0 0
    %3221 = vmatpush1.bf16.msra.mxu0 %v773
    %3222 = vmatprep.subr.bf16.mxu0 0
    %3223 = vmatpush1.bf16.msra.mxu0 %v774
    %3224 = vmatprep.subr.bf16.mxu0 0
    %3225 = vmatpush1.bf16.msra.mxu0 %v775
    %3226 = vmatprep.subr.bf16.mxu0 0
    %3227 = vmatpush1.bf16.msra.mxu0 %v776
    %3228 = vmatprep.subr.bf16.mxu0 0
    %3229 = vmatpush1.bf16.msra.mxu0 %v777
    %3230 = vmatprep.subr.bf16.mxu0 0
    %3231 = vmatpush1.bf16.msra.mxu0 %v778
    %3232 = vmatprep.mubr.bf16.mxu0 %v3042
    %3233 = vmatmul.mubr.bf16.gmra.mrb[0].mxu0 %v3041
    %v3234 = vpop.f32.mrb[0].mxu0
    %v3235 = vadd.f32 %v3138, %v3234
    %v3236 = vpop.f32.mrb[0].mxu0
    %v3237 = vpop.f32.mrb[0].mxu0
    %v3238 = vadd.f32 %v3141, %v3237
    %v3239 = vpop.f32.mrb[0].mxu0
    %3240 = vmatprep.mubr.bf16.mxu0 %v3046
    %3241 = vmatmul.mubr.bf16.gmra.mrb[0].mxu0 %v3045
    %v3242 = vpop.f32.mrb[0].mxu0
    %v3243 = vadd.f32 %v3146, %v3242
    %v3244 = vpop.f32.mrb[0].mxu0
    %v3245 = vpop.f32.mrb[0].mxu0
    %v3246 = vadd.f32 %v3149, %v3245
    %v3247 = vpop.f32.mrb[0].mxu0
    %3248 = vmatprep.mubr.bf16.mxu0 %v3050
    %3249 = vmatmul.mubr.bf16.gmra.mrb[0].mxu0 %v3049
    %v3250 = vpop.f32.mrb[0].mxu0
    %v3251 = vadd.f32 %v3154, %v3250
    %v3252 = vpop.f32.mrb[0].mxu0
    %v3253 = vpop.f32.mrb[0].mxu0
    %v3254 = vadd.f32 %v3157, %v3253
    %v3255 = vpop.f32.mrb[0].mxu0
    %3256 = vmatprep.mubr.bf16.mxu0 %v3054
    %3257 = vmatmul.mubr.bf16.gmra.mrb[0].mxu0 %v3053
    %v3258 = vpop.f32.mrb[0].mxu0
    %v3259 = vadd.f32 %v3162, %v3258
    %v3260 = vpop.f32.mrb[0].mxu0
    %v3261 = vpop.f32.mrb[0].mxu0
    %v3262 = vadd.f32 %v3165, %v3261
    %v3263 = vpop.f32.mrb[0].mxu0
    %3264 = vmatprep.mubr.bf16.mxu0 %v3058
    %3265 = vmatmul.mubr.bf16.gmra.mrb[0].mxu0 %v3057
    %v3266 = vpop.f32.mrb[0].mxu0
    %v3267 = vadd.f32 %v3170, %v3266
    %v3268 = vpop.f32.mrb[0].mxu0
    %v3269 = vpop.f32.mrb[0].mxu0
    %v3270 = vadd.f32 %v3173, %v3269
    %v3271 = vpop.f32.mrb[0].mxu0
    %3272 = vmatprep.mubr.bf16.mxu0 %v3062
    %3273 = vmatmul.mubr.bf16.gmra.mrb[0].mxu0 %v3061
    %v3274 = vpop.f32.mrb[0].mxu0
    %v3275 = vadd.f32 %v3178, %v3274
    %v3276 = vpop.f32.mrb[0].mxu0
    %v3277 = vpop.f32.mrb[0].mxu0
    %v3278 = vadd.f32 %v3181, %v3277
    %v3279 = vpop.f32.mrb[0].mxu0
    %3280 = vmatprep.mubr.bf16.mxu0 %v3066
    %3281 = vmatmul.mubr.bf16.gmra.mrb[0].mxu0 %v3065
    %v3282 = vpop.f32.mrb[0].mxu0
    %v3283 = vadd.f32 %v3186, %v3282
    %v3284 = vpop.f32.mrb[0].mxu0
    %v3285 = vpop.f32.mrb[0].mxu0
    %v3286 = vadd.f32 %v3189, %v3285
    %v3287 = vpop.f32.mrb[0].mxu0
    %3288 = vmatprep.mubr.bf16.mxu0 %v3070
    %3289 = vmatmul.mubr.bf16.gmra.mrb[0].mxu0 %v3069
    %v3290 = vpop.f32.mrb[0].mxu0
    %v3291 = vadd.f32 %v3194, %v3290
    %v3292 = vpop.f32.mrb[0].mxu0
    %v3293 = vpop.f32.mrb[0].mxu0
    %v3294 = vadd.f32 %v3197, %v3293
    %v3295 = vpop.f32.mrb[0].mxu0
    %3296 = vdwg.mxu0
    %v3297 = vpack.c.bf16 %v3238, %v3235
    %v3298 = vpack.c.bf16 %v3246, %v3243
    %v3299 = vpack.c.bf16 %v3254, %v3251
    %v3300 = vpack.c.bf16 %v3262, %v3259
    %v3301 = vpack.c.bf16 %v3270, %v3267
    %v3302 = vpack.c.bf16 %v3278, %v3275
    %v3303 = vpack.c.bf16 %v3286, %v3283
    %v3304 = vpack.c.bf16 %v3294, %v3291
    %s3305 = scalar_lea.vmem %s4, 32
    %v3306 = vld [vmem:[%s3305] sm:$0xf]
    %v3307 = vld [vmem:[%s3305 + $0x4] sm:$0xf]
    %v3310 = vunpack.c.l.b16 %v3306
    %v3311 = vunpack.c.l.b16 %v3307
    %v3312 = vpack.c.b16 %v3311, %v3310
    %v3315 = vsel %vm1579, %v3297, 0
    %v3318 = vsel %vm1579, %v3298, 0
    %v3321 = vsel %vm1579, %v3299, 0
    %v3324 = vsel %vm1579, %v3300, 0
    %v3327 = vsel %vm1579, %v3301, 0
    %v3330 = vsel %vm1579, %v3302, 0
    %v3333 = vsel %vm1579, %v3303, 0
    %v3336 = vsel %vm1579, %v3304, 0
    %3338 = vmatprep.subr.bf16.mxu0 0
    %3339 = vmatpush1.bf16.msra.mxu0 %v3312
    %3340 = vmatprep.subr.bf16.mxu0 0
    %3341 = vmatpush1.bf16.msra.mxu0 0
    %3342 = vmatprep.subr.bf16.mxu0 0
    %3343 = vmatpush1.bf16.msra.mxu0 0
    %3344 = vmatprep.subr.bf16.mxu0 0
    %3345 = vmatpush1.bf16.msra.mxu0 0
    %3346 = vmatprep.subr.bf16.mxu0 0
    %3347 = vmatpush1.bf16.msra.mxu0 0
    %3348 = vmatprep.subr.bf16.mxu0 0
    %3349 = vmatpush1.bf16.msra.mxu0 0
    %3350 = vmatprep.subr.bf16.mxu0 0
    %3351 = vmatpush1.bf16.msra.mxu0 0
    %3352 = vmatprep.subr.bf16.mxu0 0
    %3353 = vmatpush1.bf16.msra.mxu0 0
    %3354 = vmatprep.subr.bf16.mxu0 0
    %3355 = vmatpush1.bf16.msra.mxu0 0
    %3356 = vmatprep.subr.bf16.mxu0 0
    %3357 = vmatpush1.bf16.msra.mxu0 0
    %3358 = vmatprep.subr.bf16.mxu0 0
    %3359 = vmatpush1.bf16.msra.mxu0 0
    %3360 = vmatprep.subr.bf16.mxu0 0
    %3361 = vmatpush1.bf16.msra.mxu0 0
    %3362 = vmatprep.subr.bf16.mxu0 0
    %3363 = vmatpush1.bf16.msra.mxu0 0
    %3364 = vmatprep.subr.bf16.mxu0 0
    %3365 = vmatpush1.bf16.msra.mxu0 0
    %3366 = vmatprep.subr.bf16.mxu0 0
    %3367 = vmatpush1.bf16.msra.mxu0 0
    %3368 = vmatprep.subr.bf16.mxu0 0
    %3369 = vmatpush1.bf16.msra.mxu0 0
    %3370 = vmatprep.mubr.bf16.mxu0 0
    %3371 = vmatmul.mubr.bf16.gmra.mrb[0].mxu0 %v3315
    %v3372 = vpop.f32.mrb[0].mxu0
    %v3373 = vadd.f32 0.0, %v3372
    %v3374 = vpop.f32.mrb[0].mxu0
    %v3375 = vpop.f32.mrb[0].mxu0
    %v3376 = vadd.f32 0.0, %v3375
    %v3377 = vpop.f32.mrb[0].mxu0
    %3378 = vmatprep.mubr.bf16.mxu0 0
    %3379 = vmatmul.mubr.bf16.gmra.mrb[0].mxu0 %v3318
    %v3380 = vpop.f32.mrb[0].mxu0
    %v3381 = vadd.f32 0.0, %v3380
    %v3382 = vpop.f32.mrb[0].mxu0
    %v3383 = vpop.f32.mrb[0].mxu0
    %v3384 = vadd.f32 0.0, %v3383
    %v3385 = vpop.f32.mrb[0].mxu0
    %3386 = vmatprep.mubr.bf16.mxu0 0
    %3387 = vmatmul.mubr.bf16.gmra.mrb[0].mxu0 %v3321
    %v3388 = vpop.f32.mrb[0].mxu0
    %v3389 = vadd.f32 0.0, %v3388
    %v3390 = vpop.f32.mrb[0].mxu0
    %v3391 = vpop.f32.mrb[0].mxu0
    %v3392 = vadd.f32 0.0, %v3391
    %v3393 = vpop.f32.mrb[0].mxu0
    %3394 = vmatprep.mubr.bf16.mxu0 0
    %3395 = vmatmul.mubr.bf16.gmra.mrb[0].mxu0 %v3324
    %v3396 = vpop.f32.mrb[0].mxu0
    %v3397 = vadd.f32 0.0, %v3396
    %v3398 = vpop.f32.mrb[0].mxu0
    %v3399 = vpop.f32.mrb[0].mxu0
    %v3400 = vadd.f32 0.0, %v3399
    %v3401 = vpop.f32.mrb[0].mxu0
    %3402 = vmatprep.mubr.bf16.mxu0 0
    %3403 = vmatmul.mubr.bf16.gmra.mrb[0].mxu0 %v3327
    %v3404 = vpop.f32.mrb[0].mxu0
    %v3405 = vadd.f32 0.0, %v3404
    %v3406 = vpop.f32.mrb[0].mxu0
    %v3407 = vpop.f32.mrb[0].mxu0
    %v3408 = vadd.f32 0.0, %v3407
    %v3409 = vpop.f32.mrb[0].mxu0
    %3410 = vmatprep.mubr.bf16.mxu0 0
    %3411 = vmatmul.mubr.bf16.gmra.mrb[0].mxu0 %v3330
    %v3412 = vpop.f32.mrb[0].mxu0
    %v3413 = vadd.f32 0.0, %v3412
    %v3414 = vpop.f32.mrb[0].mxu0
    %v3415 = vpop.f32.mrb[0].mxu0
    %v3416 = vadd.f32 0.0, %v3415
    %v3417 = vpop.f32.mrb[0].mxu0
    %3418 = vmatprep.mubr.bf16.mxu0 0
    %3419 = vmatmul.mubr.bf16.gmra.mrb[0].mxu0 %v3333
    %v3420 = vpop.f32.mrb[0].mxu0
    %v3421 = vadd.f32 0.0, %v3420
    %v3422 = vpop.f32.mrb[0].mxu0
    %v3423 = vpop.f32.mrb[0].mxu0
    %v3424 = vadd.f32 0.0, %v3423
    %v3425 = vpop.f32.mrb[0].mxu0
    %3426 = vmatprep.mubr.bf16.mxu0 0
    %3427 = vmatmul.mubr.bf16.gmra.mrb[0].mxu0 %v3336
    %v3428 = vpop.f32.mrb[0].mxu0
    %v3429 = vadd.f32 0.0, %v3428
    %v3430 = vpop.f32.mrb[0].mxu0
    %v3431 = vpop.f32.mrb[0].mxu0
    %v3432 = vadd.f32 0.0, %v3431
    %v3433 = vpop.f32.mrb[0].mxu0
    %3434 = vdwg.mxu0
    %v3435 = vadd.f32 %v2894, %v3373
    %v3436 = vadd.f32 %v2895, %v3376
    %v3437 = vadd.f32 %v2896, %v3381
    %v3438 = vadd.f32 %v2897, %v3384
    %v3439 = vadd.f32 %v2898, %v3389
    %v3440 = vadd.f32 %v2899, %v3392
    %v3441 = vadd.f32 %v2900, %v3397
    %v3442 = vadd.f32 %v2901, %v3400
    %v3443 = vadd.f32 %v2902, %v3405
    %v3444 = vadd.f32 %v2903, %v3408
    %v3445 = vadd.f32 %v2904, %v3413
    %v3446 = vadd.f32 %v2905, %v3416
    %v3447 = vadd.f32 %v2906, %v3421
    %v3448 = vadd.f32 %v2907, %v3424
    %v3449 = vadd.f32 %v2908, %v3429
    %v3450 = vadd.f32 %v2909, %v3432
    %s3451 = scalar_lea.vmem %s3, 1280
    %v3452 = vld [vmem:[%s3451] sm:$0xff]
    %v3453 = vld [vmem:[%s3451 + $0x8] sm:$0xff]
    %v3454 = vld [vmem:[%s3451 + $0x10] sm:$0xff]
    %v3455 = vld [vmem:[%s3451 + $0x18] sm:$0xff]
    %v3456 = vld [vmem:[%s3451 + $0x20] sm:$0xff]
    %v3457 = vld [vmem:[%s3451 + $0x28] sm:$0xff]
    %v3458 = vld [vmem:[%s3451 + $0x30] sm:$0xff]
    %v3459 = vld [vmem:[%s3451 + $0x38] sm:$0xff]
    %v3460 = vld [vmem:[%s3451 + $0x40] sm:$0xff]
    %v3461 = vld [vmem:[%s3451 + $0x48] sm:$0xff]
    %v3462 = vld [vmem:[%s3451 + $0x50] sm:$0xff]
    %v3463 = vld [vmem:[%s3451 + $0x58] sm:$0xff]
    %v3464 = vld [vmem:[%s3451 + $0x60] sm:$0xff]
    %v3465 = vld [vmem:[%s3451 + $0x68] sm:$0xff]
    %v3466 = vld [vmem:[%s3451 + $0x70] sm:$0xff]
    %v3467 = vld [vmem:[%s3451 + $0x78] sm:$0xff]
    %v3468 = vld [vmem:[%s3451 + $0x80] sm:$0xff]
    %v3469 = vld [vmem:[%s3451 + $0x88] sm:$0xff]
    %v3470 = vld [vmem:[%s3451 + $0x90] sm:$0xff]
    %v3471 = vld [vmem:[%s3451 + $0x98] sm:$0xff]
    %v3472 = vld [vmem:[%s3451 + $0xa0] sm:$0xff]
    %v3473 = vld [vmem:[%s3451 + $0xa8] sm:$0xff]
    %v3474 = vld [vmem:[%s3451 + $0xb0] sm:$0xff]
    %v3475 = vld [vmem:[%s3451 + $0xb8] sm:$0xff]
    %v3476 = vld [vmem:[%s3451 + $0xc0] sm:$0xff]
    %v3477 = vld [vmem:[%s3451 + $0xc8] sm:$0xff]
    %v3478 = vld [vmem:[%s3451 + $0xd0] sm:$0xff]
    %v3479 = vld [vmem:[%s3451 + $0xd8] sm:$0xff]
    %v3480 = vld [vmem:[%s3451 + $0xe0] sm:$0xff]
    %v3481 = vld [vmem:[%s3451 + $0xe8] sm:$0xff]
    %v3482 = vld [vmem:[%s3451 + $0xf0] sm:$0xff]
    %v3483 = vld [vmem:[%s3451 + $0xf8] sm:$0xff]
    %v3516 = vunpack.c.l.b16 %v3452
    %v3517 = vunpack.c.h.b16 %v3452
    %v3518 = vunpack.c.l.b16 %v3453
    %v3519 = vunpack.c.h.b16 %v3453
    %v3520 = vunpack.c.l.b16 %v3454
    %v3521 = vunpack.c.h.b16 %v3454
    %v3522 = vunpack.c.l.b16 %v3455
    %v3523 = vunpack.c.h.b16 %v3455
    %v3524 = vunpack.c.l.b16 %v3456
    %v3525 = vunpack.c.h.b16 %v3456
    %v3526 = vunpack.c.l.b16 %v3457
    %v3527 = vunpack.c.h.b16 %v3457
    %v3528 = vunpack.c.l.b16 %v3458
    %v3529 = vunpack.c.h.b16 %v3458
    %v3530 = vunpack.c.l.b16 %v3459
    %v3531 = vunpack.c.h.b16 %v3459
    %v3532 = vunpack.c.l.b16 %v3460
    %v3533 = vunpack.c.h.b16 %v3460
    %v3534 = vunpack.c.l.b16 %v3461
    %v3535 = vunpack.c.h.b16 %v3461
    %v3536 = vunpack.c.l.b16 %v3462
    %v3537 = vunpack.c.h.b16 %v3462
    %v3538 = vunpack.c.l.b16 %v3463
    %v3539 = vunpack.c.h.b16 %v3463
    %v3540 = vunpack.c.l.b16 %v3464
    %v3541 = vunpack.c.h.b16 %v3464
    %v3542 = vunpack.c.l.b16 %v3465
    %v3543 = vunpack.c.h.b16 %v3465
    %v3544 = vunpack.c.l.b16 %v3466
    %v3545 = vunpack.c.h.b16 %v3466
    %v3546 = vunpack.c.l.b16 %v3467
    %v3547 = vunpack.c.h.b16 %v3467
    %v3548 = vunpack.c.l.b16 %v3468
    %v3549 = vunpack.c.h.b16 %v3468
    %v3550 = vunpack.c.l.b16 %v3469
    %v3551 = vunpack.c.h.b16 %v3469
    %v3552 = vunpack.c.l.b16 %v3470
    %v3553 = vunpack.c.h.b16 %v3470
    %v3554 = vunpack.c.l.b16 %v3471
    %v3555 = vunpack.c.h.b16 %v3471
    %v3556 = vunpack.c.l.b16 %v3472
    %v3557 = vunpack.c.h.b16 %v3472
    %v3558 = vunpack.c.l.b16 %v3473
    %v3559 = vunpack.c.h.b16 %v3473
    %v3560 = vunpack.c.l.b16 %v3474
    %v3561 = vunpack.c.h.b16 %v3474
    %v3562 = vunpack.c.l.b16 %v3475
    %v3563 = vunpack.c.h.b16 %v3475
    %v3564 = vunpack.c.l.b16 %v3476
    %v3565 = vunpack.c.h.b16 %v3476
    %v3566 = vunpack.c.l.b16 %v3477
    %v3567 = vunpack.c.h.b16 %v3477
    %v3568 = vunpack.c.l.b16 %v3478
    %v3569 = vunpack.c.h.b16 %v3478
    %v3570 = vunpack.c.l.b16 %v3479
    %v3571 = vunpack.c.h.b16 %v3479
    %v3572 = vunpack.c.l.b16 %v3480
    %v3573 = vunpack.c.h.b16 %v3480
    %v3574 = vunpack.c.l.b16 %v3481
    %v3575 = vunpack.c.h.b16 %v3481
    %v3576 = vunpack.c.l.b16 %v3482
    %v3577 = vunpack.c.h.b16 %v3482
    %v3578 = vunpack.c.l.b16 %v3483
    %v3579 = vunpack.c.h.b16 %v3483
    %v3580 = vpack.c.b16 %v3520, %v3516
    %v3581 = vpack.c.b16 %v3521, %v3517
    %v3582 = vpack.c.b16 %v3522, %v3518
    %v3583 = vpack.c.b16 %v3523, %v3519
    %v3584 = vpack.c.b16 %v3528, %v3524
    %v3585 = vpack.c.b16 %v3529, %v3525
    %v3586 = vpack.c.b16 %v3530, %v3526
    %v3587 = vpack.c.b16 %v3531, %v3527
    %v3588 = vpack.c.b16 %v3536, %v3532
    %v3589 = vpack.c.b16 %v3537, %v3533
    %v3590 = vpack.c.b16 %v3538, %v3534
    %v3591 = vpack.c.b16 %v3539, %v3535
    %v3592 = vpack.c.b16 %v3544, %v3540
    %v3593 = vpack.c.b16 %v3545, %v3541
    %v3594 = vpack.c.b16 %v3546, %v3542
    %v3595 = vpack.c.b16 %v3547, %v3543
    %v3596 = vpack.c.b16 %v3552, %v3548
    %v3597 = vpack.c.b16 %v3553, %v3549
    %v3598 = vpack.c.b16 %v3554, %v3550
    %v3599 = vpack.c.b16 %v3555, %v3551
    %v3600 = vpack.c.b16 %v3560, %v3556
    %v3601 = vpack.c.b16 %v3561, %v3557
    %v3602 = vpack.c.b16 %v3562, %v3558
    %v3603 = vpack.c.b16 %v3563, %v3559
    %v3604 = vpack.c.b16 %v3568, %v3564
    %v3605 = vpack.c.b16 %v3569, %v3565
    %v3606 = vpack.c.b16 %v3570, %v3566
    %v3607 = vpack.c.b16 %v3571, %v3567
    %v3608 = vpack.c.b16 %v3576, %v3572
    %v3609 = vpack.c.b16 %v3577, %v3573
    %v3610 = vpack.c.b16 %v3578, %v3574
    %v3611 = vpack.c.b16 %v3579, %v3575
    %3644 = vmatprep.subr.bf16.mxu0 0
    %3645 = vmatpush1.bf16.msra.mxu0 %v747
    %3646 = vmatprep.subr.bf16.mxu0 0
    %3647 = vmatpush1.bf16.msra.mxu0 %v748
    %3648 = vmatprep.subr.bf16.mxu0 0
    %3649 = vmatpush1.bf16.msra.mxu0 %v749
    %3650 = vmatprep.subr.bf16.mxu0 0
    %3651 = vmatpush1.bf16.msra.mxu0 %v750
    %3652 = vmatprep.subr.bf16.mxu0 0
    %3653 = vmatpush1.bf16.msra.mxu0 %v751
    %3654 = vmatprep.subr.bf16.mxu0 0
    %3655 = vmatpush1.bf16.msra.mxu0 %v752
    %3656 = vmatprep.subr.bf16.mxu0 0
    %3657 = vmatpush1.bf16.msra.mxu0 %v753
    %3658 = vmatprep.subr.bf16.mxu0 0
    %3659 = vmatpush1.bf16.msra.mxu0 %v754
    %3660 = vmatprep.subr.bf16.mxu0 0
    %3661 = vmatpush1.bf16.msra.mxu0 %v755
    %3662 = vmatprep.subr.bf16.mxu0 0
    %3663 = vmatpush1.bf16.msra.mxu0 %v756
    %3664 = vmatprep.subr.bf16.mxu0 0
    %3665 = vmatpush1.bf16.msra.mxu0 %v757
    %3666 = vmatprep.subr.bf16.mxu0 0
    %3667 = vmatpush1.bf16.msra.mxu0 %v758
    %3668 = vmatprep.subr.bf16.mxu0 0
    %3669 = vmatpush1.bf16.msra.mxu0 %v759
    %3670 = vmatprep.subr.bf16.mxu0 0
    %3671 = vmatpush1.bf16.msra.mxu0 %v760
    %3672 = vmatprep.subr.bf16.mxu0 0
    %3673 = vmatpush1.bf16.msra.mxu0 %v761
    %3674 = vmatprep.subr.bf16.mxu0 0
    %3675 = vmatpush1.bf16.msra.mxu0 %v762
    %3676 = vmatprep.mubr.bf16.mxu0 %v3581
    %3677 = vmatmul.mubr.bf16.gmra.mrb[0].mxu0 %v3580
    %v3678 = vpop.f32.mrb[0].mxu0
    %v3679 = vadd.f32 0.0, %v3678
    %v3680 = vpop.f32.mrb[0].mxu0
    %v3681 = vpop.f32.mrb[0].mxu0
    %v3682 = vadd.f32 0.0, %v3681
    %v3683 = vpop.f32.mrb[0].mxu0
    %3684 = vmatprep.mubr.bf16.mxu0 %v3585
    %3685 = vmatmul.mubr.bf16.gmra.mrb[0].mxu0 %v3584
    %v3686 = vpop.f32.mrb[0].mxu0
    %v3687 = vadd.f32 0.0, %v3686
    %v3688 = vpop.f32.mrb[0].mxu0
    %v3689 = vpop.f32.mrb[0].mxu0
    %v3690 = vadd.f32 0.0, %v3689
    %v3691 = vpop.f32.mrb[0].mxu0
    %3692 = vmatprep.mubr.bf16.mxu0 %v3589
    %3693 = vmatmul.mubr.bf16.gmra.mrb[0].mxu0 %v3588
    %v3694 = vpop.f32.mrb[0].mxu0
    %v3695 = vadd.f32 0.0, %v3694
    %v3696 = vpop.f32.mrb[0].mxu0
    %v3697 = vpop.f32.mrb[0].mxu0
    %v3698 = vadd.f32 0.0, %v3697
    %v3699 = vpop.f32.mrb[0].mxu0
    %3700 = vmatprep.mubr.bf16.mxu0 %v3593
    %3701 = vmatmul.mubr.bf16.gmra.mrb[0].mxu0 %v3592
    %v3702 = vpop.f32.mrb[0].mxu0
    %v3703 = vadd.f32 0.0, %v3702
    %v3704 = vpop.f32.mrb[0].mxu0
    %v3705 = vpop.f32.mrb[0].mxu0
    %v3706 = vadd.f32 0.0, %v3705
    %v3707 = vpop.f32.mrb[0].mxu0
    %3708 = vmatprep.mubr.bf16.mxu0 %v3597
    %3709 = vmatmul.mubr.bf16.gmra.mrb[0].mxu0 %v3596
    %v3710 = vpop.f32.mrb[0].mxu0
    %v3711 = vadd.f32 0.0, %v3710
    %v3712 = vpop.f32.mrb[0].mxu0
    %v3713 = vpop.f32.mrb[0].mxu0
    %v3714 = vadd.f32 0.0, %v3713
    %v3715 = vpop.f32.mrb[0].mxu0
    %3716 = vmatprep.mubr.bf16.mxu0 %v3601
    %3717 = vmatmul.mubr.bf16.gmra.mrb[0].mxu0 %v3600
    %v3718 = vpop.f32.mrb[0].mxu0
    %v3719 = vadd.f32 0.0, %v3718
    %v3720 = vpop.f32.mrb[0].mxu0
    %v3721 = vpop.f32.mrb[0].mxu0
    %v3722 = vadd.f32 0.0, %v3721
    %v3723 = vpop.f32.mrb[0].mxu0
    %3724 = vmatprep.mubr.bf16.mxu0 %v3605
    %3725 = vmatmul.mubr.bf16.gmra.mrb[0].mxu0 %v3604
    %v3726 = vpop.f32.mrb[0].mxu0
    %v3727 = vadd.f32 0.0, %v3726
    %v3728 = vpop.f32.mrb[0].mxu0
    %v3729 = vpop.f32.mrb[0].mxu0
    %v3730 = vadd.f32 0.0, %v3729
    %v3731 = vpop.f32.mrb[0].mxu0
    %3732 = vmatprep.mubr.bf16.mxu0 %v3609
    %3733 = vmatmul.mubr.bf16.gmra.mrb[0].mxu0 %v3608
    %v3734 = vpop.f32.mrb[0].mxu0
    %v3735 = vadd.f32 0.0, %v3734
    %v3736 = vpop.f32.mrb[0].mxu0
    %v3737 = vpop.f32.mrb[0].mxu0
    %v3738 = vadd.f32 0.0, %v3737
    %v3739 = vpop.f32.mrb[0].mxu0
    %3740 = vdwg.mxu0
    %3741 = vmatprep.subr.bf16.mxu0 0
    %3742 = vmatpush1.bf16.msra.mxu0 %v763
    %3743 = vmatprep.subr.bf16.mxu0 0
    %3744 = vmatpush1.bf16.msra.mxu0 %v764
    %3745 = vmatprep.subr.bf16.mxu0 0
    %3746 = vmatpush1.bf16.msra.mxu0 %v765
    %3747 = vmatprep.subr.bf16.mxu0 0
    %3748 = vmatpush1.bf16.msra.mxu0 %v766
    %3749 = vmatprep.subr.bf16.mxu0 0
    %3750 = vmatpush1.bf16.msra.mxu0 %v767
    %3751 = vmatprep.subr.bf16.mxu0 0
    %3752 = vmatpush1.bf16.msra.mxu0 %v768
    %3753 = vmatprep.subr.bf16.mxu0 0
    %3754 = vmatpush1.bf16.msra.mxu0 %v769
    %3755 = vmatprep.subr.bf16.mxu0 0
    %3756 = vmatpush1.bf16.msra.mxu0 %v770
    %3757 = vmatprep.subr.bf16.mxu0 0
    %3758 = vmatpush1.bf16.msra.mxu0 %v771
    %3759 = vmatprep.subr.bf16.mxu0 0
    %3760 = vmatpush1.bf16.msra.mxu0 %v772
    %3761 = vmatprep.subr.bf16.mxu0 0
    %3762 = vmatpush1.bf16.msra.mxu0 %v773
    %3763 = vmatprep.subr.bf16.mxu0 0
    %3764 = vmatpush1.bf16.msra.mxu0 %v774
    %3765 = vmatprep.subr.bf16.mxu0 0
    %3766 = vmatpush1.bf16.msra.mxu0 %v775
    %3767 = vmatprep.subr.bf16.mxu0 0
    %3768 = vmatpush1.bf16.msra.mxu0 %v776
    %3769 = vmatprep.subr.bf16.mxu0 0
    %3770 = vmatpush1.bf16.msra.mxu0 %v777
    %3771 = vmatprep.subr.bf16.mxu0 0
    %3772 = vmatpush1.bf16.msra.mxu0 %v778
    %3773 = vmatprep.mubr.bf16.mxu0 %v3583
    %3774 = vmatmul.mubr.bf16.gmra.mrb[0].mxu0 %v3582
    %v3775 = vpop.f32.mrb[0].mxu0
    %v3776 = vadd.f32 %v3679, %v3775
    %v3777 = vpop.f32.mrb[0].mxu0
    %v3778 = vpop.f32.mrb[0].mxu0
    %v3779 = vadd.f32 %v3682, %v3778
    %v3780 = vpop.f32.mrb[0].mxu0
    %3781 = vmatprep.mubr.bf16.mxu0 %v3587
    %3782 = vmatmul.mubr.bf16.gmra.mrb[0].mxu0 %v3586
    %v3783 = vpop.f32.mrb[0].mxu0
    %v3784 = vadd.f32 %v3687, %v3783
    %v3785 = vpop.f32.mrb[0].mxu0
    %v3786 = vpop.f32.mrb[0].mxu0
    %v3787 = vadd.f32 %v3690, %v3786
    %v3788 = vpop.f32.mrb[0].mxu0
    %3789 = vmatprep.mubr.bf16.mxu0 %v3591
    %3790 = vmatmul.mubr.bf16.gmra.mrb[0].mxu0 %v3590
    %v3791 = vpop.f32.mrb[0].mxu0
    %v3792 = vadd.f32 %v3695, %v3791
    %v3793 = vpop.f32.mrb[0].mxu0
    %v3794 = vpop.f32.mrb[0].mxu0
    %v3795 = vadd.f32 %v3698, %v3794
    %v3796 = vpop.f32.mrb[0].mxu0
    %3797 = vmatprep.mubr.bf16.mxu0 %v3595
    %3798 = vmatmul.mubr.bf16.gmra.mrb[0].mxu0 %v3594
    %v3799 = vpop.f32.mrb[0].mxu0
    %v3800 = vadd.f32 %v3703, %v3799
    %v3801 = vpop.f32.mrb[0].mxu0
    %v3802 = vpop.f32.mrb[0].mxu0
    %v3803 = vadd.f32 %v3706, %v3802
    %v3804 = vpop.f32.mrb[0].mxu0
    %3805 = vmatprep.mubr.bf16.mxu0 %v3599
    %3806 = vmatmul.mubr.bf16.gmra.mrb[0].mxu0 %v3598
    %v3807 = vpop.f32.mrb[0].mxu0
    %v3808 = vadd.f32 %v3711, %v3807
    %v3809 = vpop.f32.mrb[0].mxu0
    %v3810 = vpop.f32.mrb[0].mxu0
    %v3811 = vadd.f32 %v3714, %v3810
    %v3812 = vpop.f32.mrb[0].mxu0
    %3813 = vmatprep.mubr.bf16.mxu0 %v3603
    %3814 = vmatmul.mubr.bf16.gmra.mrb[0].mxu0 %v3602
    %v3815 = vpop.f32.mrb[0].mxu0
    %v3816 = vadd.f32 %v3719, %v3815
    %v3817 = vpop.f32.mrb[0].mxu0
    %v3818 = vpop.f32.mrb[0].mxu0
    %v3819 = vadd.f32 %v3722, %v3818
    %v3820 = vpop.f32.mrb[0].mxu0
    %3821 = vmatprep.mubr.bf16.mxu0 %v3607
    %3822 = vmatmul.mubr.bf16.gmra.mrb[0].mxu0 %v3606
    %v3823 = vpop.f32.mrb[0].mxu0
    %v3824 = vadd.f32 %v3727, %v3823
    %v3825 = vpop.f32.mrb[0].mxu0
    %v3826 = vpop.f32.mrb[0].mxu0
    %v3827 = vadd.f32 %v3730, %v3826
    %v3828 = vpop.f32.mrb[0].mxu0
    %3829 = vmatprep.mubr.bf16.mxu0 %v3611
    %3830 = vmatmul.mubr.bf16.gmra.mrb[0].mxu0 %v3610
    %v3831 = vpop.f32.mrb[0].mxu0
    %v3832 = vadd.f32 %v3735, %v3831
    %v3833 = vpop.f32.mrb[0].mxu0
    %v3834 = vpop.f32.mrb[0].mxu0
    %v3835 = vadd.f32 %v3738, %v3834
    %v3836 = vpop.f32.mrb[0].mxu0
    %3837 = vdwg.mxu0
    %v3838 = vpack.c.bf16 %v3779, %v3776
    %v3839 = vpack.c.bf16 %v3787, %v3784
    %v3840 = vpack.c.bf16 %v3795, %v3792
    %v3841 = vpack.c.bf16 %v3803, %v3800
    %v3842 = vpack.c.bf16 %v3811, %v3808
    %v3843 = vpack.c.bf16 %v3819, %v3816
    %v3844 = vpack.c.bf16 %v3827, %v3824
    %v3845 = vpack.c.bf16 %v3835, %v3832
    %s3846 = scalar_lea.vmem %s4, 40
    %v3847 = vld [vmem:[%s3846] sm:$0xf]
    %v3848 = vld [vmem:[%s3846 + $0x4] sm:$0xf]
    %v3851 = vunpack.c.l.b16 %v3847
    %v3852 = vunpack.c.l.b16 %v3848
    %v3853 = vpack.c.b16 %v3852, %v3851
    %v3856 = vsel %vm1579, %v3838, 0
    %v3859 = vsel %vm1579, %v3839, 0
    %v3862 = vsel %vm1579, %v3840, 0
    %v3865 = vsel %vm1579, %v3841, 0
    %v3868 = vsel %vm1579, %v3842, 0
    %v3871 = vsel %vm1579, %v3843, 0
    %v3874 = vsel %vm1579, %v3844, 0
    %v3877 = vsel %vm1579, %v3845, 0
    %3879 = vmatprep.subr.bf16.mxu0 0
    %3880 = vmatpush1.bf16.msra.mxu0 %v3853
    %3881 = vmatprep.subr.bf16.mxu0 0
    %3882 = vmatpush1.bf16.msra.mxu0 0
    %3883 = vmatprep.subr.bf16.mxu0 0
    %3884 = vmatpush1.bf16.msra.mxu0 0
    %3885 = vmatprep.subr.bf16.mxu0 0
    %3886 = vmatpush1.bf16.msra.mxu0 0
    %3887 = vmatprep.subr.bf16.mxu0 0
    %3888 = vmatpush1.bf16.msra.mxu0 0
    %3889 = vmatprep.subr.bf16.mxu0 0
    %3890 = vmatpush1.bf16.msra.mxu0 0
    %3891 = vmatprep.subr.bf16.mxu0 0
    %3892 = vmatpush1.bf16.msra.mxu0 0
    %3893 = vmatprep.subr.bf16.mxu0 0
    %3894 = vmatpush1.bf16.msra.mxu0 0
    %3895 = vmatprep.subr.bf16.mxu0 0
    %3896 = vmatpush1.bf16.msra.mxu0 0
    %3897 = vmatprep.subr.bf16.mxu0 0
    %3898 = vmatpush1.bf16.msra.mxu0 0
    %3899 = vmatprep.subr.bf16.mxu0 0
    %3900 = vmatpush1.bf16.msra.mxu0 0
    %3901 = vmatprep.subr.bf16.mxu0 0
    %3902 = vmatpush1.bf16.msra.mxu0 0
    %3903 = vmatprep.subr.bf16.mxu0 0
    %3904 = vmatpush1.bf16.msra.mxu0 0
    %3905 = vmatprep.subr.bf16.mxu0 0
    %3906 = vmatpush1.bf16.msra.mxu0 0
    %3907 = vmatprep.subr.bf16.mxu0 0
    %3908 = vmatpush1.bf16.msra.mxu0 0
    %3909 = vmatprep.subr.bf16.mxu0 0
    %3910 = vmatpush1.bf16.msra.mxu0 0
    %3911 = vmatprep.mubr.bf16.mxu0 0
    %3912 = vmatmul.mubr.bf16.gmra.mrb[0].mxu0 %v3856
    %v3913 = vpop.f32.mrb[0].mxu0
    %v3914 = vadd.f32 0.0, %v3913
    %v3915 = vpop.f32.mrb[0].mxu0
    %v3916 = vpop.f32.mrb[0].mxu0
    %v3917 = vadd.f32 0.0, %v3916
    %v3918 = vpop.f32.mrb[0].mxu0
    %3919 = vmatprep.mubr.bf16.mxu0 0
    %3920 = vmatmul.mubr.bf16.gmra.mrb[0].mxu0 %v3859
    %v3921 = vpop.f32.mrb[0].mxu0
    %v3922 = vadd.f32 0.0, %v3921
    %v3923 = vpop.f32.mrb[0].mxu0
    %v3924 = vpop.f32.mrb[0].mxu0
    %v3925 = vadd.f32 0.0, %v3924
    %v3926 = vpop.f32.mrb[0].mxu0
    %3927 = vmatprep.mubr.bf16.mxu0 0
    %3928 = vmatmul.mubr.bf16.gmra.mrb[0].mxu0 %v3862
    %v3929 = vpop.f32.mrb[0].mxu0
    %v3930 = vadd.f32 0.0, %v3929
    %v3931 = vpop.f32.mrb[0].mxu0
    %v3932 = vpop.f32.mrb[0].mxu0
    %v3933 = vadd.f32 0.0, %v3932
    %v3934 = vpop.f32.mrb[0].mxu0
    %3935 = vmatprep.mubr.bf16.mxu0 0
    %3936 = vmatmul.mubr.bf16.gmra.mrb[0].mxu0 %v3865
    %v3937 = vpop.f32.mrb[0].mxu0
    %v3938 = vadd.f32 0.0, %v3937
    %v3939 = vpop.f32.mrb[0].mxu0
    %v3940 = vpop.f32.mrb[0].mxu0
    %v3941 = vadd.f32 0.0, %v3940
    %v3942 = vpop.f32.mrb[0].mxu0
    %3943 = vmatprep.mubr.bf16.mxu0 0
    %3944 = vmatmul.mubr.bf16.gmra.mrb[0].mxu0 %v3868
    %v3945 = vpop.f32.mrb[0].mxu0
    %v3946 = vadd.f32 0.0, %v3945
    %v3947 = vpop.f32.mrb[0].mxu0
    %v3948 = vpop.f32.mrb[0].mxu0
    %v3949 = vadd.f32 0.0, %v3948
    %v3950 = vpop.f32.mrb[0].mxu0
    %3951 = vmatprep.mubr.bf16.mxu0 0
    %3952 = vmatmul.mubr.bf16.gmra.mrb[0].mxu0 %v3871
    %v3953 = vpop.f32.mrb[0].mxu0
    %v3954 = vadd.f32 0.0, %v3953
    %v3955 = vpop.f32.mrb[0].mxu0
    %v3956 = vpop.f32.mrb[0].mxu0
    %v3957 = vadd.f32 0.0, %v3956
    %v3958 = vpop.f32.mrb[0].mxu0
    %3959 = vmatprep.mubr.bf16.mxu0 0
    %3960 = vmatmul.mubr.bf16.gmra.mrb[0].mxu0 %v3874
    %v3961 = vpop.f32.mrb[0].mxu0
    %v3962 = vadd.f32 0.0, %v3961
    %v3963 = vpop.f32.mrb[0].mxu0
    %v3964 = vpop.f32.mrb[0].mxu0
    %v3965 = vadd.f32 0.0, %v3964
    %v3966 = vpop.f32.mrb[0].mxu0
    %3967 = vmatprep.mubr.bf16.mxu0 0
    %3968 = vmatmul.mubr.bf16.gmra.mrb[0].mxu0 %v3877
    %v3969 = vpop.f32.mrb[0].mxu0
    %v3970 = vadd.f32 0.0, %v3969
    %v3971 = vpop.f32.mrb[0].mxu0
    %v3972 = vpop.f32.mrb[0].mxu0
    %v3973 = vadd.f32 0.0, %v3972
    %v3974 = vpop.f32.mrb[0].mxu0
    %3975 = vdwg.mxu0
    %v3976 = vadd.f32 %v3435, %v3914
    %v3977 = vadd.f32 %v3436, %v3917
    %v3978 = vadd.f32 %v3437, %v3922
    %v3979 = vadd.f32 %v3438, %v3925
    %v3980 = vadd.f32 %v3439, %v3930
    %v3981 = vadd.f32 %v3440, %v3933
    %v3982 = vadd.f32 %v3441, %v3938
    %v3983 = vadd.f32 %v3442, %v3941
    %v3984 = vadd.f32 %v3443, %v3946
    %v3985 = vadd.f32 %v3444, %v3949
    %v3986 = vadd.f32 %v3445, %v3954
    %v3987 = vadd.f32 %v3446, %v3957
    %v3988 = vadd.f32 %v3447, %v3962
    %v3989 = vadd.f32 %v3448, %v3965
    %v3990 = vadd.f32 %v3449, %v3970
    %v3991 = vadd.f32 %v3450, %v3973
    %s3992 = scalar_lea.vmem %s3, 1536
    %v3993 = vld [vmem:[%s3992] sm:$0xff]
    %v3994 = vld [vmem:[%s3992 + $0x8] sm:$0xff]
    %v3995 = vld [vmem:[%s3992 + $0x10] sm:$0xff]
    %v3996 = vld [vmem:[%s3992 + $0x18] sm:$0xff]
    %v3997 = vld [vmem:[%s3992 + $0x20] sm:$0xff]
    %v3998 = vld [vmem:[%s3992 + $0x28] sm:$0xff]
    %v3999 = vld [vmem:[%s3992 + $0x30] sm:$0xff]
    %v4000 = vld [vmem:[%s3992 + $0x38] sm:$0xff]
    %v4001 = vld [vmem:[%s3992 + $0x40] sm:$0xff]
    %v4002 = vld [vmem:[%s3992 + $0x48] sm:$0xff]
    %v4003 = vld [vmem:[%s3992 + $0x50] sm:$0xff]
    %v4004 = vld [vmem:[%s3992 + $0x58] sm:$0xff]
    %v4005 = vld [vmem:[%s3992 + $0x60] sm:$0xff]
    %v4006 = vld [vmem:[%s3992 + $0x68] sm:$0xff]
    %v4007 = vld [vmem:[%s3992 + $0x70] sm:$0xff]
    %v4008 = vld [vmem:[%s3992 + $0x78] sm:$0xff]
    %v4009 = vld [vmem:[%s3992 + $0x80] sm:$0xff]
    %v4010 = vld [vmem:[%s3992 + $0x88] sm:$0xff]
    %v4011 = vld [vmem:[%s3992 + $0x90] sm:$0xff]
    %v4012 = vld [vmem:[%s3992 + $0x98] sm:$0xff]
    %v4013 = vld [vmem:[%s3992 + $0xa0] sm:$0xff]
    %v4014 = vld [vmem:[%s3992 + $0xa8] sm:$0xff]
    %v4015 = vld [vmem:[%s3992 + $0xb0] sm:$0xff]
    %v4016 = vld [vmem:[%s3992 + $0xb8] sm:$0xff]
    %v4017 = vld [vmem:[%s3992 + $0xc0] sm:$0xff]
    %v4018 = vld [vmem:[%s3992 + $0xc8] sm:$0xff]
    %v4019 = vld [vmem:[%s3992 + $0xd0] sm:$0xff]
    %v4020 = vld [vmem:[%s3992 + $0xd8] sm:$0xff]
    %v4021 = vld [vmem:[%s3992 + $0xe0] sm:$0xff]
    %v4022 = vld [vmem:[%s3992 + $0xe8] sm:$0xff]
    %v4023 = vld [vmem:[%s3992 + $0xf0] sm:$0xff]
    %v4024 = vld [vmem:[%s3992 + $0xf8] sm:$0xff]
    %v4057 = vunpack.c.l.b16 %v3993
    %v4058 = vunpack.c.h.b16 %v3993
    %v4059 = vunpack.c.l.b16 %v3994
    %v4060 = vunpack.c.h.b16 %v3994
    %v4061 = vunpack.c.l.b16 %v3995
    %v4062 = vunpack.c.h.b16 %v3995
    %v4063 = vunpack.c.l.b16 %v3996
    %v4064 = vunpack.c.h.b16 %v3996
    %v4065 = vunpack.c.l.b16 %v3997
    %v4066 = vunpack.c.h.b16 %v3997
    %v4067 = vunpack.c.l.b16 %v3998
    %v4068 = vunpack.c.h.b16 %v3998
    %v4069 = vunpack.c.l.b16 %v3999
    %v4070 = vunpack.c.h.b16 %v3999
    %v4071 = vunpack.c.l.b16 %v4000
    %v4072 = vunpack.c.h.b16 %v4000
    %v4073 = vunpack.c.l.b16 %v4001
    %v4074 = vunpack.c.h.b16 %v4001
    %v4075 = vunpack.c.l.b16 %v4002
    %v4076 = vunpack.c.h.b16 %v4002
    %v4077 = vunpack.c.l.b16 %v4003
    %v4078 = vunpack.c.h.b16 %v4003
    %v4079 = vunpack.c.l.b16 %v4004
    %v4080 = vunpack.c.h.b16 %v4004
    %v4081 = vunpack.c.l.b16 %v4005
    %v4082 = vunpack.c.h.b16 %v4005
    %v4083 = vunpack.c.l.b16 %v4006
    %v4084 = vunpack.c.h.b16 %v4006
    %v4085 = vunpack.c.l.b16 %v4007
    %v4086 = vunpack.c.h.b16 %v4007
    %v4087 = vunpack.c.l.b16 %v4008
    %v4088 = vunpack.c.h.b16 %v4008
    %v4089 = vunpack.c.l.b16 %v4009
    %v4090 = vunpack.c.h.b16 %v4009
    %v4091 = vunpack.c.l.b16 %v4010
    %v4092 = vunpack.c.h.b16 %v4010
    %v4093 = vunpack.c.l.b16 %v4011
    %v4094 = vunpack.c.h.b16 %v4011
    %v4095 = vunpack.c.l.b16 %v4012
    %v4096 = vunpack.c.h.b16 %v4012
    %v4097 = vunpack.c.l.b16 %v4013
    %v4098 = vunpack.c.h.b16 %v4013
    %v4099 = vunpack.c.l.b16 %v4014
    %v4100 = vunpack.c.h.b16 %v4014
    %v4101 = vunpack.c.l.b16 %v4015
    %v4102 = vunpack.c.h.b16 %v4015
    %v4103 = vunpack.c.l.b16 %v4016
    %v4104 = vunpack.c.h.b16 %v4016
    %v4105 = vunpack.c.l.b16 %v4017
    %v4106 = vunpack.c.h.b16 %v4017
    %v4107 = vunpack.c.l.b16 %v4018
    %v4108 = vunpack.c.h.b16 %v4018
    %v4109 = vunpack.c.l.b16 %v4019
    %v4110 = vunpack.c.h.b16 %v4019
    %v4111 = vunpack.c.l.b16 %v4020
    %v4112 = vunpack.c.h.b16 %v4020
    %v4113 = vunpack.c.l.b16 %v4021
    %v4114 = vunpack.c.h.b16 %v4021
    %v4115 = vunpack.c.l.b16 %v4022
    %v4116 = vunpack.c.h.b16 %v4022
    %v4117 = vunpack.c.l.b16 %v4023
    %v4118 = vunpack.c.h.b16 %v4023
    %v4119 = vunpack.c.l.b16 %v4024
    %v4120 = vunpack.c.h.b16 %v4024
    %v4121 = vpack.c.b16 %v4061, %v4057
    %v4122 = vpack.c.b16 %v4062, %v4058
    %v4123 = vpack.c.b16 %v4063, %v4059
    %v4124 = vpack.c.b16 %v4064, %v4060
    %v4125 = vpack.c.b16 %v4069, %v4065
    %v4126 = vpack.c.b16 %v4070, %v4066
    %v4127 = vpack.c.b16 %v4071, %v4067
    %v4128 = vpack.c.b16 %v4072, %v4068
    %v4129 = vpack.c.b16 %v4077, %v4073
    %v4130 = vpack.c.b16 %v4078, %v4074
    %v4131 = vpack.c.b16 %v4079, %v4075
    %v4132 = vpack.c.b16 %v4080, %v4076
    %v4133 = vpack.c.b16 %v4085, %v4081
    %v4134 = vpack.c.b16 %v4086, %v4082
    %v4135 = vpack.c.b16 %v4087, %v4083
    %v4136 = vpack.c.b16 %v4088, %v4084
    %v4137 = vpack.c.b16 %v4093, %v4089
    %v4138 = vpack.c.b16 %v4094, %v4090
    %v4139 = vpack.c.b16 %v4095, %v4091
    %v4140 = vpack.c.b16 %v4096, %v4092
    %v4141 = vpack.c.b16 %v4101, %v4097
    %v4142 = vpack.c.b16 %v4102, %v4098
    %v4143 = vpack.c.b16 %v4103, %v4099
    %v4144 = vpack.c.b16 %v4104, %v4100
    %v4145 = vpack.c.b16 %v4109, %v4105
    %v4146 = vpack.c.b16 %v4110, %v4106
    %v4147 = vpack.c.b16 %v4111, %v4107
    %v4148 = vpack.c.b16 %v4112, %v4108
    %v4149 = vpack.c.b16 %v4117, %v4113
    %v4150 = vpack.c.b16 %v4118, %v4114
    %v4151 = vpack.c.b16 %v4119, %v4115
    %v4152 = vpack.c.b16 %v4120, %v4116
    %4185 = vmatprep.subr.bf16.mxu0 0
    %4186 = vmatpush1.bf16.msra.mxu0 %v747
    %4187 = vmatprep.subr.bf16.mxu0 0
    %4188 = vmatpush1.bf16.msra.mxu0 %v748
    %4189 = vmatprep.subr.bf16.mxu0 0
    %4190 = vmatpush1.bf16.msra.mxu0 %v749
    %4191 = vmatprep.subr.bf16.mxu0 0
    %4192 = vmatpush1.bf16.msra.mxu0 %v750
    %4193 = vmatprep.subr.bf16.mxu0 0
    %4194 = vmatpush1.bf16.msra.mxu0 %v751
    %4195 = vmatprep.subr.bf16.mxu0 0
    %4196 = vmatpush1.bf16.msra.mxu0 %v752
    %4197 = vmatprep.subr.bf16.mxu0 0
    %4198 = vmatpush1.bf16.msra.mxu0 %v753
    %4199 = vmatprep.subr.bf16.mxu0 0
    %4200 = vmatpush1.bf16.msra.mxu0 %v754
    %4201 = vmatprep.subr.bf16.mxu0 0
    %4202 = vmatpush1.bf16.msra.mxu0 %v755
    %4203 = vmatprep.subr.bf16.mxu0 0
    %4204 = vmatpush1.bf16.msra.mxu0 %v756
    %4205 = vmatprep.subr.bf16.mxu0 0
    %4206 = vmatpush1.bf16.msra.mxu0 %v757
    %4207 = vmatprep.subr.bf16.mxu0 0
    %4208 = vmatpush1.bf16.msra.mxu0 %v758
    %4209 = vmatprep.subr.bf16.mxu0 0
    %4210 = vmatpush1.bf16.msra.mxu0 %v759
    %4211 = vmatprep.subr.bf16.mxu0 0
    %4212 = vmatpush1.bf16.msra.mxu0 %v760
    %4213 = vmatprep.subr.bf16.mxu0 0
    %4214 = vmatpush1.bf16.msra.mxu0 %v761
    %4215 = vmatprep.subr.bf16.mxu0 0
    %4216 = vmatpush1.bf16.msra.mxu0 %v762
    %4217 = vmatprep.mubr.bf16.mxu0 %v4122
    %4218 = vmatmul.mubr.bf16.gmra.mrb[0].mxu0 %v4121
    %v4219 = vpop.f32.mrb[0].mxu0
    %v4220 = vadd.f32 0.0, %v4219
    %v4221 = vpop.f32.mrb[0].mxu0
    %v4222 = vpop.f32.mrb[0].mxu0
    %v4223 = vadd.f32 0.0, %v4222
    %v4224 = vpop.f32.mrb[0].mxu0
    %4225 = vmatprep.mubr.bf16.mxu0 %v4126
    %4226 = vmatmul.mubr.bf16.gmra.mrb[0].mxu0 %v4125
    %v4227 = vpop.f32.mrb[0].mxu0
    %v4228 = vadd.f32 0.0, %v4227
    %v4229 = vpop.f32.mrb[0].mxu0
    %v4230 = vpop.f32.mrb[0].mxu0
    %v4231 = vadd.f32 0.0, %v4230
    %v4232 = vpop.f32.mrb[0].mxu0
    %4233 = vmatprep.mubr.bf16.mxu0 %v4130
    %4234 = vmatmul.mubr.bf16.gmra.mrb[0].mxu0 %v4129
    %v4235 = vpop.f32.mrb[0].mxu0
    %v4236 = vadd.f32 0.0, %v4235
    %v4237 = vpop.f32.mrb[0].mxu0
    %v4238 = vpop.f32.mrb[0].mxu0
    %v4239 = vadd.f32 0.0, %v4238
    %v4240 = vpop.f32.mrb[0].mxu0
    %4241 = vmatprep.mubr.bf16.mxu0 %v4134
    %4242 = vmatmul.mubr.bf16.gmra.mrb[0].mxu0 %v4133
    %v4243 = vpop.f32.mrb[0].mxu0
    %v4244 = vadd.f32 0.0, %v4243
    %v4245 = vpop.f32.mrb[0].mxu0
    %v4246 = vpop.f32.mrb[0].mxu0
    %v4247 = vadd.f32 0.0, %v4246
    %v4248 = vpop.f32.mrb[0].mxu0
    %4249 = vmatprep.mubr.bf16.mxu0 %v4138
    %4250 = vmatmul.mubr.bf16.gmra.mrb[0].mxu0 %v4137
    %v4251 = vpop.f32.mrb[0].mxu0
    %v4252 = vadd.f32 0.0, %v4251
    %v4253 = vpop.f32.mrb[0].mxu0
    %v4254 = vpop.f32.mrb[0].mxu0
    %v4255 = vadd.f32 0.0, %v4254
    %v4256 = vpop.f32.mrb[0].mxu0
    %4257 = vmatprep.mubr.bf16.mxu0 %v4142
    %4258 = vmatmul.mubr.bf16.gmra.mrb[0].mxu0 %v4141
    %v4259 = vpop.f32.mrb[0].mxu0
    %v4260 = vadd.f32 0.0, %v4259
    %v4261 = vpop.f32.mrb[0].mxu0
    %v4262 = vpop.f32.mrb[0].mxu0
    %v4263 = vadd.f32 0.0, %v4262
    %v4264 = vpop.f32.mrb[0].mxu0
    %4265 = vmatprep.mubr.bf16.mxu0 %v4146
    %4266 = vmatmul.mubr.bf16.gmra.mrb[0].mxu0 %v4145
    %v4267 = vpop.f32.mrb[0].mxu0
    %v4268 = vadd.f32 0.0, %v4267
    %v4269 = vpop.f32.mrb[0].mxu0
    %v4270 = vpop.f32.mrb[0].mxu0
    %v4271 = vadd.f32 0.0, %v4270
    %v4272 = vpop.f32.mrb[0].mxu0
    %4273 = vmatprep.mubr.bf16.mxu0 %v4150
    %4274 = vmatmul.mubr.bf16.gmra.mrb[0].mxu0 %v4149
    %v4275 = vpop.f32.mrb[0].mxu0
    %v4276 = vadd.f32 0.0, %v4275
    %v4277 = vpop.f32.mrb[0].mxu0
    %v4278 = vpop.f32.mrb[0].mxu0
    %v4279 = vadd.f32 0.0, %v4278
    %v4280 = vpop.f32.mrb[0].mxu0
    %4281 = vdwg.mxu0
    %4282 = vmatprep.subr.bf16.mxu0 0
    %4283 = vmatpush1.bf16.msra.mxu0 %v763
    %4284 = vmatprep.subr.bf16.mxu0 0
    %4285 = vmatpush1.bf16.msra.mxu0 %v764
    %4286 = vmatprep.subr.bf16.mxu0 0
    %4287 = vmatpush1.bf16.msra.mxu0 %v765
    %4288 = vmatprep.subr.bf16.mxu0 0
    %4289 = vmatpush1.bf16.msra.mxu0 %v766
    %4290 = vmatprep.subr.bf16.mxu0 0
    %4291 = vmatpush1.bf16.msra.mxu0 %v767
    %4292 = vmatprep.subr.bf16.mxu0 0
    %4293 = vmatpush1.bf16.msra.mxu0 %v768
    %4294 = vmatprep.subr.bf16.mxu0 0
    %4295 = vmatpush1.bf16.msra.mxu0 %v769
    %4296 = vmatprep.subr.bf16.mxu0 0
    %4297 = vmatpush1.bf16.msra.mxu0 %v770
    %4298 = vmatprep.subr.bf16.mxu0 0
    %4299 = vmatpush1.bf16.msra.mxu0 %v771
    %4300 = vmatprep.subr.bf16.mxu0 0
    %4301 = vmatpush1.bf16.msra.mxu0 %v772
    %4302 = vmatprep.subr.bf16.mxu0 0
    %4303 = vmatpush1.bf16.msra.mxu0 %v773
    %4304 = vmatprep.subr.bf16.mxu0 0
    %4305 = vmatpush1.bf16.msra.mxu0 %v774
    %4306 = vmatprep.subr.bf16.mxu0 0
    %4307 = vmatpush1.bf16.msra.mxu0 %v775
    %4308 = vmatprep.subr.bf16.mxu0 0
    %4309 = vmatpush1.bf16.msra.mxu0 %v776
    %4310 = vmatprep.subr.bf16.mxu0 0
    %4311 = vmatpush1.bf16.msra.mxu0 %v777
    %4312 = vmatprep.subr.bf16.mxu0 0
    %4313 = vmatpush1.bf16.msra.mxu0 %v778
    %4314 = vmatprep.mubr.bf16.mxu0 %v4124
    %4315 = vmatmul.mubr.bf16.gmra.mrb[0].mxu0 %v4123
    %v4316 = vpop.f32.mrb[0].mxu0
    %v4317 = vadd.f32 %v4220, %v4316
    %v4318 = vpop.f32.mrb[0].mxu0
    %v4319 = vpop.f32.mrb[0].mxu0
    %v4320 = vadd.f32 %v4223, %v4319
    %v4321 = vpop.f32.mrb[0].mxu0
    %4322 = vmatprep.mubr.bf16.mxu0 %v4128
    %4323 = vmatmul.mubr.bf16.gmra.mrb[0].mxu0 %v4127
    %v4324 = vpop.f32.mrb[0].mxu0
    %v4325 = vadd.f32 %v4228, %v4324
    %v4326 = vpop.f32.mrb[0].mxu0
    %v4327 = vpop.f32.mrb[0].mxu0
    %v4328 = vadd.f32 %v4231, %v4327
    %v4329 = vpop.f32.mrb[0].mxu0
    %4330 = vmatprep.mubr.bf16.mxu0 %v4132
    %4331 = vmatmul.mubr.bf16.gmra.mrb[0].mxu0 %v4131
    %v4332 = vpop.f32.mrb[0].mxu0
    %v4333 = vadd.f32 %v4236, %v4332
    %v4334 = vpop.f32.mrb[0].mxu0
    %v4335 = vpop.f32.mrb[0].mxu0
    %v4336 = vadd.f32 %v4239, %v4335
    %v4337 = vpop.f32.mrb[0].mxu0
    %4338 = vmatprep.mubr.bf16.mxu0 %v4136
    %4339 = vmatmul.mubr.bf16.gmra.mrb[0].mxu0 %v4135
    %v4340 = vpop.f32.mrb[0].mxu0
    %v4341 = vadd.f32 %v4244, %v4340
    %v4342 = vpop.f32.mrb[0].mxu0
    %v4343 = vpop.f32.mrb[0].mxu0
    %v4344 = vadd.f32 %v4247, %v4343
    %v4345 = vpop.f32.mrb[0].mxu0
    %4346 = vmatprep.mubr.bf16.mxu0 %v4140
    %4347 = vmatmul.mubr.bf16.gmra.mrb[0].mxu0 %v4139
    %v4348 = vpop.f32.mrb[0].mxu0
    %v4349 = vadd.f32 %v4252, %v4348
    %v4350 = vpop.f32.mrb[0].mxu0
    %v4351 = vpop.f32.mrb[0].mxu0
    %v4352 = vadd.f32 %v4255, %v4351
    %v4353 = vpop.f32.mrb[0].mxu0
    %4354 = vmatprep.mubr.bf16.mxu0 %v4144
    %4355 = vmatmul.mubr.bf16.gmra.mrb[0].mxu0 %v4143
    %v4356 = vpop.f32.mrb[0].mxu0
    %v4357 = vadd.f32 %v4260, %v4356
    %v4358 = vpop.f32.mrb[0].mxu0
    %v4359 = vpop.f32.mrb[0].mxu0
    %v4360 = vadd.f32 %v4263, %v4359
    %v4361 = vpop.f32.mrb[0].mxu0
    %4362 = vmatprep.mubr.bf16.mxu0 %v4148
    %4363 = vmatmul.mubr.bf16.gmra.mrb[0].mxu0 %v4147
    %v4364 = vpop.f32.mrb[0].mxu0
    %v4365 = vadd.f32 %v4268, %v4364
    %v4366 = vpop.f32.mrb[0].mxu0
    %v4367 = vpop.f32.mrb[0].mxu0
    %v4368 = vadd.f32 %v4271, %v4367
    %v4369 = vpop.f32.mrb[0].mxu0
    %4370 = vmatprep.mubr.bf16.mxu0 %v4152
    %4371 = vmatmul.mubr.bf16.gmra.mrb[0].mxu0 %v4151
    %v4372 = vpop.f32.mrb[0].mxu0
    %v4373 = vadd.f32 %v4276, %v4372
    %v4374 = vpop.f32.mrb[0].mxu0
    %v4375 = vpop.f32.mrb[0].mxu0
    %v4376 = vadd.f32 %v4279, %v4375
    %v4377 = vpop.f32.mrb[0].mxu0
    %4378 = vdwg.mxu0
    %v4379 = vpack.c.bf16 %v4320, %v4317
    %v4380 = vpack.c.bf16 %v4328, %v4325
    %v4381 = vpack.c.bf16 %v4336, %v4333
    %v4382 = vpack.c.bf16 %v4344, %v4341
    %v4383 = vpack.c.bf16 %v4352, %v4349
    %v4384 = vpack.c.bf16 %v4360, %v4357
    %v4385 = vpack.c.bf16 %v4368, %v4365
    %v4386 = vpack.c.bf16 %v4376, %v4373
    %s4387 = scalar_lea.vmem %s4, 48
    %v4388 = vld [vmem:[%s4387] sm:$0xf]
    %v4389 = vld [vmem:[%s4387 + $0x4] sm:$0xf]
    %v4392 = vunpack.c.l.b16 %v4388
    %v4393 = vunpack.c.l.b16 %v4389
    %v4394 = vpack.c.b16 %v4393, %v4392
    %v4397 = vsel %vm1579, %v4379, 0
    %v4400 = vsel %vm1579, %v4380, 0
    %v4403 = vsel %vm1579, %v4381, 0
    %v4406 = vsel %vm1579, %v4382, 0
    %v4409 = vsel %vm1579, %v4383, 0
    %v4412 = vsel %vm1579, %v4384, 0
    %v4415 = vsel %vm1579, %v4385, 0
    %v4418 = vsel %vm1579, %v4386, 0
    %4420 = vmatprep.subr.bf16.mxu0 0
    %4421 = vmatpush1.bf16.msra.mxu0 %v4394
    %4422 = vmatprep.subr.bf16.mxu0 0
    %4423 = vmatpush1.bf16.msra.mxu0 0
    %4424 = vmatprep.subr.bf16.mxu0 0
    %4425 = vmatpush1.bf16.msra.mxu0 0
    %4426 = vmatprep.subr.bf16.mxu0 0
    %4427 = vmatpush1.bf16.msra.mxu0 0
    %4428 = vmatprep.subr.bf16.mxu0 0
    %4429 = vmatpush1.bf16.msra.mxu0 0
    %4430 = vmatprep.subr.bf16.mxu0 0
    %4431 = vmatpush1.bf16.msra.mxu0 0
    %4432 = vmatprep.subr.bf16.mxu0 0
    %4433 = vmatpush1.bf16.msra.mxu0 0
    %4434 = vmatprep.subr.bf16.mxu0 0
    %4435 = vmatpush1.bf16.msra.mxu0 0
    %4436 = vmatprep.subr.bf16.mxu0 0
    %4437 = vmatpush1.bf16.msra.mxu0 0
    %4438 = vmatprep.subr.bf16.mxu0 0
    %4439 = vmatpush1.bf16.msra.mxu0 0
    %4440 = vmatprep.subr.bf16.mxu0 0
    %4441 = vmatpush1.bf16.msra.mxu0 0
    %4442 = vmatprep.subr.bf16.mxu0 0
    %4443 = vmatpush1.bf16.msra.mxu0 0
    %4444 = vmatprep.subr.bf16.mxu0 0
    %4445 = vmatpush1.bf16.msra.mxu0 0
    %4446 = vmatprep.subr.bf16.mxu0 0
    %4447 = vmatpush1.bf16.msra.mxu0 0
    %4448 = vmatprep.subr.bf16.mxu0 0
    %4449 = vmatpush1.bf16.msra.mxu0 0
    %4450 = vmatprep.subr.bf16.mxu0 0
    %4451 = vmatpush1.bf16.msra.mxu0 0
    %4452 = vmatprep.mubr.bf16.mxu0 0
    %4453 = vmatmul.mubr.bf16.gmra.mrb[0].mxu0 %v4397
    %v4454 = vpop.f32.mrb[0].mxu0
    %v4455 = vadd.f32 0.0, %v4454
    %v4456 = vpop.f32.mrb[0].mxu0
    %v4457 = vpop.f32.mrb[0].mxu0
    %v4458 = vadd.f32 0.0, %v4457
    %v4459 = vpop.f32.mrb[0].mxu0
    %4460 = vmatprep.mubr.bf16.mxu0 0
    %4461 = vmatmul.mubr.bf16.gmra.mrb[0].mxu0 %v4400
    %v4462 = vpop.f32.mrb[0].mxu0
    %v4463 = vadd.f32 0.0, %v4462
    %v4464 = vpop.f32.mrb[0].mxu0
    %v4465 = vpop.f32.mrb[0].mxu0
    %v4466 = vadd.f32 0.0, %v4465
    %v4467 = vpop.f32.mrb[0].mxu0
    %4468 = vmatprep.mubr.bf16.mxu0 0
    %4469 = vmatmul.mubr.bf16.gmra.mrb[0].mxu0 %v4403
    %v4470 = vpop.f32.mrb[0].mxu0
    %v4471 = vadd.f32 0.0, %v4470
    %v4472 = vpop.f32.mrb[0].mxu0
    %v4473 = vpop.f32.mrb[0].mxu0
    %v4474 = vadd.f32 0.0, %v4473
    %v4475 = vpop.f32.mrb[0].mxu0
    %4476 = vmatprep.mubr.bf16.mxu0 0
    %4477 = vmatmul.mubr.bf16.gmra.mrb[0].mxu0 %v4406
    %v4478 = vpop.f32.mrb[0].mxu0
    %v4479 = vadd.f32 0.0, %v4478
    %v4480 = vpop.f32.mrb[0].mxu0
    %v4481 = vpop.f32.mrb[0].mxu0
    %v4482 = vadd.f32 0.0, %v4481
    %v4483 = vpop.f32.mrb[0].mxu0
    %4484 = vmatprep.mubr.bf16.mxu0 0
    %4485 = vmatmul.mubr.bf16.gmra.mrb[0].mxu0 %v4409
    %v4486 = vpop.f32.mrb[0].mxu0
    %v4487 = vadd.f32 0.0, %v4486
    %v4488 = vpop.f32.mrb[0].mxu0
    %v4489 = vpop.f32.mrb[0].mxu0
    %v4490 = vadd.f32 0.0, %v4489
    %v4491 = vpop.f32.mrb[0].mxu0
    %4492 = vmatprep.mubr.bf16.mxu0 0
    %4493 = vmatmul.mubr.bf16.gmra.mrb[0].mxu0 %v4412
    %v4494 = vpop.f32.mrb[0].mxu0
    %v4495 = vadd.f32 0.0, %v4494
    %v4496 = vpop.f32.mrb[0].mxu0
    %v4497 = vpop.f32.mrb[0].mxu0
    %v4498 = vadd.f32 0.0, %v4497
    %v4499 = vpop.f32.mrb[0].mxu0
    %4500 = vmatprep.mubr.bf16.mxu0 0
    %4501 = vmatmul.mubr.bf16.gmra.mrb[0].mxu0 %v4415
    %v4502 = vpop.f32.mrb[0].mxu0
    %v4503 = vadd.f32 0.0, %v4502
    %v4504 = vpop.f32.mrb[0].mxu0
    %v4505 = vpop.f32.mrb[0].mxu0
    %v4506 = vadd.f32 0.0, %v4505
    %v4507 = vpop.f32.mrb[0].mxu0
    %4508 = vmatprep.mubr.bf16.mxu0 0
    %4509 = vmatmul.mubr.bf16.gmra.mrb[0].mxu0 %v4418
    %v4510 = vpop.f32.mrb[0].mxu0
    %v4511 = vadd.f32 0.0, %v4510
    %v4512 = vpop.f32.mrb[0].mxu0
    %v4513 = vpop.f32.mrb[0].mxu0
    %v4514 = vadd.f32 0.0, %v4513
    %v4515 = vpop.f32.mrb[0].mxu0
    %4516 = vdwg.mxu0
    %v4517 = vadd.f32 %v3976, %v4455
    %v4518 = vadd.f32 %v3977, %v4458
    %v4519 = vadd.f32 %v3978, %v4463
    %v4520 = vadd.f32 %v3979, %v4466
    %v4521 = vadd.f32 %v3980, %v4471
    %v4522 = vadd.f32 %v3981, %v4474
    %v4523 = vadd.f32 %v3982, %v4479
    %v4524 = vadd.f32 %v3983, %v4482
    %v4525 = vadd.f32 %v3984, %v4487
    %v4526 = vadd.f32 %v3985, %v4490
    %v4527 = vadd.f32 %v3986, %v4495
    %v4528 = vadd.f32 %v3987, %v4498
    %v4529 = vadd.f32 %v3988, %v4503
    %v4530 = vadd.f32 %v3989, %v4506
    %v4531 = vadd.f32 %v3990, %v4511
    %v4532 = vadd.f32 %v3991, %v4514
    %s4533 = scalar_lea.vmem %s3, 1792
    %v4534 = vld [vmem:[%s4533] sm:$0xff]
    %v4535 = vld [vmem:[%s4533 + $0x8] sm:$0xff]
    %v4536 = vld [vmem:[%s4533 + $0x10] sm:$0xff]
    %v4537 = vld [vmem:[%s4533 + $0x18] sm:$0xff]
    %v4538 = vld [vmem:[%s4533 + $0x20] sm:$0xff]
    %v4539 = vld [vmem:[%s4533 + $0x28] sm:$0xff]
    %v4540 = vld [vmem:[%s4533 + $0x30] sm:$0xff]
    %v4541 = vld [vmem:[%s4533 + $0x38] sm:$0xff]
    %v4542 = vld [vmem:[%s4533 + $0x40] sm:$0xff]
    %v4543 = vld [vmem:[%s4533 + $0x48] sm:$0xff]
    %v4544 = vld [vmem:[%s4533 + $0x50] sm:$0xff]
    %v4545 = vld [vmem:[%s4533 + $0x58] sm:$0xff]
    %v4546 = vld [vmem:[%s4533 + $0x60] sm:$0xff]
    %v4547 = vld [vmem:[%s4533 + $0x68] sm:$0xff]
    %v4548 = vld [vmem:[%s4533 + $0x70] sm:$0xff]
    %v4549 = vld [vmem:[%s4533 + $0x78] sm:$0xff]
    %v4550 = vld [vmem:[%s4533 + $0x80] sm:$0xff]
    %v4551 = vld [vmem:[%s4533 + $0x88] sm:$0xff]
    %v4552 = vld [vmem:[%s4533 + $0x90] sm:$0xff]
    %v4553 = vld [vmem:[%s4533 + $0x98] sm:$0xff]
    %v4554 = vld [vmem:[%s4533 + $0xa0] sm:$0xff]
    %v4555 = vld [vmem:[%s4533 + $0xa8] sm:$0xff]
    %v4556 = vld [vmem:[%s4533 + $0xb0] sm:$0xff]
    %v4557 = vld [vmem:[%s4533 + $0xb8] sm:$0xff]
    %v4558 = vld [vmem:[%s4533 + $0xc0] sm:$0xff]
    %v4559 = vld [vmem:[%s4533 + $0xc8] sm:$0xff]
    %v4560 = vld [vmem:[%s4533 + $0xd0] sm:$0xff]
    %v4561 = vld [vmem:[%s4533 + $0xd8] sm:$0xff]
    %v4562 = vld [vmem:[%s4533 + $0xe0] sm:$0xff]
    %v4563 = vld [vmem:[%s4533 + $0xe8] sm:$0xff]
    %v4564 = vld [vmem:[%s4533 + $0xf0] sm:$0xff]
    %v4565 = vld [vmem:[%s4533 + $0xf8] sm:$0xff]
    %v4598 = vunpack.c.l.b16 %v4534
    %v4599 = vunpack.c.h.b16 %v4534
    %v4600 = vunpack.c.l.b16 %v4535
    %v4601 = vunpack.c.h.b16 %v4535
    %v4602 = vunpack.c.l.b16 %v4536
    %v4603 = vunpack.c.h.b16 %v4536
    %v4604 = vunpack.c.l.b16 %v4537
    %v4605 = vunpack.c.h.b16 %v4537
    %v4606 = vunpack.c.l.b16 %v4538
    %v4607 = vunpack.c.h.b16 %v4538
    %v4608 = vunpack.c.l.b16 %v4539
    %v4609 = vunpack.c.h.b16 %v4539
    %v4610 = vunpack.c.l.b16 %v4540
    %v4611 = vunpack.c.h.b16 %v4540
    %v4612 = vunpack.c.l.b16 %v4541
    %v4613 = vunpack.c.h.b16 %v4541
    %v4614 = vunpack.c.l.b16 %v4542
    %v4615 = vunpack.c.h.b16 %v4542
    %v4616 = vunpack.c.l.b16 %v4543
    %v4617 = vunpack.c.h.b16 %v4543
    %v4618 = vunpack.c.l.b16 %v4544
    %v4619 = vunpack.c.h.b16 %v4544
    %v4620 = vunpack.c.l.b16 %v4545
    %v4621 = vunpack.c.h.b16 %v4545
    %v4622 = vunpack.c.l.b16 %v4546
    %v4623 = vunpack.c.h.b16 %v4546
    %v4624 = vunpack.c.l.b16 %v4547
    %v4625 = vunpack.c.h.b16 %v4547
    %v4626 = vunpack.c.l.b16 %v4548
    %v4627 = vunpack.c.h.b16 %v4548
    %v4628 = vunpack.c.l.b16 %v4549
    %v4629 = vunpack.c.h.b16 %v4549
    %v4630 = vunpack.c.l.b16 %v4550
    %v4631 = vunpack.c.h.b16 %v4550
    %v4632 = vunpack.c.l.b16 %v4551
    %v4633 = vunpack.c.h.b16 %v4551
    %v4634 = vunpack.c.l.b16 %v4552
    %v4635 = vunpack.c.h.b16 %v4552
    %v4636 = vunpack.c.l.b16 %v4553
    %v4637 = vunpack.c.h.b16 %v4553
    %v4638 = vunpack.c.l.b16 %v4554
    %v4639 = vunpack.c.h.b16 %v4554
    %v4640 = vunpack.c.l.b16 %v4555
    %v4641 = vunpack.c.h.b16 %v4555
    %v4642 = vunpack.c.l.b16 %v4556
    %v4643 = vunpack.c.h.b16 %v4556
    %v4644 = vunpack.c.l.b16 %v4557
    %v4645 = vunpack.c.h.b16 %v4557
    %v4646 = vunpack.c.l.b16 %v4558
    %v4647 = vunpack.c.h.b16 %v4558
    %v4648 = vunpack.c.l.b16 %v4559
    %v4649 = vunpack.c.h.b16 %v4559
    %v4650 = vunpack.c.l.b16 %v4560
    %v4651 = vunpack.c.h.b16 %v4560
    %v4652 = vunpack.c.l.b16 %v4561
    %v4653 = vunpack.c.h.b16 %v4561
    %v4654 = vunpack.c.l.b16 %v4562
    %v4655 = vunpack.c.h.b16 %v4562
    %v4656 = vunpack.c.l.b16 %v4563
    %v4657 = vunpack.c.h.b16 %v4563
    %v4658 = vunpack.c.l.b16 %v4564
    %v4659 = vunpack.c.h.b16 %v4564
    %v4660 = vunpack.c.l.b16 %v4565
    %v4661 = vunpack.c.h.b16 %v4565
    %v4662 = vpack.c.b16 %v4602, %v4598
    %v4663 = vpack.c.b16 %v4603, %v4599
    %v4664 = vpack.c.b16 %v4604, %v4600
    %v4665 = vpack.c.b16 %v4605, %v4601
    %v4666 = vpack.c.b16 %v4610, %v4606
    %v4667 = vpack.c.b16 %v4611, %v4607
    %v4668 = vpack.c.b16 %v4612, %v4608
    %v4669 = vpack.c.b16 %v4613, %v4609
    %v4670 = vpack.c.b16 %v4618, %v4614
    %v4671 = vpack.c.b16 %v4619, %v4615
    %v4672 = vpack.c.b16 %v4620, %v4616
    %v4673 = vpack.c.b16 %v4621, %v4617
    %v4674 = vpack.c.b16 %v4626, %v4622
    %v4675 = vpack.c.b16 %v4627, %v4623
    %v4676 = vpack.c.b16 %v4628, %v4624
    %v4677 = vpack.c.b16 %v4629, %v4625
    %v4678 = vpack.c.b16 %v4634, %v4630
    %v4679 = vpack.c.b16 %v4635, %v4631
    %v4680 = vpack.c.b16 %v4636, %v4632
    %v4681 = vpack.c.b16 %v4637, %v4633
    %v4682 = vpack.c.b16 %v4642, %v4638
    %v4683 = vpack.c.b16 %v4643, %v4639
    %v4684 = vpack.c.b16 %v4644, %v4640
    %v4685 = vpack.c.b16 %v4645, %v4641
    %v4686 = vpack.c.b16 %v4650, %v4646
    %v4687 = vpack.c.b16 %v4651, %v4647
    %v4688 = vpack.c.b16 %v4652, %v4648
    %v4689 = vpack.c.b16 %v4653, %v4649
    %v4690 = vpack.c.b16 %v4658, %v4654
    %v4691 = vpack.c.b16 %v4659, %v4655
    %v4692 = vpack.c.b16 %v4660, %v4656
    %v4693 = vpack.c.b16 %v4661, %v4657
    %4726 = vmatprep.subr.bf16.mxu0 0
    %4727 = vmatpush1.bf16.msra.mxu0 %v747
    %4728 = vmatprep.subr.bf16.mxu0 0
    %4729 = vmatpush1.bf16.msra.mxu0 %v748
    %4730 = vmatprep.subr.bf16.mxu0 0
    %4731 = vmatpush1.bf16.msra.mxu0 %v749
    %4732 = vmatprep.subr.bf16.mxu0 0
    %4733 = vmatpush1.bf16.msra.mxu0 %v750
    %4734 = vmatprep.subr.bf16.mxu0 0
    %4735 = vmatpush1.bf16.msra.mxu0 %v751
    %4736 = vmatprep.subr.bf16.mxu0 0
    %4737 = vmatpush1.bf16.msra.mxu0 %v752
    %4738 = vmatprep.subr.bf16.mxu0 0
    %4739 = vmatpush1.bf16.msra.mxu0 %v753
    %4740 = vmatprep.subr.bf16.mxu0 0
    %4741 = vmatpush1.bf16.msra.mxu0 %v754
    %4742 = vmatprep.subr.bf16.mxu0 0
    %4743 = vmatpush1.bf16.msra.mxu0 %v755
    %4744 = vmatprep.subr.bf16.mxu0 0
    %4745 = vmatpush1.bf16.msra.mxu0 %v756
    %4746 = vmatprep.subr.bf16.mxu0 0
    %4747 = vmatpush1.bf16.msra.mxu0 %v757
    %4748 = vmatprep.subr.bf16.mxu0 0
    %4749 = vmatpush1.bf16.msra.mxu0 %v758
    %4750 = vmatprep.subr.bf16.mxu0 0
    %4751 = vmatpush1.bf16.msra.mxu0 %v759
    %4752 = vmatprep.subr.bf16.mxu0 0
    %4753 = vmatpush1.bf16.msra.mxu0 %v760
    %4754 = vmatprep.subr.bf16.mxu0 0
    %4755 = vmatpush1.bf16.msra.mxu0 %v761
    %4756 = vmatprep.subr.bf16.mxu0 0
    %4757 = vmatpush1.bf16.msra.mxu0 %v762
    %4758 = vmatprep.mubr.bf16.mxu0 %v4663
    %4759 = vmatmul.mubr.bf16.gmra.mrb[0].mxu0 %v4662
    %v4760 = vpop.f32.mrb[0].mxu0
    %v4761 = vadd.f32 0.0, %v4760
    %v4762 = vpop.f32.mrb[0].mxu0
    %v4763 = vpop.f32.mrb[0].mxu0
    %v4764 = vadd.f32 0.0, %v4763
    %v4765 = vpop.f32.mrb[0].mxu0
    %4766 = vmatprep.mubr.bf16.mxu0 %v4667
    %4767 = vmatmul.mubr.bf16.gmra.mrb[0].mxu0 %v4666
    %v4768 = vpop.f32.mrb[0].mxu0
    %v4769 = vadd.f32 0.0, %v4768
    %v4770 = vpop.f32.mrb[0].mxu0
    %v4771 = vpop.f32.mrb[0].mxu0
    %v4772 = vadd.f32 0.0, %v4771
    %v4773 = vpop.f32.mrb[0].mxu0
    %4774 = vmatprep.mubr.bf16.mxu0 %v4671
    %4775 = vmatmul.mubr.bf16.gmra.mrb[0].mxu0 %v4670
    %v4776 = vpop.f32.mrb[0].mxu0
    %v4777 = vadd.f32 0.0, %v4776
    %v4778 = vpop.f32.mrb[0].mxu0
    %v4779 = vpop.f32.mrb[0].mxu0
    %v4780 = vadd.f32 0.0, %v4779
    %v4781 = vpop.f32.mrb[0].mxu0
    %4782 = vmatprep.mubr.bf16.mxu0 %v4675
    %4783 = vmatmul.mubr.bf16.gmra.mrb[0].mxu0 %v4674
    %v4784 = vpop.f32.mrb[0].mxu0
    %v4785 = vadd.f32 0.0, %v4784
    %v4786 = vpop.f32.mrb[0].mxu0
    %v4787 = vpop.f32.mrb[0].mxu0
    %v4788 = vadd.f32 0.0, %v4787
    %v4789 = vpop.f32.mrb[0].mxu0
    %4790 = vmatprep.mubr.bf16.mxu0 %v4679
    %4791 = vmatmul.mubr.bf16.gmra.mrb[0].mxu0 %v4678
    %v4792 = vpop.f32.mrb[0].mxu0
    %v4793 = vadd.f32 0.0, %v4792
    %v4794 = vpop.f32.mrb[0].mxu0
    %v4795 = vpop.f32.mrb[0].mxu0
    %v4796 = vadd.f32 0.0, %v4795
    %v4797 = vpop.f32.mrb[0].mxu0
    %4798 = vmatprep.mubr.bf16.mxu0 %v4683
    %4799 = vmatmul.mubr.bf16.gmra.mrb[0].mxu0 %v4682
    %v4800 = vpop.f32.mrb[0].mxu0
    %v4801 = vadd.f32 0.0, %v4800
    %v4802 = vpop.f32.mrb[0].mxu0
    %v4803 = vpop.f32.mrb[0].mxu0
    %v4804 = vadd.f32 0.0, %v4803
    %v4805 = vpop.f32.mrb[0].mxu0
    %4806 = vmatprep.mubr.bf16.mxu0 %v4687
    %4807 = vmatmul.mubr.bf16.gmra.mrb[0].mxu0 %v4686
    %v4808 = vpop.f32.mrb[0].mxu0
    %v4809 = vadd.f32 0.0, %v4808
    %v4810 = vpop.f32.mrb[0].mxu0
    %v4811 = vpop.f32.mrb[0].mxu0
    %v4812 = vadd.f32 0.0, %v4811
    %v4813 = vpop.f32.mrb[0].mxu0
    %4814 = vmatprep.mubr.bf16.mxu0 %v4691
    %4815 = vmatmul.mubr.bf16.gmra.mrb[0].mxu0 %v4690
    %v4816 = vpop.f32.mrb[0].mxu0
    %v4817 = vadd.f32 0.0, %v4816
    %v4818 = vpop.f32.mrb[0].mxu0
    %v4819 = vpop.f32.mrb[0].mxu0
    %v4820 = vadd.f32 0.0, %v4819
    %v4821 = vpop.f32.mrb[0].mxu0
    %4822 = vdwg.mxu0
    %4823 = vmatprep.subr.bf16.mxu0 0
    %4824 = vmatpush1.bf16.msra.mxu0 %v763
    %4825 = vmatprep.subr.bf16.mxu0 0
    %4826 = vmatpush1.bf16.msra.mxu0 %v764
    %4827 = vmatprep.subr.bf16.mxu0 0
    %4828 = vmatpush1.bf16.msra.mxu0 %v765
    %4829 = vmatprep.subr.bf16.mxu0 0
    %4830 = vmatpush1.bf16.msra.mxu0 %v766
    %4831 = vmatprep.subr.bf16.mxu0 0
    %4832 = vmatpush1.bf16.msra.mxu0 %v767
    %4833 = vmatprep.subr.bf16.mxu0 0
    %4834 = vmatpush1.bf16.msra.mxu0 %v768
    %4835 = vmatprep.subr.bf16.mxu0 0
    %4836 = vmatpush1.bf16.msra.mxu0 %v769
    %4837 = vmatprep.subr.bf16.mxu0 0
    %4838 = vmatpush1.bf16.msra.mxu0 %v770
    %4839 = vmatprep.subr.bf16.mxu0 0
    %4840 = vmatpush1.bf16.msra.mxu0 %v771
    %4841 = vmatprep.subr.bf16.mxu0 0
    %4842 = vmatpush1.bf16.msra.mxu0 %v772
    %4843 = vmatprep.subr.bf16.mxu0 0
    %4844 = vmatpush1.bf16.msra.mxu0 %v773
    %4845 = vmatprep.subr.bf16.mxu0 0
    %4846 = vmatpush1.bf16.msra.mxu0 %v774
    %4847 = vmatprep.subr.bf16.mxu0 0
    %4848 = vmatpush1.bf16.msra.mxu0 %v775
    %4849 = vmatprep.subr.bf16.mxu0 0
    %4850 = vmatpush1.bf16.msra.mxu0 %v776
    %4851 = vmatprep.subr.bf16.mxu0 0
    %4852 = vmatpush1.bf16.msra.mxu0 %v777
    %4853 = vmatprep.subr.bf16.mxu0 0
    %4854 = vmatpush1.bf16.msra.mxu0 %v778
    %4855 = vmatprep.mubr.bf16.mxu0 %v4665
    %4856 = vmatmul.mubr.bf16.gmra.mrb[0].mxu0 %v4664
    %v4857 = vpop.f32.mrb[0].mxu0
    %v4858 = vadd.f32 %v4761, %v4857
    %v4859 = vpop.f32.mrb[0].mxu0
    %v4860 = vpop.f32.mrb[0].mxu0
    %v4861 = vadd.f32 %v4764, %v4860
    %v4862 = vpop.f32.mrb[0].mxu0
    %4863 = vmatprep.mubr.bf16.mxu0 %v4669
    %4864 = vmatmul.mubr.bf16.gmra.mrb[0].mxu0 %v4668
    %v4865 = vpop.f32.mrb[0].mxu0
    %v4866 = vadd.f32 %v4769, %v4865
    %v4867 = vpop.f32.mrb[0].mxu0
    %v4868 = vpop.f32.mrb[0].mxu0
    %v4869 = vadd.f32 %v4772, %v4868
    %v4870 = vpop.f32.mrb[0].mxu0
    %4871 = vmatprep.mubr.bf16.mxu0 %v4673
    %4872 = vmatmul.mubr.bf16.gmra.mrb[0].mxu0 %v4672
    %v4873 = vpop.f32.mrb[0].mxu0
    %v4874 = vadd.f32 %v4777, %v4873
    %v4875 = vpop.f32.mrb[0].mxu0
    %v4876 = vpop.f32.mrb[0].mxu0
    %v4877 = vadd.f32 %v4780, %v4876
    %v4878 = vpop.f32.mrb[0].mxu0
    %4879 = vmatprep.mubr.bf16.mxu0 %v4677
    %4880 = vmatmul.mubr.bf16.gmra.mrb[0].mxu0 %v4676
    %v4881 = vpop.f32.mrb[0].mxu0
    %v4882 = vadd.f32 %v4785, %v4881
    %v4883 = vpop.f32.mrb[0].mxu0
    %v4884 = vpop.f32.mrb[0].mxu0
    %v4885 = vadd.f32 %v4788, %v4884
    %v4886 = vpop.f32.mrb[0].mxu0
    %4887 = vmatprep.mubr.bf16.mxu0 %v4681
    %4888 = vmatmul.mubr.bf16.gmra.mrb[0].mxu0 %v4680
    %v4889 = vpop.f32.mrb[0].mxu0
    %v4890 = vadd.f32 %v4793, %v4889
    %v4891 = vpop.f32.mrb[0].mxu0
    %v4892 = vpop.f32.mrb[0].mxu0
    %v4893 = vadd.f32 %v4796, %v4892
    %v4894 = vpop.f32.mrb[0].mxu0
    %4895 = vmatprep.mubr.bf16.mxu0 %v4685
    %4896 = vmatmul.mubr.bf16.gmra.mrb[0].mxu0 %v4684
    %v4897 = vpop.f32.mrb[0].mxu0
    %v4898 = vadd.f32 %v4801, %v4897
    %v4899 = vpop.f32.mrb[0].mxu0
    %v4900 = vpop.f32.mrb[0].mxu0
    %v4901 = vadd.f32 %v4804, %v4900
    %v4902 = vpop.f32.mrb[0].mxu0
    %4903 = vmatprep.mubr.bf16.mxu0 %v4689
    %4904 = vmatmul.mubr.bf16.gmra.mrb[0].mxu0 %v4688
    %v4905 = vpop.f32.mrb[0].mxu0
    %v4906 = vadd.f32 %v4809, %v4905
    %v4907 = vpop.f32.mrb[0].mxu0
    %v4908 = vpop.f32.mrb[0].mxu0
    %v4909 = vadd.f32 %v4812, %v4908
    %v4910 = vpop.f32.mrb[0].mxu0
    %4911 = vmatprep.mubr.bf16.mxu0 %v4693
    %4912 = vmatmul.mubr.bf16.gmra.mrb[0].mxu0 %v4692
    %v4913 = vpop.f32.mrb[0].mxu0
    %v4914 = vadd.f32 %v4817, %v4913
    %v4915 = vpop.f32.mrb[0].mxu0
    %v4916 = vpop.f32.mrb[0].mxu0
    %v4917 = vadd.f32 %v4820, %v4916
    %v4918 = vpop.f32.mrb[0].mxu0
    %4919 = vdwg.mxu0
    %v4920 = vpack.c.bf16 %v4861, %v4858
    %v4921 = vpack.c.bf16 %v4869, %v4866
    %v4922 = vpack.c.bf16 %v4877, %v4874
    %v4923 = vpack.c.bf16 %v4885, %v4882
    %v4924 = vpack.c.bf16 %v4893, %v4890
    %v4925 = vpack.c.bf16 %v4901, %v4898
    %v4926 = vpack.c.bf16 %v4909, %v4906
    %v4927 = vpack.c.bf16 %v4917, %v4914
    %s4928 = scalar_lea.vmem %s4, 56
    %v4929 = vld [vmem:[%s4928] sm:$0xf]
    %v4930 = vld [vmem:[%s4928 + $0x4] sm:$0xf]
    %v4933 = vunpack.c.l.b16 %v4929
    %v4934 = vunpack.c.l.b16 %v4930
    %v4935 = vpack.c.b16 %v4934, %v4933
    %v4938 = vsel %vm1579, %v4920, 0
    %v4941 = vsel %vm1579, %v4921, 0
    %v4944 = vsel %vm1579, %v4922, 0
    %v4947 = vsel %vm1579, %v4923, 0
    %v4950 = vsel %vm1579, %v4924, 0
    %v4953 = vsel %vm1579, %v4925, 0
    %v4956 = vsel %vm1579, %v4926, 0
    %v4959 = vsel %vm1579, %v4927, 0
    %4961 = vmatprep.subr.bf16.mxu0 0
    %4962 = vmatpush1.bf16.msra.mxu0 %v4935
    %4963 = vmatprep.subr.bf16.mxu0 0
    %4964 = vmatpush1.bf16.msra.mxu0 0
    %4965 = vmatprep.subr.bf16.mxu0 0
    %4966 = vmatpush1.bf16.msra.mxu0 0
    %4967 = vmatprep.subr.bf16.mxu0 0
    %4968 = vmatpush1.bf16.msra.mxu0 0
    %4969 = vmatprep.subr.bf16.mxu0 0
    %4970 = vmatpush1.bf16.msra.mxu0 0
    %4971 = vmatprep.subr.bf16.mxu0 0
    %4972 = vmatpush1.bf16.msra.mxu0 0
    %4973 = vmatprep.subr.bf16.mxu0 0
    %4974 = vmatpush1.bf16.msra.mxu0 0
    %4975 = vmatprep.subr.bf16.mxu0 0
    %4976 = vmatpush1.bf16.msra.mxu0 0
    %4977 = vmatprep.subr.bf16.mxu0 0
    %4978 = vmatpush1.bf16.msra.mxu0 0
    %4979 = vmatprep.subr.bf16.mxu0 0
    %4980 = vmatpush1.bf16.msra.mxu0 0
    %4981 = vmatprep.subr.bf16.mxu0 0
    %4982 = vmatpush1.bf16.msra.mxu0 0
    %4983 = vmatprep.subr.bf16.mxu0 0
    %4984 = vmatpush1.bf16.msra.mxu0 0
    %4985 = vmatprep.subr.bf16.mxu0 0
    %4986 = vmatpush1.bf16.msra.mxu0 0
    %4987 = vmatprep.subr.bf16.mxu0 0
    %4988 = vmatpush1.bf16.msra.mxu0 0
    %4989 = vmatprep.subr.bf16.mxu0 0
    %4990 = vmatpush1.bf16.msra.mxu0 0
    %4991 = vmatprep.subr.bf16.mxu0 0
    %4992 = vmatpush1.bf16.msra.mxu0 0
    %4993 = vmatprep.mubr.bf16.mxu0 0
    %4994 = vmatmul.mubr.bf16.gmra.mrb[0].mxu0 %v4938
    %v4995 = vpop.f32.mrb[0].mxu0
    %v4996 = vadd.f32 0.0, %v4995
    %v4997 = vpop.f32.mrb[0].mxu0
    %v4998 = vpop.f32.mrb[0].mxu0
    %v4999 = vadd.f32 0.0, %v4998
    %v5000 = vpop.f32.mrb[0].mxu0
    %5001 = vmatprep.mubr.bf16.mxu0 0
    %5002 = vmatmul.mubr.bf16.gmra.mrb[0].mxu0 %v4941
    %v5003 = vpop.f32.mrb[0].mxu0
    %v5004 = vadd.f32 0.0, %v5003
    %v5005 = vpop.f32.mrb[0].mxu0
    %v5006 = vpop.f32.mrb[0].mxu0
    %v5007 = vadd.f32 0.0, %v5006
    %v5008 = vpop.f32.mrb[0].mxu0
    %5009 = vmatprep.mubr.bf16.mxu0 0
    %5010 = vmatmul.mubr.bf16.gmra.mrb[0].mxu0 %v4944
    %v5011 = vpop.f32.mrb[0].mxu0
    %v5012 = vadd.f32 0.0, %v5011
    %v5013 = vpop.f32.mrb[0].mxu0
    %v5014 = vpop.f32.mrb[0].mxu0
    %v5015 = vadd.f32 0.0, %v5014
    %v5016 = vpop.f32.mrb[0].mxu0
    %5017 = vmatprep.mubr.bf16.mxu0 0
    %5018 = vmatmul.mubr.bf16.gmra.mrb[0].mxu0 %v4947
    %v5019 = vpop.f32.mrb[0].mxu0
    %v5020 = vadd.f32 0.0, %v5019
    %v5021 = vpop.f32.mrb[0].mxu0
    %v5022 = vpop.f32.mrb[0].mxu0
    %v5023 = vadd.f32 0.0, %v5022
    %v5024 = vpop.f32.mrb[0].mxu0
    %5025 = vmatprep.mubr.bf16.mxu0 0
    %5026 = vmatmul.mubr.bf16.gmra.mrb[0].mxu0 %v4950
    %v5027 = vpop.f32.mrb[0].mxu0
    %v5028 = vadd.f32 0.0, %v5027
    %v5029 = vpop.f32.mrb[0].mxu0
    %v5030 = vpop.f32.mrb[0].mxu0
    %v5031 = vadd.f32 0.0, %v5030
    %v5032 = vpop.f32.mrb[0].mxu0
    %5033 = vmatprep.mubr.bf16.mxu0 0
    %5034 = vmatmul.mubr.bf16.gmra.mrb[0].mxu0 %v4953
    %v5035 = vpop.f32.mrb[0].mxu0
    %v5036 = vadd.f32 0.0, %v5035
    %v5037 = vpop.f32.mrb[0].mxu0
    %v5038 = vpop.f32.mrb[0].mxu0
    %v5039 = vadd.f32 0.0, %v5038
    %v5040 = vpop.f32.mrb[0].mxu0
    %5041 = vmatprep.mubr.bf16.mxu0 0
    %5042 = vmatmul.mubr.bf16.gmra.mrb[0].mxu0 %v4956
    %v5043 = vpop.f32.mrb[0].mxu0
    %v5044 = vadd.f32 0.0, %v5043
    %v5045 = vpop.f32.mrb[0].mxu0
    %v5046 = vpop.f32.mrb[0].mxu0
    %v5047 = vadd.f32 0.0, %v5046
    %v5048 = vpop.f32.mrb[0].mxu0
    %5049 = vmatprep.mubr.bf16.mxu0 0
    %5050 = vmatmul.mubr.bf16.gmra.mrb[0].mxu0 %v4959
    %v5051 = vpop.f32.mrb[0].mxu0
    %v5052 = vadd.f32 0.0, %v5051
    %v5053 = vpop.f32.mrb[0].mxu0
    %v5054 = vpop.f32.mrb[0].mxu0
    %v5055 = vadd.f32 0.0, %v5054
    %v5056 = vpop.f32.mrb[0].mxu0
    %5057 = vdwg.mxu0
    %v5058 = vadd.f32 %v4517, %v4996
    %v5059 = vadd.f32 %v4518, %v4999
    %v5060 = vadd.f32 %v4519, %v5004
    %v5061 = vadd.f32 %v4520, %v5007
    %v5062 = vadd.f32 %v4521, %v5012
    %v5063 = vadd.f32 %v4522, %v5015
    %v5064 = vadd.f32 %v4523, %v5020
    %v5065 = vadd.f32 %v4524, %v5023
    %v5066 = vadd.f32 %v4525, %v5028
    %v5067 = vadd.f32 %v4526, %v5031
    %v5068 = vadd.f32 %v4527, %v5036
    %v5069 = vadd.f32 %v4528, %v5039
    %v5070 = vadd.f32 %v4529, %v5044
    %v5071 = vadd.f32 %v4530, %v5047
    %v5072 = vadd.f32 %v4531, %v5052
    %v5073 = vadd.f32 %v4532, %v5055
    %s5074 = scalar_lea.vmem %s3, 2048
    %v5075 = vld [vmem:[%s5074] sm:$0xff]
    %v5076 = vld [vmem:[%s5074 + $0x8] sm:$0xff]
    %v5077 = vld [vmem:[%s5074 + $0x10] sm:$0xff]
    %v5078 = vld [vmem:[%s5074 + $0x18] sm:$0xff]
    %v5079 = vld [vmem:[%s5074 + $0x20] sm:$0xff]
    %v5080 = vld [vmem:[%s5074 + $0x28] sm:$0xff]
    %v5081 = vld [vmem:[%s5074 + $0x30] sm:$0xff]
    %v5082 = vld [vmem:[%s5074 + $0x38] sm:$0xff]
    %v5083 = vld [vmem:[%s5074 + $0x40] sm:$0xff]
    %v5084 = vld [vmem:[%s5074 + $0x48] sm:$0xff]
    %v5085 = vld [vmem:[%s5074 + $0x50] sm:$0xff]
    %v5086 = vld [vmem:[%s5074 + $0x58] sm:$0xff]
    %v5087 = vld [vmem:[%s5074 + $0x60] sm:$0xff]
    %v5088 = vld [vmem:[%s5074 + $0x68] sm:$0xff]
    %v5089 = vld [vmem:[%s5074 + $0x70] sm:$0xff]
    %v5090 = vld [vmem:[%s5074 + $0x78] sm:$0xff]
    %v5091 = vld [vmem:[%s5074 + $0x80] sm:$0xff]
    %v5092 = vld [vmem:[%s5074 + $0x88] sm:$0xff]
    %v5093 = vld [vmem:[%s5074 + $0x90] sm:$0xff]
    %v5094 = vld [vmem:[%s5074 + $0x98] sm:$0xff]
    %v5095 = vld [vmem:[%s5074 + $0xa0] sm:$0xff]
    %v5096 = vld [vmem:[%s5074 + $0xa8] sm:$0xff]
    %v5097 = vld [vmem:[%s5074 + $0xb0] sm:$0xff]
    %v5098 = vld [vmem:[%s5074 + $0xb8] sm:$0xff]
    %v5099 = vld [vmem:[%s5074 + $0xc0] sm:$0xff]
    %v5100 = vld [vmem:[%s5074 + $0xc8] sm:$0xff]
    %v5101 = vld [vmem:[%s5074 + $0xd0] sm:$0xff]
    %v5102 = vld [vmem:[%s5074 + $0xd8] sm:$0xff]
    %v5103 = vld [vmem:[%s5074 + $0xe0] sm:$0xff]
    %v5104 = vld [vmem:[%s5074 + $0xe8] sm:$0xff]
    %v5105 = vld [vmem:[%s5074 + $0xf0] sm:$0xff]
    %v5106 = vld [vmem:[%s5074 + $0xf8] sm:$0xff]
    %v5139 = vunpack.c.l.b16 %v5075
    %v5140 = vunpack.c.h.b16 %v5075
    %v5141 = vunpack.c.l.b16 %v5076
    %v5142 = vunpack.c.h.b16 %v5076
    %v5143 = vunpack.c.l.b16 %v5077
    %v5144 = vunpack.c.h.b16 %v5077
    %v5145 = vunpack.c.l.b16 %v5078
    %v5146 = vunpack.c.h.b16 %v5078
    %v5147 = vunpack.c.l.b16 %v5079
    %v5148 = vunpack.c.h.b16 %v5079
    %v5149 = vunpack.c.l.b16 %v5080
    %v5150 = vunpack.c.h.b16 %v5080
    %v5151 = vunpack.c.l.b16 %v5081
    %v5152 = vunpack.c.h.b16 %v5081
    %v5153 = vunpack.c.l.b16 %v5082
    %v5154 = vunpack.c.h.b16 %v5082
    %v5155 = vunpack.c.l.b16 %v5083
    %v5156 = vunpack.c.h.b16 %v5083
    %v5157 = vunpack.c.l.b16 %v5084
    %v5158 = vunpack.c.h.b16 %v5084
    %v5159 = vunpack.c.l.b16 %v5085
    %v5160 = vunpack.c.h.b16 %v5085
    %v5161 = vunpack.c.l.b16 %v5086
    %v5162 = vunpack.c.h.b16 %v5086
    %v5163 = vunpack.c.l.b16 %v5087
    %v5164 = vunpack.c.h.b16 %v5087
    %v5165 = vunpack.c.l.b16 %v5088
    %v5166 = vunpack.c.h.b16 %v5088
    %v5167 = vunpack.c.l.b16 %v5089
    %v5168 = vunpack.c.h.b16 %v5089
    %v5169 = vunpack.c.l.b16 %v5090
    %v5170 = vunpack.c.h.b16 %v5090
    %v5171 = vunpack.c.l.b16 %v5091
    %v5172 = vunpack.c.h.b16 %v5091
    %v5173 = vunpack.c.l.b16 %v5092
    %v5174 = vunpack.c.h.b16 %v5092
    %v5175 = vunpack.c.l.b16 %v5093
    %v5176 = vunpack.c.h.b16 %v5093
    %v5177 = vunpack.c.l.b16 %v5094
    %v5178 = vunpack.c.h.b16 %v5094
    %v5179 = vunpack.c.l.b16 %v5095
    %v5180 = vunpack.c.h.b16 %v5095
    %v5181 = vunpack.c.l.b16 %v5096
    %v5182 = vunpack.c.h.b16 %v5096
    %v5183 = vunpack.c.l.b16 %v5097
    %v5184 = vunpack.c.h.b16 %v5097
    %v5185 = vunpack.c.l.b16 %v5098
    %v5186 = vunpack.c.h.b16 %v5098
    %v5187 = vunpack.c.l.b16 %v5099
    %v5188 = vunpack.c.h.b16 %v5099
    %v5189 = vunpack.c.l.b16 %v5100
    %v5190 = vunpack.c.h.b16 %v5100
    %v5191 = vunpack.c.l.b16 %v5101
    %v5192 = vunpack.c.h.b16 %v5101
    %v5193 = vunpack.c.l.b16 %v5102
    %v5194 = vunpack.c.h.b16 %v5102
    %v5195 = vunpack.c.l.b16 %v5103
    %v5196 = vunpack.c.h.b16 %v5103
    %v5197 = vunpack.c.l.b16 %v5104
    %v5198 = vunpack.c.h.b16 %v5104
    %v5199 = vunpack.c.l.b16 %v5105
    %v5200 = vunpack.c.h.b16 %v5105
    %v5201 = vunpack.c.l.b16 %v5106
    %v5202 = vunpack.c.h.b16 %v5106
    %v5203 = vpack.c.b16 %v5143, %v5139
    %v5204 = vpack.c.b16 %v5144, %v5140
    %v5205 = vpack.c.b16 %v5145, %v5141
    %v5206 = vpack.c.b16 %v5146, %v5142
    %v5207 = vpack.c.b16 %v5151, %v5147
    %v5208 = vpack.c.b16 %v5152, %v5148
    %v5209 = vpack.c.b16 %v5153, %v5149
    %v5210 = vpack.c.b16 %v5154, %v5150
    %v5211 = vpack.c.b16 %v5159, %v5155
    %v5212 = vpack.c.b16 %v5160, %v5156
    %v5213 = vpack.c.b16 %v5161, %v5157
    %v5214 = vpack.c.b16 %v5162, %v5158
    %v5215 = vpack.c.b16 %v5167, %v5163
    %v5216 = vpack.c.b16 %v5168, %v5164
    %v5217 = vpack.c.b16 %v5169, %v5165
    %v5218 = vpack.c.b16 %v5170, %v5166
    %v5219 = vpack.c.b16 %v5175, %v5171
    %v5220 = vpack.c.b16 %v5176, %v5172
    %v5221 = vpack.c.b16 %v5177, %v5173
    %v5222 = vpack.c.b16 %v5178, %v5174
    %v5223 = vpack.c.b16 %v5183, %v5179
    %v5224 = vpack.c.b16 %v5184, %v5180
    %v5225 = vpack.c.b16 %v5185, %v5181
    %v5226 = vpack.c.b16 %v5186, %v5182
    %v5227 = vpack.c.b16 %v5191, %v5187
    %v5228 = vpack.c.b16 %v5192, %v5188
    %v5229 = vpack.c.b16 %v5193, %v5189
    %v5230 = vpack.c.b16 %v5194, %v5190
    %v5231 = vpack.c.b16 %v5199, %v5195
    %v5232 = vpack.c.b16 %v5200, %v5196
    %v5233 = vpack.c.b16 %v5201, %v5197
    %v5234 = vpack.c.b16 %v5202, %v5198
    %5267 = vmatprep.subr.bf16.mxu0 0
    %5268 = vmatpush1.bf16.msra.mxu0 %v747
    %5269 = vmatprep.subr.bf16.mxu0 0
    %5270 = vmatpush1.bf16.msra.mxu0 %v748
    %5271 = vmatprep.subr.bf16.mxu0 0
    %5272 = vmatpush1.bf16.msra.mxu0 %v749
    %5273 = vmatprep.subr.bf16.mxu0 0
    %5274 = vmatpush1.bf16.msra.mxu0 %v750
    %5275 = vmatprep.subr.bf16.mxu0 0
    %5276 = vmatpush1.bf16.msra.mxu0 %v751
    %5277 = vmatprep.subr.bf16.mxu0 0
    %5278 = vmatpush1.bf16.msra.mxu0 %v752
    %5279 = vmatprep.subr.bf16.mxu0 0
    %5280 = vmatpush1.bf16.msra.mxu0 %v753
    %5281 = vmatprep.subr.bf16.mxu0 0
    %5282 = vmatpush1.bf16.msra.mxu0 %v754
    %5283 = vmatprep.subr.bf16.mxu0 0
    %5284 = vmatpush1.bf16.msra.mxu0 %v755
    %5285 = vmatprep.subr.bf16.mxu0 0
    %5286 = vmatpush1.bf16.msra.mxu0 %v756
    %5287 = vmatprep.subr.bf16.mxu0 0
    %5288 = vmatpush1.bf16.msra.mxu0 %v757
    %5289 = vmatprep.subr.bf16.mxu0 0
    %5290 = vmatpush1.bf16.msra.mxu0 %v758
    %5291 = vmatprep.subr.bf16.mxu0 0
    %5292 = vmatpush1.bf16.msra.mxu0 %v759
    %5293 = vmatprep.subr.bf16.mxu0 0
    %5294 = vmatpush1.bf16.msra.mxu0 %v760
    %5295 = vmatprep.subr.bf16.mxu0 0
    %5296 = vmatpush1.bf16.msra.mxu0 %v761
    %5297 = vmatprep.subr.bf16.mxu0 0
    %5298 = vmatpush1.bf16.msra.mxu0 %v762
    %5299 = vmatprep.mubr.bf16.mxu0 %v5204
    %5300 = vmatmul.mubr.bf16.gmra.mrb[0].mxu0 %v5203
    %v5301 = vpop.f32.mrb[0].mxu0
    %v5302 = vadd.f32 0.0, %v5301
    %v5303 = vpop.f32.mrb[0].mxu0
    %v5304 = vpop.f32.mrb[0].mxu0
    %v5305 = vadd.f32 0.0, %v5304
    %v5306 = vpop.f32.mrb[0].mxu0
    %5307 = vmatprep.mubr.bf16.mxu0 %v5208
    %5308 = vmatmul.mubr.bf16.gmra.mrb[0].mxu0 %v5207
    %v5309 = vpop.f32.mrb[0].mxu0
    %v5310 = vadd.f32 0.0, %v5309
    %v5311 = vpop.f32.mrb[0].mxu0
    %v5312 = vpop.f32.mrb[0].mxu0
    %v5313 = vadd.f32 0.0, %v5312
    %v5314 = vpop.f32.mrb[0].mxu0
    %5315 = vmatprep.mubr.bf16.mxu0 %v5212
    %5316 = vmatmul.mubr.bf16.gmra.mrb[0].mxu0 %v5211
    %v5317 = vpop.f32.mrb[0].mxu0
    %v5318 = vadd.f32 0.0, %v5317
    %v5319 = vpop.f32.mrb[0].mxu0
    %v5320 = vpop.f32.mrb[0].mxu0
    %v5321 = vadd.f32 0.0, %v5320
    %v5322 = vpop.f32.mrb[0].mxu0
    %5323 = vmatprep.mubr.bf16.mxu0 %v5216
    %5324 = vmatmul.mubr.bf16.gmra.mrb[0].mxu0 %v5215
    %v5325 = vpop.f32.mrb[0].mxu0
    %v5326 = vadd.f32 0.0, %v5325
    %v5327 = vpop.f32.mrb[0].mxu0
    %v5328 = vpop.f32.mrb[0].mxu0
    %v5329 = vadd.f32 0.0, %v5328
    %v5330 = vpop.f32.mrb[0].mxu0
    %5331 = vmatprep.mubr.bf16.mxu0 %v5220
    %5332 = vmatmul.mubr.bf16.gmra.mrb[0].mxu0 %v5219
    %v5333 = vpop.f32.mrb[0].mxu0
    %v5334 = vadd.f32 0.0, %v5333
    %v5335 = vpop.f32.mrb[0].mxu0
    %v5336 = vpop.f32.mrb[0].mxu0
    %v5337 = vadd.f32 0.0, %v5336
    %v5338 = vpop.f32.mrb[0].mxu0
    %5339 = vmatprep.mubr.bf16.mxu0 %v5224
    %5340 = vmatmul.mubr.bf16.gmra.mrb[0].mxu0 %v5223
    %v5341 = vpop.f32.mrb[0].mxu0
    %v5342 = vadd.f32 0.0, %v5341
    %v5343 = vpop.f32.mrb[0].mxu0
    %v5344 = vpop.f32.mrb[0].mxu0
    %v5345 = vadd.f32 0.0, %v5344
    %v5346 = vpop.f32.mrb[0].mxu0
    %5347 = vmatprep.mubr.bf16.mxu0 %v5228
    %5348 = vmatmul.mubr.bf16.gmra.mrb[0].mxu0 %v5227
    %v5349 = vpop.f32.mrb[0].mxu0
    %v5350 = vadd.f32 0.0, %v5349
    %v5351 = vpop.f32.mrb[0].mxu0
    %v5352 = vpop.f32.mrb[0].mxu0
    %v5353 = vadd.f32 0.0, %v5352
    %v5354 = vpop.f32.mrb[0].mxu0
    %5355 = vmatprep.mubr.bf16.mxu0 %v5232
    %5356 = vmatmul.mubr.bf16.gmra.mrb[0].mxu0 %v5231
    %v5357 = vpop.f32.mrb[0].mxu0
    %v5358 = vadd.f32 0.0, %v5357
    %v5359 = vpop.f32.mrb[0].mxu0
    %v5360 = vpop.f32.mrb[0].mxu0
    %v5361 = vadd.f32 0.0, %v5360
    %v5362 = vpop.f32.mrb[0].mxu0
    %5363 = vdwg.mxu0
    %5364 = vmatprep.subr.bf16.mxu0 0
    %5365 = vmatpush1.bf16.msra.mxu0 %v763
    %5366 = vmatprep.subr.bf16.mxu0 0
    %5367 = vmatpush1.bf16.msra.mxu0 %v764
    %5368 = vmatprep.subr.bf16.mxu0 0
    %5369 = vmatpush1.bf16.msra.mxu0 %v765
    %5370 = vmatprep.subr.bf16.mxu0 0
    %5371 = vmatpush1.bf16.msra.mxu0 %v766
    %5372 = vmatprep.subr.bf16.mxu0 0
    %5373 = vmatpush1.bf16.msra.mxu0 %v767
    %5374 = vmatprep.subr.bf16.mxu0 0
    %5375 = vmatpush1.bf16.msra.mxu0 %v768
    %5376 = vmatprep.subr.bf16.mxu0 0
    %5377 = vmatpush1.bf16.msra.mxu0 %v769
    %5378 = vmatprep.subr.bf16.mxu0 0
    %5379 = vmatpush1.bf16.msra.mxu0 %v770
    %5380 = vmatprep.subr.bf16.mxu0 0
    %5381 = vmatpush1.bf16.msra.mxu0 %v771
    %5382 = vmatprep.subr.bf16.mxu0 0
    %5383 = vmatpush1.bf16.msra.mxu0 %v772
    %5384 = vmatprep.subr.bf16.mxu0 0
    %5385 = vmatpush1.bf16.msra.mxu0 %v773
    %5386 = vmatprep.subr.bf16.mxu0 0
    %5387 = vmatpush1.bf16.msra.mxu0 %v774
    %5388 = vmatprep.subr.bf16.mxu0 0
    %5389 = vmatpush1.bf16.msra.mxu0 %v775
    %5390 = vmatprep.subr.bf16.mxu0 0
    %5391 = vmatpush1.bf16.msra.mxu0 %v776
    %5392 = vmatprep.subr.bf16.mxu0 0
    %5393 = vmatpush1.bf16.msra.mxu0 %v777
    %5394 = vmatprep.subr.bf16.mxu0 0
    %5395 = vmatpush1.bf16.msra.mxu0 %v778
    %5396 = vmatprep.mubr.bf16.mxu0 %v5206
    %5397 = vmatmul.mubr.bf16.gmra.mrb[0].mxu0 %v5205
    %v5398 = vpop.f32.mrb[0].mxu0
    %v5399 = vadd.f32 %v5302, %v5398
    %v5400 = vpop.f32.mrb[0].mxu0
    %v5401 = vpop.f32.mrb[0].mxu0
    %v5402 = vadd.f32 %v5305, %v5401
    %v5403 = vpop.f32.mrb[0].mxu0
    %5404 = vmatprep.mubr.bf16.mxu0 %v5210
    %5405 = vmatmul.mubr.bf16.gmra.mrb[0].mxu0 %v5209
    %v5406 = vpop.f32.mrb[0].mxu0
    %v5407 = vadd.f32 %v5310, %v5406
    %v5408 = vpop.f32.mrb[0].mxu0
    %v5409 = vpop.f32.mrb[0].mxu0
    %v5410 = vadd.f32 %v5313, %v5409
    %v5411 = vpop.f32.mrb[0].mxu0
    %5412 = vmatprep.mubr.bf16.mxu0 %v5214
    %5413 = vmatmul.mubr.bf16.gmra.mrb[0].mxu0 %v5213
    %v5414 = vpop.f32.mrb[0].mxu0
    %v5415 = vadd.f32 %v5318, %v5414
    %v5416 = vpop.f32.mrb[0].mxu0
    %v5417 = vpop.f32.mrb[0].mxu0
    %v5418 = vadd.f32 %v5321, %v5417
    %v5419 = vpop.f32.mrb[0].mxu0
    %5420 = vmatprep.mubr.bf16.mxu0 %v5218
    %5421 = vmatmul.mubr.bf16.gmra.mrb[0].mxu0 %v5217
    %v5422 = vpop.f32.mrb[0].mxu0
    %v5423 = vadd.f32 %v5326, %v5422
    %v5424 = vpop.f32.mrb[0].mxu0
    %v5425 = vpop.f32.mrb[0].mxu0
    %v5426 = vadd.f32 %v5329, %v5425
    %v5427 = vpop.f32.mrb[0].mxu0
    %5428 = vmatprep.mubr.bf16.mxu0 %v5222
    %5429 = vmatmul.mubr.bf16.gmra.mrb[0].mxu0 %v5221
    %v5430 = vpop.f32.mrb[0].mxu0
    %v5431 = vadd.f32 %v5334, %v5430
    %v5432 = vpop.f32.mrb[0].mxu0
    %v5433 = vpop.f32.mrb[0].mxu0
    %v5434 = vadd.f32 %v5337, %v5433
    %v5435 = vpop.f32.mrb[0].mxu0
    %5436 = vmatprep.mubr.bf16.mxu0 %v5226
    %5437 = vmatmul.mubr.bf16.gmra.mrb[0].mxu0 %v5225
    %v5438 = vpop.f32.mrb[0].mxu0
    %v5439 = vadd.f32 %v5342, %v5438
    %v5440 = vpop.f32.mrb[0].mxu0
    %v5441 = vpop.f32.mrb[0].mxu0
    %v5442 = vadd.f32 %v5345, %v5441
    %v5443 = vpop.f32.mrb[0].mxu0
    %5444 = vmatprep.mubr.bf16.mxu0 %v5230
    %5445 = vmatmul.mubr.bf16.gmra.mrb[0].mxu0 %v5229
    %v5446 = vpop.f32.mrb[0].mxu0
    %v5447 = vadd.f32 %v5350, %v5446
    %v5448 = vpop.f32.mrb[0].mxu0
    %v5449 = vpop.f32.mrb[0].mxu0
    %v5450 = vadd.f32 %v5353, %v5449
    %v5451 = vpop.f32.mrb[0].mxu0
    %5452 = vmatprep.mubr.bf16.mxu0 %v5234
    %5453 = vmatmul.mubr.bf16.gmra.mrb[0].mxu0 %v5233
    %v5454 = vpop.f32.mrb[0].mxu0
    %v5455 = vadd.f32 %v5358, %v5454
    %v5456 = vpop.f32.mrb[0].mxu0
    %v5457 = vpop.f32.mrb[0].mxu0
    %v5458 = vadd.f32 %v5361, %v5457
    %v5459 = vpop.f32.mrb[0].mxu0
    %5460 = vdwg.mxu0
    %v5461 = vpack.c.bf16 %v5402, %v5399
    %v5462 = vpack.c.bf16 %v5410, %v5407
    %v5463 = vpack.c.bf16 %v5418, %v5415
    %v5464 = vpack.c.bf16 %v5426, %v5423
    %v5465 = vpack.c.bf16 %v5434, %v5431
    %v5466 = vpack.c.bf16 %v5442, %v5439
    %v5467 = vpack.c.bf16 %v5450, %v5447
    %v5468 = vpack.c.bf16 %v5458, %v5455
    %s5469 = scalar_lea.vmem %s4, 64
    %v5470 = vld [vmem:[%s5469] sm:$0xf]
    %v5471 = vld [vmem:[%s5469 + $0x4] sm:$0xf]
    %v5474 = vunpack.c.l.b16 %v5470
    %v5475 = vunpack.c.l.b16 %v5471
    %v5476 = vpack.c.b16 %v5475, %v5474
    %v5479 = vsel %vm1579, %v5461, 0
    %v5482 = vsel %vm1579, %v5462, 0
    %v5485 = vsel %vm1579, %v5463, 0
    %v5488 = vsel %vm1579, %v5464, 0
    %v5491 = vsel %vm1579, %v5465, 0
    %v5494 = vsel %vm1579, %v5466, 0
    %v5497 = vsel %vm1579, %v5467, 0
    %v5500 = vsel %vm1579, %v5468, 0
    %5502 = vmatprep.subr.bf16.mxu0 0
    %5503 = vmatpush1.bf16.msra.mxu0 %v5476
    %5504 = vmatprep.subr.bf16.mxu0 0
    %5505 = vmatpush1.bf16.msra.mxu0 0
    %5506 = vmatprep.subr.bf16.mxu0 0
    %5507 = vmatpush1.bf16.msra.mxu0 0
    %5508 = vmatprep.subr.bf16.mxu0 0
    %5509 = vmatpush1.bf16.msra.mxu0 0
    %5510 = vmatprep.subr.bf16.mxu0 0
    %5511 = vmatpush1.bf16.msra.mxu0 0
    %5512 = vmatprep.subr.bf16.mxu0 0
    %5513 = vmatpush1.bf16.msra.mxu0 0
    %5514 = vmatprep.subr.bf16.mxu0 0
    %5515 = vmatpush1.bf16.msra.mxu0 0
    %5516 = vmatprep.subr.bf16.mxu0 0
    %5517 = vmatpush1.bf16.msra.mxu0 0
    %5518 = vmatprep.subr.bf16.mxu0 0
    %5519 = vmatpush1.bf16.msra.mxu0 0
    %5520 = vmatprep.subr.bf16.mxu0 0
    %5521 = vmatpush1.bf16.msra.mxu0 0
    %5522 = vmatprep.subr.bf16.mxu0 0
    %5523 = vmatpush1.bf16.msra.mxu0 0
    %5524 = vmatprep.subr.bf16.mxu0 0
    %5525 = vmatpush1.bf16.msra.mxu0 0
    %5526 = vmatprep.subr.bf16.mxu0 0
    %5527 = vmatpush1.bf16.msra.mxu0 0
    %5528 = vmatprep.subr.bf16.mxu0 0
    %5529 = vmatpush1.bf16.msra.mxu0 0
    %5530 = vmatprep.subr.bf16.mxu0 0
    %5531 = vmatpush1.bf16.msra.mxu0 0
    %5532 = vmatprep.subr.bf16.mxu0 0
    %5533 = vmatpush1.bf16.msra.mxu0 0
    %5534 = vmatprep.mubr.bf16.mxu0 0
    %5535 = vmatmul.mubr.bf16.gmra.mrb[0].mxu0 %v5479
    %v5536 = vpop.f32.mrb[0].mxu0
    %v5537 = vadd.f32 0.0, %v5536
    %v5538 = vpop.f32.mrb[0].mxu0
    %v5539 = vpop.f32.mrb[0].mxu0
    %v5540 = vadd.f32 0.0, %v5539
    %v5541 = vpop.f32.mrb[0].mxu0
    %5542 = vmatprep.mubr.bf16.mxu0 0
    %5543 = vmatmul.mubr.bf16.gmra.mrb[0].mxu0 %v5482
    %v5544 = vpop.f32.mrb[0].mxu0
    %v5545 = vadd.f32 0.0, %v5544
    %v5546 = vpop.f32.mrb[0].mxu0
    %v5547 = vpop.f32.mrb[0].mxu0
    %v5548 = vadd.f32 0.0, %v5547
    %v5549 = vpop.f32.mrb[0].mxu0
    %5550 = vmatprep.mubr.bf16.mxu0 0
    %5551 = vmatmul.mubr.bf16.gmra.mrb[0].mxu0 %v5485
    %v5552 = vpop.f32.mrb[0].mxu0
    %v5553 = vadd.f32 0.0, %v5552
    %v5554 = vpop.f32.mrb[0].mxu0
    %v5555 = vpop.f32.mrb[0].mxu0
    %v5556 = vadd.f32 0.0, %v5555
    %v5557 = vpop.f32.mrb[0].mxu0
    %5558 = vmatprep.mubr.bf16.mxu0 0
    %5559 = vmatmul.mubr.bf16.gmra.mrb[0].mxu0 %v5488
    %v5560 = vpop.f32.mrb[0].mxu0
    %v5561 = vadd.f32 0.0, %v5560
    %v5562 = vpop.f32.mrb[0].mxu0
    %v5563 = vpop.f32.mrb[0].mxu0
    %v5564 = vadd.f32 0.0, %v5563
    %v5565 = vpop.f32.mrb[0].mxu0
    %5566 = vmatprep.mubr.bf16.mxu0 0
    %5567 = vmatmul.mubr.bf16.gmra.mrb[0].mxu0 %v5491
    %v5568 = vpop.f32.mrb[0].mxu0
    %v5569 = vadd.f32 0.0, %v5568
    %v5570 = vpop.f32.mrb[0].mxu0
    %v5571 = vpop.f32.mrb[0].mxu0
    %v5572 = vadd.f32 0.0, %v5571
    %v5573 = vpop.f32.mrb[0].mxu0
    %5574 = vmatprep.mubr.bf16.mxu0 0
    %5575 = vmatmul.mubr.bf16.gmra.mrb[0].mxu0 %v5494
    %v5576 = vpop.f32.mrb[0].mxu0
    %v5577 = vadd.f32 0.0, %v5576
    %v5578 = vpop.f32.mrb[0].mxu0
    %v5579 = vpop.f32.mrb[0].mxu0
    %v5580 = vadd.f32 0.0, %v5579
    %v5581 = vpop.f32.mrb[0].mxu0
    %5582 = vmatprep.mubr.bf16.mxu0 0
    %5583 = vmatmul.mubr.bf16.gmra.mrb[0].mxu0 %v5497
    %v5584 = vpop.f32.mrb[0].mxu0
    %v5585 = vadd.f32 0.0, %v5584
    %v5586 = vpop.f32.mrb[0].mxu0
    %v5587 = vpop.f32.mrb[0].mxu0
    %v5588 = vadd.f32 0.0, %v5587
    %v5589 = vpop.f32.mrb[0].mxu0
    %5590 = vmatprep.mubr.bf16.mxu0 0
    %5591 = vmatmul.mubr.bf16.gmra.mrb[0].mxu0 %v5500
    %v5592 = vpop.f32.mrb[0].mxu0
    %v5593 = vadd.f32 0.0, %v5592
    %v5594 = vpop.f32.mrb[0].mxu0
    %v5595 = vpop.f32.mrb[0].mxu0
    %v5596 = vadd.f32 0.0, %v5595
    %v5597 = vpop.f32.mrb[0].mxu0
    %5598 = vdwg.mxu0
    %v5599 = vadd.f32 %v5058, %v5537
    %v5600 = vadd.f32 %v5059, %v5540
    %v5601 = vadd.f32 %v5060, %v5545
    %v5602 = vadd.f32 %v5061, %v5548
    %v5603 = vadd.f32 %v5062, %v5553
    %v5604 = vadd.f32 %v5063, %v5556
    %v5605 = vadd.f32 %v5064, %v5561
    %v5606 = vadd.f32 %v5065, %v5564
    %v5607 = vadd.f32 %v5066, %v5569
    %v5608 = vadd.f32 %v5067, %v5572
    %v5609 = vadd.f32 %v5068, %v5577
    %v5610 = vadd.f32 %v5069, %v5580
    %v5611 = vadd.f32 %v5070, %v5585
    %v5612 = vadd.f32 %v5071, %v5588
    %v5613 = vadd.f32 %v5072, %v5593
    %v5614 = vadd.f32 %v5073, %v5596
    %v5615 = vld [vmem:[%s5] sm:$0x1]
    %v5617 = vlaneseq
    %v5618 = vshrl.u32 %v5617, 7
    %v5619 = vsub.s32 0, %v5618
    %v5620 = vrot.slane %v5615, %v5619
    %v5622 = vadd.f32 %v5599, %v5620
    %v5623 = vadd.f32 %v5600, %v5620
    %v5624 = vadd.f32 %v5601, %v5620
    %v5625 = vadd.f32 %v5602, %v5620
    %v5626 = vadd.f32 %v5603, %v5620
    %v5627 = vadd.f32 %v5604, %v5620
    %v5628 = vadd.f32 %v5605, %v5620
    %v5629 = vadd.f32 %v5606, %v5620
    %v5630 = vadd.f32 %v5607, %v5620
    %v5631 = vadd.f32 %v5608, %v5620
    %v5632 = vadd.f32 %v5609, %v5620
    %v5633 = vadd.f32 %v5610, %v5620
    %v5634 = vadd.f32 %v5611, %v5620
    %v5635 = vadd.f32 %v5612, %v5620
    %v5636 = vadd.f32 %v5613, %v5620
    %v5637 = vadd.f32 %v5614, %v5620
    %v5638 = vmax.f32 %v5622, 0.0
    %v5639 = vmax.f32 %v5623, 0.0
    %v5640 = vmax.f32 %v5624, 0.0
    %v5641 = vmax.f32 %v5625, 0.0
    %v5642 = vmax.f32 %v5626, 0.0
    %v5643 = vmax.f32 %v5627, 0.0
    %v5644 = vmax.f32 %v5628, 0.0
    %v5645 = vmax.f32 %v5629, 0.0
    %v5646 = vmax.f32 %v5630, 0.0
    %v5647 = vmax.f32 %v5631, 0.0
    %v5648 = vmax.f32 %v5632, 0.0
    %v5649 = vmax.f32 %v5633, 0.0
    %v5650 = vmax.f32 %v5634, 0.0
    %v5651 = vmax.f32 %v5635, 0.0
    %v5652 = vmax.f32 %v5636, 0.0
    %v5653 = vmax.f32 %v5637, 0.0
    %v5654 = vpack.c.bf16 %v5639, %v5638
    %v5655 = vpack.c.bf16 %v5641, %v5640
    %v5656 = vpack.c.bf16 %v5643, %v5642
    %v5657 = vpack.c.bf16 %v5645, %v5644
    %v5658 = vpack.c.bf16 %v5647, %v5646
    %v5659 = vpack.c.bf16 %v5649, %v5648
    %v5660 = vpack.c.bf16 %v5651, %v5650
    %v5661 = vpack.c.bf16 %v5653, %v5652
    %v5662 = vld [vmem:[%s6] sm:$0xf]
    %v5663 = vld [vmem:[%s6 + $0x4] sm:$0xf]
    %v5664 = vld [vmem:[%s6 + $0x8] sm:$0xf]
    %v5665 = vld [vmem:[%s6 + $0xc] sm:$0xf]
    %v5670 = vunpack.c.l.b16 %v5662
    %v5671 = vunpack.c.l.b16 %v5663
    %v5672 = vunpack.c.l.b16 %v5664
    %v5673 = vunpack.c.l.b16 %v5665
    %v5674 = vpack.c.b16 %v5671, %v5670
    %v5675 = vpack.c.b16 %v5673, %v5672
    %5678 = vmatprep.subr.bf16.mxu0 0
    %5679 = vmatpush1.bf16.msra.mxu0 %v5654
    %5680 = vmatprep.subr.bf16.mxu0 0
    %5681 = vmatpush1.bf16.msra.mxu0 %v5655
    %5682 = vmatprep.subr.bf16.mxu0 0
    %5683 = vmatpush1.bf16.msra.mxu0 %v5656
    %5684 = vmatprep.subr.bf16.mxu0 0
    %5685 = vmatpush1.bf16.msra.mxu0 %v5657
    %5686 = vmatprep.subr.bf16.mxu0 0
    %5687 = vmatpush1.bf16.msra.mxu0 %v5658
    %5688 = vmatprep.subr.bf16.mxu0 0
    %5689 = vmatpush1.bf16.msra.mxu0 %v5659
    %5690 = vmatprep.subr.bf16.mxu0 0
    %5691 = vmatpush1.bf16.msra.mxu0 %v5660
    %5692 = vmatprep.subr.bf16.mxu0 0
    %5693 = vmatpush1.bf16.msra.mxu0 %v5661
    %5694 = vmatprep.subr.bf16.mxu0 0
    %5695 = vmatpush1.bf16.msra.mxu0 0
    %5696 = vmatprep.subr.bf16.mxu0 0
    %5697 = vmatpush1.bf16.msra.mxu0 0
    %5698 = vmatprep.subr.bf16.mxu0 0
    %5699 = vmatpush1.bf16.msra.mxu0 0
    %5700 = vmatprep.subr.bf16.mxu0 0
    %5701 = vmatpush1.bf16.msra.mxu0 0
    %5702 = vmatprep.subr.bf16.mxu0 0
    %5703 = vmatpush1.bf16.msra.mxu0 0
    %5704 = vmatprep.subr.bf16.mxu0 0
    %5705 = vmatpush1.bf16.msra.mxu0 0
    %5706 = vmatprep.subr.bf16.mxu0 0
    %5707 = vmatpush1.bf16.msra.mxu0 0
    %5708 = vmatprep.subr.bf16.mxu0 0
    %5709 = vmatpush1.bf16.msra.mxu0 0
    %5710 = vmatprep.mubr.bf16.mxu0 0
    %5711 = vmatmul.mubr.bf16.gmra.mrb[0].mxu0 %v5674
    %v5712 = vpop.f32.mrb[0].mxu0
    %v5713 = vadd.f32 0.0, %v5712
    %v5714 = vpop.f32.mrb[0].mxu0
    %v5715 = vpop.f32.mrb[0].mxu0
    %v5716 = vadd.f32 0.0, %v5715
    %v5717 = vpop.f32.mrb[0].mxu0
    %5718 = vmatprep.mubr.bf16.mxu0 0
    %5719 = vmatmul.mubr.bf16.gmra.mrb[0].mxu0 %v5675
    %v5720 = vpop.f32.mrb[0].mxu0
    %v5721 = vadd.f32 0.0, %v5720
    %v5722 = vpop.f32.mrb[0].mxu0
    %v5723 = vpop.f32.mrb[0].mxu0
    %v5724 = vadd.f32 0.0, %v5723
    %v5725 = vpop.f32.mrb[0].mxu0
    %5726 = vdwg.mxu0
    %v5727 = vpack.c.bf16 %v5716, %v5713
    %v5728 = vpack.c.bf16 %v5724, %v5721
    %v5729 = vld [vmem:[%s7] sm:$0xf]
    %v5730 = vld [vmem:[%s7 + $0x4] sm:$0xf]
    %v5731 = vld [vmem:[%s7 + $0x8] sm:$0xf]
    %v5732 = vld [vmem:[%s7 + $0xc] sm:$0xf]
    %s5733 = scalar_lea.vmem %s6, 16
    %v5734 = vld [vmem:[%s5733] sm:$0xf]
    %v5735 = vld [vmem:[%s5733 + $0x4] sm:$0xf]
    %v5736 = vld [vmem:[%s5733 + $0x8] sm:$0xf]
    %v5737 = vld [vmem:[%s5733 + $0xc] sm:$0xf]
    %v5742 = vunpack.c.l.b16 %v5734
    %v5743 = vunpack.c.l.b16 %v5735
    %v5744 = vunpack.c.l.b16 %v5736
    %v5745 = vunpack.c.l.b16 %v5737
    %v5746 = vpack.c.b16 %v5743, %v5742
    %v5747 = vpack.c.b16 %v5745, %v5744
    %5750 = vmatprep.subr.bf16.mxu0 0
    %5751 = vmatpush1.bf16.msra.mxu0 %v5654
    %5752 = vmatprep.subr.bf16.mxu0 0
    %5753 = vmatpush1.bf16.msra.mxu0 %v5655
    %5754 = vmatprep.subr.bf16.mxu0 0
    %5755 = vmatpush1.bf16.msra.mxu0 %v5656
    %5756 = vmatprep.subr.bf16.mxu0 0
    %5757 = vmatpush1.bf16.msra.mxu0 %v5657
    %5758 = vmatprep.subr.bf16.mxu0 0
    %5759 = vmatpush1.bf16.msra.mxu0 %v5658
    %5760 = vmatprep.subr.bf16.mxu0 0
    %5761 = vmatpush1.bf16.msra.mxu0 %v5659
    %5762 = vmatprep.subr.bf16.mxu0 0
    %5763 = vmatpush1.bf16.msra.mxu0 %v5660
    %5764 = vmatprep.subr.bf16.mxu0 0
    %5765 = vmatpush1.bf16.msra.mxu0 %v5661
    %5766 = vmatprep.subr.bf16.mxu0 0
    %5767 = vmatpush1.bf16.msra.mxu0 0
    %5768 = vmatprep.subr.bf16.mxu0 0
    %5769 = vmatpush1.bf16.msra.mxu0 0
    %5770 = vmatprep.subr.bf16.mxu0 0
    %5771 = vmatpush1.bf16.msra.mxu0 0
    %5772 = vmatprep.subr.bf16.mxu0 0
    %5773 = vmatpush1.bf16.msra.mxu0 0
    %5774 = vmatprep.subr.bf16.mxu0 0
    %5775 = vmatpush1.bf16.msra.mxu0 0
    %5776 = vmatprep.subr.bf16.mxu0 0
    %5777 = vmatpush1.bf16.msra.mxu0 0
    %5778 = vmatprep.subr.bf16.mxu0 0
    %5779 = vmatpush1.bf16.msra.mxu0 0
    %5780 = vmatprep.subr.bf16.mxu0 0
    %5781 = vmatpush1.bf16.msra.mxu0 0
    %5782 = vmatprep.mubr.bf16.mxu0 0
    %5783 = vmatmul.mubr.bf16.gmra.mrb[0].mxu0 %v5746
    %v5784 = vpop.f32.mrb[0].mxu0
    %v5785 = vadd.f32 0.0, %v5784
    %v5786 = vpop.f32.mrb[0].mxu0
    %v5787 = vpop.f32.mrb[0].mxu0
    %v5788 = vadd.f32 0.0, %v5787
    %v5789 = vpop.f32.mrb[0].mxu0
    %5790 = vmatprep.mubr.bf16.mxu0 0
    %5791 = vmatmul.mubr.bf16.gmra.mrb[0].mxu0 %v5747
    %v5792 = vpop.f32.mrb[0].mxu0
    %v5793 = vadd.f32 0.0, %v5792
    %v5794 = vpop.f32.mrb[0].mxu0
    %v5795 = vpop.f32.mrb[0].mxu0
    %v5796 = vadd.f32 0.0, %v5795
    %v5797 = vpop.f32.mrb[0].mxu0
    %5798 = vdwg.mxu0
    %v5799 = vpack.c.bf16 %v5788, %v5785
    %v5800 = vpack.c.bf16 %v5796, %v5793
    %s5801 = scalar_lea.vmem %s7, 16
    %v5802 = vld [vmem:[%s5801] sm:$0xf]
    %v5803 = vld [vmem:[%s5801 + $0x4] sm:$0xf]
    %v5804 = vld [vmem:[%s5801 + $0x8] sm:$0xf]
    %v5805 = vld [vmem:[%s5801 + $0xc] sm:$0xf]
    %v5810 = vunpack.c.l.b16 %v5802
    %v5811 = vunpack.c.l.b16 %v5803
    %v5812 = vunpack.c.l.b16 %v5804
    %v5813 = vunpack.c.l.b16 %v5805
    %v5814 = vpack.c.b16 %v5811, %v5810
    %v5815 = vpack.c.b16 %v5813, %v5812
    %vm5818 = vcmask 261120
    %v5820 = vsel %vm5818, %v5799, 0
    %v5823 = vsel %vm5818, %v5800, 0
    %5825 = vmatprep.subr.bf16.mxu0 0
    %5826 = vmatpush1.bf16.msra.mxu0 %v5814
    %5827 = vmatprep.subr.bf16.mxu0 0
    %5828 = vmatpush1.bf16.msra.mxu0 %v5815
    %5829 = vmatprep.subr.bf16.mxu0 0
    %5830 = vmatpush1.bf16.msra.mxu0 0
    %5831 = vmatprep.subr.bf16.mxu0 0
    %5832 = vmatpush1.bf16.msra.mxu0 0
    %5833 = vmatprep.subr.bf16.mxu0 0
    %5834 = vmatpush1.bf16.msra.mxu0 0
    %5835 = vmatprep.subr.bf16.mxu0 0
    %5836 = vmatpush1.bf16.msra.mxu0 0
    %5837 = vmatprep.subr.bf16.mxu0 0
    %5838 = vmatpush1.bf16.msra.mxu0 0
    %5839 = vmatprep.subr.bf16.mxu0 0
    %5840 = vmatpush1.bf16.msra.mxu0 0
    %5841 = vmatprep.subr.bf16.mxu0 0
    %5842 = vmatpush1.bf16.msra.mxu0 0
    %5843 = vmatprep.subr.bf16.mxu0 0
    %5844 = vmatpush1.bf16.msra.mxu0 0
    %5845 = vmatprep.subr.bf16.mxu0 0
    %5846 = vmatpush1.bf16.msra.mxu0 0
    %5847 = vmatprep.subr.bf16.mxu0 0
    %5848 = vmatpush1.bf16.msra.mxu0 0
    %5849 = vmatprep.subr.bf16.mxu0 0
    %5850 = vmatpush1.bf16.msra.mxu0 0
    %5851 = vmatprep.subr.bf16.mxu0 0
    %5852 = vmatpush1.bf16.msra.mxu0 0
    %5853 = vmatprep.subr.bf16.mxu0 0
    %5854 = vmatpush1.bf16.msra.mxu0 0
    %5855 = vmatprep.subr.bf16.mxu0 0
    %5856 = vmatpush1.bf16.msra.mxu0 0
    %5857 = vmatprep.mubr.bf16.mxu0 0
    %5858 = vmatmul.mubr.bf16.gmra.mrb[0].mxu0 %v5820
    %v5859 = vpop.f32.mrb[0].mxu0
    %v5860 = vadd.f32 0.0, %v5859
    %v5861 = vpop.f32.mrb[0].mxu0
    %v5862 = vpop.f32.mrb[0].mxu0
    %v5863 = vadd.f32 0.0, %v5862
    %v5864 = vpop.f32.mrb[0].mxu0
    %5865 = vmatprep.mubr.bf16.mxu0 0
    %5866 = vmatmul.mubr.bf16.gmra.mrb[0].mxu0 %v5823
    %v5867 = vpop.f32.mrb[0].mxu0
    %v5868 = vadd.f32 0.0, %v5867
    %v5869 = vpop.f32.mrb[0].mxu0
    %v5870 = vpop.f32.mrb[0].mxu0
    %v5871 = vadd.f32 0.0, %v5870
    %v5872 = vpop.f32.mrb[0].mxu0
    %5873 = vdwg.mxu0
    %v5878 = vunpack.c.l.b16 %v5729
    %v5879 = vunpack.c.l.b16 %v5730
    %v5880 = vunpack.c.l.b16 %v5731
    %v5881 = vunpack.c.l.b16 %v5732
    %v5882 = vpack.c.b16 %v5879, %v5878
    %v5883 = vpack.c.b16 %v5881, %v5880
    %v5887 = vsel %vm5818, %v5727, 0
    %v5890 = vsel %vm5818, %v5728, 0
    %5892 = vmatprep.subr.bf16.mxu0 0
    %5893 = vmatpush1.bf16.msra.mxu0 %v5882
    %5894 = vmatprep.subr.bf16.mxu0 0
    %5895 = vmatpush1.bf16.msra.mxu0 %v5883
    %5896 = vmatprep.subr.bf16.mxu0 0
    %5897 = vmatpush1.bf16.msra.mxu0 0
    %5898 = vmatprep.subr.bf16.mxu0 0
    %5899 = vmatpush1.bf16.msra.mxu0 0
    %5900 = vmatprep.subr.bf16.mxu0 0
    %5901 = vmatpush1.bf16.msra.mxu0 0
    %5902 = vmatprep.subr.bf16.mxu0 0
    %5903 = vmatpush1.bf16.msra.mxu0 0
    %5904 = vmatprep.subr.bf16.mxu0 0
    %5905 = vmatpush1.bf16.msra.mxu0 0
    %5906 = vmatprep.subr.bf16.mxu0 0
    %5907 = vmatpush1.bf16.msra.mxu0 0
    %5908 = vmatprep.subr.bf16.mxu0 0
    %5909 = vmatpush1.bf16.msra.mxu0 0
    %5910 = vmatprep.subr.bf16.mxu0 0
    %5911 = vmatpush1.bf16.msra.mxu0 0
    %5912 = vmatprep.subr.bf16.mxu0 0
    %5913 = vmatpush1.bf16.msra.mxu0 0
    %5914 = vmatprep.subr.bf16.mxu0 0
    %5915 = vmatpush1.bf16.msra.mxu0 0
    %5916 = vmatprep.subr.bf16.mxu0 0
    %5917 = vmatpush1.bf16.msra.mxu0 0
    %5918 = vmatprep.subr.bf16.mxu0 0
    %5919 = vmatpush1.bf16.msra.mxu0 0
    %5920 = vmatprep.subr.bf16.mxu0 0
    %5921 = vmatpush1.bf16.msra.mxu0 0
    %5922 = vmatprep.subr.bf16.mxu0 0
    %5923 = vmatpush1.bf16.msra.mxu0 0
    %5924 = vmatprep.mubr.bf16.mxu0 0
    %5925 = vmatmul.mubr.bf16.gmra.mrb[0].mxu0 %v5887
    %v5926 = vpop.f32.mrb[0].mxu0
    %v5927 = vadd.f32 %v5860, %v5926
    %v5928 = vpop.f32.mrb[0].mxu0
    %v5929 = vpop.f32.mrb[0].mxu0
    %v5930 = vadd.f32 %v5863, %v5929
    %v5931 = vpop.f32.mrb[0].mxu0
    %5932 = vmatprep.mubr.bf16.mxu0 0
    %5933 = vmatmul.mubr.bf16.gmra.mrb[0].mxu0 %v5890
    %v5934 = vpop.f32.mrb[0].mxu0
    %v5935 = vadd.f32 %v5868, %v5934
    %v5936 = vpop.f32.mrb[0].mxu0
    %v5937 = vpop.f32.mrb[0].mxu0
    %v5938 = vadd.f32 %v5871, %v5937
    %v5939 = vpop.f32.mrb[0].mxu0
    %5940 = vdwg.mxu0
    %s5941 = scalar_lea.vmem %s6, 32
    %v5942 = vld [vmem:[%s5941] sm:$0xf]
    %v5943 = vld [vmem:[%s5941 + $0x4] sm:$0xf]
    %v5944 = vld [vmem:[%s5941 + $0x8] sm:$0xf]
    %v5945 = vld [vmem:[%s5941 + $0xc] sm:$0xf]
    %v5950 = vunpack.c.l.b16 %v5942
    %v5951 = vunpack.c.l.b16 %v5943
    %v5952 = vunpack.c.l.b16 %v5944
    %v5953 = vunpack.c.l.b16 %v5945
    %v5954 = vpack.c.b16 %v5951, %v5950
    %v5955 = vpack.c.b16 %v5953, %v5952
    %5958 = vmatprep.subr.bf16.mxu0 0
    %5959 = vmatpush1.bf16.msra.mxu0 %v5654
    %5960 = vmatprep.subr.bf16.mxu0 0
    %5961 = vmatpush1.bf16.msra.mxu0 %v5655
    %5962 = vmatprep.subr.bf16.mxu0 0
    %5963 = vmatpush1.bf16.msra.mxu0 %v5656
    %5964 = vmatprep.subr.bf16.mxu0 0
    %5965 = vmatpush1.bf16.msra.mxu0 %v5657
    %5966 = vmatprep.subr.bf16.mxu0 0
    %5967 = vmatpush1.bf16.msra.mxu0 %v5658
    %5968 = vmatprep.subr.bf16.mxu0 0
    %5969 = vmatpush1.bf16.msra.mxu0 %v5659
    %5970 = vmatprep.subr.bf16.mxu0 0
    %5971 = vmatpush1.bf16.msra.mxu0 %v5660
    %5972 = vmatprep.subr.bf16.mxu0 0
    %5973 = vmatpush1.bf16.msra.mxu0 %v5661
    %5974 = vmatprep.subr.bf16.mxu0 0
    %5975 = vmatpush1.bf16.msra.mxu0 0
    %5976 = vmatprep.subr.bf16.mxu0 0
    %5977 = vmatpush1.bf16.msra.mxu0 0
    %5978 = vmatprep.subr.bf16.mxu0 0
    %5979 = vmatpush1.bf16.msra.mxu0 0
    %5980 = vmatprep.subr.bf16.mxu0 0
    %5981 = vmatpush1.bf16.msra.mxu0 0
    %5982 = vmatprep.subr.bf16.mxu0 0
    %5983 = vmatpush1.bf16.msra.mxu0 0
    %5984 = vmatprep.subr.bf16.mxu0 0
    %5985 = vmatpush1.bf16.msra.mxu0 0
    %5986 = vmatprep.subr.bf16.mxu0 0
    %5987 = vmatpush1.bf16.msra.mxu0 0
    %5988 = vmatprep.subr.bf16.mxu0 0
    %5989 = vmatpush1.bf16.msra.mxu0 0
    %5990 = vmatprep.mubr.bf16.mxu0 0
    %5991 = vmatmul.mubr.bf16.gmra.mrb[0].mxu0 %v5954
    %v5992 = vpop.f32.mrb[0].mxu0
    %v5993 = vadd.f32 0.0, %v5992
    %v5994 = vpop.f32.mrb[0].mxu0
    %v5995 = vpop.f32.mrb[0].mxu0
    %v5996 = vadd.f32 0.0, %v5995
    %v5997 = vpop.f32.mrb[0].mxu0
    %5998 = vmatprep.mubr.bf16.mxu0 0
    %5999 = vmatmul.mubr.bf16.gmra.mrb[0].mxu0 %v5955
    %v6000 = vpop.f32.mrb[0].mxu0
    %v6001 = vadd.f32 0.0, %v6000
    %v6002 = vpop.f32.mrb[0].mxu0
    %v6003 = vpop.f32.mrb[0].mxu0
    %v6004 = vadd.f32 0.0, %v6003
    %v6005 = vpop.f32.mrb[0].mxu0
    %6006 = vdwg.mxu0
    %v6007 = vpack.c.bf16 %v5996, %v5993
    %v6008 = vpack.c.bf16 %v6004, %v6001
    %s6009 = scalar_lea.vmem %s7, 32
    %v6010 = vld [vmem:[%s6009] sm:$0xf]
    %v6011 = vld [vmem:[%s6009 + $0x4] sm:$0xf]
    %v6012 = vld [vmem:[%s6009 + $0x8] sm:$0xf]
    %v6013 = vld [vmem:[%s6009 + $0xc] sm:$0xf]
    %v6018 = vunpack.c.l.b16 %v6010
    %v6019 = vunpack.c.l.b16 %v6011
    %v6020 = vunpack.c.l.b16 %v6012
    %v6021 = vunpack.c.l.b16 %v6013
    %v6022 = vpack.c.b16 %v6019, %v6018
    %v6023 = vpack.c.b16 %v6021, %v6020
    %v6027 = vsel %vm5818, %v6007, 0
    %v6030 = vsel %vm5818, %v6008, 0
    %6032 = vmatprep.subr.bf16.mxu0 0
    %6033 = vmatpush1.bf16.msra.mxu0 %v6022
    %6034 = vmatprep.subr.bf16.mxu0 0
    %6035 = vmatpush1.bf16.msra.mxu0 %v6023
    %6036 = vmatprep.subr.bf16.mxu0 0
    %6037 = vmatpush1.bf16.msra.mxu0 0
    %6038 = vmatprep.subr.bf16.mxu0 0
    %6039 = vmatpush1.bf16.msra.mxu0 0
    %6040 = vmatprep.subr.bf16.mxu0 0
    %6041 = vmatpush1.bf16.msra.mxu0 0
    %6042 = vmatprep.subr.bf16.mxu0 0
    %6043 = vmatpush1.bf16.msra.mxu0 0
    %6044 = vmatprep.subr.bf16.mxu0 0
    %6045 = vmatpush1.bf16.msra.mxu0 0
    %6046 = vmatprep.subr.bf16.mxu0 0
    %6047 = vmatpush1.bf16.msra.mxu0 0
    %6048 = vmatprep.subr.bf16.mxu0 0
    %6049 = vmatpush1.bf16.msra.mxu0 0
    %6050 = vmatprep.subr.bf16.mxu0 0
    %6051 = vmatpush1.bf16.msra.mxu0 0
    %6052 = vmatprep.subr.bf16.mxu0 0
    %6053 = vmatpush1.bf16.msra.mxu0 0
    %6054 = vmatprep.subr.bf16.mxu0 0
    %6055 = vmatpush1.bf16.msra.mxu0 0
    %6056 = vmatprep.subr.bf16.mxu0 0
    %6057 = vmatpush1.bf16.msra.mxu0 0
    %6058 = vmatprep.subr.bf16.mxu0 0
    %6059 = vmatpush1.bf16.msra.mxu0 0
    %6060 = vmatprep.subr.bf16.mxu0 0
    %6061 = vmatpush1.bf16.msra.mxu0 0
    %6062 = vmatprep.subr.bf16.mxu0 0
    %6063 = vmatpush1.bf16.msra.mxu0 0
    %6064 = vmatprep.mubr.bf16.mxu0 0
    %6065 = vmatmul.mubr.bf16.gmra.mrb[0].mxu0 %v6027
    %v6066 = vpop.f32.mrb[0].mxu0
    %v6067 = vadd.f32 0.0, %v6066
    %v6068 = vpop.f32.mrb[0].mxu0
    %v6069 = vpop.f32.mrb[0].mxu0
    %v6070 = vadd.f32 0.0, %v6069
    %v6071 = vpop.f32.mrb[0].mxu0
    %6072 = vmatprep.mubr.bf16.mxu0 0
    %6073 = vmatmul.mubr.bf16.gmra.mrb[0].mxu0 %v6030
    %v6074 = vpop.f32.mrb[0].mxu0
    %v6075 = vadd.f32 0.0, %v6074
    %v6076 = vpop.f32.mrb[0].mxu0
    %v6077 = vpop.f32.mrb[0].mxu0
    %v6078 = vadd.f32 0.0, %v6077
    %v6079 = vpop.f32.mrb[0].mxu0
    %6080 = vdwg.mxu0
    %v6081 = vadd.f32 %v5927, %v6067
    %v6082 = vadd.f32 %v5930, %v6070
    %v6083 = vadd.f32 %v5935, %v6075
    %v6084 = vadd.f32 %v5938, %v6078
    %s6085 = scalar_lea.vmem %s6, 48
    %v6086 = vld [vmem:[%s6085] sm:$0xf]
    %v6087 = vld [vmem:[%s6085 + $0x4] sm:$0xf]
    %v6088 = vld [vmem:[%s6085 + $0x8] sm:$0xf]
    %v6089 = vld [vmem:[%s6085 + $0xc] sm:$0xf]
    %v6094 = vunpack.c.l.b16 %v6086
    %v6095 = vunpack.c.l.b16 %v6087
    %v6096 = vunpack.c.l.b16 %v6088
    %v6097 = vunpack.c.l.b16 %v6089
    %v6098 = vpack.c.b16 %v6095, %v6094
    %v6099 = vpack.c.b16 %v6097, %v6096
    %6102 = vmatprep.subr.bf16.mxu0 0
    %6103 = vmatpush1.bf16.msra.mxu0 %v5654
    %6104 = vmatprep.subr.bf16.mxu0 0
    %6105 = vmatpush1.bf16.msra.mxu0 %v5655
    %6106 = vmatprep.subr.bf16.mxu0 0
    %6107 = vmatpush1.bf16.msra.mxu0 %v5656
    %6108 = vmatprep.subr.bf16.mxu0 0
    %6109 = vmatpush1.bf16.msra.mxu0 %v5657
    %6110 = vmatprep.subr.bf16.mxu0 0
    %6111 = vmatpush1.bf16.msra.mxu0 %v5658
    %6112 = vmatprep.subr.bf16.mxu0 0
    %6113 = vmatpush1.bf16.msra.mxu0 %v5659
    %6114 = vmatprep.subr.bf16.mxu0 0
    %6115 = vmatpush1.bf16.msra.mxu0 %v5660
    %6116 = vmatprep.subr.bf16.mxu0 0
    %6117 = vmatpush1.bf16.msra.mxu0 %v5661
    %6118 = vmatprep.subr.bf16.mxu0 0
    %6119 = vmatpush1.bf16.msra.mxu0 0
    %6120 = vmatprep.subr.bf16.mxu0 0
    %6121 = vmatpush1.bf16.msra.mxu0 0
    %6122 = vmatprep.subr.bf16.mxu0 0
    %6123 = vmatpush1.bf16.msra.mxu0 0
    %6124 = vmatprep.subr.bf16.mxu0 0
    %6125 = vmatpush1.bf16.msra.mxu0 0
    %6126 = vmatprep.subr.bf16.mxu0 0
    %6127 = vmatpush1.bf16.msra.mxu0 0
    %6128 = vmatprep.subr.bf16.mxu0 0
    %6129 = vmatpush1.bf16.msra.mxu0 0
    %6130 = vmatprep.subr.bf16.mxu0 0
    %6131 = vmatpush1.bf16.msra.mxu0 0
    %6132 = vmatprep.subr.bf16.mxu0 0
    %6133 = vmatpush1.bf16.msra.mxu0 0
    %6134 = vmatprep.mubr.bf16.mxu0 0
    %6135 = vmatmul.mubr.bf16.gmra.mrb[0].mxu0 %v6098
    %v6136 = vpop.f32.mrb[0].mxu0
    %v6137 = vadd.f32 0.0, %v6136
    %v6138 = vpop.f32.mrb[0].mxu0
    %v6139 = vpop.f32.mrb[0].mxu0
    %v6140 = vadd.f32 0.0, %v6139
    %v6141 = vpop.f32.mrb[0].mxu0
    %6142 = vmatprep.mubr.bf16.mxu0 0
    %6143 = vmatmul.mubr.bf16.gmra.mrb[0].mxu0 %v6099
    %v6144 = vpop.f32.mrb[0].mxu0
    %v6145 = vadd.f32 0.0, %v6144
    %v6146 = vpop.f32.mrb[0].mxu0
    %v6147 = vpop.f32.mrb[0].mxu0
    %v6148 = vadd.f32 0.0, %v6147
    %v6149 = vpop.f32.mrb[0].mxu0
    %6150 = vdwg.mxu0
    %v6151 = vpack.c.bf16 %v6140, %v6137
    %v6152 = vpack.c.bf16 %v6148, %v6145
    %s6153 = scalar_lea.vmem %s7, 48
    %v6154 = vld [vmem:[%s6153] sm:$0xf]
    %v6155 = vld [vmem:[%s6153 + $0x4] sm:$0xf]
    %v6156 = vld [vmem:[%s6153 + $0x8] sm:$0xf]
    %v6157 = vld [vmem:[%s6153 + $0xc] sm:$0xf]
    %v6162 = vunpack.c.l.b16 %v6154
    %v6163 = vunpack.c.l.b16 %v6155
    %v6164 = vunpack.c.l.b16 %v6156
    %v6165 = vunpack.c.l.b16 %v6157
    %v6166 = vpack.c.b16 %v6163, %v6162
    %v6167 = vpack.c.b16 %v6165, %v6164
    %v6171 = vsel %vm5818, %v6151, 0
    %v6174 = vsel %vm5818, %v6152, 0
    %6176 = vmatprep.subr.bf16.mxu0 0
    %6177 = vmatpush1.bf16.msra.mxu0 %v6166
    %6178 = vmatprep.subr.bf16.mxu0 0
    %6179 = vmatpush1.bf16.msra.mxu0 %v6167
    %6180 = vmatprep.subr.bf16.mxu0 0
    %6181 = vmatpush1.bf16.msra.mxu0 0
    %6182 = vmatprep.subr.bf16.mxu0 0
    %6183 = vmatpush1.bf16.msra.mxu0 0
    %6184 = vmatprep.subr.bf16.mxu0 0
    %6185 = vmatpush1.bf16.msra.mxu0 0
    %6186 = vmatprep.subr.bf16.mxu0 0
    %6187 = vmatpush1.bf16.msra.mxu0 0
    %6188 = vmatprep.subr.bf16.mxu0 0
    %6189 = vmatpush1.bf16.msra.mxu0 0
    %6190 = vmatprep.subr.bf16.mxu0 0
    %6191 = vmatpush1.bf16.msra.mxu0 0
    %6192 = vmatprep.subr.bf16.mxu0 0
    %6193 = vmatpush1.bf16.msra.mxu0 0
    %6194 = vmatprep.subr.bf16.mxu0 0
    %6195 = vmatpush1.bf16.msra.mxu0 0
    %6196 = vmatprep.subr.bf16.mxu0 0
    %6197 = vmatpush1.bf16.msra.mxu0 0
    %6198 = vmatprep.subr.bf16.mxu0 0
    %6199 = vmatpush1.bf16.msra.mxu0 0
    %6200 = vmatprep.subr.bf16.mxu0 0
    %6201 = vmatpush1.bf16.msra.mxu0 0
    %6202 = vmatprep.subr.bf16.mxu0 0
    %6203 = vmatpush1.bf16.msra.mxu0 0
    %6204 = vmatprep.subr.bf16.mxu0 0
    %6205 = vmatpush1.bf16.msra.mxu0 0
    %6206 = vmatprep.subr.bf16.mxu0 0
    %6207 = vmatpush1.bf16.msra.mxu0 0
    %6208 = vmatprep.mubr.bf16.mxu0 0
    %6209 = vmatmul.mubr.bf16.gmra.mrb[0].mxu0 %v6171
    %v6210 = vpop.f32.mrb[0].mxu0
    %v6211 = vadd.f32 0.0, %v6210
    %v6212 = vpop.f32.mrb[0].mxu0
    %v6213 = vpop.f32.mrb[0].mxu0
    %v6214 = vadd.f32 0.0, %v6213
    %v6215 = vpop.f32.mrb[0].mxu0
    %6216 = vmatprep.mubr.bf16.mxu0 0
    %6217 = vmatmul.mubr.bf16.gmra.mrb[0].mxu0 %v6174
    %v6218 = vpop.f32.mrb[0].mxu0
    %v6219 = vadd.f32 0.0, %v6218
    %v6220 = vpop.f32.mrb[0].mxu0
    %v6221 = vpop.f32.mrb[0].mxu0
    %v6222 = vadd.f32 0.0, %v6221
    %v6223 = vpop.f32.mrb[0].mxu0
    %6224 = vdwg.mxu0
    %v6225 = vadd.f32 %v6081, %v6211
    %v6226 = vadd.f32 %v6082, %v6214
    %v6227 = vadd.f32 %v6083, %v6219
    %v6228 = vadd.f32 %v6084, %v6222
    %s6229 = scalar_lea.vmem %s6, 64
    %v6230 = vld [vmem:[%s6229] sm:$0xf]
    %v6231 = vld [vmem:[%s6229 + $0x4] sm:$0xf]
    %v6232 = vld [vmem:[%s6229 + $0x8] sm:$0xf]
    %v6233 = vld [vmem:[%s6229 + $0xc] sm:$0xf]
    %v6238 = vunpack.c.l.b16 %v6230
    %v6239 = vunpack.c.l.b16 %v6231
    %v6240 = vunpack.c.l.b16 %v6232
    %v6241 = vunpack.c.l.b16 %v6233
    %v6242 = vpack.c.b16 %v6239, %v6238
    %v6243 = vpack.c.b16 %v6241, %v6240
    %6246 = vmatprep.subr.bf16.mxu0 0
    %6247 = vmatpush1.bf16.msra.mxu0 %v5654
    %6248 = vmatprep.subr.bf16.mxu0 0
    %6249 = vmatpush1.bf16.msra.mxu0 %v5655
    %6250 = vmatprep.subr.bf16.mxu0 0
    %6251 = vmatpush1.bf16.msra.mxu0 %v5656
    %6252 = vmatprep.subr.bf16.mxu0 0
    %6253 = vmatpush1.bf16.msra.mxu0 %v5657
    %6254 = vmatprep.subr.bf16.mxu0 0
    %6255 = vmatpush1.bf16.msra.mxu0 %v5658
    %6256 = vmatprep.subr.bf16.mxu0 0
    %6257 = vmatpush1.bf16.msra.mxu0 %v5659
    %6258 = vmatprep.subr.bf16.mxu0 0
    %6259 = vmatpush1.bf16.msra.mxu0 %v5660
    %6260 = vmatprep.subr.bf16.mxu0 0
    %6261 = vmatpush1.bf16.msra.mxu0 %v5661
    %6262 = vmatprep.subr.bf16.mxu0 0
    %6263 = vmatpush1.bf16.msra.mxu0 0
    %6264 = vmatprep.subr.bf16.mxu0 0
    %6265 = vmatpush1.bf16.msra.mxu0 0
    %6266 = vmatprep.subr.bf16.mxu0 0
    %6267 = vmatpush1.bf16.msra.mxu0 0
    %6268 = vmatprep.subr.bf16.mxu0 0
    %6269 = vmatpush1.bf16.msra.mxu0 0
    %6270 = vmatprep.subr.bf16.mxu0 0
    %6271 = vmatpush1.bf16.msra.mxu0 0
    %6272 = vmatprep.subr.bf16.mxu0 0
    %6273 = vmatpush1.bf16.msra.mxu0 0
    %6274 = vmatprep.subr.bf16.mxu0 0
    %6275 = vmatpush1.bf16.msra.mxu0 0
    %6276 = vmatprep.subr.bf16.mxu0 0
    %6277 = vmatpush1.bf16.msra.mxu0 0
    %6278 = vmatprep.mubr.bf16.mxu0 0
    %6279 = vmatmul.mubr.bf16.gmra.mrb[0].mxu0 %v6242
    %v6280 = vpop.f32.mrb[0].mxu0
    %v6281 = vadd.f32 0.0, %v6280
    %v6282 = vpop.f32.mrb[0].mxu0
    %v6283 = vpop.f32.mrb[0].mxu0
    %v6284 = vadd.f32 0.0, %v6283
    %v6285 = vpop.f32.mrb[0].mxu0
    %6286 = vmatprep.mubr.bf16.mxu0 0
    %6287 = vmatmul.mubr.bf16.gmra.mrb[0].mxu0 %v6243
    %v6288 = vpop.f32.mrb[0].mxu0
    %v6289 = vadd.f32 0.0, %v6288
    %v6290 = vpop.f32.mrb[0].mxu0
    %v6291 = vpop.f32.mrb[0].mxu0
    %v6292 = vadd.f32 0.0, %v6291
    %v6293 = vpop.f32.mrb[0].mxu0
    %6294 = vdwg.mxu0
    %v6295 = vpack.c.bf16 %v6284, %v6281
    %v6296 = vpack.c.bf16 %v6292, %v6289
    %s6297 = scalar_lea.vmem %s7, 64
    %v6298 = vld [vmem:[%s6297] sm:$0xf]
    %v6299 = vld [vmem:[%s6297 + $0x4] sm:$0xf]
    %v6300 = vld [vmem:[%s6297 + $0x8] sm:$0xf]
    %v6301 = vld [vmem:[%s6297 + $0xc] sm:$0xf]
    %v6306 = vunpack.c.l.b16 %v6298
    %v6307 = vunpack.c.l.b16 %v6299
    %v6308 = vunpack.c.l.b16 %v6300
    %v6309 = vunpack.c.l.b16 %v6301
    %v6310 = vpack.c.b16 %v6307, %v6306
    %v6311 = vpack.c.b16 %v6309, %v6308
    %v6315 = vsel %vm5818, %v6295, 0
    %v6318 = vsel %vm5818, %v6296, 0
    %6320 = vmatprep.subr.bf16.mxu0 0
    %6321 = vmatpush1.bf16.msra.mxu0 %v6310
    %6322 = vmatprep.subr.bf16.mxu0 0
    %6323 = vmatpush1.bf16.msra.mxu0 %v6311
    %6324 = vmatprep.subr.bf16.mxu0 0
    %6325 = vmatpush1.bf16.msra.mxu0 0
    %6326 = vmatprep.subr.bf16.mxu0 0
    %6327 = vmatpush1.bf16.msra.mxu0 0
    %6328 = vmatprep.subr.bf16.mxu0 0
    %6329 = vmatpush1.bf16.msra.mxu0 0
    %6330 = vmatprep.subr.bf16.mxu0 0
    %6331 = vmatpush1.bf16.msra.mxu0 0
    %6332 = vmatprep.subr.bf16.mxu0 0
    %6333 = vmatpush1.bf16.msra.mxu0 0
    %6334 = vmatprep.subr.bf16.mxu0 0
    %6335 = vmatpush1.bf16.msra.mxu0 0
    %6336 = vmatprep.subr.bf16.mxu0 0
    %6337 = vmatpush1.bf16.msra.mxu0 0
    %6338 = vmatprep.subr.bf16.mxu0 0
    %6339 = vmatpush1.bf16.msra.mxu0 0
    %6340 = vmatprep.subr.bf16.mxu0 0
    %6341 = vmatpush1.bf16.msra.mxu0 0
    %6342 = vmatprep.subr.bf16.mxu0 0
    %6343 = vmatpush1.bf16.msra.mxu0 0
    %6344 = vmatprep.subr.bf16.mxu0 0
    %6345 = vmatpush1.bf16.msra.mxu0 0
    %6346 = vmatprep.subr.bf16.mxu0 0
    %6347 = vmatpush1.bf16.msra.mxu0 0
    %6348 = vmatprep.subr.bf16.mxu0 0
    %6349 = vmatpush1.bf16.msra.mxu0 0
    %6350 = vmatprep.subr.bf16.mxu0 0
    %6351 = vmatpush1.bf16.msra.mxu0 0
    %6352 = vmatprep.mubr.bf16.mxu0 0
    %6353 = vmatmul.mubr.bf16.gmra.mrb[0].mxu0 %v6315
    %v6354 = vpop.f32.mrb[0].mxu0
    %v6355 = vadd.f32 0.0, %v6354
    %v6356 = vpop.f32.mrb[0].mxu0
    %v6357 = vpop.f32.mrb[0].mxu0
    %v6358 = vadd.f32 0.0, %v6357
    %v6359 = vpop.f32.mrb[0].mxu0
    %6360 = vmatprep.mubr.bf16.mxu0 0
    %6361 = vmatmul.mubr.bf16.gmra.mrb[0].mxu0 %v6318
    %v6362 = vpop.f32.mrb[0].mxu0
    %v6363 = vadd.f32 0.0, %v6362
    %v6364 = vpop.f32.mrb[0].mxu0
    %v6365 = vpop.f32.mrb[0].mxu0
    %v6366 = vadd.f32 0.0, %v6365
    %v6367 = vpop.f32.mrb[0].mxu0
    %6368 = vdwg.mxu0
    %v6369 = vadd.f32 %v6225, %v6355
    %v6370 = vadd.f32 %v6226, %v6358
    %v6371 = vadd.f32 %v6227, %v6363
    %v6372 = vadd.f32 %v6228, %v6366
    %s6373 = scalar_lea.vmem %s6, 80
    %v6374 = vld [vmem:[%s6373] sm:$0xf]
    %v6375 = vld [vmem:[%s6373 + $0x4] sm:$0xf]
    %v6376 = vld [vmem:[%s6373 + $0x8] sm:$0xf]
    %v6377 = vld [vmem:[%s6373 + $0xc] sm:$0xf]
    %v6382 = vunpack.c.l.b16 %v6374
    %v6383 = vunpack.c.l.b16 %v6375
    %v6384 = vunpack.c.l.b16 %v6376
    %v6385 = vunpack.c.l.b16 %v6377
    %v6386 = vpack.c.b16 %v6383, %v6382
    %v6387 = vpack.c.b16 %v6385, %v6384
    %6390 = vmatprep.subr.bf16.mxu0 0
    %6391 = vmatpush1.bf16.msra.mxu0 %v5654
    %6392 = vmatprep.subr.bf16.mxu0 0
    %6393 = vmatpush1.bf16.msra.mxu0 %v5655
    %6394 = vmatprep.subr.bf16.mxu0 0
    %6395 = vmatpush1.bf16.msra.mxu0 %v5656
    %6396 = vmatprep.subr.bf16.mxu0 0
    %6397 = vmatpush1.bf16.msra.mxu0 %v5657
    %6398 = vmatprep.subr.bf16.mxu0 0
    %6399 = vmatpush1.bf16.msra.mxu0 %v5658
    %6400 = vmatprep.subr.bf16.mxu0 0
    %6401 = vmatpush1.bf16.msra.mxu0 %v5659
    %6402 = vmatprep.subr.bf16.mxu0 0
    %6403 = vmatpush1.bf16.msra.mxu0 %v5660
    %6404 = vmatprep.subr.bf16.mxu0 0
    %6405 = vmatpush1.bf16.msra.mxu0 %v5661
    %6406 = vmatprep.subr.bf16.mxu0 0
    %6407 = vmatpush1.bf16.msra.mxu0 0
    %6408 = vmatprep.subr.bf16.mxu0 0
    %6409 = vmatpush1.bf16.msra.mxu0 0
    %6410 = vmatprep.subr.bf16.mxu0 0
    %6411 = vmatpush1.bf16.msra.mxu0 0
    %6412 = vmatprep.subr.bf16.mxu0 0
    %6413 = vmatpush1.bf16.msra.mxu0 0
    %6414 = vmatprep.subr.bf16.mxu0 0
    %6415 = vmatpush1.bf16.msra.mxu0 0
    %6416 = vmatprep.subr.bf16.mxu0 0
    %6417 = vmatpush1.bf16.msra.mxu0 0
    %6418 = vmatprep.subr.bf16.mxu0 0
    %6419 = vmatpush1.bf16.msra.mxu0 0
    %6420 = vmatprep.subr.bf16.mxu0 0
    %6421 = vmatpush1.bf16.msra.mxu0 0
    %6422 = vmatprep.mubr.bf16.mxu0 0
    %6423 = vmatmul.mubr.bf16.gmra.mrb[0].mxu0 %v6386
    %v6424 = vpop.f32.mrb[0].mxu0
    %v6425 = vadd.f32 0.0, %v6424
    %v6426 = vpop.f32.mrb[0].mxu0
    %v6427 = vpop.f32.mrb[0].mxu0
    %v6428 = vadd.f32 0.0, %v6427
    %v6429 = vpop.f32.mrb[0].mxu0
    %6430 = vmatprep.mubr.bf16.mxu0 0
    %6431 = vmatmul.mubr.bf16.gmra.mrb[0].mxu0 %v6387
    %v6432 = vpop.f32.mrb[0].mxu0
    %v6433 = vadd.f32 0.0, %v6432
    %v6434 = vpop.f32.mrb[0].mxu0
    %v6435 = vpop.f32.mrb[0].mxu0
    %v6436 = vadd.f32 0.0, %v6435
    %v6437 = vpop.f32.mrb[0].mxu0
    %6438 = vdwg.mxu0
    %v6439 = vpack.c.bf16 %v6428, %v6425
    %v6440 = vpack.c.bf16 %v6436, %v6433
    %s6441 = scalar_lea.vmem %s7, 80
    %v6442 = vld [vmem:[%s6441] sm:$0xf]
    %v6443 = vld [vmem:[%s6441 + $0x4] sm:$0xf]
    %v6444 = vld [vmem:[%s6441 + $0x8] sm:$0xf]
    %v6445 = vld [vmem:[%s6441 + $0xc] sm:$0xf]
    %v6450 = vunpack.c.l.b16 %v6442
    %v6451 = vunpack.c.l.b16 %v6443
    %v6452 = vunpack.c.l.b16 %v6444
    %v6453 = vunpack.c.l.b16 %v6445
    %v6454 = vpack.c.b16 %v6451, %v6450
    %v6455 = vpack.c.b16 %v6453, %v6452
    %v6459 = vsel %vm5818, %v6439, 0
    %v6462 = vsel %vm5818, %v6440, 0
    %6464 = vmatprep.subr.bf16.mxu0 0
    %6465 = vmatpush1.bf16.msra.mxu0 %v6454
    %6466 = vmatprep.subr.bf16.mxu0 0
    %6467 = vmatpush1.bf16.msra.mxu0 %v6455
    %6468 = vmatprep.subr.bf16.mxu0 0
    %6469 = vmatpush1.bf16.msra.mxu0 0
    %6470 = vmatprep.subr.bf16.mxu0 0
    %6471 = vmatpush1.bf16.msra.mxu0 0
    %6472 = vmatprep.subr.bf16.mxu0 0
    %6473 = vmatpush1.bf16.msra.mxu0 0
    %6474 = vmatprep.subr.bf16.mxu0 0
    %6475 = vmatpush1.bf16.msra.mxu0 0
    %6476 = vmatprep.subr.bf16.mxu0 0
    %6477 = vmatpush1.bf16.msra.mxu0 0
    %6478 = vmatprep.subr.bf16.mxu0 0
    %6479 = vmatpush1.bf16.msra.mxu0 0
    %6480 = vmatprep.subr.bf16.mxu0 0
    %6481 = vmatpush1.bf16.msra.mxu0 0
    %6482 = vmatprep.subr.bf16.mxu0 0
    %6483 = vmatpush1.bf16.msra.mxu0 0
    %6484 = vmatprep.subr.bf16.mxu0 0
    %6485 = vmatpush1.bf16.msra.mxu0 0
    %6486 = vmatprep.subr.bf16.mxu0 0
    %6487 = vmatpush1.bf16.msra.mxu0 0
    %6488 = vmatprep.subr.bf16.mxu0 0
    %6489 = vmatpush1.bf16.msra.mxu0 0
    %6490 = vmatprep.subr.bf16.mxu0 0
    %6491 = vmatpush1.bf16.msra.mxu0 0
    %6492 = vmatprep.subr.bf16.mxu0 0
    %6493 = vmatpush1.bf16.msra.mxu0 0
    %6494 = vmatprep.subr.bf16.mxu0 0
    %6495 = vmatpush1.bf16.msra.mxu0 0
    %6496 = vmatprep.mubr.bf16.mxu0 0
    %6497 = vmatmul.mubr.bf16.gmra.mrb[0].mxu0 %v6459
    %v6498 = vpop.f32.mrb[0].mxu0
    %v6499 = vadd.f32 0.0, %v6498
    %v6500 = vpop.f32.mrb[0].mxu0
    %v6501 = vpop.f32.mrb[0].mxu0
    %v6502 = vadd.f32 0.0, %v6501
    %v6503 = vpop.f32.mrb[0].mxu0
    %6504 = vmatprep.mubr.bf16.mxu0 0
    %6505 = vmatmul.mubr.bf16.gmra.mrb[0].mxu0 %v6462
    %v6506 = vpop.f32.mrb[0].mxu0
    %v6507 = vadd.f32 0.0, %v6506
    %v6508 = vpop.f32.mrb[0].mxu0
    %v6509 = vpop.f32.mrb[0].mxu0
    %v6510 = vadd.f32 0.0, %v6509
    %v6511 = vpop.f32.mrb[0].mxu0
    %6512 = vdwg.mxu0
    %v6513 = vadd.f32 %v6369, %v6499
    %v6514 = vadd.f32 %v6370, %v6502
    %v6515 = vadd.f32 %v6371, %v6507
    %v6516 = vadd.f32 %v6372, %v6510
    %s6517 = scalar_lea.vmem %s6, 96
    %v6518 = vld [vmem:[%s6517] sm:$0xf]
    %v6519 = vld [vmem:[%s6517 + $0x4] sm:$0xf]
    %v6520 = vld [vmem:[%s6517 + $0x8] sm:$0xf]
    %v6521 = vld [vmem:[%s6517 + $0xc] sm:$0xf]
    %v6526 = vunpack.c.l.b16 %v6518
    %v6527 = vunpack.c.l.b16 %v6519
    %v6528 = vunpack.c.l.b16 %v6520
    %v6529 = vunpack.c.l.b16 %v6521
    %v6530 = vpack.c.b16 %v6527, %v6526
    %v6531 = vpack.c.b16 %v6529, %v6528
    %6534 = vmatprep.subr.bf16.mxu0 0
    %6535 = vmatpush1.bf16.msra.mxu0 %v5654
    %6536 = vmatprep.subr.bf16.mxu0 0
    %6537 = vmatpush1.bf16.msra.mxu0 %v5655
    %6538 = vmatprep.subr.bf16.mxu0 0
    %6539 = vmatpush1.bf16.msra.mxu0 %v5656
    %6540 = vmatprep.subr.bf16.mxu0 0
    %6541 = vmatpush1.bf16.msra.mxu0 %v5657
    %6542 = vmatprep.subr.bf16.mxu0 0
    %6543 = vmatpush1.bf16.msra.mxu0 %v5658
    %6544 = vmatprep.subr.bf16.mxu0 0
    %6545 = vmatpush1.bf16.msra.mxu0 %v5659
    %6546 = vmatprep.subr.bf16.mxu0 0
    %6547 = vmatpush1.bf16.msra.mxu0 %v5660
    %6548 = vmatprep.subr.bf16.mxu0 0
    %6549 = vmatpush1.bf16.msra.mxu0 %v5661
    %6550 = vmatprep.subr.bf16.mxu0 0
    %6551 = vmatpush1.bf16.msra.mxu0 0
    %6552 = vmatprep.subr.bf16.mxu0 0
    %6553 = vmatpush1.bf16.msra.mxu0 0
    %6554 = vmatprep.subr.bf16.mxu0 0
    %6555 = vmatpush1.bf16.msra.mxu0 0
    %6556 = vmatprep.subr.bf16.mxu0 0
    %6557 = vmatpush1.bf16.msra.mxu0 0
    %6558 = vmatprep.subr.bf16.mxu0 0
    %6559 = vmatpush1.bf16.msra.mxu0 0
    %6560 = vmatprep.subr.bf16.mxu0 0
    %6561 = vmatpush1.bf16.msra.mxu0 0
    %6562 = vmatprep.subr.bf16.mxu0 0
    %6563 = vmatpush1.bf16.msra.mxu0 0
    %6564 = vmatprep.subr.bf16.mxu0 0
    %6565 = vmatpush1.bf16.msra.mxu0 0
    %6566 = vmatprep.mubr.bf16.mxu0 0
    %6567 = vmatmul.mubr.bf16.gmra.mrb[0].mxu0 %v6530
    %v6568 = vpop.f32.mrb[0].mxu0
    %v6569 = vadd.f32 0.0, %v6568
    %v6570 = vpop.f32.mrb[0].mxu0
    %v6571 = vpop.f32.mrb[0].mxu0
    %v6572 = vadd.f32 0.0, %v6571
    %v6573 = vpop.f32.mrb[0].mxu0
    %6574 = vmatprep.mubr.bf16.mxu0 0
    %6575 = vmatmul.mubr.bf16.gmra.mrb[0].mxu0 %v6531
    %v6576 = vpop.f32.mrb[0].mxu0
    %v6577 = vadd.f32 0.0, %v6576
    %v6578 = vpop.f32.mrb[0].mxu0
    %v6579 = vpop.f32.mrb[0].mxu0
    %v6580 = vadd.f32 0.0, %v6579
    %v6581 = vpop.f32.mrb[0].mxu0
    %6582 = vdwg.mxu0
    %v6583 = vpack.c.bf16 %v6572, %v6569
    %v6584 = vpack.c.bf16 %v6580, %v6577
    %s6585 = scalar_lea.vmem %s7, 96
    %v6586 = vld [vmem:[%s6585] sm:$0xf]
    %v6587 = vld [vmem:[%s6585 + $0x4] sm:$0xf]
    %v6588 = vld [vmem:[%s6585 + $0x8] sm:$0xf]
    %v6589 = vld [vmem:[%s6585 + $0xc] sm:$0xf]
    %v6594 = vunpack.c.l.b16 %v6586
    %v6595 = vunpack.c.l.b16 %v6587
    %v6596 = vunpack.c.l.b16 %v6588
    %v6597 = vunpack.c.l.b16 %v6589
    %v6598 = vpack.c.b16 %v6595, %v6594
    %v6599 = vpack.c.b16 %v6597, %v6596
    %v6603 = vsel %vm5818, %v6583, 0
    %v6606 = vsel %vm5818, %v6584, 0
    %6608 = vmatprep.subr.bf16.mxu0 0
    %6609 = vmatpush1.bf16.msra.mxu0 %v6598
    %6610 = vmatprep.subr.bf16.mxu0 0
    %6611 = vmatpush1.bf16.msra.mxu0 %v6599
    %6612 = vmatprep.subr.bf16.mxu0 0
    %6613 = vmatpush1.bf16.msra.mxu0 0
    %6614 = vmatprep.subr.bf16.mxu0 0
    %6615 = vmatpush1.bf16.msra.mxu0 0
    %6616 = vmatprep.subr.bf16.mxu0 0
    %6617 = vmatpush1.bf16.msra.mxu0 0
    %6618 = vmatprep.subr.bf16.mxu0 0
    %6619 = vmatpush1.bf16.msra.mxu0 0
    %6620 = vmatprep.subr.bf16.mxu0 0
    %6621 = vmatpush1.bf16.msra.mxu0 0
    %6622 = vmatprep.subr.bf16.mxu0 0
    %6623 = vmatpush1.bf16.msra.mxu0 0
    %6624 = vmatprep.subr.bf16.mxu0 0
    %6625 = vmatpush1.bf16.msra.mxu0 0
    %6626 = vmatprep.subr.bf16.mxu0 0
    %6627 = vmatpush1.bf16.msra.mxu0 0
    %6628 = vmatprep.subr.bf16.mxu0 0
    %6629 = vmatpush1.bf16.msra.mxu0 0
    %6630 = vmatprep.subr.bf16.mxu0 0
    %6631 = vmatpush1.bf16.msra.mxu0 0
    %6632 = vmatprep.subr.bf16.mxu0 0
    %6633 = vmatpush1.bf16.msra.mxu0 0
    %6634 = vmatprep.subr.bf16.mxu0 0
    %6635 = vmatpush1.bf16.msra.mxu0 0
    %6636 = vmatprep.subr.bf16.mxu0 0
    %6637 = vmatpush1.bf16.msra.mxu0 0
    %6638 = vmatprep.subr.bf16.mxu0 0
    %6639 = vmatpush1.bf16.msra.mxu0 0
    %6640 = vmatprep.mubr.bf16.mxu0 0
    %6641 = vmatmul.mubr.bf16.gmra.mrb[0].mxu0 %v6603
    %v6642 = vpop.f32.mrb[0].mxu0
    %v6643 = vadd.f32 0.0, %v6642
    %v6644 = vpop.f32.mrb[0].mxu0
    %v6645 = vpop.f32.mrb[0].mxu0
    %v6646 = vadd.f32 0.0, %v6645
    %v6647 = vpop.f32.mrb[0].mxu0
    %6648 = vmatprep.mubr.bf16.mxu0 0
    %6649 = vmatmul.mubr.bf16.gmra.mrb[0].mxu0 %v6606
    %v6650 = vpop.f32.mrb[0].mxu0
    %v6651 = vadd.f32 0.0, %v6650
    %v6652 = vpop.f32.mrb[0].mxu0
    %v6653 = vpop.f32.mrb[0].mxu0
    %v6654 = vadd.f32 0.0, %v6653
    %v6655 = vpop.f32.mrb[0].mxu0
    %6656 = vdwg.mxu0
    %v6657 = vadd.f32 %v6513, %v6643
    %v6658 = vadd.f32 %v6514, %v6646
    %v6659 = vadd.f32 %v6515, %v6651
    %v6660 = vadd.f32 %v6516, %v6654
    %s6661 = scalar_lea.vmem %s6, 112
    %v6662 = vld [vmem:[%s6661] sm:$0xf]
    %v6663 = vld [vmem:[%s6661 + $0x4] sm:$0xf]
    %v6664 = vld [vmem:[%s6661 + $0x8] sm:$0xf]
    %v6665 = vld [vmem:[%s6661 + $0xc] sm:$0xf]
    %v6670 = vunpack.c.l.b16 %v6662
    %v6671 = vunpack.c.l.b16 %v6663
    %v6672 = vunpack.c.l.b16 %v6664
    %v6673 = vunpack.c.l.b16 %v6665
    %v6674 = vpack.c.b16 %v6671, %v6670
    %v6675 = vpack.c.b16 %v6673, %v6672
    %6678 = vmatprep.subr.bf16.mxu0 0
    %6679 = vmatpush1.bf16.msra.mxu0 %v5654
    %6680 = vmatprep.subr.bf16.mxu0 0
    %6681 = vmatpush1.bf16.msra.mxu0 %v5655
    %6682 = vmatprep.subr.bf16.mxu0 0
    %6683 = vmatpush1.bf16.msra.mxu0 %v5656
    %6684 = vmatprep.subr.bf16.mxu0 0
    %6685 = vmatpush1.bf16.msra.mxu0 %v5657
    %6686 = vmatprep.subr.bf16.mxu0 0
    %6687 = vmatpush1.bf16.msra.mxu0 %v5658
    %6688 = vmatprep.subr.bf16.mxu0 0
    %6689 = vmatpush1.bf16.msra.mxu0 %v5659
    %6690 = vmatprep.subr.bf16.mxu0 0
    %6691 = vmatpush1.bf16.msra.mxu0 %v5660
    %6692 = vmatprep.subr.bf16.mxu0 0
    %6693 = vmatpush1.bf16.msra.mxu0 %v5661
    %6694 = vmatprep.subr.bf16.mxu0 0
    %6695 = vmatpush1.bf16.msra.mxu0 0
    %6696 = vmatprep.subr.bf16.mxu0 0
    %6697 = vmatpush1.bf16.msra.mxu0 0
    %6698 = vmatprep.subr.bf16.mxu0 0
    %6699 = vmatpush1.bf16.msra.mxu0 0
    %6700 = vmatprep.subr.bf16.mxu0 0
    %6701 = vmatpush1.bf16.msra.mxu0 0
    %6702 = vmatprep.subr.bf16.mxu0 0
    %6703 = vmatpush1.bf16.msra.mxu0 0
    %6704 = vmatprep.subr.bf16.mxu0 0
    %6705 = vmatpush1.bf16.msra.mxu0 0
    %6706 = vmatprep.subr.bf16.mxu0 0
    %6707 = vmatpush1.bf16.msra.mxu0 0
    %6708 = vmatprep.subr.bf16.mxu0 0
    %6709 = vmatpush1.bf16.msra.mxu0 0
    %6710 = vmatprep.mubr.bf16.mxu0 0
    %6711 = vmatmul.mubr.bf16.gmra.mrb[0].mxu0 %v6674
    %v6712 = vpop.f32.mrb[0].mxu0
    %v6713 = vadd.f32 0.0, %v6712
    %v6714 = vpop.f32.mrb[0].mxu0
    %v6715 = vpop.f32.mrb[0].mxu0
    %v6716 = vadd.f32 0.0, %v6715
    %v6717 = vpop.f32.mrb[0].mxu0
    %6718 = vmatprep.mubr.bf16.mxu0 0
    %6719 = vmatmul.mubr.bf16.gmra.mrb[0].mxu0 %v6675
    %v6720 = vpop.f32.mrb[0].mxu0
    %v6721 = vadd.f32 0.0, %v6720
    %v6722 = vpop.f32.mrb[0].mxu0
    %v6723 = vpop.f32.mrb[0].mxu0
    %v6724 = vadd.f32 0.0, %v6723
    %v6725 = vpop.f32.mrb[0].mxu0
    %6726 = vdwg.mxu0
    %v6727 = vpack.c.bf16 %v6716, %v6713
    %v6728 = vpack.c.bf16 %v6724, %v6721
    %s6729 = scalar_lea.vmem %s7, 112
    %v6730 = vld [vmem:[%s6729] sm:$0xf]
    %v6731 = vld [vmem:[%s6729 + $0x4] sm:$0xf]
    %v6732 = vld [vmem:[%s6729 + $0x8] sm:$0xf]
    %v6733 = vld [vmem:[%s6729 + $0xc] sm:$0xf]
    %v6738 = vunpack.c.l.b16 %v6730
    %v6739 = vunpack.c.l.b16 %v6731
    %v6740 = vunpack.c.l.b16 %v6732
    %v6741 = vunpack.c.l.b16 %v6733
    %v6742 = vpack.c.b16 %v6739, %v6738
    %v6743 = vpack.c.b16 %v6741, %v6740
    %v6747 = vsel %vm5818, %v6727, 0
    %v6750 = vsel %vm5818, %v6728, 0
    %6752 = vmatprep.subr.bf16.mxu0 0
    %6753 = vmatpush1.bf16.msra.mxu0 %v6742
    %6754 = vmatprep.subr.bf16.mxu0 0
    %6755 = vmatpush1.bf16.msra.mxu0 %v6743
    %6756 = vmatprep.subr.bf16.mxu0 0
    %6757 = vmatpush1.bf16.msra.mxu0 0
    %6758 = vmatprep.subr.bf16.mxu0 0
    %6759 = vmatpush1.bf16.msra.mxu0 0
    %6760 = vmatprep.subr.bf16.mxu0 0
    %6761 = vmatpush1.bf16.msra.mxu0 0
    %6762 = vmatprep.subr.bf16.mxu0 0
    %6763 = vmatpush1.bf16.msra.mxu0 0
    %6764 = vmatprep.subr.bf16.mxu0 0
    %6765 = vmatpush1.bf16.msra.mxu0 0
    %6766 = vmatprep.subr.bf16.mxu0 0
    %6767 = vmatpush1.bf16.msra.mxu0 0
    %6768 = vmatprep.subr.bf16.mxu0 0
    %6769 = vmatpush1.bf16.msra.mxu0 0
    %6770 = vmatprep.subr.bf16.mxu0 0
    %6771 = vmatpush1.bf16.msra.mxu0 0
    %6772 = vmatprep.subr.bf16.mxu0 0
    %6773 = vmatpush1.bf16.msra.mxu0 0
    %6774 = vmatprep.subr.bf16.mxu0 0
    %6775 = vmatpush1.bf16.msra.mxu0 0
    %6776 = vmatprep.subr.bf16.mxu0 0
    %6777 = vmatpush1.bf16.msra.mxu0 0
    %6778 = vmatprep.subr.bf16.mxu0 0
    %6779 = vmatpush1.bf16.msra.mxu0 0
    %6780 = vmatprep.subr.bf16.mxu0 0
    %6781 = vmatpush1.bf16.msra.mxu0 0
    %6782 = vmatprep.subr.bf16.mxu0 0
    %6783 = vmatpush1.bf16.msra.mxu0 0
    %6784 = vmatprep.mubr.bf16.mxu0 0
    %6785 = vmatmul.mubr.bf16.gmra.mrb[0].mxu0 %v6747
    %v6786 = vpop.f32.mrb[0].mxu0
    %v6787 = vadd.f32 0.0, %v6786
    %v6788 = vpop.f32.mrb[0].mxu0
    %v6789 = vpop.f32.mrb[0].mxu0
    %v6790 = vadd.f32 0.0, %v6789
    %v6791 = vpop.f32.mrb[0].mxu0
    %6792 = vmatprep.mubr.bf16.mxu0 0
    %6793 = vmatmul.mubr.bf16.gmra.mrb[0].mxu0 %v6750
    %v6794 = vpop.f32.mrb[0].mxu0
    %v6795 = vadd.f32 0.0, %v6794
    %v6796 = vpop.f32.mrb[0].mxu0
    %v6797 = vpop.f32.mrb[0].mxu0
    %v6798 = vadd.f32 0.0, %v6797
    %v6799 = vpop.f32.mrb[0].mxu0
    %6800 = vdwg.mxu0
    %v6801 = vadd.f32 %v6657, %v6787
    %v6802 = vadd.f32 %v6658, %v6790
    %v6803 = vadd.f32 %v6659, %v6795
    %v6804 = vadd.f32 %v6660, %v6798
    %s6805 = scalar_lea.vmem %s6, 128
    %v6806 = vld [vmem:[%s6805] sm:$0xf]
    %v6807 = vld [vmem:[%s6805 + $0x4] sm:$0xf]
    %v6808 = vld [vmem:[%s6805 + $0x8] sm:$0xf]
    %v6809 = vld [vmem:[%s6805 + $0xc] sm:$0xf]
    %v6814 = vunpack.c.l.b16 %v6806
    %v6815 = vunpack.c.l.b16 %v6807
    %v6816 = vunpack.c.l.b16 %v6808
    %v6817 = vunpack.c.l.b16 %v6809
    %v6818 = vpack.c.b16 %v6815, %v6814
    %v6819 = vpack.c.b16 %v6817, %v6816
    %6822 = vmatprep.subr.bf16.mxu0 0
    %6823 = vmatpush1.bf16.msra.mxu0 %v5654
    %6824 = vmatprep.subr.bf16.mxu0 0
    %6825 = vmatpush1.bf16.msra.mxu0 %v5655
    %6826 = vmatprep.subr.bf16.mxu0 0
    %6827 = vmatpush1.bf16.msra.mxu0 %v5656
    %6828 = vmatprep.subr.bf16.mxu0 0
    %6829 = vmatpush1.bf16.msra.mxu0 %v5657
    %6830 = vmatprep.subr.bf16.mxu0 0
    %6831 = vmatpush1.bf16.msra.mxu0 %v5658
    %6832 = vmatprep.subr.bf16.mxu0 0
    %6833 = vmatpush1.bf16.msra.mxu0 %v5659
    %6834 = vmatprep.subr.bf16.mxu0 0
    %6835 = vmatpush1.bf16.msra.mxu0 %v5660
    %6836 = vmatprep.subr.bf16.mxu0 0
    %6837 = vmatpush1.bf16.msra.mxu0 %v5661
    %6838 = vmatprep.subr.bf16.mxu0 0
    %6839 = vmatpush1.bf16.msra.mxu0 0
    %6840 = vmatprep.subr.bf16.mxu0 0
    %6841 = vmatpush1.bf16.msra.mxu0 0
    %6842 = vmatprep.subr.bf16.mxu0 0
    %6843 = vmatpush1.bf16.msra.mxu0 0
    %6844 = vmatprep.subr.bf16.mxu0 0
    %6845 = vmatpush1.bf16.msra.mxu0 0
    %6846 = vmatprep.subr.bf16.mxu0 0
    %6847 = vmatpush1.bf16.msra.mxu0 0
    %6848 = vmatprep.subr.bf16.mxu0 0
    %6849 = vmatpush1.bf16.msra.mxu0 0
    %6850 = vmatprep.subr.bf16.mxu0 0
    %6851 = vmatpush1.bf16.msra.mxu0 0
    %6852 = vmatprep.subr.bf16.mxu0 0
    %6853 = vmatpush1.bf16.msra.mxu0 0
    %6854 = vmatprep.mubr.bf16.mxu0 0
    %6855 = vmatmul.mubr.bf16.gmra.mrb[0].mxu0 %v6818
    %v6856 = vpop.f32.mrb[0].mxu0
    %v6857 = vadd.f32 0.0, %v6856
    %v6858 = vpop.f32.mrb[0].mxu0
    %v6859 = vpop.f32.mrb[0].mxu0
    %v6860 = vadd.f32 0.0, %v6859
    %v6861 = vpop.f32.mrb[0].mxu0
    %6862 = vmatprep.mubr.bf16.mxu0 0
    %6863 = vmatmul.mubr.bf16.gmra.mrb[0].mxu0 %v6819
    %v6864 = vpop.f32.mrb[0].mxu0
    %v6865 = vadd.f32 0.0, %v6864
    %v6866 = vpop.f32.mrb[0].mxu0
    %v6867 = vpop.f32.mrb[0].mxu0
    %v6868 = vadd.f32 0.0, %v6867
    %v6869 = vpop.f32.mrb[0].mxu0
    %6870 = vdwg.mxu0
    %v6871 = vpack.c.bf16 %v6860, %v6857
    %v6872 = vpack.c.bf16 %v6868, %v6865
    %s6873 = scalar_lea.vmem %s7, 128
    %v6874 = vld [vmem:[%s6873] sm:$0xf]
    %v6875 = vld [vmem:[%s6873 + $0x4] sm:$0xf]
    %v6876 = vld [vmem:[%s6873 + $0x8] sm:$0xf]
    %v6877 = vld [vmem:[%s6873 + $0xc] sm:$0xf]
    %v6882 = vunpack.c.l.b16 %v6874
    %v6883 = vunpack.c.l.b16 %v6875
    %v6884 = vunpack.c.l.b16 %v6876
    %v6885 = vunpack.c.l.b16 %v6877
    %v6886 = vpack.c.b16 %v6883, %v6882
    %v6887 = vpack.c.b16 %v6885, %v6884
    %v6891 = vsel %vm5818, %v6871, 0
    %v6894 = vsel %vm5818, %v6872, 0
    %6896 = vmatprep.subr.bf16.mxu0 0
    %6897 = vmatpush1.bf16.msra.mxu0 %v6886
    %6898 = vmatprep.subr.bf16.mxu0 0
    %6899 = vmatpush1.bf16.msra.mxu0 %v6887
    %6900 = vmatprep.subr.bf16.mxu0 0
    %6901 = vmatpush1.bf16.msra.mxu0 0
    %6902 = vmatprep.subr.bf16.mxu0 0
    %6903 = vmatpush1.bf16.msra.mxu0 0
    %6904 = vmatprep.subr.bf16.mxu0 0
    %6905 = vmatpush1.bf16.msra.mxu0 0
    %6906 = vmatprep.subr.bf16.mxu0 0
    %6907 = vmatpush1.bf16.msra.mxu0 0
    %6908 = vmatprep.subr.bf16.mxu0 0
    %6909 = vmatpush1.bf16.msra.mxu0 0
    %6910 = vmatprep.subr.bf16.mxu0 0
    %6911 = vmatpush1.bf16.msra.mxu0 0
    %6912 = vmatprep.subr.bf16.mxu0 0
    %6913 = vmatpush1.bf16.msra.mxu0 0
    %6914 = vmatprep.subr.bf16.mxu0 0
    %6915 = vmatpush1.bf16.msra.mxu0 0
    %6916 = vmatprep.subr.bf16.mxu0 0
    %6917 = vmatpush1.bf16.msra.mxu0 0
    %6918 = vmatprep.subr.bf16.mxu0 0
    %6919 = vmatpush1.bf16.msra.mxu0 0
    %6920 = vmatprep.subr.bf16.mxu0 0
    %6921 = vmatpush1.bf16.msra.mxu0 0
    %6922 = vmatprep.subr.bf16.mxu0 0
    %6923 = vmatpush1.bf16.msra.mxu0 0
    %6924 = vmatprep.subr.bf16.mxu0 0
    %6925 = vmatpush1.bf16.msra.mxu0 0
    %6926 = vmatprep.subr.bf16.mxu0 0
    %6927 = vmatpush1.bf16.msra.mxu0 0
    %6928 = vmatprep.mubr.bf16.mxu0 0
    %6929 = vmatmul.mubr.bf16.gmra.mrb[0].mxu0 %v6891
    %v6930 = vpop.f32.mrb[0].mxu0
    %v6931 = vadd.f32 0.0, %v6930
    %v6932 = vpop.f32.mrb[0].mxu0
    %v6933 = vpop.f32.mrb[0].mxu0
    %v6934 = vadd.f32 0.0, %v6933
    %v6935 = vpop.f32.mrb[0].mxu0
    %6936 = vmatprep.mubr.bf16.mxu0 0
    %6937 = vmatmul.mubr.bf16.gmra.mrb[0].mxu0 %v6894
    %v6938 = vpop.f32.mrb[0].mxu0
    %v6939 = vadd.f32 0.0, %v6938
    %v6940 = vpop.f32.mrb[0].mxu0
    %v6941 = vpop.f32.mrb[0].mxu0
    %v6942 = vadd.f32 0.0, %v6941
    %v6943 = vpop.f32.mrb[0].mxu0
    %6944 = vdwg.mxu0
    %v6945 = vadd.f32 %v6801, %v6931
    %v6946 = vadd.f32 %v6802, %v6934
    %v6947 = vadd.f32 %v6803, %v6939
    %v6948 = vadd.f32 %v6804, %v6942
    %v6949 = vld [vmem:[%s8] sm:$0x1]
    %v6951 = vlaneseq
    %v6952 = vshrl.u32 %v6951, 7
    %v6953 = vsub.s32 0, %v6952
    %v6954 = vrot.slane %v6949, %v6953
    %v6956 = vadd.f32 %v6945, %v6954
    %v6957 = vadd.f32 %v6946, %v6954
    %v6958 = vadd.f32 %v6947, %v6954
    %v6959 = vadd.f32 %v6948, %v6954
    %v6960 = vmax.f32 %v6956, 0.0
    %v6961 = vmax.f32 %v6957, 0.0
    %v6962 = vmax.f32 %v6958, 0.0
    %v6963 = vmax.f32 %v6959, 0.0
    %v6964 = vpack.c.bf16 %v6961, %v6960
    %v6965 = vpack.c.bf16 %v6963, %v6962
    %v6966 = vld [vmem:[%s9] sm:$0xf]
    %v6968 = vsel %vm5818, %v6966, 0
    %6970 = vmatprep.subr.bf16.mxu0 0
    %6971 = vmatpush1.bf16.msra.mxu0 %v6964
    %6972 = vmatprep.subr.bf16.mxu0 0
    %6973 = vmatpush1.bf16.msra.mxu0 %v6965
    %6974 = vmatprep.subr.bf16.mxu0 0
    %6975 = vmatpush1.bf16.msra.mxu0 0
    %6976 = vmatprep.subr.bf16.mxu0 0
    %6977 = vmatpush1.bf16.msra.mxu0 0
    %6978 = vmatprep.subr.bf16.mxu0 0
    %6979 = vmatpush1.bf16.msra.mxu0 0
    %6980 = vmatprep.subr.bf16.mxu0 0
    %6981 = vmatpush1.bf16.msra.mxu0 0
    %6982 = vmatprep.subr.bf16.mxu0 0
    %6983 = vmatpush1.bf16.msra.mxu0 0
    %6984 = vmatprep.subr.bf16.mxu0 0
    %6985 = vmatpush1.bf16.msra.mxu0 0
    %6986 = vmatprep.subr.bf16.mxu0 0
    %6987 = vmatpush1.bf16.msra.mxu0 0
    %6988 = vmatprep.subr.bf16.mxu0 0
    %6989 = vmatpush1.bf16.msra.mxu0 0
    %6990 = vmatprep.subr.bf16.mxu0 0
    %6991 = vmatpush1.bf16.msra.mxu0 0
    %6992 = vmatprep.subr.bf16.mxu0 0
    %6993 = vmatpush1.bf16.msra.mxu0 0
    %6994 = vmatprep.subr.bf16.mxu0 0
    %6995 = vmatpush1.bf16.msra.mxu0 0
    %6996 = vmatprep.subr.bf16.mxu0 0
    %6997 = vmatpush1.bf16.msra.mxu0 0
    %6998 = vmatprep.subr.bf16.mxu0 0
    %6999 = vmatpush1.bf16.msra.mxu0 0
    %7000 = vmatprep.subr.bf16.mxu0 0
    %7001 = vmatpush1.bf16.msra.mxu0 0
    %7002 = vmatprep.mubr.bf16.mxu0 0
    %7003 = vmatmul.mubr.bf16.gmra.mrb[0].mxu0 %v6968
    %v7004 = vpop.f32.mrb[0].mxu0
    %v7005 = vadd.f32 0.0, %v7004
    %v7006 = vpop.f32.mrb[0].mxu0
    %v7007 = vpop.f32.mrb[0].mxu0
    %v7008 = vpop.f32.mrb[0].mxu0
    %7009 = vdwg.mxu0
    %v7010 = vpack.c.bf16 %v7005, %v7005
    %v7011 = vld [vmem:[%s10] sm:$0xf]
    %v7012 = vld [vmem:[%s10 + $0x4] sm:$0xf]
    %v7013 = vld [vmem:[%s10 + $0x8] sm:$0xf]
    %v7014 = vld [vmem:[%s10 + $0xc] sm:$0xf]
    %v7015 = vld [vmem:[%s10 + $0x10] sm:$0xf]
    %v7016 = vld [vmem:[%s10 + $0x14] sm:$0xf]
    %v7017 = vld [vmem:[%s10 + $0x18] sm:$0xf]
    %v7018 = vld [vmem:[%s10 + $0x1c] sm:$0xf]
    %s7019 = scalar_lea.vmem %s9, 4
    %v7020 = vld [vmem:[%s7019] sm:$0xf]
    %v7022 = vsel %vm5818, %v7020, 0
    %7024 = vmatprep.subr.bf16.mxu0 0
    %7025 = vmatpush1.bf16.msra.mxu0 %v6964
    %7026 = vmatprep.subr.bf16.mxu0 0
    %7027 = vmatpush1.bf16.msra.mxu0 %v6965
    %7028 = vmatprep.subr.bf16.mxu0 0
    %7029 = vmatpush1.bf16.msra.mxu0 0
    %7030 = vmatprep.subr.bf16.mxu0 0
    %7031 = vmatpush1.bf16.msra.mxu0 0
    %7032 = vmatprep.subr.bf16.mxu0 0
    %7033 = vmatpush1.bf16.msra.mxu0 0
    %7034 = vmatprep.subr.bf16.mxu0 0
    %7035 = vmatpush1.bf16.msra.mxu0 0
    %7036 = vmatprep.subr.bf16.mxu0 0
    %7037 = vmatpush1.bf16.msra.mxu0 0
    %7038 = vmatprep.subr.bf16.mxu0 0
    %7039 = vmatpush1.bf16.msra.mxu0 0
    %7040 = vmatprep.subr.bf16.mxu0 0
    %7041 = vmatpush1.bf16.msra.mxu0 0
    %7042 = vmatprep.subr.bf16.mxu0 0
    %7043 = vmatpush1.bf16.msra.mxu0 0
    %7044 = vmatprep.subr.bf16.mxu0 0
    %7045 = vmatpush1.bf16.msra.mxu0 0
    %7046 = vmatprep.subr.bf16.mxu0 0
    %7047 = vmatpush1.bf16.msra.mxu0 0
    %7048 = vmatprep.subr.bf16.mxu0 0
    %7049 = vmatpush1.bf16.msra.mxu0 0
    %7050 = vmatprep.subr.bf16.mxu0 0
    %7051 = vmatpush1.bf16.msra.mxu0 0
    %7052 = vmatprep.subr.bf16.mxu0 0
    %7053 = vmatpush1.bf16.msra.mxu0 0
    %7054 = vmatprep.subr.bf16.mxu0 0
    %7055 = vmatpush1.bf16.msra.mxu0 0
    %7056 = vmatprep.mubr.bf16.mxu0 0
    %7057 = vmatmul.mubr.bf16.gmra.mrb[0].mxu0 %v7022
    %v7058 = vpop.f32.mrb[0].mxu0
    %v7059 = vadd.f32 0.0, %v7058
    %v7060 = vpop.f32.mrb[0].mxu0
    %v7061 = vpop.f32.mrb[0].mxu0
    %v7062 = vpop.f32.mrb[0].mxu0
    %7063 = vdwg.mxu0
    %v7064 = vpack.c.bf16 %v7059, %v7059
    %s7065 = scalar_lea.vmem %s10, 32
    %v7066 = vld [vmem:[%s7065] sm:$0xf]
    %v7067 = vld [vmem:[%s7065 + $0x4] sm:$0xf]
    %v7068 = vld [vmem:[%s7065 + $0x8] sm:$0xf]
    %v7069 = vld [vmem:[%s7065 + $0xc] sm:$0xf]
    %v7070 = vld [vmem:[%s7065 + $0x10] sm:$0xf]
    %v7071 = vld [vmem:[%s7065 + $0x14] sm:$0xf]
    %v7072 = vld [vmem:[%s7065 + $0x18] sm:$0xf]
    %v7073 = vld [vmem:[%s7065 + $0x1c] sm:$0xf]
    %v7082 = vunpack.c.l.b16 %v7066
    %v7083 = vunpack.c.l.b16 %v7067
    %v7084 = vunpack.c.l.b16 %v7068
    %v7085 = vunpack.c.l.b16 %v7069
    %v7086 = vunpack.c.l.b16 %v7070
    %v7087 = vunpack.c.l.b16 %v7071
    %v7088 = vunpack.c.l.b16 %v7072
    %v7089 = vunpack.c.l.b16 %v7073
    %v7090 = vpack.c.b16 %v7083, %v7082
    %v7091 = vpack.c.b16 %v7085, %v7084
    %v7092 = vpack.c.b16 %v7087, %v7086
    %v7093 = vpack.c.b16 %v7089, %v7088
    %vm7098 = vcmask 523264
    %v7100 = vsel %vm7098, %v7064, 0
    %7102 = vmatprep.subr.bf16.mxu0 0
    %7103 = vmatpush1.bf16.msra.mxu0 %v7090
    %7104 = vmatprep.subr.bf16.mxu0 0
    %7105 = vmatpush1.bf16.msra.mxu0 %v7091
    %7106 = vmatprep.subr.bf16.mxu0 0
    %7107 = vmatpush1.bf16.msra.mxu0 %v7092
    %7108 = vmatprep.subr.bf16.mxu0 0
    %7109 = vmatpush1.bf16.msra.mxu0 %v7093
    %7110 = vmatprep.subr.bf16.mxu0 0
    %7111 = vmatpush1.bf16.msra.mxu0 0
    %7112 = vmatprep.subr.bf16.mxu0 0
    %7113 = vmatpush1.bf16.msra.mxu0 0
    %7114 = vmatprep.subr.bf16.mxu0 0
    %7115 = vmatpush1.bf16.msra.mxu0 0
    %7116 = vmatprep.subr.bf16.mxu0 0
    %7117 = vmatpush1.bf16.msra.mxu0 0
    %7118 = vmatprep.subr.bf16.mxu0 0
    %7119 = vmatpush1.bf16.msra.mxu0 0
    %7120 = vmatprep.subr.bf16.mxu0 0
    %7121 = vmatpush1.bf16.msra.mxu0 0
    %7122 = vmatprep.subr.bf16.mxu0 0
    %7123 = vmatpush1.bf16.msra.mxu0 0
    %7124 = vmatprep.subr.bf16.mxu0 0
    %7125 = vmatpush1.bf16.msra.mxu0 0
    %7126 = vmatprep.subr.bf16.mxu0 0
    %7127 = vmatpush1.bf16.msra.mxu0 0
    %7128 = vmatprep.subr.bf16.mxu0 0
    %7129 = vmatpush1.bf16.msra.mxu0 0
    %7130 = vmatprep.subr.bf16.mxu0 0
    %7131 = vmatpush1.bf16.msra.mxu0 0
    %7132 = vmatprep.subr.bf16.mxu0 0
    %7133 = vmatpush1.bf16.msra.mxu0 0
    %7134 = vmatprep.mubr.bf16.mxu0 0
    %7135 = vmatmul.mubr.bf16.gmra.mrb[0].mxu0 %v7100
    %v7136 = vpop.f32.mrb[0].mxu0
    %v7137 = vadd.f32 0.0, %v7136
    %v7138 = vpop.f32.mrb[0].mxu0
    %v7139 = vpop.f32.mrb[0].mxu0
    %v7140 = vpop.f32.mrb[0].mxu0
    %7141 = vdwg.mxu0
    %v7150 = vunpack.c.l.b16 %v7011
    %v7151 = vunpack.c.l.b16 %v7012
    %v7152 = vunpack.c.l.b16 %v7013
    %v7153 = vunpack.c.l.b16 %v7014
    %v7154 = vunpack.c.l.b16 %v7015
    %v7155 = vunpack.c.l.b16 %v7016
    %v7156 = vunpack.c.l.b16 %v7017
    %v7157 = vunpack.c.l.b16 %v7018
    %v7158 = vpack.c.b16 %v7151, %v7150
    %v7159 = vpack.c.b16 %v7153, %v7152
    %v7160 = vpack.c.b16 %v7155, %v7154
    %v7161 = vpack.c.b16 %v7157, %v7156
    %v7167 = vsel %vm7098, %v7010, 0
    %7169 = vmatprep.subr.bf16.mxu0 0
    %7170 = vmatpush1.bf16.msra.mxu0 %v7158
    %7171 = vmatprep.subr.bf16.mxu0 0
    %7172 = vmatpush1.bf16.msra.mxu0 %v7159
    %7173 = vmatprep.subr.bf16.mxu0 0
    %7174 = vmatpush1.bf16.msra.mxu0 %v7160
    %7175 = vmatprep.subr.bf16.mxu0 0
    %7176 = vmatpush1.bf16.msra.mxu0 %v7161
    %7177 = vmatprep.subr.bf16.mxu0 0
    %7178 = vmatpush1.bf16.msra.mxu0 0
    %7179 = vmatprep.subr.bf16.mxu0 0
    %7180 = vmatpush1.bf16.msra.mxu0 0
    %7181 = vmatprep.subr.bf16.mxu0 0
    %7182 = vmatpush1.bf16.msra.mxu0 0
    %7183 = vmatprep.subr.bf16.mxu0 0
    %7184 = vmatpush1.bf16.msra.mxu0 0
    %7185 = vmatprep.subr.bf16.mxu0 0
    %7186 = vmatpush1.bf16.msra.mxu0 0
    %7187 = vmatprep.subr.bf16.mxu0 0
    %7188 = vmatpush1.bf16.msra.mxu0 0
    %7189 = vmatprep.subr.bf16.mxu0 0
    %7190 = vmatpush1.bf16.msra.mxu0 0
    %7191 = vmatprep.subr.bf16.mxu0 0
    %7192 = vmatpush1.bf16.msra.mxu0 0
    %7193 = vmatprep.subr.bf16.mxu0 0
    %7194 = vmatpush1.bf16.msra.mxu0 0
    %7195 = vmatprep.subr.bf16.mxu0 0
    %7196 = vmatpush1.bf16.msra.mxu0 0
    %7197 = vmatprep.subr.bf16.mxu0 0
    %7198 = vmatpush1.bf16.msra.mxu0 0
    %7199 = vmatprep.subr.bf16.mxu0 0
    %7200 = vmatpush1.bf16.msra.mxu0 0
    %7201 = vmatprep.mubr.bf16.mxu0 0
    %7202 = vmatmul.mubr.bf16.gmra.mrb[0].mxu0 %v7167
    %v7203 = vpop.f32.mrb[0].mxu0
    %v7204 = vadd.f32 %v7137, %v7203
    %v7205 = vpop.f32.mrb[0].mxu0
    %v7206 = vpop.f32.mrb[0].mxu0
    %v7207 = vpop.f32.mrb[0].mxu0
    %7208 = vdwg.mxu0
    %s7209 = scalar_lea.vmem %s9, 8
    %v7210 = vld [vmem:[%s7209] sm:$0xf]
    %v7212 = vsel %vm5818, %v7210, 0
    %7214 = vmatprep.subr.bf16.mxu0 0
    %7215 = vmatpush1.bf16.msra.mxu0 %v6964
    %7216 = vmatprep.subr.bf16.mxu0 0
    %7217 = vmatpush1.bf16.msra.mxu0 %v6965
    %7218 = vmatprep.subr.bf16.mxu0 0
    %7219 = vmatpush1.bf16.msra.mxu0 0
    %7220 = vmatprep.subr.bf16.mxu0 0
    %7221 = vmatpush1.bf16.msra.mxu0 0
    %7222 = vmatprep.subr.bf16.mxu0 0
    %7223 = vmatpush1.bf16.msra.mxu0 0
    %7224 = vmatprep.subr.bf16.mxu0 0
    %7225 = vmatpush1.bf16.msra.mxu0 0
    %7226 = vmatprep.subr.bf16.mxu0 0
    %7227 = vmatpush1.bf16.msra.mxu0 0
    %7228 = vmatprep.subr.bf16.mxu0 0
    %7229 = vmatpush1.bf16.msra.mxu0 0
    %7230 = vmatprep.subr.bf16.mxu0 0
    %7231 = vmatpush1.bf16.msra.mxu0 0
    %7232 = vmatprep.subr.bf16.mxu0 0
    %7233 = vmatpush1.bf16.msra.mxu0 0
    %7234 = vmatprep.subr.bf16.mxu0 0
    %7235 = vmatpush1.bf16.msra.mxu0 0
    %7236 = vmatprep.subr.bf16.mxu0 0
    %7237 = vmatpush1.bf16.msra.mxu0 0
    %7238 = vmatprep.subr.bf16.mxu0 0
    %7239 = vmatpush1.bf16.msra.mxu0 0
    %7240 = vmatprep.subr.bf16.mxu0 0
    %7241 = vmatpush1.bf16.msra.mxu0 0
    %7242 = vmatprep.subr.bf16.mxu0 0
    %7243 = vmatpush1.bf16.msra.mxu0 0
    %7244 = vmatprep.subr.bf16.mxu0 0
    %7245 = vmatpush1.bf16.msra.mxu0 0
    %7246 = vmatprep.mubr.bf16.mxu0 0
    %7247 = vmatmul.mubr.bf16.gmra.mrb[0].mxu0 %v7212
    %v7248 = vpop.f32.mrb[0].mxu0
    %v7249 = vadd.f32 0.0, %v7248
    %v7250 = vpop.f32.mrb[0].mxu0
    %v7251 = vpop.f32.mrb[0].mxu0
    %v7252 = vpop.f32.mrb[0].mxu0
    %7253 = vdwg.mxu0
    %v7254 = vpack.c.bf16 %v7249, %v7249
    %s7255 = scalar_lea.vmem %s10, 64
    %v7256 = vld [vmem:[%s7255] sm:$0xf]
    %v7257 = vld [vmem:[%s7255 + $0x4] sm:$0xf]
    %v7258 = vld [vmem:[%s7255 + $0x8] sm:$0xf]
    %v7259 = vld [vmem:[%s7255 + $0xc] sm:$0xf]
    %v7260 = vld [vmem:[%s7255 + $0x10] sm:$0xf]
    %v7261 = vld [vmem:[%s7255 + $0x14] sm:$0xf]
    %v7262 = vld [vmem:[%s7255 + $0x18] sm:$0xf]
    %v7263 = vld [vmem:[%s7255 + $0x1c] sm:$0xf]
    %v7272 = vunpack.c.l.b16 %v7256
    %v7273 = vunpack.c.l.b16 %v7257
    %v7274 = vunpack.c.l.b16 %v7258
    %v7275 = vunpack.c.l.b16 %v7259
    %v7276 = vunpack.c.l.b16 %v7260
    %v7277 = vunpack.c.l.b16 %v7261
    %v7278 = vunpack.c.l.b16 %v7262
    %v7279 = vunpack.c.l.b16 %v7263
    %v7280 = vpack.c.b16 %v7273, %v7272
    %v7281 = vpack.c.b16 %v7275, %v7274
    %v7282 = vpack.c.b16 %v7277, %v7276
    %v7283 = vpack.c.b16 %v7279, %v7278
    %v7289 = vsel %vm7098, %v7254, 0
    %7291 = vmatprep.subr.bf16.mxu0 0
    %7292 = vmatpush1.bf16.msra.mxu0 %v7280
    %7293 = vmatprep.subr.bf16.mxu0 0
    %7294 = vmatpush1.bf16.msra.mxu0 %v7281
    %7295 = vmatprep.subr.bf16.mxu0 0
    %7296 = vmatpush1.bf16.msra.mxu0 %v7282
    %7297 = vmatprep.subr.bf16.mxu0 0
    %7298 = vmatpush1.bf16.msra.mxu0 %v7283
    %7299 = vmatprep.subr.bf16.mxu0 0
    %7300 = vmatpush1.bf16.msra.mxu0 0
    %7301 = vmatprep.subr.bf16.mxu0 0
    %7302 = vmatpush1.bf16.msra.mxu0 0
    %7303 = vmatprep.subr.bf16.mxu0 0
    %7304 = vmatpush1.bf16.msra.mxu0 0
    %7305 = vmatprep.subr.bf16.mxu0 0
    %7306 = vmatpush1.bf16.msra.mxu0 0
    %7307 = vmatprep.subr.bf16.mxu0 0
    %7308 = vmatpush1.bf16.msra.mxu0 0
    %7309 = vmatprep.subr.bf16.mxu0 0
    %7310 = vmatpush1.bf16.msra.mxu0 0
    %7311 = vmatprep.subr.bf16.mxu0 0
    %7312 = vmatpush1.bf16.msra.mxu0 0
    %7313 = vmatprep.subr.bf16.mxu0 0
    %7314 = vmatpush1.bf16.msra.mxu0 0
    %7315 = vmatprep.subr.bf16.mxu0 0
    %7316 = vmatpush1.bf16.msra.mxu0 0
    %7317 = vmatprep.subr.bf16.mxu0 0
    %7318 = vmatpush1.bf16.msra.mxu0 0
    %7319 = vmatprep.subr.bf16.mxu0 0
    %7320 = vmatpush1.bf16.msra.mxu0 0
    %7321 = vmatprep.subr.bf16.mxu0 0
    %7322 = vmatpush1.bf16.msra.mxu0 0
    %7323 = vmatprep.mubr.bf16.mxu0 0
    %7324 = vmatmul.mubr.bf16.gmra.mrb[0].mxu0 %v7289
    %v7325 = vpop.f32.mrb[0].mxu0
    %v7326 = vadd.f32 0.0, %v7325
    %v7327 = vpop.f32.mrb[0].mxu0
    %v7328 = vpop.f32.mrb[0].mxu0
    %v7329 = vpop.f32.mrb[0].mxu0
    %7330 = vdwg.mxu0
    %v7331 = vadd.f32 %v7204, %v7326
    %s7332 = scalar_lea.vmem %s9, 12
    %v7333 = vld [vmem:[%s7332] sm:$0xf]
    %v7335 = vsel %vm5818, %v7333, 0
    %7337 = vmatprep.subr.bf16.mxu0 0
    %7338 = vmatpush1.bf16.msra.mxu0 %v6964
    %7339 = vmatprep.subr.bf16.mxu0 0
    %7340 = vmatpush1.bf16.msra.mxu0 %v6965
    %7341 = vmatprep.subr.bf16.mxu0 0
    %7342 = vmatpush1.bf16.msra.mxu0 0
    %7343 = vmatprep.subr.bf16.mxu0 0
    %7344 = vmatpush1.bf16.msra.mxu0 0
    %7345 = vmatprep.subr.bf16.mxu0 0
    %7346 = vmatpush1.bf16.msra.mxu0 0
    %7347 = vmatprep.subr.bf16.mxu0 0
    %7348 = vmatpush1.bf16.msra.mxu0 0
    %7349 = vmatprep.subr.bf16.mxu0 0
    %7350 = vmatpush1.bf16.msra.mxu0 0
    %7351 = vmatprep.subr.bf16.mxu0 0
    %7352 = vmatpush1.bf16.msra.mxu0 0
    %7353 = vmatprep.subr.bf16.mxu0 0
    %7354 = vmatpush1.bf16.msra.mxu0 0
    %7355 = vmatprep.subr.bf16.mxu0 0
    %7356 = vmatpush1.bf16.msra.mxu0 0
    %7357 = vmatprep.subr.bf16.mxu0 0
    %7358 = vmatpush1.bf16.msra.mxu0 0
    %7359 = vmatprep.subr.bf16.mxu0 0
    %7360 = vmatpush1.bf16.msra.mxu0 0
    %7361 = vmatprep.subr.bf16.mxu0 0
    %7362 = vmatpush1.bf16.msra.mxu0 0
    %7363 = vmatprep.subr.bf16.mxu0 0
    %7364 = vmatpush1.bf16.msra.mxu0 0
    %7365 = vmatprep.subr.bf16.mxu0 0
    %7366 = vmatpush1.bf16.msra.mxu0 0
    %7367 = vmatprep.subr.bf16.mxu0 0
    %7368 = vmatpush1.bf16.msra.mxu0 0
    %7369 = vmatprep.mubr.bf16.mxu0 0
    %7370 = vmatmul.mubr.bf16.gmra.mrb[0].mxu0 %v7335
    %v7371 = vpop.f32.mrb[0].mxu0
    %v7372 = vadd.f32 0.0, %v7371
    %v7373 = vpop.f32.mrb[0].mxu0
    %v7374 = vpop.f32.mrb[0].mxu0
    %v7375 = vpop.f32.mrb[0].mxu0
    %7376 = vdwg.mxu0
    %v7377 = vpack.c.bf16 %v7372, %v7372
    %s7378 = scalar_lea.vmem %s10, 96
    %v7379 = vld [vmem:[%s7378] sm:$0xf]
    %v7380 = vld [vmem:[%s7378 + $0x4] sm:$0xf]
    %v7381 = vld [vmem:[%s7378 + $0x8] sm:$0xf]
    %v7382 = vld [vmem:[%s7378 + $0xc] sm:$0xf]
    %v7383 = vld [vmem:[%s7378 + $0x10] sm:$0xf]
    %v7384 = vld [vmem:[%s7378 + $0x14] sm:$0xf]
    %v7385 = vld [vmem:[%s7378 + $0x18] sm:$0xf]
    %v7386 = vld [vmem:[%s7378 + $0x1c] sm:$0xf]
    %v7395 = vunpack.c.l.b16 %v7379
    %v7396 = vunpack.c.l.b16 %v7380
    %v7397 = vunpack.c.l.b16 %v7381
    %v7398 = vunpack.c.l.b16 %v7382
    %v7399 = vunpack.c.l.b16 %v7383
    %v7400 = vunpack.c.l.b16 %v7384
    %v7401 = vunpack.c.l.b16 %v7385
    %v7402 = vunpack.c.l.b16 %v7386
    %v7403 = vpack.c.b16 %v7396, %v7395
    %v7404 = vpack.c.b16 %v7398, %v7397
    %v7405 = vpack.c.b16 %v7400, %v7399
    %v7406 = vpack.c.b16 %v7402, %v7401
    %v7412 = vsel %vm7098, %v7377, 0
    %7414 = vmatprep.subr.bf16.mxu0 0
    %7415 = vmatpush1.bf16.msra.mxu0 %v7403
    %7416 = vmatprep.subr.bf16.mxu0 0
    %7417 = vmatpush1.bf16.msra.mxu0 %v7404
    %7418 = vmatprep.subr.bf16.mxu0 0
    %7419 = vmatpush1.bf16.msra.mxu0 %v7405
    %7420 = vmatprep.subr.bf16.mxu0 0
    %7421 = vmatpush1.bf16.msra.mxu0 %v7406
    %7422 = vmatprep.subr.bf16.mxu0 0
    %7423 = vmatpush1.bf16.msra.mxu0 0
    %7424 = vmatprep.subr.bf16.mxu0 0
    %7425 = vmatpush1.bf16.msra.mxu0 0
    %7426 = vmatprep.subr.bf16.mxu0 0
    %7427 = vmatpush1.bf16.msra.mxu0 0
    %7428 = vmatprep.subr.bf16.mxu0 0
    %7429 = vmatpush1.bf16.msra.mxu0 0
    %7430 = vmatprep.subr.bf16.mxu0 0
    %7431 = vmatpush1.bf16.msra.mxu0 0
    %7432 = vmatprep.subr.bf16.mxu0 0
    %7433 = vmatpush1.bf16.msra.mxu0 0
    %7434 = vmatprep.subr.bf16.mxu0 0
    %7435 = vmatpush1.bf16.msra.mxu0 0
    %7436 = vmatprep.subr.bf16.mxu0 0
    %7437 = vmatpush1.bf16.msra.mxu0 0
    %7438 = vmatprep.subr.bf16.mxu0 0
    %7439 = vmatpush1.bf16.msra.mxu0 0
    %7440 = vmatprep.subr.bf16.mxu0 0
    %7441 = vmatpush1.bf16.msra.mxu0 0
    %7442 = vmatprep.subr.bf16.mxu0 0
    %7443 = vmatpush1.bf16.msra.mxu0 0
    %7444 = vmatprep.subr.bf16.mxu0 0
    %7445 = vmatpush1.bf16.msra.mxu0 0
    %7446 = vmatprep.mubr.bf16.mxu0 0
    %7447 = vmatmul.mubr.bf16.gmra.mrb[0].mxu0 %v7412
    %v7448 = vpop.f32.mrb[0].mxu0
    %v7449 = vadd.f32 0.0, %v7448
    %v7450 = vpop.f32.mrb[0].mxu0
    %v7451 = vpop.f32.mrb[0].mxu0
    %v7452 = vpop.f32.mrb[0].mxu0
    %7453 = vdwg.mxu0
    %v7454 = vadd.f32 %v7331, %v7449
    %s7455 = scalar_lea.vmem %s9, 16
    %v7456 = vld [vmem:[%s7455] sm:$0xf]
    %v7458 = vsel %vm5818, %v7456, 0
    %7460 = vmatprep.subr.bf16.mxu0 0
    %7461 = vmatpush1.bf16.msra.mxu0 %v6964
    %7462 = vmatprep.subr.bf16.mxu0 0
    %7463 = vmatpush1.bf16.msra.mxu0 %v6965
    %7464 = vmatprep.subr.bf16.mxu0 0
    %7465 = vmatpush1.bf16.msra.mxu0 0
    %7466 = vmatprep.subr.bf16.mxu0 0
    %7467 = vmatpush1.bf16.msra.mxu0 0
    %7468 = vmatprep.subr.bf16.mxu0 0
    %7469 = vmatpush1.bf16.msra.mxu0 0
    %7470 = vmatprep.subr.bf16.mxu0 0
    %7471 = vmatpush1.bf16.msra.mxu0 0
    %7472 = vmatprep.subr.bf16.mxu0 0
    %7473 = vmatpush1.bf16.msra.mxu0 0
    %7474 = vmatprep.subr.bf16.mxu0 0
    %7475 = vmatpush1.bf16.msra.mxu0 0
    %7476 = vmatprep.subr.bf16.mxu0 0
    %7477 = vmatpush1.bf16.msra.mxu0 0
    %7478 = vmatprep.subr.bf16.mxu0 0
    %7479 = vmatpush1.bf16.msra.mxu0 0
    %7480 = vmatprep.subr.bf16.mxu0 0
    %7481 = vmatpush1.bf16.msra.mxu0 0
    %7482 = vmatprep.subr.bf16.mxu0 0
    %7483 = vmatpush1.bf16.msra.mxu0 0
    %7484 = vmatprep.subr.bf16.mxu0 0
    %7485 = vmatpush1.bf16.msra.mxu0 0
    %7486 = vmatprep.subr.bf16.mxu0 0
    %7487 = vmatpush1.bf16.msra.mxu0 0
    %7488 = vmatprep.subr.bf16.mxu0 0
    %7489 = vmatpush1.bf16.msra.mxu0 0
    %7490 = vmatprep.subr.bf16.mxu0 0
    %7491 = vmatpush1.bf16.msra.mxu0 0
    %7492 = vmatprep.mubr.bf16.mxu0 0
    %7493 = vmatmul.mubr.bf16.gmra.mrb[0].mxu0 %v7458
    %v7494 = vpop.f32.mrb[0].mxu0
    %v7495 = vadd.f32 0.0, %v7494
    %v7496 = vpop.f32.mrb[0].mxu0
    %v7497 = vpop.f32.mrb[0].mxu0
    %v7498 = vpop.f32.mrb[0].mxu0
    %7499 = vdwg.mxu0
    %v7500 = vpack.c.bf16 %v7495, %v7495
    %s7501 = scalar_lea.vmem %s10, 128
    %v7502 = vld [vmem:[%s7501] sm:$0xf]
    %v7503 = vld [vmem:[%s7501 + $0x4] sm:$0xf]
    %v7504 = vld [vmem:[%s7501 + $0x8] sm:$0xf]
    %v7505 = vld [vmem:[%s7501 + $0xc] sm:$0xf]
    %v7506 = vld [vmem:[%s7501 + $0x10] sm:$0xf]
    %v7507 = vld [vmem:[%s7501 + $0x14] sm:$0xf]
    %v7508 = vld [vmem:[%s7501 + $0x18] sm:$0xf]
    %v7509 = vld [vmem:[%s7501 + $0x1c] sm:$0xf]
    %v7518 = vunpack.c.l.b16 %v7502
    %v7519 = vunpack.c.l.b16 %v7503
    %v7520 = vunpack.c.l.b16 %v7504
    %v7521 = vunpack.c.l.b16 %v7505
    %v7522 = vunpack.c.l.b16 %v7506
    %v7523 = vunpack.c.l.b16 %v7507
    %v7524 = vunpack.c.l.b16 %v7508
    %v7525 = vunpack.c.l.b16 %v7509
    %v7526 = vpack.c.b16 %v7519, %v7518
    %v7527 = vpack.c.b16 %v7521, %v7520
    %v7528 = vpack.c.b16 %v7523, %v7522
    %v7529 = vpack.c.b16 %v7525, %v7524
    %v7535 = vsel %vm7098, %v7500, 0
    %7537 = vmatprep.subr.bf16.mxu0 0
    %7538 = vmatpush1.bf16.msra.mxu0 %v7526
    %7539 = vmatprep.subr.bf16.mxu0 0
    %7540 = vmatpush1.bf16.msra.mxu0 %v7527
    %7541 = vmatprep.subr.bf16.mxu0 0
    %7542 = vmatpush1.bf16.msra.mxu0 %v7528
    %7543 = vmatprep.subr.bf16.mxu0 0
    %7544 = vmatpush1.bf16.msra.mxu0 %v7529
    %7545 = vmatprep.subr.bf16.mxu0 0
    %7546 = vmatpush1.bf16.msra.mxu0 0
    %7547 = vmatprep.subr.bf16.mxu0 0
    %7548 = vmatpush1.bf16.msra.mxu0 0
    %7549 = vmatprep.subr.bf16.mxu0 0
    %7550 = vmatpush1.bf16.msra.mxu0 0
    %7551 = vmatprep.subr.bf16.mxu0 0
    %7552 = vmatpush1.bf16.msra.mxu0 0
    %7553 = vmatprep.subr.bf16.mxu0 0
    %7554 = vmatpush1.bf16.msra.mxu0 0
    %7555 = vmatprep.subr.bf16.mxu0 0
    %7556 = vmatpush1.bf16.msra.mxu0 0
    %7557 = vmatprep.subr.bf16.mxu0 0
    %7558 = vmatpush1.bf16.msra.mxu0 0
    %7559 = vmatprep.subr.bf16.mxu0 0
    %7560 = vmatpush1.bf16.msra.mxu0 0
    %7561 = vmatprep.subr.bf16.mxu0 0
    %7562 = vmatpush1.bf16.msra.mxu0 0
    %7563 = vmatprep.subr.bf16.mxu0 0
    %7564 = vmatpush1.bf16.msra.mxu0 0
    %7565 = vmatprep.subr.bf16.mxu0 0
    %7566 = vmatpush1.bf16.msra.mxu0 0
    %7567 = vmatprep.subr.bf16.mxu0 0
    %7568 = vmatpush1.bf16.msra.mxu0 0
    %7569 = vmatprep.mubr.bf16.mxu0 0
    %7570 = vmatmul.mubr.bf16.gmra.mrb[0].mxu0 %v7535
    %v7571 = vpop.f32.mrb[0].mxu0
    %v7572 = vadd.f32 0.0, %v7571
    %v7573 = vpop.f32.mrb[0].mxu0
    %v7574 = vpop.f32.mrb[0].mxu0
    %v7575 = vpop.f32.mrb[0].mxu0
    %7576 = vdwg.mxu0
    %v7577 = vadd.f32 %v7454, %v7572
    %s7578 = scalar_lea.vmem %s9, 20
    %v7579 = vld [vmem:[%s7578] sm:$0xf]
    %v7581 = vsel %vm5818, %v7579, 0
    %7583 = vmatprep.subr.bf16.mxu0 0
    %7584 = vmatpush1.bf16.msra.mxu0 %v6964
    %7585 = vmatprep.subr.bf16.mxu0 0
    %7586 = vmatpush1.bf16.msra.mxu0 %v6965
    %7587 = vmatprep.subr.bf16.mxu0 0
    %7588 = vmatpush1.bf16.msra.mxu0 0
    %7589 = vmatprep.subr.bf16.mxu0 0
    %7590 = vmatpush1.bf16.msra.mxu0 0
    %7591 = vmatprep.subr.bf16.mxu0 0
    %7592 = vmatpush1.bf16.msra.mxu0 0
    %7593 = vmatprep.subr.bf16.mxu0 0
    %7594 = vmatpush1.bf16.msra.mxu0 0
    %7595 = vmatprep.subr.bf16.mxu0 0
    %7596 = vmatpush1.bf16.msra.mxu0 0
    %7597 = vmatprep.subr.bf16.mxu0 0
    %7598 = vmatpush1.bf16.msra.mxu0 0
    %7599 = vmatprep.subr.bf16.mxu0 0
    %7600 = vmatpush1.bf16.msra.mxu0 0
    %7601 = vmatprep.subr.bf16.mxu0 0
    %7602 = vmatpush1.bf16.msra.mxu0 0
    %7603 = vmatprep.subr.bf16.mxu0 0
    %7604 = vmatpush1.bf16.msra.mxu0 0
    %7605 = vmatprep.subr.bf16.mxu0 0
    %7606 = vmatpush1.bf16.msra.mxu0 0
    %7607 = vmatprep.subr.bf16.mxu0 0
    %7608 = vmatpush1.bf16.msra.mxu0 0
    %7609 = vmatprep.subr.bf16.mxu0 0
    %7610 = vmatpush1.bf16.msra.mxu0 0
    %7611 = vmatprep.subr.bf16.mxu0 0
    %7612 = vmatpush1.bf16.msra.mxu0 0
    %7613 = vmatprep.subr.bf16.mxu0 0
    %7614 = vmatpush1.bf16.msra.mxu0 0
    %7615 = vmatprep.mubr.bf16.mxu0 0
    %7616 = vmatmul.mubr.bf16.gmra.mrb[0].mxu0 %v7581
    %v7617 = vpop.f32.mrb[0].mxu0
    %v7618 = vadd.f32 0.0, %v7617
    %v7619 = vpop.f32.mrb[0].mxu0
    %v7620 = vpop.f32.mrb[0].mxu0
    %v7621 = vpop.f32.mrb[0].mxu0
    %7622 = vdwg.mxu0
    %v7623 = vpack.c.bf16 %v7618, %v7618
    %s7624 = scalar_lea.vmem %s10, 160
    %v7625 = vld [vmem:[%s7624] sm:$0xf]
    %v7626 = vld [vmem:[%s7624 + $0x4] sm:$0xf]
    %v7627 = vld [vmem:[%s7624 + $0x8] sm:$0xf]
    %v7628 = vld [vmem:[%s7624 + $0xc] sm:$0xf]
    %v7629 = vld [vmem:[%s7624 + $0x10] sm:$0xf]
    %v7630 = vld [vmem:[%s7624 + $0x14] sm:$0xf]
    %v7631 = vld [vmem:[%s7624 + $0x18] sm:$0xf]
    %v7632 = vld [vmem:[%s7624 + $0x1c] sm:$0xf]
    %v7641 = vunpack.c.l.b16 %v7625
    %v7642 = vunpack.c.l.b16 %v7626
    %v7643 = vunpack.c.l.b16 %v7627
    %v7644 = vunpack.c.l.b16 %v7628
    %v7645 = vunpack.c.l.b16 %v7629
    %v7646 = vunpack.c.l.b16 %v7630
    %v7647 = vunpack.c.l.b16 %v7631
    %v7648 = vunpack.c.l.b16 %v7632
    %v7649 = vpack.c.b16 %v7642, %v7641
    %v7650 = vpack.c.b16 %v7644, %v7643
    %v7651 = vpack.c.b16 %v7646, %v7645
    %v7652 = vpack.c.b16 %v7648, %v7647
    %v7658 = vsel %vm7098, %v7623, 0
    %7660 = vmatprep.subr.bf16.mxu0 0
    %7661 = vmatpush1.bf16.msra.mxu0 %v7649
    %7662 = vmatprep.subr.bf16.mxu0 0
    %7663 = vmatpush1.bf16.msra.mxu0 %v7650
    %7664 = vmatprep.subr.bf16.mxu0 0
    %7665 = vmatpush1.bf16.msra.mxu0 %v7651
    %7666 = vmatprep.subr.bf16.mxu0 0
    %7667 = vmatpush1.bf16.msra.mxu0 %v7652
    %7668 = vmatprep.subr.bf16.mxu0 0
    %7669 = vmatpush1.bf16.msra.mxu0 0
    %7670 = vmatprep.subr.bf16.mxu0 0
    %7671 = vmatpush1.bf16.msra.mxu0 0
    %7672 = vmatprep.subr.bf16.mxu0 0
    %7673 = vmatpush1.bf16.msra.mxu0 0
    %7674 = vmatprep.subr.bf16.mxu0 0
    %7675 = vmatpush1.bf16.msra.mxu0 0
    %7676 = vmatprep.subr.bf16.mxu0 0
    %7677 = vmatpush1.bf16.msra.mxu0 0
    %7678 = vmatprep.subr.bf16.mxu0 0
    %7679 = vmatpush1.bf16.msra.mxu0 0
    %7680 = vmatprep.subr.bf16.mxu0 0
    %7681 = vmatpush1.bf16.msra.mxu0 0
    %7682 = vmatprep.subr.bf16.mxu0 0
    %7683 = vmatpush1.bf16.msra.mxu0 0
    %7684 = vmatprep.subr.bf16.mxu0 0
    %7685 = vmatpush1.bf16.msra.mxu0 0
    %7686 = vmatprep.subr.bf16.mxu0 0
    %7687 = vmatpush1.bf16.msra.mxu0 0
    %7688 = vmatprep.subr.bf16.mxu0 0
    %7689 = vmatpush1.bf16.msra.mxu0 0
    %7690 = vmatprep.subr.bf16.mxu0 0
    %7691 = vmatpush1.bf16.msra.mxu0 0
    %7692 = vmatprep.mubr.bf16.mxu0 0
    %7693 = vmatmul.mubr.bf16.gmra.mrb[0].mxu0 %v7658
    %v7694 = vpop.f32.mrb[0].mxu0
    %v7695 = vadd.f32 0.0, %v7694
    %v7696 = vpop.f32.mrb[0].mxu0
    %v7697 = vpop.f32.mrb[0].mxu0
    %v7698 = vpop.f32.mrb[0].mxu0
    %7699 = vdwg.mxu0
    %v7700 = vadd.f32 %v7577, %v7695
    %s7701 = scalar_lea.vmem %s9, 24
    %v7702 = vld [vmem:[%s7701] sm:$0xf]
    %v7704 = vsel %vm5818, %v7702, 0
    %7706 = vmatprep.subr.bf16.mxu0 0
    %7707 = vmatpush1.bf16.msra.mxu0 %v6964
    %7708 = vmatprep.subr.bf16.mxu0 0
    %7709 = vmatpush1.bf16.msra.mxu0 %v6965
    %7710 = vmatprep.subr.bf16.mxu0 0
    %7711 = vmatpush1.bf16.msra.mxu0 0
    %7712 = vmatprep.subr.bf16.mxu0 0
    %7713 = vmatpush1.bf16.msra.mxu0 0
    %7714 = vmatprep.subr.bf16.mxu0 0
    %7715 = vmatpush1.bf16.msra.mxu0 0
    %7716 = vmatprep.subr.bf16.mxu0 0
    %7717 = vmatpush1.bf16.msra.mxu0 0
    %7718 = vmatprep.subr.bf16.mxu0 0
    %7719 = vmatpush1.bf16.msra.mxu0 0
    %7720 = vmatprep.subr.bf16.mxu0 0
    %7721 = vmatpush1.bf16.msra.mxu0 0
    %7722 = vmatprep.subr.bf16.mxu0 0
    %7723 = vmatpush1.bf16.msra.mxu0 0
    %7724 = vmatprep.subr.bf16.mxu0 0
    %7725 = vmatpush1.bf16.msra.mxu0 0
    %7726 = vmatprep.subr.bf16.mxu0 0
    %7727 = vmatpush1.bf16.msra.mxu0 0
    %7728 = vmatprep.subr.bf16.mxu0 0
    %7729 = vmatpush1.bf16.msra.mxu0 0
    %7730 = vmatprep.subr.bf16.mxu0 0
    %7731 = vmatpush1.bf16.msra.mxu0 0
    %7732 = vmatprep.subr.bf16.mxu0 0
    %7733 = vmatpush1.bf16.msra.mxu0 0
    %7734 = vmatprep.subr.bf16.mxu0 0
    %7735 = vmatpush1.bf16.msra.mxu0 0
    %7736 = vmatprep.subr.bf16.mxu0 0
    %7737 = vmatpush1.bf16.msra.mxu0 0
    %7738 = vmatprep.mubr.bf16.mxu0 0
    %7739 = vmatmul.mubr.bf16.gmra.mrb[0].mxu0 %v7704
    %v7740 = vpop.f32.mrb[0].mxu0
    %v7741 = vadd.f32 0.0, %v7740
    %v7742 = vpop.f32.mrb[0].mxu0
    %v7743 = vpop.f32.mrb[0].mxu0
    %v7744 = vpop.f32.mrb[0].mxu0
    %7745 = vdwg.mxu0
    %v7746 = vpack.c.bf16 %v7741, %v7741
    %s7747 = scalar_lea.vmem %s10, 192
    %v7748 = vld [vmem:[%s7747] sm:$0xf]
    %v7749 = vld [vmem:[%s7747 + $0x4] sm:$0xf]
    %v7750 = vld [vmem:[%s7747 + $0x8] sm:$0xf]
    %v7751 = vld [vmem:[%s7747 + $0xc] sm:$0xf]
    %v7752 = vld [vmem:[%s7747 + $0x10] sm:$0xf]
    %v7753 = vld [vmem:[%s7747 + $0x14] sm:$0xf]
    %v7754 = vld [vmem:[%s7747 + $0x18] sm:$0xf]
    %v7755 = vld [vmem:[%s7747 + $0x1c] sm:$0xf]
    %v7764 = vunpack.c.l.b16 %v7748
    %v7765 = vunpack.c.l.b16 %v7749
    %v7766 = vunpack.c.l.b16 %v7750
    %v7767 = vunpack.c.l.b16 %v7751
    %v7768 = vunpack.c.l.b16 %v7752
    %v7769 = vunpack.c.l.b16 %v7753
    %v7770 = vunpack.c.l.b16 %v7754
    %v7771 = vunpack.c.l.b16 %v7755
    %v7772 = vpack.c.b16 %v7765, %v7764
    %v7773 = vpack.c.b16 %v7767, %v7766
    %v7774 = vpack.c.b16 %v7769, %v7768
    %v7775 = vpack.c.b16 %v7771, %v7770
    %v7781 = vsel %vm7098, %v7746, 0
    %7783 = vmatprep.subr.bf16.mxu0 0
    %7784 = vmatpush1.bf16.msra.mxu0 %v7772
    %7785 = vmatprep.subr.bf16.mxu0 0
    %7786 = vmatpush1.bf16.msra.mxu0 %v7773
    %7787 = vmatprep.subr.bf16.mxu0 0
    %7788 = vmatpush1.bf16.msra.mxu0 %v7774
    %7789 = vmatprep.subr.bf16.mxu0 0
    %7790 = vmatpush1.bf16.msra.mxu0 %v7775
    %7791 = vmatprep.subr.bf16.mxu0 0
    %7792 = vmatpush1.bf16.msra.mxu0 0
    %7793 = vmatprep.subr.bf16.mxu0 0
    %7794 = vmatpush1.bf16.msra.mxu0 0
    %7795 = vmatprep.subr.bf16.mxu0 0
    %7796 = vmatpush1.bf16.msra.mxu0 0
    %7797 = vmatprep.subr.bf16.mxu0 0
    %7798 = vmatpush1.bf16.msra.mxu0 0
    %7799 = vmatprep.subr.bf16.mxu0 0
    %7800 = vmatpush1.bf16.msra.mxu0 0
    %7801 = vmatprep.subr.bf16.mxu0 0
    %7802 = vmatpush1.bf16.msra.mxu0 0
    %7803 = vmatprep.subr.bf16.mxu0 0
    %7804 = vmatpush1.bf16.msra.mxu0 0
    %7805 = vmatprep.subr.bf16.mxu0 0
    %7806 = vmatpush1.bf16.msra.mxu0 0
    %7807 = vmatprep.subr.bf16.mxu0 0
    %7808 = vmatpush1.bf16.msra.mxu0 0
    %7809 = vmatprep.subr.bf16.mxu0 0
    %7810 = vmatpush1.bf16.msra.mxu0 0
    %7811 = vmatprep.subr.bf16.mxu0 0
    %7812 = vmatpush1.bf16.msra.mxu0 0
    %7813 = vmatprep.subr.bf16.mxu0 0
    %7814 = vmatpush1.bf16.msra.mxu0 0
    %7815 = vmatprep.mubr.bf16.mxu0 0
    %7816 = vmatmul.mubr.bf16.gmra.mrb[0].mxu0 %v7781
    %v7817 = vpop.f32.mrb[0].mxu0
    %v7818 = vadd.f32 0.0, %v7817
    %v7819 = vpop.f32.mrb[0].mxu0
    %v7820 = vpop.f32.mrb[0].mxu0
    %v7821 = vpop.f32.mrb[0].mxu0
    %7822 = vdwg.mxu0
    %v7823 = vadd.f32 %v7700, %v7818
    %s7824 = scalar_lea.vmem %s9, 28
    %v7825 = vld [vmem:[%s7824] sm:$0xf]
    %v7827 = vsel %vm5818, %v7825, 0
    %7829 = vmatprep.subr.bf16.mxu0 0
    %7830 = vmatpush1.bf16.msra.mxu0 %v6964
    %7831 = vmatprep.subr.bf16.mxu0 0
    %7832 = vmatpush1.bf16.msra.mxu0 %v6965
    %7833 = vmatprep.subr.bf16.mxu0 0
    %7834 = vmatpush1.bf16.msra.mxu0 0
    %7835 = vmatprep.subr.bf16.mxu0 0
    %7836 = vmatpush1.bf16.msra.mxu0 0
    %7837 = vmatprep.subr.bf16.mxu0 0
    %7838 = vmatpush1.bf16.msra.mxu0 0
    %7839 = vmatprep.subr.bf16.mxu0 0
    %7840 = vmatpush1.bf16.msra.mxu0 0
    %7841 = vmatprep.subr.bf16.mxu0 0
    %7842 = vmatpush1.bf16.msra.mxu0 0
    %7843 = vmatprep.subr.bf16.mxu0 0
    %7844 = vmatpush1.bf16.msra.mxu0 0
    %7845 = vmatprep.subr.bf16.mxu0 0
    %7846 = vmatpush1.bf16.msra.mxu0 0
    %7847 = vmatprep.subr.bf16.mxu0 0
    %7848 = vmatpush1.bf16.msra.mxu0 0
    %7849 = vmatprep.subr.bf16.mxu0 0
    %7850 = vmatpush1.bf16.msra.mxu0 0
    %7851 = vmatprep.subr.bf16.mxu0 0
    %7852 = vmatpush1.bf16.msra.mxu0 0
    %7853 = vmatprep.subr.bf16.mxu0 0
    %7854 = vmatpush1.bf16.msra.mxu0 0
    %7855 = vmatprep.subr.bf16.mxu0 0
    %7856 = vmatpush1.bf16.msra.mxu0 0
    %7857 = vmatprep.subr.bf16.mxu0 0
    %7858 = vmatpush1.bf16.msra.mxu0 0
    %7859 = vmatprep.subr.bf16.mxu0 0
    %7860 = vmatpush1.bf16.msra.mxu0 0
    %7861 = vmatprep.mubr.bf16.mxu0 0
    %7862 = vmatmul.mubr.bf16.gmra.mrb[0].mxu0 %v7827
    %v7863 = vpop.f32.mrb[0].mxu0
    %v7864 = vadd.f32 0.0, %v7863
    %v7865 = vpop.f32.mrb[0].mxu0
    %v7866 = vpop.f32.mrb[0].mxu0
    %v7867 = vpop.f32.mrb[0].mxu0
    %7868 = vdwg.mxu0
    %v7869 = vpack.c.bf16 %v7864, %v7864
    %s7870 = scalar_lea.vmem %s10, 224
    %v7871 = vld [vmem:[%s7870] sm:$0xf]
    %v7872 = vld [vmem:[%s7870 + $0x4] sm:$0xf]
    %v7873 = vld [vmem:[%s7870 + $0x8] sm:$0xf]
    %v7874 = vld [vmem:[%s7870 + $0xc] sm:$0xf]
    %v7875 = vld [vmem:[%s7870 + $0x10] sm:$0xf]
    %v7876 = vld [vmem:[%s7870 + $0x14] sm:$0xf]
    %v7877 = vld [vmem:[%s7870 + $0x18] sm:$0xf]
    %v7878 = vld [vmem:[%s7870 + $0x1c] sm:$0xf]
    %v7887 = vunpack.c.l.b16 %v7871
    %v7888 = vunpack.c.l.b16 %v7872
    %v7889 = vunpack.c.l.b16 %v7873
    %v7890 = vunpack.c.l.b16 %v7874
    %v7891 = vunpack.c.l.b16 %v7875
    %v7892 = vunpack.c.l.b16 %v7876
    %v7893 = vunpack.c.l.b16 %v7877
    %v7894 = vunpack.c.l.b16 %v7878
    %v7895 = vpack.c.b16 %v7888, %v7887
    %v7896 = vpack.c.b16 %v7890, %v7889
    %v7897 = vpack.c.b16 %v7892, %v7891
    %v7898 = vpack.c.b16 %v7894, %v7893
    %v7904 = vsel %vm7098, %v7869, 0
    %7906 = vmatprep.subr.bf16.mxu0 0
    %7907 = vmatpush1.bf16.msra.mxu0 %v7895
    %7908 = vmatprep.subr.bf16.mxu0 0
    %7909 = vmatpush1.bf16.msra.mxu0 %v7896
    %7910 = vmatprep.subr.bf16.mxu0 0
    %7911 = vmatpush1.bf16.msra.mxu0 %v7897
    %7912 = vmatprep.subr.bf16.mxu0 0
    %7913 = vmatpush1.bf16.msra.mxu0 %v7898
    %7914 = vmatprep.subr.bf16.mxu0 0
    %7915 = vmatpush1.bf16.msra.mxu0 0
    %7916 = vmatprep.subr.bf16.mxu0 0
    %7917 = vmatpush1.bf16.msra.mxu0 0
    %7918 = vmatprep.subr.bf16.mxu0 0
    %7919 = vmatpush1.bf16.msra.mxu0 0
    %7920 = vmatprep.subr.bf16.mxu0 0
    %7921 = vmatpush1.bf16.msra.mxu0 0
    %7922 = vmatprep.subr.bf16.mxu0 0
    %7923 = vmatpush1.bf16.msra.mxu0 0
    %7924 = vmatprep.subr.bf16.mxu0 0
    %7925 = vmatpush1.bf16.msra.mxu0 0
    %7926 = vmatprep.subr.bf16.mxu0 0
    %7927 = vmatpush1.bf16.msra.mxu0 0
    %7928 = vmatprep.subr.bf16.mxu0 0
    %7929 = vmatpush1.bf16.msra.mxu0 0
    %7930 = vmatprep.subr.bf16.mxu0 0
    %7931 = vmatpush1.bf16.msra.mxu0 0
    %7932 = vmatprep.subr.bf16.mxu0 0
    %7933 = vmatpush1.bf16.msra.mxu0 0
    %7934 = vmatprep.subr.bf16.mxu0 0
    %7935 = vmatpush1.bf16.msra.mxu0 0
    %7936 = vmatprep.subr.bf16.mxu0 0
    %7937 = vmatpush1.bf16.msra.mxu0 0
    %7938 = vmatprep.mubr.bf16.mxu0 0
    %7939 = vmatmul.mubr.bf16.gmra.mrb[0].mxu0 %v7904
    %v7940 = vpop.f32.mrb[0].mxu0
    %v7941 = vadd.f32 0.0, %v7940
    %v7942 = vpop.f32.mrb[0].mxu0
    %v7943 = vpop.f32.mrb[0].mxu0
    %v7944 = vpop.f32.mrb[0].mxu0
    %7945 = vdwg.mxu0
    %v7946 = vadd.f32 %v7823, %v7941
    %s7947 = scalar_lea.vmem %s9, 32
    %v7948 = vld [vmem:[%s7947] sm:$0xf]
    %v7950 = vsel %vm5818, %v7948, 0
    %7952 = vmatprep.subr.bf16.mxu0 0
    %7953 = vmatpush1.bf16.msra.mxu0 %v6964
    %7954 = vmatprep.subr.bf16.mxu0 0
    %7955 = vmatpush1.bf16.msra.mxu0 %v6965
    %7956 = vmatprep.subr.bf16.mxu0 0
    %7957 = vmatpush1.bf16.msra.mxu0 0
    %7958 = vmatprep.subr.bf16.mxu0 0
    %7959 = vmatpush1.bf16.msra.mxu0 0
    %7960 = vmatprep.subr.bf16.mxu0 0
    %7961 = vmatpush1.bf16.msra.mxu0 0
    %7962 = vmatprep.subr.bf16.mxu0 0
    %7963 = vmatpush1.bf16.msra.mxu0 0
    %7964 = vmatprep.subr.bf16.mxu0 0
    %7965 = vmatpush1.bf16.msra.mxu0 0
    %7966 = vmatprep.subr.bf16.mxu0 0
    %7967 = vmatpush1.bf16.msra.mxu0 0
    %7968 = vmatprep.subr.bf16.mxu0 0
    %7969 = vmatpush1.bf16.msra.mxu0 0
    %7970 = vmatprep.subr.bf16.mxu0 0
    %7971 = vmatpush1.bf16.msra.mxu0 0
    %7972 = vmatprep.subr.bf16.mxu0 0
    %7973 = vmatpush1.bf16.msra.mxu0 0
    %7974 = vmatprep.subr.bf16.mxu0 0
    %7975 = vmatpush1.bf16.msra.mxu0 0
    %7976 = vmatprep.subr.bf16.mxu0 0
    %7977 = vmatpush1.bf16.msra.mxu0 0
    %7978 = vmatprep.subr.bf16.mxu0 0
    %7979 = vmatpush1.bf16.msra.mxu0 0
    %7980 = vmatprep.subr.bf16.mxu0 0
    %7981 = vmatpush1.bf16.msra.mxu0 0
    %7982 = vmatprep.subr.bf16.mxu0 0
    %7983 = vmatpush1.bf16.msra.mxu0 0
    %7984 = vmatprep.mubr.bf16.mxu0 0
    %7985 = vmatmul.mubr.bf16.gmra.mrb[0].mxu0 %v7950
    %v7986 = vpop.f32.mrb[0].mxu0
    %v7987 = vadd.f32 0.0, %v7986
    %v7988 = vpop.f32.mrb[0].mxu0
    %v7989 = vpop.f32.mrb[0].mxu0
    %v7990 = vpop.f32.mrb[0].mxu0
    %7991 = vdwg.mxu0
    %v7992 = vpack.c.bf16 %v7987, %v7987
    %s7993 = scalar_lea.vmem %s10, 256
    %v7994 = vld [vmem:[%s7993] sm:$0xf]
    %v7995 = vld [vmem:[%s7993 + $0x4] sm:$0xf]
    %v7996 = vld [vmem:[%s7993 + $0x8] sm:$0xf]
    %v7997 = vld [vmem:[%s7993 + $0xc] sm:$0xf]
    %v7998 = vld [vmem:[%s7993 + $0x10] sm:$0xf]
    %v7999 = vld [vmem:[%s7993 + $0x14] sm:$0xf]
    %v8000 = vld [vmem:[%s7993 + $0x18] sm:$0xf]
    %v8001 = vld [vmem:[%s7993 + $0x1c] sm:$0xf]
    %v8010 = vunpack.c.l.b16 %v7994
    %v8011 = vunpack.c.l.b16 %v7995
    %v8012 = vunpack.c.l.b16 %v7996
    %v8013 = vunpack.c.l.b16 %v7997
    %v8014 = vunpack.c.l.b16 %v7998
    %v8015 = vunpack.c.l.b16 %v7999
    %v8016 = vunpack.c.l.b16 %v8000
    %v8017 = vunpack.c.l.b16 %v8001
    %v8018 = vpack.c.b16 %v8011, %v8010
    %v8019 = vpack.c.b16 %v8013, %v8012
    %v8020 = vpack.c.b16 %v8015, %v8014
    %v8021 = vpack.c.b16 %v8017, %v8016
    %v8027 = vsel %vm7098, %v7992, 0
    %8029 = vmatprep.subr.bf16.mxu0 0
    %8030 = vmatpush1.bf16.msra.mxu0 %v8018
    %8031 = vmatprep.subr.bf16.mxu0 0
    %8032 = vmatpush1.bf16.msra.mxu0 %v8019
    %8033 = vmatprep.subr.bf16.mxu0 0
    %8034 = vmatpush1.bf16.msra.mxu0 %v8020
    %8035 = vmatprep.subr.bf16.mxu0 0
    %8036 = vmatpush1.bf16.msra.mxu0 %v8021
    %8037 = vmatprep.subr.bf16.mxu0 0
    %8038 = vmatpush1.bf16.msra.mxu0 0
    %8039 = vmatprep.subr.bf16.mxu0 0
    %8040 = vmatpush1.bf16.msra.mxu0 0
    %8041 = vmatprep.subr.bf16.mxu0 0
    %8042 = vmatpush1.bf16.msra.mxu0 0
    %8043 = vmatprep.subr.bf16.mxu0 0
    %8044 = vmatpush1.bf16.msra.mxu0 0
    %8045 = vmatprep.subr.bf16.mxu0 0
    %8046 = vmatpush1.bf16.msra.mxu0 0
    %8047 = vmatprep.subr.bf16.mxu0 0
    %8048 = vmatpush1.bf16.msra.mxu0 0
    %8049 = vmatprep.subr.bf16.mxu0 0
    %8050 = vmatpush1.bf16.msra.mxu0 0
    %8051 = vmatprep.subr.bf16.mxu0 0
    %8052 = vmatpush1.bf16.msra.mxu0 0
    %8053 = vmatprep.subr.bf16.mxu0 0
    %8054 = vmatpush1.bf16.msra.mxu0 0
    %8055 = vmatprep.subr.bf16.mxu0 0
    %8056 = vmatpush1.bf16.msra.mxu0 0
    %8057 = vmatprep.subr.bf16.mxu0 0
    %8058 = vmatpush1.bf16.msra.mxu0 0
    %8059 = vmatprep.subr.bf16.mxu0 0
    %8060 = vmatpush1.bf16.msra.mxu0 0
    %8061 = vmatprep.mubr.bf16.mxu0 0
    %8062 = vmatmul.mubr.bf16.gmra.mrb[0].mxu0 %v8027
    %v8063 = vpop.f32.mrb[0].mxu0
    %v8064 = vadd.f32 0.0, %v8063
    %v8065 = vpop.f32.mrb[0].mxu0
    %v8066 = vpop.f32.mrb[0].mxu0
    %v8067 = vpop.f32.mrb[0].mxu0
    %8068 = vdwg.mxu0
    %v8069 = vadd.f32 %v7946, %v8064
    %v8070 = vld [vmem:[%s11] sm:$0x1]
    %v8072 = vlaneseq
    %v8073 = vshrl.u32 %v8072, 7
    %v8074 = vsub.s32 0, %v8073
    %v8075 = vrot.slane %v8070, %v8074
    %v8077 = vadd.f32 %v8069, %v8075
    %v8078 = vmax.f32 %v8077, 0.0
    %v8079 = vpack.c.bf16 %v8078, %v8078
    %v8080 = vld [vmem:[%s12] sm:$0x1]
    %vm8081 = vcmask 64512
    %v8083 = vsel %vm8081, %v8080, 0
    %v8086 = vsel %vm387, %v8079, 0
    %8088 = vmatprep.subr.bf16.mxu0 0
    %8089 = vmatpush1.bf16.msra.mxu0 %v8086
    %8090 = vmatprep.subr.bf16.mxu0 0
    %8091 = vmatpush1.bf16.msra.mxu0 0
    %8092 = vmatprep.subr.bf16.mxu0 0
    %8093 = vmatpush1.bf16.msra.mxu0 0
    %8094 = vmatprep.subr.bf16.mxu0 0
    %8095 = vmatpush1.bf16.msra.mxu0 0
    %8096 = vmatprep.subr.bf16.mxu0 0
    %8097 = vmatpush1.bf16.msra.mxu0 0
    %8098 = vmatprep.subr.bf16.mxu0 0
    %8099 = vmatpush1.bf16.msra.mxu0 0
    %8100 = vmatprep.subr.bf16.mxu0 0
    %8101 = vmatpush1.bf16.msra.mxu0 0
    %8102 = vmatprep.subr.bf16.mxu0 0
    %8103 = vmatpush1.bf16.msra.mxu0 0
    %8104 = vmatprep.subr.bf16.mxu0 0
    %8105 = vmatpush1.bf16.msra.mxu0 0
    %8106 = vmatprep.subr.bf16.mxu0 0
    %8107 = vmatpush1.bf16.msra.mxu0 0
    %8108 = vmatprep.subr.bf16.mxu0 0
    %8109 = vmatpush1.bf16.msra.mxu0 0
    %8110 = vmatprep.subr.bf16.mxu0 0
    %8111 = vmatpush1.bf16.msra.mxu0 0
    %8112 = vmatprep.subr.bf16.mxu0 0
    %8113 = vmatpush1.bf16.msra.mxu0 0
    %8114 = vmatprep.subr.bf16.mxu0 0
    %8115 = vmatpush1.bf16.msra.mxu0 0
    %8116 = vmatprep.subr.bf16.mxu0 0
    %8117 = vmatpush1.bf16.msra.mxu0 0
    %8118 = vmatprep.subr.bf16.mxu0 0
    %8119 = vmatpush1.bf16.msra.mxu0 0
    %8120 = vmatprep.mubr.bf16.mxu0 0
    %8121 = vmatmul.mubr.bf16.gmra.mrb[0].mxu0 %v8083
    %v8122 = vpop.f32.mrb[0].mxu0
    %v8123 = vadd.f32 0.0, %v8122
    %v8124 = vpop.f32.mrb[0].mxu0
    %v8125 = vpop.f32.mrb[0].mxu0
    %v8126 = vpop.f32.mrb[0].mxu0
    %8127 = vdwg.mxu0
    %v8128 = vpack.c.bf16 %v8123, %v8123
    %v8129 = vld [vmem:[%s13] sm:$0xf]
    %v8130 = vld [vmem:[%s13 + $0x4] sm:$0xf]
    %v8131 = vld [vmem:[%s13 + $0x8] sm:$0xf]
    %v8132 = vld [vmem:[%s13 + $0xc] sm:$0xf]
    %v8133 = vld [vmem:[%s13 + $0x10] sm:$0xf]
    %v8134 = vld [vmem:[%s13 + $0x14] sm:$0xf]
    %v8135 = vld [vmem:[%s13 + $0x18] sm:$0xf]
    %v8136 = vld [vmem:[%s13 + $0x1c] sm:$0xf]
    %v8137 = vld [vmem:[%s13 + $0x20] sm:$0xf]
    %v8138 = vld [vmem:[%s13 + $0x24] sm:$0xf]
    %v8139 = vld [vmem:[%s13 + $0x28] sm:$0xf]
    %v8140 = vld [vmem:[%s13 + $0x2c] sm:$0xf]
    %v8141 = vld [vmem:[%s13 + $0x30] sm:$0xf]
    %v8142 = vld [vmem:[%s13 + $0x34] sm:$0xf]
    %v8143 = vld [vmem:[%s13 + $0x38] sm:$0xf]
    %v8144 = vld [vmem:[%s13 + $0x3c] sm:$0xf]
    %s8145 = scalar_lea.vmem %s12, 1
    %v8146 = vld [vmem:[%s8145] sm:$0x1]
    %v8148 = vsel %vm8081, %v8146, 0
    %8150 = vmatprep.subr.bf16.mxu0 0
    %8151 = vmatpush1.bf16.msra.mxu0 %v8086
    %8152 = vmatprep.subr.bf16.mxu0 0
    %8153 = vmatpush1.bf16.msra.mxu0 0
    %8154 = vmatprep.subr.bf16.mxu0 0
    %8155 = vmatpush1.bf16.msra.mxu0 0
    %8156 = vmatprep.subr.bf16.mxu0 0
    %8157 = vmatpush1.bf16.msra.mxu0 0
    %8158 = vmatprep.subr.bf16.mxu0 0
    %8159 = vmatpush1.bf16.msra.mxu0 0
    %8160 = vmatprep.subr.bf16.mxu0 0
    %8161 = vmatpush1.bf16.msra.mxu0 0
    %8162 = vmatprep.subr.bf16.mxu0 0
    %8163 = vmatpush1.bf16.msra.mxu0 0
    %8164 = vmatprep.subr.bf16.mxu0 0
    %8165 = vmatpush1.bf16.msra.mxu0 0
    %8166 = vmatprep.subr.bf16.mxu0 0
    %8167 = vmatpush1.bf16.msra.mxu0 0
    %8168 = vmatprep.subr.bf16.mxu0 0
    %8169 = vmatpush1.bf16.msra.mxu0 0
    %8170 = vmatprep.subr.bf16.mxu0 0
    %8171 = vmatpush1.bf16.msra.mxu0 0
    %8172 = vmatprep.subr.bf16.mxu0 0
    %8173 = vmatpush1.bf16.msra.mxu0 0
    %8174 = vmatprep.subr.bf16.mxu0 0
    %8175 = vmatpush1.bf16.msra.mxu0 0
    %8176 = vmatprep.subr.bf16.mxu0 0
    %8177 = vmatpush1.bf16.msra.mxu0 0
    %8178 = vmatprep.subr.bf16.mxu0 0
    %8179 = vmatpush1.bf16.msra.mxu0 0
    %8180 = vmatprep.subr.bf16.mxu0 0
    %8181 = vmatpush1.bf16.msra.mxu0 0
    %8182 = vmatprep.mubr.bf16.mxu0 0
    %8183 = vmatmul.mubr.bf16.gmra.mrb[0].mxu0 %v8148
    %v8184 = vpop.f32.mrb[0].mxu0
    %v8185 = vadd.f32 0.0, %v8184
    %v8186 = vpop.f32.mrb[0].mxu0
    %v8187 = vpop.f32.mrb[0].mxu0
    %v8188 = vpop.f32.mrb[0].mxu0
    %8189 = vdwg.mxu0
    %v8190 = vpack.c.bf16 %v8185, %v8185
    %s8191 = scalar_lea.vmem %s13, 64
    %v8192 = vld [vmem:[%s8191] sm:$0xf]
    %v8193 = vld [vmem:[%s8191 + $0x4] sm:$0xf]
    %v8194 = vld [vmem:[%s8191 + $0x8] sm:$0xf]
    %v8195 = vld [vmem:[%s8191 + $0xc] sm:$0xf]
    %v8196 = vld [vmem:[%s8191 + $0x10] sm:$0xf]
    %v8197 = vld [vmem:[%s8191 + $0x14] sm:$0xf]
    %v8198 = vld [vmem:[%s8191 + $0x18] sm:$0xf]
    %v8199 = vld [vmem:[%s8191 + $0x1c] sm:$0xf]
    %v8200 = vld [vmem:[%s8191 + $0x20] sm:$0xf]
    %v8201 = vld [vmem:[%s8191 + $0x24] sm:$0xf]
    %v8202 = vld [vmem:[%s8191 + $0x28] sm:$0xf]
    %v8203 = vld [vmem:[%s8191 + $0x2c] sm:$0xf]
    %v8204 = vld [vmem:[%s8191 + $0x30] sm:$0xf]
    %v8205 = vld [vmem:[%s8191 + $0x34] sm:$0xf]
    %v8206 = vld [vmem:[%s8191 + $0x38] sm:$0xf]
    %v8207 = vld [vmem:[%s8191 + $0x3c] sm:$0xf]
    %v8224 = vunpack.c.l.b16 %v8192
    %v8225 = vunpack.c.l.b16 %v8193
    %v8226 = vunpack.c.l.b16 %v8194
    %v8227 = vunpack.c.l.b16 %v8195
    %v8228 = vunpack.c.l.b16 %v8196
    %v8229 = vunpack.c.l.b16 %v8197
    %v8230 = vunpack.c.l.b16 %v8198
    %v8231 = vunpack.c.l.b16 %v8199
    %v8232 = vunpack.c.l.b16 %v8200
    %v8233 = vunpack.c.l.b16 %v8201
    %v8234 = vunpack.c.l.b16 %v8202
    %v8235 = vunpack.c.l.b16 %v8203
    %v8236 = vunpack.c.l.b16 %v8204
    %v8237 = vunpack.c.l.b16 %v8205
    %v8238 = vunpack.c.l.b16 %v8206
    %v8239 = vunpack.c.l.b16 %v8207
    %v8240 = vpack.c.b16 %v8225, %v8224
    %v8241 = vpack.c.b16 %v8227, %v8226
    %v8242 = vpack.c.b16 %v8229, %v8228
    %v8243 = vpack.c.b16 %v8231, %v8230
    %v8244 = vpack.c.b16 %v8233, %v8232
    %v8245 = vpack.c.b16 %v8235, %v8234
    %v8246 = vpack.c.b16 %v8237, %v8236
    %v8247 = vpack.c.b16 %v8239, %v8238
    %8256 = vmatprep.subr.bf16.mxu0 0
    %8257 = vmatpush1.bf16.msra.mxu0 %v8240
    %8258 = vmatprep.subr.bf16.mxu0 0
    %8259 = vmatpush1.bf16.msra.mxu0 %v8241
    %8260 = vmatprep.subr.bf16.mxu0 0
    %8261 = vmatpush1.bf16.msra.mxu0 %v8242
    %8262 = vmatprep.subr.bf16.mxu0 0
    %8263 = vmatpush1.bf16.msra.mxu0 %v8243
    %8264 = vmatprep.subr.bf16.mxu0 0
    %8265 = vmatpush1.bf16.msra.mxu0 %v8244
    %8266 = vmatprep.subr.bf16.mxu0 0
    %8267 = vmatpush1.bf16.msra.mxu0 %v8245
    %8268 = vmatprep.subr.bf16.mxu0 0
    %8269 = vmatpush1.bf16.msra.mxu0 %v8246
    %8270 = vmatprep.subr.bf16.mxu0 0
    %8271 = vmatpush1.bf16.msra.mxu0 %v8247
    %8272 = vmatprep.subr.bf16.mxu0 0
    %8273 = vmatpush1.bf16.msra.mxu0 0
    %8274 = vmatprep.subr.bf16.mxu0 0
    %8275 = vmatpush1.bf16.msra.mxu0 0
    %8276 = vmatprep.subr.bf16.mxu0 0
    %8277 = vmatpush1.bf16.msra.mxu0 0
    %8278 = vmatprep.subr.bf16.mxu0 0
    %8279 = vmatpush1.bf16.msra.mxu0 0
    %8280 = vmatprep.subr.bf16.mxu0 0
    %8281 = vmatpush1.bf16.msra.mxu0 0
    %8282 = vmatprep.subr.bf16.mxu0 0
    %8283 = vmatpush1.bf16.msra.mxu0 0
    %8284 = vmatprep.subr.bf16.mxu0 0
    %8285 = vmatpush1.bf16.msra.mxu0 0
    %8286 = vmatprep.subr.bf16.mxu0 0
    %8287 = vmatpush1.bf16.msra.mxu0 0
    %8288 = vmatprep.mubr.bf16.mxu0 0
    %8289 = vmatmul.mubr.bf16.gmra.mrb[0].mxu0 %v8190
    %v8290 = vpop.f32.mrb[0].mxu0
    %v8291 = vadd.f32 0.0, %v8290
    %v8292 = vpop.f32.mrb[0].mxu0
    %v8293 = vpop.f32.mrb[0].mxu0
    %v8294 = vpop.f32.mrb[0].mxu0
    %8295 = vdwg.mxu0
    %v8312 = vunpack.c.l.b16 %v8129
    %v8313 = vunpack.c.l.b16 %v8130
    %v8314 = vunpack.c.l.b16 %v8131
    %v8315 = vunpack.c.l.b16 %v8132
    %v8316 = vunpack.c.l.b16 %v8133
    %v8317 = vunpack.c.l.b16 %v8134
    %v8318 = vunpack.c.l.b16 %v8135
    %v8319 = vunpack.c.l.b16 %v8136
    %v8320 = vunpack.c.l.b16 %v8137
    %v8321 = vunpack.c.l.b16 %v8138
    %v8322 = vunpack.c.l.b16 %v8139
    %v8323 = vunpack.c.l.b16 %v8140
    %v8324 = vunpack.c.l.b16 %v8141
    %v8325 = vunpack.c.l.b16 %v8142
    %v8326 = vunpack.c.l.b16 %v8143
    %v8327 = vunpack.c.l.b16 %v8144
    %v8328 = vpack.c.b16 %v8313, %v8312
    %v8329 = vpack.c.b16 %v8315, %v8314
    %v8330 = vpack.c.b16 %v8317, %v8316
    %v8331 = vpack.c.b16 %v8319, %v8318
    %v8332 = vpack.c.b16 %v8321, %v8320
    %v8333 = vpack.c.b16 %v8323, %v8322
    %v8334 = vpack.c.b16 %v8325, %v8324
    %v8335 = vpack.c.b16 %v8327, %v8326
    %8344 = vmatprep.subr.bf16.mxu0 0
    %8345 = vmatpush1.bf16.msra.mxu0 %v8328
    %8346 = vmatprep.subr.bf16.mxu0 0
    %8347 = vmatpush1.bf16.msra.mxu0 %v8329
    %8348 = vmatprep.subr.bf16.mxu0 0
    %8349 = vmatpush1.bf16.msra.mxu0 %v8330
    %8350 = vmatprep.subr.bf16.mxu0 0
    %8351 = vmatpush1.bf16.msra.mxu0 %v8331
    %8352 = vmatprep.subr.bf16.mxu0 0
    %8353 = vmatpush1.bf16.msra.mxu0 %v8332
    %8354 = vmatprep.subr.bf16.mxu0 0
    %8355 = vmatpush1.bf16.msra.mxu0 %v8333
    %8356 = vmatprep.subr.bf16.mxu0 0
    %8357 = vmatpush1.bf16.msra.mxu0 %v8334
    %8358 = vmatprep.subr.bf16.mxu0 0
    %8359 = vmatpush1.bf16.msra.mxu0 %v8335
    %8360 = vmatprep.subr.bf16.mxu0 0
    %8361 = vmatpush1.bf16.msra.mxu0 0
    %8362 = vmatprep.subr.bf16.mxu0 0
    %8363 = vmatpush1.bf16.msra.mxu0 0
    %8364 = vmatprep.subr.bf16.mxu0 0
    %8365 = vmatpush1.bf16.msra.mxu0 0
    %8366 = vmatprep.subr.bf16.mxu0 0
    %8367 = vmatpush1.bf16.msra.mxu0 0
    %8368 = vmatprep.subr.bf16.mxu0 0
    %8369 = vmatpush1.bf16.msra.mxu0 0
    %8370 = vmatprep.subr.bf16.mxu0 0
    %8371 = vmatpush1.bf16.msra.mxu0 0
    %8372 = vmatprep.subr.bf16.mxu0 0
    %8373 = vmatpush1.bf16.msra.mxu0 0
    %8374 = vmatprep.subr.bf16.mxu0 0
    %8375 = vmatpush1.bf16.msra.mxu0 0
    %8376 = vmatprep.mubr.bf16.mxu0 0
    %8377 = vmatmul.mubr.bf16.gmra.mrb[0].mxu0 %v8128
    %v8378 = vpop.f32.mrb[0].mxu0
    %v8379 = vadd.f32 %v8291, %v8378
    %v8380 = vpop.f32.mrb[0].mxu0
    %v8381 = vpop.f32.mrb[0].mxu0
    %v8382 = vpop.f32.mrb[0].mxu0
    %8383 = vdwg.mxu0
    %s8384 = scalar_lea.vmem %s12, 2
    %v8385 = vld [vmem:[%s8384] sm:$0x1]
    %v8387 = vsel %vm8081, %v8385, 0
    %8389 = vmatprep.subr.bf16.mxu0 0
    %8390 = vmatpush1.bf16.msra.mxu0 %v8086
    %8391 = vmatprep.subr.bf16.mxu0 0
    %8392 = vmatpush1.bf16.msra.mxu0 0
    %8393 = vmatprep.subr.bf16.mxu0 0
    %8394 = vmatpush1.bf16.msra.mxu0 0
    %8395 = vmatprep.subr.bf16.mxu0 0
    %8396 = vmatpush1.bf16.msra.mxu0 0
    %8397 = vmatprep.subr.bf16.mxu0 0
    %8398 = vmatpush1.bf16.msra.mxu0 0
    %8399 = vmatprep.subr.bf16.mxu0 0
    %8400 = vmatpush1.bf16.msra.mxu0 0
    %8401 = vmatprep.subr.bf16.mxu0 0
    %8402 = vmatpush1.bf16.msra.mxu0 0
    %8403 = vmatprep.subr.bf16.mxu0 0
    %8404 = vmatpush1.bf16.msra.mxu0 0
    %8405 = vmatprep.subr.bf16.mxu0 0
    %8406 = vmatpush1.bf16.msra.mxu0 0
    %8407 = vmatprep.subr.bf16.mxu0 0
    %8408 = vmatpush1.bf16.msra.mxu0 0
    %8409 = vmatprep.subr.bf16.mxu0 0
    %8410 = vmatpush1.bf16.msra.mxu0 0
    %8411 = vmatprep.subr.bf16.mxu0 0
    %8412 = vmatpush1.bf16.msra.mxu0 0
    %8413 = vmatprep.subr.bf16.mxu0 0
    %8414 = vmatpush1.bf16.msra.mxu0 0
    %8415 = vmatprep.subr.bf16.mxu0 0
    %8416 = vmatpush1.bf16.msra.mxu0 0
    %8417 = vmatprep.subr.bf16.mxu0 0
    %8418 = vmatpush1.bf16.msra.mxu0 0
    %8419 = vmatprep.subr.bf16.mxu0 0
    %8420 = vmatpush1.bf16.msra.mxu0 0
    %8421 = vmatprep.mubr.bf16.mxu0 0
    %8422 = vmatmul.mubr.bf16.gmra.mrb[0].mxu0 %v8387
    %v8423 = vpop.f32.mrb[0].mxu0
    %v8424 = vadd.f32 0.0, %v8423
    %v8425 = vpop.f32.mrb[0].mxu0
    %v8426 = vpop.f32.mrb[0].mxu0
    %v8427 = vpop.f32.mrb[0].mxu0
    %8428 = vdwg.mxu0
    %v8429 = vpack.c.bf16 %v8424, %v8424
    %s8430 = scalar_lea.vmem %s13, 128
    %v8431 = vld [vmem:[%s8430] sm:$0xf]
    %v8432 = vld [vmem:[%s8430 + $0x4] sm:$0xf]
    %v8433 = vld [vmem:[%s8430 + $0x8] sm:$0xf]
    %v8434 = vld [vmem:[%s8430 + $0xc] sm:$0xf]
    %v8435 = vld [vmem:[%s8430 + $0x10] sm:$0xf]
    %v8436 = vld [vmem:[%s8430 + $0x14] sm:$0xf]
    %v8437 = vld [vmem:[%s8430 + $0x18] sm:$0xf]
    %v8438 = vld [vmem:[%s8430 + $0x1c] sm:$0xf]
    %v8439 = vld [vmem:[%s8430 + $0x20] sm:$0xf]
    %v8440 = vld [vmem:[%s8430 + $0x24] sm:$0xf]
    %v8441 = vld [vmem:[%s8430 + $0x28] sm:$0xf]
    %v8442 = vld [vmem:[%s8430 + $0x2c] sm:$0xf]
    %v8443 = vld [vmem:[%s8430 + $0x30] sm:$0xf]
    %v8444 = vld [vmem:[%s8430 + $0x34] sm:$0xf]
    %v8445 = vld [vmem:[%s8430 + $0x38] sm:$0xf]
    %v8446 = vld [vmem:[%s8430 + $0x3c] sm:$0xf]
    %v8463 = vunpack.c.l.b16 %v8431
    %v8464 = vunpack.c.l.b16 %v8432
    %v8465 = vunpack.c.l.b16 %v8433
    %v8466 = vunpack.c.l.b16 %v8434
    %v8467 = vunpack.c.l.b16 %v8435
    %v8468 = vunpack.c.l.b16 %v8436
    %v8469 = vunpack.c.l.b16 %v8437
    %v8470 = vunpack.c.l.b16 %v8438
    %v8471 = vunpack.c.l.b16 %v8439
    %v8472 = vunpack.c.l.b16 %v8440
    %v8473 = vunpack.c.l.b16 %v8441
    %v8474 = vunpack.c.l.b16 %v8442
    %v8475 = vunpack.c.l.b16 %v8443
    %v8476 = vunpack.c.l.b16 %v8444
    %v8477 = vunpack.c.l.b16 %v8445
    %v8478 = vunpack.c.l.b16 %v8446
    %v8479 = vpack.c.b16 %v8464, %v8463
    %v8480 = vpack.c.b16 %v8466, %v8465
    %v8481 = vpack.c.b16 %v8468, %v8467
    %v8482 = vpack.c.b16 %v8470, %v8469
    %v8483 = vpack.c.b16 %v8472, %v8471
    %v8484 = vpack.c.b16 %v8474, %v8473
    %v8485 = vpack.c.b16 %v8476, %v8475
    %v8486 = vpack.c.b16 %v8478, %v8477
    %8495 = vmatprep.subr.bf16.mxu0 0
    %8496 = vmatpush1.bf16.msra.mxu0 %v8479
    %8497 = vmatprep.subr.bf16.mxu0 0
    %8498 = vmatpush1.bf16.msra.mxu0 %v8480
    %8499 = vmatprep.subr.bf16.mxu0 0
    %8500 = vmatpush1.bf16.msra.mxu0 %v8481
    %8501 = vmatprep.subr.bf16.mxu0 0
    %8502 = vmatpush1.bf16.msra.mxu0 %v8482
    %8503 = vmatprep.subr.bf16.mxu0 0
    %8504 = vmatpush1.bf16.msra.mxu0 %v8483
    %8505 = vmatprep.subr.bf16.mxu0 0
    %8506 = vmatpush1.bf16.msra.mxu0 %v8484
    %8507 = vmatprep.subr.bf16.mxu0 0
    %8508 = vmatpush1.bf16.msra.mxu0 %v8485
    %8509 = vmatprep.subr.bf16.mxu0 0
    %8510 = vmatpush1.bf16.msra.mxu0 %v8486
    %8511 = vmatprep.subr.bf16.mxu0 0
    %8512 = vmatpush1.bf16.msra.mxu0 0
    %8513 = vmatprep.subr.bf16.mxu0 0
    %8514 = vmatpush1.bf16.msra.mxu0 0
    %8515 = vmatprep.subr.bf16.mxu0 0
    %8516 = vmatpush1.bf16.msra.mxu0 0
    %8517 = vmatprep.subr.bf16.mxu0 0
    %8518 = vmatpush1.bf16.msra.mxu0 0
    %8519 = vmatprep.subr.bf16.mxu0 0
    %8520 = vmatpush1.bf16.msra.mxu0 0
    %8521 = vmatprep.subr.bf16.mxu0 0
    %8522 = vmatpush1.bf16.msra.mxu0 0
    %8523 = vmatprep.subr.bf16.mxu0 0
    %8524 = vmatpush1.bf16.msra.mxu0 0
    %8525 = vmatprep.subr.bf16.mxu0 0
    %8526 = vmatpush1.bf16.msra.mxu0 0
    %8527 = vmatprep.mubr.bf16.mxu0 0
    %8528 = vmatmul.mubr.bf16.gmra.mrb[0].mxu0 %v8429
    %v8529 = vpop.f32.mrb[0].mxu0
    %v8530 = vadd.f32 0.0, %v8529
    %v8531 = vpop.f32.mrb[0].mxu0
    %v8532 = vpop.f32.mrb[0].mxu0
    %v8533 = vpop.f32.mrb[0].mxu0
    %8534 = vdwg.mxu0
    %v8535 = vadd.f32 %v8379, %v8530
    %s8536 = scalar_lea.vmem %s12, 3
    %v8537 = vld [vmem:[%s8536] sm:$0x1]
    %v8539 = vsel %vm8081, %v8537, 0
    %8541 = vmatprep.subr.bf16.mxu0 0
    %8542 = vmatpush1.bf16.msra.mxu0 %v8086
    %8543 = vmatprep.subr.bf16.mxu0 0
    %8544 = vmatpush1.bf16.msra.mxu0 0
    %8545 = vmatprep.subr.bf16.mxu0 0
    %8546 = vmatpush1.bf16.msra.mxu0 0
    %8547 = vmatprep.subr.bf16.mxu0 0
    %8548 = vmatpush1.bf16.msra.mxu0 0
    %8549 = vmatprep.subr.bf16.mxu0 0
    %8550 = vmatpush1.bf16.msra.mxu0 0
    %8551 = vmatprep.subr.bf16.mxu0 0
    %8552 = vmatpush1.bf16.msra.mxu0 0
    %8553 = vmatprep.subr.bf16.mxu0 0
    %8554 = vmatpush1.bf16.msra.mxu0 0
    %8555 = vmatprep.subr.bf16.mxu0 0
    %8556 = vmatpush1.bf16.msra.mxu0 0
    %8557 = vmatprep.subr.bf16.mxu0 0
    %8558 = vmatpush1.bf16.msra.mxu0 0
    %8559 = vmatprep.subr.bf16.mxu0 0
    %8560 = vmatpush1.bf16.msra.mxu0 0
    %8561 = vmatprep.subr.bf16.mxu0 0
    %8562 = vmatpush1.bf16.msra.mxu0 0
    %8563 = vmatprep.subr.bf16.mxu0 0
    %8564 = vmatpush1.bf16.msra.mxu0 0
    %8565 = vmatprep.subr.bf16.mxu0 0
    %8566 = vmatpush1.bf16.msra.mxu0 0
    %8567 = vmatprep.subr.bf16.mxu0 0
    %8568 = vmatpush1.bf16.msra.mxu0 0
    %8569 = vmatprep.subr.bf16.mxu0 0
    %8570 = vmatpush1.bf16.msra.mxu0 0
    %8571 = vmatprep.subr.bf16.mxu0 0
    %8572 = vmatpush1.bf16.msra.mxu0 0
    %8573 = vmatprep.mubr.bf16.mxu0 0
    %8574 = vmatmul.mubr.bf16.gmra.mrb[0].mxu0 %v8539
    %v8575 = vpop.f32.mrb[0].mxu0
    %v8576 = vadd.f32 0.0, %v8575
    %v8577 = vpop.f32.mrb[0].mxu0
    %v8578 = vpop.f32.mrb[0].mxu0
    %v8579 = vpop.f32.mrb[0].mxu0
    %8580 = vdwg.mxu0
    %v8581 = vpack.c.bf16 %v8576, %v8576
    %s8582 = scalar_lea.vmem %s13, 192
    %v8583 = vld [vmem:[%s8582] sm:$0xf]
    %v8584 = vld [vmem:[%s8582 + $0x4] sm:$0xf]
    %v8585 = vld [vmem:[%s8582 + $0x8] sm:$0xf]
    %v8586 = vld [vmem:[%s8582 + $0xc] sm:$0xf]
    %v8587 = vld [vmem:[%s8582 + $0x10] sm:$0xf]
    %v8588 = vld [vmem:[%s8582 + $0x14] sm:$0xf]
    %v8589 = vld [vmem:[%s8582 + $0x18] sm:$0xf]
    %v8590 = vld [vmem:[%s8582 + $0x1c] sm:$0xf]
    %v8591 = vld [vmem:[%s8582 + $0x20] sm:$0xf]
    %v8592 = vld [vmem:[%s8582 + $0x24] sm:$0xf]
    %v8593 = vld [vmem:[%s8582 + $0x28] sm:$0xf]
    %v8594 = vld [vmem:[%s8582 + $0x2c] sm:$0xf]
    %v8595 = vld [vmem:[%s8582 + $0x30] sm:$0xf]
    %v8596 = vld [vmem:[%s8582 + $0x34] sm:$0xf]
    %v8597 = vld [vmem:[%s8582 + $0x38] sm:$0xf]
    %v8598 = vld [vmem:[%s8582 + $0x3c] sm:$0xf]
    %v8615 = vunpack.c.l.b16 %v8583
    %v8616 = vunpack.c.l.b16 %v8584
    %v8617 = vunpack.c.l.b16 %v8585
    %v8618 = vunpack.c.l.b16 %v8586
    %v8619 = vunpack.c.l.b16 %v8587
    %v8620 = vunpack.c.l.b16 %v8588
    %v8621 = vunpack.c.l.b16 %v8589
    %v8622 = vunpack.c.l.b16 %v8590
    %v8623 = vunpack.c.l.b16 %v8591
    %v8624 = vunpack.c.l.b16 %v8592
    %v8625 = vunpack.c.l.b16 %v8593
    %v8626 = vunpack.c.l.b16 %v8594
    %v8627 = vunpack.c.l.b16 %v8595
    %v8628 = vunpack.c.l.b16 %v8596
    %v8629 = vunpack.c.l.b16 %v8597
    %v8630 = vunpack.c.l.b16 %v8598
    %v8631 = vpack.c.b16 %v8616, %v8615
    %v8632 = vpack.c.b16 %v8618, %v8617
    %v8633 = vpack.c.b16 %v8620, %v8619
    %v8634 = vpack.c.b16 %v8622, %v8621
    %v8635 = vpack.c.b16 %v8624, %v8623
    %v8636 = vpack.c.b16 %v8626, %v8625
    %v8637 = vpack.c.b16 %v8628, %v8627
    %v8638 = vpack.c.b16 %v8630, %v8629
    %8647 = vmatprep.subr.bf16.mxu0 0
    %8648 = vmatpush1.bf16.msra.mxu0 %v8631
    %8649 = vmatprep.subr.bf16.mxu0 0
    %8650 = vmatpush1.bf16.msra.mxu0 %v8632
    %8651 = vmatprep.subr.bf16.mxu0 0
    %8652 = vmatpush1.bf16.msra.mxu0 %v8633
    %8653 = vmatprep.subr.bf16.mxu0 0
    %8654 = vmatpush1.bf16.msra.mxu0 %v8634
    %8655 = vmatprep.subr.bf16.mxu0 0
    %8656 = vmatpush1.bf16.msra.mxu0 %v8635
    %8657 = vmatprep.subr.bf16.mxu0 0
    %8658 = vmatpush1.bf16.msra.mxu0 %v8636
    %8659 = vmatprep.subr.bf16.mxu0 0
    %8660 = vmatpush1.bf16.msra.mxu0 %v8637
    %8661 = vmatprep.subr.bf16.mxu0 0
    %8662 = vmatpush1.bf16.msra.mxu0 %v8638
    %8663 = vmatprep.subr.bf16.mxu0 0
    %8664 = vmatpush1.bf16.msra.mxu0 0
    %8665 = vmatprep.subr.bf16.mxu0 0
    %8666 = vmatpush1.bf16.msra.mxu0 0
    %8667 = vmatprep.subr.bf16.mxu0 0
    %8668 = vmatpush1.bf16.msra.mxu0 0
    %8669 = vmatprep.subr.bf16.mxu0 0
    %8670 = vmatpush1.bf16.msra.mxu0 0
    %8671 = vmatprep.subr.bf16.mxu0 0
    %8672 = vmatpush1.bf16.msra.mxu0 0
    %8673 = vmatprep.subr.bf16.mxu0 0
    %8674 = vmatpush1.bf16.msra.mxu0 0
    %8675 = vmatprep.subr.bf16.mxu0 0
    %8676 = vmatpush1.bf16.msra.mxu0 0
    %8677 = vmatprep.subr.bf16.mxu0 0
    %8678 = vmatpush1.bf16.msra.mxu0 0
    %8679 = vmatprep.mubr.bf16.mxu0 0
    %8680 = vmatmul.mubr.bf16.gmra.mrb[0].mxu0 %v8581
    %v8681 = vpop.f32.mrb[0].mxu0
    %v8682 = vadd.f32 0.0, %v8681
    %v8683 = vpop.f32.mrb[0].mxu0
    %v8684 = vpop.f32.mrb[0].mxu0
    %v8685 = vpop.f32.mrb[0].mxu0
    %8686 = vdwg.mxu0
    %v8687 = vadd.f32 %v8535, %v8682
    %v8688 = vld [vmem:[%s14] sm:$0x1]
    %v8690 = vlaneseq
    %v8691 = vshrl.u32 %v8690, 7
    %v8692 = vsub.s32 0, %v8691
    %v8693 = vrot.slane %v8688, %v8692
    %v8695 = vadd.f32 %v8687, %v8693
    %vm8696 = vcmask 74752
    %8697 = vst.msk [vmem:[#allocation2] sm:$0x3] %vm8696, %v8695
    // Predicated region
    $region62: #{cnn_forward.1} parent=1 // pred_check
      _
    $region63: #{cnn_forward.1} parent=1 // pred_check_branch
      %8699 = sbr.rel (0) target = $region65
    $region64: #{cnn_forward.1} parent=1 // pred_region
      %s8701 = ssub.s32 32, 32
      %8702 = vsyncadd [#allocation3], %s8701
      %s8704 = sshll.u32 [#allocation2], 4
      %s8705 = int_to_ptr.vmem [resolvable:$true] %s8704
      %8707 = dma.vmem_to_hbm [thread:$0]  %s8705, 32, %s15, [#allocation3]
    $region65: #{cnn_forward.1} parent=1 // pred_fallthru
      _
    // Predicated region
    $region66: #{cnn_forward.1} parent=1 // pred_check
      _
    $region67: #{cnn_forward.1} parent=1 // pred_check_branch
      %8709 = sbr.rel (0) target = $region69
    $region68: #{cnn_forward.1} parent=1 // pred_region
      %8710 = dma.done [#allocation3], 32
    $region69: #{cnn_forward.1} parent=1 // pred_fallthru
      _
    %8711 = vsyncpa [#allocation3], 1

</llo_original>
